<compile_context>
chip_gen: v5e
topology: v5e:2x2
jax: 0.10.0
libtpu: 0.0.40
codegen_flags: <defaults>
</compile_context>

<pallas_src>
import functools

import jax
import jax.numpy as jnp
import numpy as np
from jax.experimental import pallas as pl
from jax.experimental.pallas import tpu as pltpu

EPS = 1e-3


def _round_up(n, m):
    return ((n + m - 1) // m) * m


# ------------------------------ fused kernel --------------------------------

def _inception_kernel(x_ref, wmask_ref, w1_ref, b1_ref, w2_ref, b2_ref,
                      w3_ref, b3_ref, w4_ref, b4_ref, o_ref,
                      pool_pad_ref, r2_pad_ref, r3_pad_ref, *,
                      H, W, PAD, seg1, seg2, seg3, out_off, mm_dtype):
    """seg1/seg2/seg3: lane-padded widths of [branch1 | 3x3-reduce | 5x5-reduce]
    inside the fused 1x1 output.  out_off: lane offsets of the four branch
    outputs inside o_ref (all multiples of 128)."""
    HW = H * W
    neg_inf = float("-inf")

    # ---- refresh only the +-PAD border regions of the flat scratches -------
    # (body rows are overwritten every step; borders are tiny: PAD rows each.)
    for ref, fill in ((pool_pad_ref, neg_inf), (r2_pad_ref, 0.0), (r3_pad_ref, 0.0)):
        ref[0:PAD, :] = jnp.full((PAD, ref.shape[1]), fill, ref.dtype)
        ref[PAD + HW:PAD + HW + PAD, :] = jnp.full((PAD, ref.shape[1]), fill, ref.dtype)

    x2d = x_ref[0]                         # (HW, Cin), channels on lanes
    wm = wmask_ref[...]                    # (HW, 2) {0,1} in mm_dtype
    ml = wm[:, 0:1]                        # output column w-1 exists (tap dw=-1)
    mr = wm[:, 1:2]                        # output column w+1 exists (tap dw=+1)
    ml_b = ml > 0
    mr_b = mr > 0

    # ---- fused 1x1 convs: branch1 + branch2-reduce + branch3-reduce --------
    # (BN already folded into the weights; epilogue = bias + ReLU in f32.)
    y1 = jnp.dot(x2d, w1_ref[...], preferred_element_type=jnp.float32)
    y1 = jnp.maximum(y1 + b1_ref[...], 0.0)

    br1 = y1[:, :seg1]                                       # 128-aligned slice
    r2 = y1[:, seg1:seg1 + seg2].astype(mm_dtype)
    r3 = y1[:, seg1 + seg2:seg1 + seg2 + seg3].astype(mm_dtype)

    o0, o1, o2, o3 = out_off
    o_ref[0, :, o0:o0 + br1.shape[1]] = br1.astype(o_ref.dtype)

    def window(pad_ref, s):
        # pad_ref[PAD + i] == src[i]; window(s)[m] == src[m + s] with the
        # fill value wherever the shift runs off the top/bottom of the image.
        return pad_ref[PAD + s:PAD + s + HW, :]

    # ---- 3x3 convs: 9 accumulated MXU dots on shifted windows --------------
    def conv3x3(pad_ref, src, w_ref, b_ref):
        pad_ref[PAD:PAD + HW, :] = src     # sublane-aligned (PAD % 8 == 0)
        acc = None
        t = 0
        for dh in (-1, 0, 1):
            for dw in (-1, 0, 1):
                win = window(pad_ref, dh * W + dw)
                if dw < 0:
                    win = win * ml         # kill W-border wrap-around
                elif dw > 0:
                    win = win * mr
                p = jnp.dot(win, w_ref[t], preferred_element_type=jnp.float32)
                acc = p if acc is None else acc + p
                t += 1
        return jnp.maximum(acc + b_ref[...], 0.0)

    br2 = conv3x3(r2_pad_ref, r2, w2_ref, b2_ref)            # (HW, ch3x3_p)
    o_ref[0, :, o1:o1 + br2.shape[1]] = br2.astype(o_ref.dtype)

    br3 = conv3x3(r3_pad_ref, r3, w3_ref, b3_ref)            # (HW, ch5x5_p)
    o_ref[0, :, o2:o2 + br3.shape[1]] = br3.astype(o_ref.dtype)

    # ---- branch4: 3x3/s1 SAME max pool (9 reads, no writeback) + 1x1 proj --
    pool_pad_ref[PAD:PAD + HW, :] = x2d
    cmax = jnp.maximum(jnp.maximum(window(pool_pad_ref, -W),
                                   window(pool_pad_ref, 0)),
                       window(pool_pad_ref, W))
    lmax = jnp.maximum(jnp.maximum(window(pool_pad_ref, -W - 1),
                                   window(pool_pad_ref, -1)),
                       window(pool_pad_ref, W - 1))
    rmax = jnp.maximum(jnp.maximum(window(pool_pad_ref, -W + 1),
                                   window(pool_pad_ref, 1)),
                       window(pool_pad_ref, W + 1))
    pooled = jnp.maximum(cmax, jnp.where(ml_b, lmax, neg_inf))
    pooled = jnp.maximum(pooled, jnp.where(mr_b, rmax, neg_inf))

    y4 = jnp.dot(pooled, w4_ref[...], preferred_element_type=jnp.float32)
    br4 = jnp.maximum(y4 + b4_ref[...], 0.0)
    o_ref[0, :, o3:o3 + br4.shape[1]] = br4.astype(o_ref.dtype)


# --------------------------------- wrapper ----------------------------------

def inception_forward(x_nchw, fparams, *, channels):
    """x_nchw: (N, Cin, H, W) f32.  fparams: output of prepare_inception_params.
    channels: static tuple (ch1x1, ch3x3, ch5x5, pool_proj) of real widths."""
    w1, b1 = fparams["w1"], fparams["b1"]
    w2, b2 = fparams["w2"], fparams["b2"]
    w3, b3 = fparams["w3"], fparams["b3"]
    w4, b4 = fparams["w4"], fparams["b4"]

    N, Cin, H, W = x_nchw.shape
    HW = H * W
    mm_dtype = w1.dtype

    # Lane-padded segment widths, all inferable from the (static) shapes.
    r2p, r3p = w2.shape[1], w3.shape[1]
    o1p = w1.shape[1] - r2p - r3p
    o2p, o3p, o4p = w2.shape[2], w3.shape[2], w4.shape[1]
    ctot_p = o1p + o2p + o3p + o4p
    out_off = (0, o1p, o1p + o2p, o1p + o2p + o3p)

    PAD = _round_up(W + 1, 8)              # sublane-aligned flat padding
    flat_pad = HW + 2 * PAD

    # NCHW -> flattened NHWC (channels on lanes); one boundary transpose.
    x = jnp.transpose(x_nchw, (0, 2, 3, 1)).reshape(N, HW, Cin).astype(mm_dtype)

    # Static W-border validity masks for the dw=-1 / dw=+1 taps, as {0,1}
    # mm_dtype (applied with a broadcast multiply; no int32 input).
    col = np.tile(np.arange(W), H)
    wmask = jnp.asarray(np.stack([(col >= 1), (col <= W - 2)], axis=1),
                        dtype=mm_dtype)

    kernel = functools.partial(
        _inception_kernel, H=H, W=W, PAD=PAD,
        seg1=o1p, seg2=r2p, seg3=r3p, out_off=out_off, mm_dtype=mm_dtype)

    # Rough scoped-VMEM budget: double-buffered x/out blocks + resident
    # weights + 3 pad scratches, with 2x headroom; never below the 32 MiB
    # default, never above ~100 MiB.
    isz = jnp.dtype(mm_dtype).itemsize
    est = (2 * HW * Cin * isz + 2 * HW * ctot_p * 4
           + (w1.size + w2.size + w3.size + w4.size) * isz
           + flat_pad * (Cin + r2p + r3p) * isz)
    vmem_limit = int(min(max(32 * 1024 * 1024, 2 * est), 100 * 1024 * 1024))

    # TODO(synk): add row-block grid tiling with a 1-row halo for production
    # spatial sizes / tiny batches (see header comment).
    out_flat = pl.pallas_call(
        kernel,
        out_shape=jax.ShapeDtypeStruct((N, HW, ctot_p), jnp.float32),
        grid=(N,),
        in_specs=[
            pl.BlockSpec((1, HW, Cin), lambda n: (n, 0, 0)),
            pl.BlockSpec((HW, 2), lambda n: (0, 0)),
            pl.BlockSpec(w1.shape, lambda n: (0, 0)),
            pl.BlockSpec(b1.shape, lambda n: (0, 0)),
            pl.BlockSpec(w2.shape, lambda n: (0, 0, 0)),
            pl.BlockSpec(b2.shape, lambda n: (0, 0)),
            pl.BlockSpec(w3.shape, lambda n: (0, 0, 0)),
            pl.BlockSpec(b3.shape, lambda n: (0, 0)),
            pl.BlockSpec(w4.shape, lambda n: (0, 0)),
            pl.BlockSpec(b4.shape, lambda n: (0, 0)),
        ],
        out_specs=pl.BlockSpec((1, HW, ctot_p), lambda n: (n, 0, 0)),
        scratch_shapes=[
            pltpu.VMEM((flat_pad, Cin), mm_dtype),   # pool pad buffer (-inf borders)
            pltpu.VMEM((flat_pad, r2p), mm_dtype),   # branch2-reduce pad buffer
            pltpu.VMEM((flat_pad, r3p), mm_dtype),   # branch3-reduce pad buffer
        ],
        compiler_params=pltpu.CompilerParams(
            dimension_semantics=("parallel",),
            vmem_limit_bytes=vmem_limit),
    )(x, wmask, w1, b1, w2, b2, w3, b3, w4, b4)

    # Slice the real channels back out of the lane-padded segments and
    # assemble the torch.cat(dim=1) layout.
    out = out_flat.reshape(N, H, W, ctot_p)
    ch1x1, ch3x3, ch5x5, pool_proj = channels
    o0, o1, o2, o3 = out_off
    out = jnp.concatenate([
        out[..., o0:o0 + ch1x1],
        out[..., o1:o1 + ch3x3],
        out[..., o2:o2 + ch5x5],
        out[..., o3:o3 + pool_proj],
    ], axis=-1)
    return jnp.transpose(out, (0, 3, 1, 2))            # NHWC -> NCHW


# --------------------------- parameter helpers -------------------------------

def init_basic_conv(key, in_ch, out_ch, ksize):
    """Random BasicConv2d params: conv weight (bias=False) + BN statistics."""
    kw, kg, kb, km, kv = jax.random.split(key, 5)
    if ksize == 1:
        w = 0.1 * jax.random.normal(kw, (in_ch, out_ch), jnp.float32)
    else:  # HWIO
        w = 0.1 * jax.random.normal(kw, (ksize, ksize, in_ch, out_ch), jnp.float32)
    return {
        "w": w,
        "gamma": 1.0 + 0.1 * jax.random.normal(kg, (out_ch,), jnp.float32),
        "beta": 0.1 * jax.random.normal(kb, (out_ch,), jnp.float32),
        "mean": 0.1 * jax.random.normal(km, (out_ch,), jnp.float32),
        "var": 0.5 + jax.random.uniform(kv, (out_ch,), jnp.float32),
    }


def prepare_inception_params(params, matmul_dtype=jnp.bfloat16, lane_multiple=128):
    """Fold inference-mode BN (eps=1e-3) into the conv weights, zero-pad every
    channel segment to a multiple of `lane_multiple` (so all kernel-side slices
    and the concatenated output store are vreg-aligned and lane-dense), and
    pack for the fused kernel.  ReLU(BN(conv(x, w))) == ReLU(conv(x, w*s) + b)
    with s = gamma/sqrt(var+eps), b = beta - mean*s.  bf16 matmul dtype is the
    default (f32 accumulation is kept in-kernel); pass jnp.float32 for the
    bit-tight path."""
    def fold(p):
        s = p["gamma"] / jnp.sqrt(p["var"] + EPS)
        return p["w"] * s, p["beta"] - p["mean"] * s

    w_b1, bias_b1 = fold(params["b1"])      # (Cin, ch1x1)
    w_b2a, bias_b2a = fold(params["b2a"])   # (Cin, ch3x3red)
    w_b3a, bias_b3a = fold(params["b3a"])   # (Cin, ch5x5red)
    w_b2b, bias_b2b = fold(params["b2b"])   # (3, 3, ch3x3red, ch3x3)  HWIO
    w_b3b, bias_b3b = fold(params["b3b"])   # (3, 3, ch5x5red, ch5x5)  HWIO
    w_b4, bias_b4 = fold(params["b4"])      # (Cin, pool_proj)

    ch1x1 = w_b1.shape[1]
    ch3x3red, ch3x3 = w_b2b.shape[2], w_b2b.shape[3]
    ch5x5red, ch5x5 = w_b3b.shape[2], w_b3b.shape[3]
    pool_proj = w_b4.shape[1]

    L = lane_multiple
    o1p, r2p, r3p = _round_up(ch1x1, L), _round_up(ch3x3red, L), _round_up(ch5x5red, L)
    o2p, o3p, o4p = _round_up(ch3x3, L), _round_up(ch5x5, L), _round_up(pool_proj, L)

    def pad_last(a, n):
        return jnp.pad(a, [(0, 0)] * (a.ndim - 1) + [(0, n - a.shape[-1])])

    # branch1 + branch2-reduce + branch3-reduce share one fused 1x1 matmul,
    # each output segment zero-padded to a 128-lane boundary.
    w1 = jnp.concatenate([pad_last(w_b1, o1p), pad_last(w_b2a, r2p),
                          pad_last(w_b3a, r3p)], axis=1)
    b1 = jnp.concatenate([pad_last(bias_b1, o1p), pad_last(bias_b2a, r2p),
                          pad_last(bias_b3a, r3p)])

    # 3x3 convs packed as (9, Cred_p, Cout_p) for 9 accumulated MXU dots.
    def pack3x3(w, b, rp, op):
        w = pad_last(w, op)
        w = jnp.pad(w, [(0, 0), (0, 0), (0, rp - w.shape[2]), (0, 0)])
        return w.reshape(9, rp, op), pad_last(b, op)

    w2, b2 = pack3x3(w_b2b, bias_b2b, r2p, o2p)
    w3, b3 = pack3x3(w_b3b, bias_b3b, r3p, o3p)

    w4 = pad_last(w_b4, o4p)
    b4 = pad_last(bias_b4, o4p)

    return {
        "w1": w1.astype(matmul_dtype), "b1": b1[None, :].astype(jnp.float32),
        "w2": w2.astype(matmul_dtype), "b2": b2[None, :].astype(jnp.float32),
        "w3": w3.astype(matmul_dtype), "b3": b3[None, :].astype(jnp.float32),
        "w4": w4.astype(matmul_dtype), "b4": b4[None, :].astype(jnp.float32),
    }


# ------------------------------ JAX reference --------------------------------

def _ref_basic_conv(x_nhwc, p):
    w = p["w"]
    if w.ndim == 2:
        y = jnp.einsum("nhwc,co->nhwo", x_nhwc, w)
    else:
        y = jax.lax.conv_general_dilated(
            x_nhwc, w, (1, 1), "SAME",
            dimension_numbers=("NHWC", "HWIO", "NHWC"))
    s = p["gamma"] / jnp.sqrt(p["var"] + EPS)
    b = p["beta"] - p["mean"] * s
    return jnp.maximum(y * s + b, 0.0)


def reference_forward(x_nchw, params):
    x = jnp.transpose(x_nchw, (0, 2, 3, 1))
    b1 = _ref_basic_conv(x, params["b1"])
    b2 = _ref_basic_conv(_ref_basic_conv(x, params["b2a"]), params["b2b"])
    b3 = _ref_basic_conv(_ref_basic_conv(x, params["b3a"]), params["b3b"])
    pooled = jax.lax.reduce_window(x, -jnp.inf, jax.lax.max,
                                   (1, 3, 3, 1), (1, 1, 1, 1), "SAME")
    b4 = _ref_basic_conv(pooled, params["b4"])
    out = jnp.concatenate([b1, b2, b3, b4], axis=-1)
    return jnp.transpose(out, (0, 3, 1, 2))


# ----------------------------------- main ------------------------------------

if __name__ == "__main__":
    key = jax.random.PRNGKey(0)
    N, Cin, H, W = 2, 4, 16, 16
    ch1x1, ch3x3red, ch3x3, ch5x5red, ch5x5, pool_proj = 8, 4, 8, 4, 8, 8
    channels = (ch1x1, ch3x3, ch5x5, pool_proj)

    keys = jax.random.split(key, 7)
    x = jax.random.normal(keys[0], (N, Cin, H, W), jnp.float32)

    params = {
        "b1":  init_basic_conv(keys[1], Cin, ch1x1, 1),
        "b2a": init_basic_conv(keys[2], Cin, ch3x3red, 1),
        "b2b": init_basic_conv(keys[3], ch3x3red, ch3x3, 3),
        "b3a": init_basic_conv(keys[4], Cin, ch5x5red, 1),
        "b3b": init_basic_conv(keys[5], ch5x5red, ch5x5, 3),
        "b4":  init_basic_conv(keys[6], Cin, pool_proj, 1),
    }

    fwd = jax.jit(functools.partial(inception_forward, channels=channels))
    ref = reference_forward(x, params)

    # bf16 MXU path (default) — looser tolerance.
    fparams_bf16 = prepare_inception_params(params)               # bf16 default
    out_bf16 = jax.block_until_ready(fwd(x, fparams_bf16))
    assert out_bf16.shape == (N, ch1x1 + ch3x3 + ch5x5 + pool_proj, H, W)
    np.testing.assert_allclose(np.asarray(out_bf16), np.asarray(ref),
                               rtol=5e-2, atol=5e-2)

    # f32 path — tight tolerance against the reference.
    fparams_f32 = prepare_inception_params(params, matmul_dtype=jnp.float32)
    out_f32 = jax.block_until_ready(fwd(x, fparams_f32))
    assert out_f32.shape == (N, ch1x1 + ch3x3 + ch5x5 + pool_proj, H, W)
    np.testing.assert_allclose(np.asarray(out_f32), np.asarray(ref),
                               rtol=1e-3, atol=1e-3)

    print("KERNEL_OK")
</pallas_src>

<mosaic_0001>
module attributes {stable_mosaic.version = 11 : i64} {
  func.func @_inception_kernel(%arg0: i32, %arg1: memref<1x256x4xbf16, #tpu.memory_space<vmem>>, %arg2: memref<256x2xbf16, #tpu.memory_space<vmem>>, %arg3: memref<4x384xbf16, #tpu.memory_space<vmem>>, %arg4: memref<1x384xf32, #tpu.memory_space<vmem>>, %arg5: memref<9x128x128xbf16, #tpu.memory_space<vmem>>, %arg6: memref<1x128xf32, #tpu.memory_space<vmem>>, %arg7: memref<9x128x128xbf16, #tpu.memory_space<vmem>>, %arg8: memref<1x128xf32, #tpu.memory_space<vmem>>, %arg9: memref<4x128xbf16, #tpu.memory_space<vmem>>, %arg10: memref<1x128xf32, #tpu.memory_space<vmem>>, %arg11: memref<1x256x512xf32, #tpu.memory_space<vmem>>, %arg12: memref<304x4xbf16, #tpu.memory_space<vmem>>, %arg13: memref<304x128xbf16, #tpu.memory_space<vmem>>, %arg14: memref<304x128xbf16, #tpu.memory_space<vmem>>) attributes {dimension_semantics = [#tpu.dimension_semantics<parallel>], iteration_bounds = array<i64: 2>, scalar_prefetch = 0 : i64, scratch_operands = 3 : i64, tpu.core_type = #tpu.core_type<tc>, window_params = [{transform_indices = @transform_0, window_bounds = array<i64: 1, 256, 4>}, {pipeline_mode = #tpu.pipeline_mode<synchronous>, transform_indices = @transform_1, window_bounds = array<i64: 256, 2>}, {pipeline_mode = #tpu.pipeline_mode<synchronous>, transform_indices = @transform_2, window_bounds = array<i64: 4, 384>}, {pipeline_mode = #tpu.pipeline_mode<synchronous>, transform_indices = @transform_3, window_bounds = array<i64: 1, 384>}, {pipeline_mode = #tpu.pipeline_mode<synchronous>, transform_indices = @transform_4, window_bounds = array<i64: 9, 128, 128>}, {pipeline_mode = #tpu.pipeline_mode<synchronous>, transform_indices = @transform_5, window_bounds = array<i64: 1, 128>}, {pipeline_mode = #tpu.pipeline_mode<synchronous>, transform_indices = @transform_6, window_bounds = array<i64: 9, 128, 128>}, {pipeline_mode = #tpu.pipeline_mode<synchronous>, transform_indices = @transform_7, window_bounds = array<i64: 1, 128>}, {pipeline_mode = #tpu.pipeline_mode<synchronous>, transform_indices = @transform_8, window_bounds = array<i64: 4, 128>}, {pipeline_mode = #tpu.pipeline_mode<synchronous>, transform_indices = @transform_9, window_bounds = array<i64: 1, 128>}, {transform_indices = @transform_10, window_bounds = array<i64: 1, 256, 512>}]} {
    %cst = arith.constant 0xFF80 : bf16
    %0 = vector.broadcast %cst : bf16 to vector<24x4xbf16>
    %c0 = arith.constant 0 : index
    %c0_0 = arith.constant 0 : index
    %1 = vector.load %arg12[%c0, %c0_0] : memref<304x4xbf16, #tpu.memory_space<vmem>>, vector<24x4xbf16>
    tpu.vector_store %arg12[%c0, %c0_0], %0 {strides = array<i32>} : memref<304x4xbf16, #tpu.memory_space<vmem>>, vector<24x4xbf16>,
    %cst_1 = arith.constant 0xFF80 : bf16
    %2 = vector.broadcast %cst_1 : bf16 to vector<24x4xbf16>
    %c280 = arith.constant 280 : index
    %c0_2 = arith.constant 0 : index
    %3 = vector.load %arg12[%c280, %c0_2] : memref<304x4xbf16, #tpu.memory_space<vmem>>, vector<24x4xbf16>
    tpu.vector_store %arg12[%c280, %c0_2], %2 {strides = array<i32>} : memref<304x4xbf16, #tpu.memory_space<vmem>>, vector<24x4xbf16>,
    %cst_3 = arith.constant 0.000000e+00 : bf16
    %4 = vector.broadcast %cst_3 : bf16 to vector<24x128xbf16>
    %c0_4 = arith.constant 0 : index
    %c0_5 = arith.constant 0 : index
    %5 = vector.load %arg13[%c0_4, %c0_5] : memref<304x128xbf16, #tpu.memory_space<vmem>>, vector<24x128xbf16>
    tpu.vector_store %arg13[%c0_4, %c0_5], %4 {strides = array<i32>} : memref<304x128xbf16, #tpu.memory_space<vmem>>, vector<24x128xbf16>,
    %cst_6 = arith.constant 0.000000e+00 : bf16
    %6 = vector.broadcast %cst_6 : bf16 to vector<24x128xbf16>
    %c280_7 = arith.constant 280 : index
    %c0_8 = arith.constant 0 : index
    %7 = vector.load %arg13[%c280_7, %c0_8] : memref<304x128xbf16, #tpu.memory_space<vmem>>, vector<24x128xbf16>
    tpu.vector_store %arg13[%c280_7, %c0_8], %6 {strides = array<i32>} : memref<304x128xbf16, #tpu.memory_space<vmem>>, vector<24x128xbf16>,
    %cst_9 = arith.constant 0.000000e+00 : bf16
    %8 = vector.broadcast %cst_9 : bf16 to vector<24x128xbf16>
    %c0_10 = arith.constant 0 : index
    %c0_11 = arith.constant 0 : index
    %9 = vector.load %arg14[%c0_10, %c0_11] : memref<304x128xbf16, #tpu.memory_space<vmem>>, vector<24x128xbf16>
    tpu.vector_store %arg14[%c0_10, %c0_11], %8 {strides = array<i32>} : memref<304x128xbf16, #tpu.memory_space<vmem>>, vector<24x128xbf16>,
    %cst_12 = arith.constant 0.000000e+00 : bf16
    %10 = vector.broadcast %cst_12 : bf16 to vector<24x128xbf16>
    %c280_13 = arith.constant 280 : index
    %c0_14 = arith.constant 0 : index
    %11 = vector.load %arg14[%c280_13, %c0_14] : memref<304x128xbf16, #tpu.memory_space<vmem>>, vector<24x128xbf16>
    tpu.vector_store %arg14[%c280_13, %c0_14], %10 {strides = array<i32>} : memref<304x128xbf16, #tpu.memory_space<vmem>>, vector<24x128xbf16>,
    %c0_15 = arith.constant 0 : index
    %c0_16 = arith.constant 0 : index
    %c0_17 = arith.constant 0 : index
    %12 = vector.load %arg1[%c0_15, %c0_16, %c0_17] : memref<1x256x4xbf16, #tpu.memory_space<vmem>>, vector<1x256x4xbf16>
    %13 = vector.shape_cast %12 : vector<1x256x4xbf16> to vector<256x4xbf16>
    %c0_18 = arith.constant 0 : index
    %c0_19 = arith.constant 0 : index
    %14 = vector.load %arg2[%c0_18, %c0_19] : memref<256x2xbf16, #tpu.memory_space<vmem>>, vector<256x2xbf16>
    %15 = vector.extract_strided_slice %14 {offsets = [0, 0], sizes = [256, 1], strides = [1, 1]} : vector<256x2xbf16> to vector<256x1xbf16>
    %16 = vector.extract_strided_slice %14 {offsets = [0, 1], sizes = [256, 1], strides = [1, 1]} : vector<256x2xbf16> to vector<256x1xbf16>
    %cst_20 = arith.constant 0.000000e+00 : bf16
    %17 = vector.broadcast %cst_20 : bf16 to vector<256x1xbf16>
    %18 = arith.cmpf ogt, %15, %17 : vector<256x1xbf16>
    %cst_21 = arith.constant 0.000000e+00 : bf16
    %19 = vector.broadcast %cst_21 : bf16 to vector<256x1xbf16>
    %20 = arith.cmpf ogt, %16, %19 : vector<256x1xbf16>
    %c0_22 = arith.constant 0 : index
    %c0_23 = arith.constant 0 : index
    %21 = vector.load %arg3[%c0_22, %c0_23] : memref<4x384xbf16, #tpu.memory_space<vmem>>, vector<4x384xbf16>
    %cst_24 = arith.constant dense<0.000000e+00> : vector<256x384xf32>
    %22 = tpu.matmul %13, %21, %cst_24 {dimension_numbers = #tpu.dot_dimension_numbers<[1], [0], [0], [1], [0, 0, 1, 1], [], []>} : vector<256x4xbf16>, vector<4x384xbf16>, vector<256x384xf32> -> vector<256x384xf32>
    %c0_25 = arith.constant 0 : index
    %c0_26 = arith.constant 0 : index
    %23 = vector.load %arg4[%c0_25, %c0_26] : memref<1x384xf32, #tpu.memory_space<vmem>>, vector<1x384xf32>
    %24 = vector.broadcast %23 : vector<1x384xf32> to vector<256x384xf32>
    %25 = arith.addf %22, %24 : vector<256x384xf32>
    %cst_27 = arith.constant 0.000000e+00 : f32
    %26 = vector.broadcast %cst_27 : f32 to vector<256x384xf32>
    %27 = arith.maximumf %25, %26 : vector<256x384xf32>
    %28 = vector.extract_strided_slice %27 {offsets = [0, 0], sizes = [256, 128], strides = [1, 1]} : vector<256x384xf32> to vector<256x128xf32>
    %29 = vector.extract_strided_slice %27 {offsets = [0, 128], sizes = [256, 128], strides = [1, 1]} : vector<256x384xf32> to vector<256x128xf32>
    %30 = arith.truncf %29 : vector<256x128xf32> to vector<256x128xbf16>
    %31 = vector.extract_strided_slice %27 {offsets = [0, 256], sizes = [256, 128], strides = [1, 1]} : vector<256x384xf32> to vector<256x128xf32>
    %32 = arith.truncf %31 : vector<256x128xf32> to vector<256x128xbf16>
    %c0_28 = arith.constant 0 : index
    %c0_29 = arith.constant 0 : index
    %c0_30 = arith.constant 0 : index
    %33 = vector.load %arg11[%c0_28, %c0_29, %c0_30] : memref<1x256x512xf32, #tpu.memory_space<vmem>>, vector<1x256x128xf32>
    %34 = vector.shape_cast %33 : vector<1x256x128xf32> to vector<256x128xf32>
    %35 = vector.shape_cast %28 : vector<256x128xf32> to vector<1x256x128xf32>
    tpu.vector_store %arg11[%c0_28, %c0_29, %c0_30], %35 {strides = array<i32>} : memref<1x256x512xf32, #tpu.memory_space<vmem>>, vector<1x256x128xf32>,
    %c24 = arith.constant 24 : index
    %c0_31 = arith.constant 0 : index
    %36 = vector.load %arg13[%c24, %c0_31] : memref<304x128xbf16, #tpu.memory_space<vmem>>, vector<256x128xbf16>
    tpu.vector_store %arg13[%c24, %c0_31], %30 {strides = array<i32>} : memref<304x128xbf16, #tpu.memory_space<vmem>>, vector<256x128xbf16>,
    %c7 = arith.constant 7 : index
    %c0_32 = arith.constant 0 : index
    %37 = vector.load %arg13[%c7, %c0_32] : memref<304x128xbf16, #tpu.memory_space<vmem>>, vector<256x128xbf16>
    %38 = vector.broadcast %15 : vector<256x1xbf16> to vector<256x128xbf16>
    %39 = arith.mulf %37, %38 : vector<256x128xbf16>
    %c0_33 = arith.constant 0 : index
    %c0_34 = arith.constant 0 : index
    %c0_35 = arith.constant 0 : index
    %40 = vector.load %arg5[%c0_33, %c0_34, %c0_35] : memref<9x128x128xbf16, #tpu.memory_space<vmem>>, vector<1x128x128xbf16>
    %41 = vector.shape_cast %40 : vector<1x128x128xbf16> to vector<128x128xbf16>
    %cst_36 = arith.constant dense<0.000000e+00> : vector<256x128xf32>
    %42 = tpu.matmul %39, %41, %cst_36 {dimension_numbers = #tpu.dot_dimension_numbers<[1], [0], [0], [1], [0, 0, 1, 1], [], []>} : vector<256x128xbf16>, vector<128x128xbf16>, vector<256x128xf32> -> vector<256x128xf32>
    %c8 = arith.constant 8 : index
    %c0_37 = arith.constant 0 : index
    %43 = vector.load %arg13[%c8, %c0_37] : memref<304x128xbf16, #tpu.memory_space<vmem>>, vector<256x128xbf16>
    %c1 = arith.constant 1 : index
    %c0_38 = arith.constant 0 : index
    %c0_39 = arith.constant 0 : index
    %44 = vector.load %arg5[%c1, %c0_38, %c0_39] : memref<9x128x128xbf16, #tpu.memory_space<vmem>>, vector<1x128x128xbf16>
    %45 = vector.shape_cast %44 : vector<1x128x128xbf16> to vector<128x128xbf16>
    %cst_40 = arith.constant dense<0.000000e+00> : vector<256x128xf32>
    %46 = tpu.matmul %43, %45, %cst_40 {dimension_numbers = #tpu.dot_dimension_numbers<[1], [0], [0], [1], [0, 0, 1, 1], [], []>} : vector<256x128xbf16>, vector<128x128xbf16>, vector<256x128xf32> -> vector<256x128xf32>
    %47 = arith.addf %42, %46 : vector<256x128xf32>
    %c9 = arith.constant 9 : index
    %c0_41 = arith.constant 0 : index
    %48 = vector.load %arg13[%c9, %c0_41] : memref<304x128xbf16, #tpu.memory_space<vmem>>, vector<256x128xbf16>
    %49 = vector.broadcast %16 : vector<256x1xbf16> to vector<256x128xbf16>
    %50 = arith.mulf %48, %49 : vector<256x128xbf16>
    %c2 = arith.constant 2 : index
    %c0_42 = arith.constant 0 : index
    %c0_43 = arith.constant 0 : index
    %51 = vector.load %arg5[%c2, %c0_42, %c0_43] : memref<9x128x128xbf16, #tpu.memory_space<vmem>>, vector<1x128x128xbf16>
    %52 = vector.shape_cast %51 : vector<1x128x128xbf16> to vector<128x128xbf16>
    %cst_44 = arith.constant dense<0.000000e+00> : vector<256x128xf32>
    %53 = tpu.matmul %50, %52, %cst_44 {dimension_numbers = #tpu.dot_dimension_numbers<[1], [0], [0], [1], [0, 0, 1, 1], [], []>} : vector<256x128xbf16>, vector<128x128xbf16>, vector<256x128xf32> -> vector<256x128xf32>
    %54 = arith.addf %47, %53 : vector<256x128xf32>
    %c23 = arith.constant 23 : index
    %c0_45 = arith.constant 0 : index
    %55 = vector.load %arg13[%c23, %c0_45] : memref<304x128xbf16, #tpu.memory_space<vmem>>, vector<256x128xbf16>
    %56 = vector.broadcast %15 : vector<256x1xbf16> to vector<256x128xbf16>
    %57 = arith.mulf %55, %56 : vector<256x128xbf16>
    %c3 = arith.constant 3 : index
    %c0_46 = arith.constant 0 : index
    %c0_47 = arith.constant 0 : index
    %58 = vector.load %arg5[%c3, %c0_46, %c0_47] : memref<9x128x128xbf16, #tpu.memory_space<vmem>>, vector<1x128x128xbf16>
    %59 = vector.shape_cast %58 : vector<1x128x128xbf16> to vector<128x128xbf16>
    %cst_48 = arith.constant dense<0.000000e+00> : vector<256x128xf32>
    %60 = tpu.matmul %57, %59, %cst_48 {dimension_numbers = #tpu.dot_dimension_numbers<[1], [0], [0], [1], [0, 0, 1, 1], [], []>} : vector<256x128xbf16>, vector<128x128xbf16>, vector<256x128xf32> -> vector<256x128xf32>
    %61 = arith.addf %54, %60 : vector<256x128xf32>
    %c24_49 = arith.constant 24 : index
    %c0_50 = arith.constant 0 : index
    %62 = vector.load %arg13[%c24_49, %c0_50] : memref<304x128xbf16, #tpu.memory_space<vmem>>, vector<256x128xbf16>
    %c4 = arith.constant 4 : index
    %c0_51 = arith.constant 0 : index
    %c0_52 = arith.constant 0 : index
    %63 = vector.load %arg5[%c4, %c0_51, %c0_52] : memref<9x128x128xbf16, #tpu.memory_space<vmem>>, vector<1x128x128xbf16>
    %64 = vector.shape_cast %63 : vector<1x128x128xbf16> to vector<128x128xbf16>
    %cst_53 = arith.constant dense<0.000000e+00> : vector<256x128xf32>
    %65 = tpu.matmul %62, %64, %cst_53 {dimension_numbers = #tpu.dot_dimension_numbers<[1], [0], [0], [1], [0, 0, 1, 1], [], []>} : vector<256x128xbf16>, vector<128x128xbf16>, vector<256x128xf32> -> vector<256x128xf32>
    %66 = arith.addf %61, %65 : vector<256x128xf32>
    %c25 = arith.constant 25 : index
    %c0_54 = arith.constant 0 : index
    %67 = vector.load %arg13[%c25, %c0_54] : memref<304x128xbf16, #tpu.memory_space<vmem>>, vector<256x128xbf16>
    %68 = vector.broadcast %16 : vector<256x1xbf16> to vector<256x128xbf16>
    %69 = arith.mulf %67, %68 : vector<256x128xbf16>
    %c5 = arith.constant 5 : index
    %c0_55 = arith.constant 0 : index
    %c0_56 = arith.constant 0 : index
    %70 = vector.load %arg5[%c5, %c0_55, %c0_56] : memref<9x128x128xbf16, #tpu.memory_space<vmem>>, vector<1x128x128xbf16>
    %71 = vector.shape_cast %70 : vector<1x128x128xbf16> to vector<128x128xbf16>
    %cst_57 = arith.constant dense<0.000000e+00> : vector<256x128xf32>
    %72 = tpu.matmul %69, %71, %cst_57 {dimension_numbers = #tpu.dot_dimension_numbers<[1], [0], [0], [1], [0, 0, 1, 1], [], []>} : vector<256x128xbf16>, vector<128x128xbf16>, vector<256x128xf32> -> vector<256x128xf32>
    %73 = arith.addf %66, %72 : vector<256x128xf32>
    %c39 = arith.constant 39 : index
    %c0_58 = arith.constant 0 : index
    %74 = vector.load %arg13[%c39, %c0_58] : memref<304x128xbf16, #tpu.memory_space<vmem>>, vector<256x128xbf16>
    %75 = vector.broadcast %15 : vector<256x1xbf16> to vector<256x128xbf16>
    %76 = arith.mulf %74, %75 : vector<256x128xbf16>
    %c6 = arith.constant 6 : index
    %c0_59 = arith.constant 0 : index
    %c0_60 = arith.constant 0 : index
    %77 = vector.load %arg5[%c6, %c0_59, %c0_60] : memref<9x128x128xbf16, #tpu.memory_space<vmem>>, vector<1x128x128xbf16>
    %78 = vector.shape_cast %77 : vector<1x128x128xbf16> to vector<128x128xbf16>
    %cst_61 = arith.constant dense<0.000000e+00> : vector<256x128xf32>
    %79 = tpu.matmul %76, %78, %cst_61 {dimension_numbers = #tpu.dot_dimension_numbers<[1], [0], [0], [1], [0, 0, 1, 1], [], []>} : vector<256x128xbf16>, vector<128x128xbf16>, vector<256x128xf32> -> vector<256x128xf32>
    %80 = arith.addf %73, %79 : vector<256x128xf32>
    %c40 = arith.constant 40 : index
    %c0_62 = arith.constant 0 : index
    %81 = vector.load %arg13[%c40, %c0_62] : memref<304x128xbf16, #tpu.memory_space<vmem>>, vector<256x128xbf16>
    %c7_63 = arith.constant 7 : index
    %c0_64 = arith.constant 0 : index
    %c0_65 = arith.constant 0 : index
    %82 = vector.load %arg5[%c7_63, %c0_64, %c0_65] : memref<9x128x128xbf16, #tpu.memory_space<vmem>>, vector<1x128x128xbf16>
    %83 = vector.shape_cast %82 : vector<1x128x128xbf16> to vector<128x128xbf16>
    %cst_66 = arith.constant dense<0.000000e+00> : vector<256x128xf32>
    %84 = tpu.matmul %81, %83, %cst_66 {dimension_numbers = #tpu.dot_dimension_numbers<[1], [0], [0], [1], [0, 0, 1, 1], [], []>} : vector<256x128xbf16>, vector<128x128xbf16>, vector<256x128xf32> -> vector<256x128xf32>
    %85 = arith.addf %80, %84 : vector<256x128xf32>
    %c41 = arith.constant 41 : index
    %c0_67 = arith.constant 0 : index
    %86 = vector.load %arg13[%c41, %c0_67] : memref<304x128xbf16, #tpu.memory_space<vmem>>, vector<256x128xbf16>
    %87 = vector.broadcast %16 : vector<256x1xbf16> to vector<256x128xbf16>
    %88 = arith.mulf %86, %87 : vector<256x128xbf16>
    %c8_68 = arith.constant 8 : index
    %c0_69 = arith.constant 0 : index
    %c0_70 = arith.constant 0 : index
    %89 = vector.load %arg5[%c8_68, %c0_69, %c0_70] : memref<9x128x128xbf16, #tpu.memory_space<vmem>>, vector<1x128x128xbf16>
    %90 = vector.shape_cast %89 : vector<1x128x128xbf16> to vector<128x128xbf16>
    %cst_71 = arith.constant dense<0.000000e+00> : vector<256x128xf32>
    %91 = tpu.matmul %88, %90, %cst_71 {dimension_numbers = #tpu.dot_dimension_numbers<[1], [0], [0], [1], [0, 0, 1, 1], [], []>} : vector<256x128xbf16>, vector<128x128xbf16>, vector<256x128xf32> -> vector<256x128xf32>
    %92 = arith.addf %85, %91 : vector<256x128xf32>
    %c0_72 = arith.constant 0 : index
    %c0_73 = arith.constant 0 : index
    %93 = vector.load %arg6[%c0_72, %c0_73] : memref<1x128xf32, #tpu.memory_space<vmem>>, vector<1x128xf32>
    %94 = vector.broadcast %93 : vector<1x128xf32> to vector<256x128xf32>
    %95 = arith.addf %92, %94 : vector<256x128xf32>
    %cst_74 = arith.constant 0.000000e+00 : f32
    %96 = vector.broadcast %cst_74 : f32 to vector<256x128xf32>
    %97 = arith.maximumf %95, %96 : vector<256x128xf32>
    %c0_75 = arith.constant 0 : index
    %c0_76 = arith.constant 0 : index
    %c128 = arith.constant 128 : index
    %98 = vector.load %arg11[%c0_75, %c0_76, %c128] : memref<1x256x512xf32, #tpu.memory_space<vmem>>, vector<1x256x128xf32>
    %99 = vector.shape_cast %98 : vector<1x256x128xf32> to vector<256x128xf32>
    %100 = vector.shape_cast %97 : vector<256x128xf32> to vector<1x256x128xf32>
    tpu.vector_store %arg11[%c0_75, %c0_76, %c128], %100 {strides = array<i32>} : memref<1x256x512xf32, #tpu.memory_space<vmem>>, vector<1x256x128xf32>,
    %c24_77 = arith.constant 24 : index
    %c0_78 = arith.constant 0 : index
    %101 = vector.load %arg14[%c24_77, %c0_78] : memref<304x128xbf16, #tpu.memory_space<vmem>>, vector<256x128xbf16>
    tpu.vector_store %arg14[%c24_77, %c0_78], %32 {strides = array<i32>} : memref<304x128xbf16, #tpu.memory_space<vmem>>, vector<256x128xbf16>,
    %c7_79 = arith.constant 7 : index
    %c0_80 = arith.constant 0 : index
    %102 = vector.load %arg14[%c7_79, %c0_80] : memref<304x128xbf16, #tpu.memory_space<vmem>>, vector<256x128xbf16>
    %103 = vector.broadcast %15 : vector<256x1xbf16> to vector<256x128xbf16>
    %104 = arith.mulf %102, %103 : vector<256x128xbf16>
    %c0_81 = arith.constant 0 : index
    %c0_82 = arith.constant 0 : index
    %c0_83 = arith.constant 0 : index
    %105 = vector.load %arg7[%c0_81, %c0_82, %c0_83] : memref<9x128x128xbf16, #tpu.memory_space<vmem>>, vector<1x128x128xbf16>
    %106 = vector.shape_cast %105 : vector<1x128x128xbf16> to vector<128x128xbf16>
    %cst_84 = arith.constant dense<0.000000e+00> : vector<256x128xf32>
    %107 = tpu.matmul %104, %106, %cst_84 {dimension_numbers = #tpu.dot_dimension_numbers<[1], [0], [0], [1], [0, 0, 1, 1], [], []>} : vector<256x128xbf16>, vector<128x128xbf16>, vector<256x128xf32> -> vector<256x128xf32>
    %c8_85 = arith.constant 8 : index
    %c0_86 = arith.constant 0 : index
    %108 = vector.load %arg14[%c8_85, %c0_86] : memref<304x128xbf16, #tpu.memory_space<vmem>>, vector<256x128xbf16>
    %c1_87 = arith.constant 1 : index
    %c0_88 = arith.constant 0 : index
    %c0_89 = arith.constant 0 : index
    %109 = vector.load %arg7[%c1_87, %c0_88, %c0_89] : memref<9x128x128xbf16, #tpu.memory_space<vmem>>, vector<1x128x128xbf16>
    %110 = vector.shape_cast %109 : vector<1x128x128xbf16> to vector<128x128xbf16>
    %cst_90 = arith.constant dense<0.000000e+00> : vector<256x128xf32>
    %111 = tpu.matmul %108, %110, %cst_90 {dimension_numbers = #tpu.dot_dimension_numbers<[1], [0], [0], [1], [0, 0, 1, 1], [], []>} : vector<256x128xbf16>, vector<128x128xbf16>, vector<256x128xf32> -> vector<256x128xf32>
    %112 = arith.addf %107, %111 : vector<256x128xf32>
    %c9_91 = arith.constant 9 : index
    %c0_92 = arith.constant 0 : index
    %113 = vector.load %arg14[%c9_91, %c0_92] : memref<304x128xbf16, #tpu.memory_space<vmem>>, vector<256x128xbf16>
    %114 = vector.broadcast %16 : vector<256x1xbf16> to vector<256x128xbf16>
    %115 = arith.mulf %113, %114 : vector<256x128xbf16>
    %c2_93 = arith.constant 2 : index
    %c0_94 = arith.constant 0 : index
    %c0_95 = arith.constant 0 : index
    %116 = vector.load %arg7[%c2_93, %c0_94, %c0_95] : memref<9x128x128xbf16, #tpu.memory_space<vmem>>, vector<1x128x128xbf16>
    %117 = vector.shape_cast %116 : vector<1x128x128xbf16> to vector<128x128xbf16>
    %cst_96 = arith.constant dense<0.000000e+00> : vector<256x128xf32>
    %118 = tpu.matmul %115, %117, %cst_96 {dimension_numbers = #tpu.dot_dimension_numbers<[1], [0], [0], [1], [0, 0, 1, 1], [], []>} : vector<256x128xbf16>, vector<128x128xbf16>, vector<256x128xf32> -> vector<256x128xf32>
    %119 = arith.addf %112, %118 : vector<256x128xf32>
    %c23_97 = arith.constant 23 : index
    %c0_98 = arith.constant 0 : index
    %120 = vector.load %arg14[%c23_97, %c0_98] : memref<304x128xbf16, #tpu.memory_space<vmem>>, vector<256x128xbf16>
    %121 = vector.broadcast %15 : vector<256x1xbf16> to vector<256x128xbf16>
    %122 = arith.mulf %120, %121 : vector<256x128xbf16>
    %c3_99 = arith.constant 3 : index
    %c0_100 = arith.constant 0 : index
    %c0_101 = arith.constant 0 : index
    %123 = vector.load %arg7[%c3_99, %c0_100, %c0_101] : memref<9x128x128xbf16, #tpu.memory_space<vmem>>, vector<1x128x128xbf16>
    %124 = vector.shape_cast %123 : vector<1x128x128xbf16> to vector<128x128xbf16>
    %cst_102 = arith.constant dense<0.000000e+00> : vector<256x128xf32>
    %125 = tpu.matmul %122, %124, %cst_102 {dimension_numbers = #tpu.dot_dimension_numbers<[1], [0], [0], [1], [0, 0, 1, 1], [], []>} : vector<256x128xbf16>, vector<128x128xbf16>, vector<256x128xf32> -> vector<256x128xf32>
    %126 = arith.addf %119, %125 : vector<256x128xf32>
    %c24_103 = arith.constant 24 : index
    %c0_104 = arith.constant 0 : index
    %127 = vector.load %arg14[%c24_103, %c0_104] : memref<304x128xbf16, #tpu.memory_space<vmem>>, vector<256x128xbf16>
    %c4_105 = arith.constant 4 : index
    %c0_106 = arith.constant 0 : index
    %c0_107 = arith.constant 0 : index
    %128 = vector.load %arg7[%c4_105, %c0_106, %c0_107] : memref<9x128x128xbf16, #tpu.memory_space<vmem>>, vector<1x128x128xbf16>
    %129 = vector.shape_cast %128 : vector<1x128x128xbf16> to vector<128x128xbf16>
    %cst_108 = arith.constant dense<0.000000e+00> : vector<256x128xf32>
    %130 = tpu.matmul %127, %129, %cst_108 {dimension_numbers = #tpu.dot_dimension_numbers<[1], [0], [0], [1], [0, 0, 1, 1], [], []>} : vector<256x128xbf16>, vector<128x128xbf16>, vector<256x128xf32> -> vector<256x128xf32>
    %131 = arith.addf %126, %130 : vector<256x128xf32>
    %c25_109 = arith.constant 25 : index
    %c0_110 = arith.constant 0 : index
    %132 = vector.load %arg14[%c25_109, %c0_110] : memref<304x128xbf16, #tpu.memory_space<vmem>>, vector<256x128xbf16>
    %133 = vector.broadcast %16 : vector<256x1xbf16> to vector<256x128xbf16>
    %134 = arith.mulf %132, %133 : vector<256x128xbf16>
    %c5_111 = arith.constant 5 : index
    %c0_112 = arith.constant 0 : index
    %c0_113 = arith.constant 0 : index
    %135 = vector.load %arg7[%c5_111, %c0_112, %c0_113] : memref<9x128x128xbf16, #tpu.memory_space<vmem>>, vector<1x128x128xbf16>
    %136 = vector.shape_cast %135 : vector<1x128x128xbf16> to vector<128x128xbf16>
    %cst_114 = arith.constant dense<0.000000e+00> : vector<256x128xf32>
    %137 = tpu.matmul %134, %136, %cst_114 {dimension_numbers = #tpu.dot_dimension_numbers<[1], [0], [0], [1], [0, 0, 1, 1], [], []>} : vector<256x128xbf16>, vector<128x128xbf16>, vector<256x128xf32> -> vector<256x128xf32>
    %138 = arith.addf %131, %137 : vector<256x128xf32>
    %c39_115 = arith.constant 39 : index
    %c0_116 = arith.constant 0 : index
    %139 = vector.load %arg14[%c39_115, %c0_116] : memref<304x128xbf16, #tpu.memory_space<vmem>>, vector<256x128xbf16>
    %140 = vector.broadcast %15 : vector<256x1xbf16> to vector<256x128xbf16>
    %141 = arith.mulf %139, %140 : vector<256x128xbf16>
    %c6_117 = arith.constant 6 : index
    %c0_118 = arith.constant 0 : index
    %c0_119 = arith.constant 0 : index
    %142 = vector.load %arg7[%c6_117, %c0_118, %c0_119] : memref<9x128x128xbf16, #tpu.memory_space<vmem>>, vector<1x128x128xbf16>
    %143 = vector.shape_cast %142 : vector<1x128x128xbf16> to vector<128x128xbf16>
    %cst_120 = arith.constant dense<0.000000e+00> : vector<256x128xf32>
    %144 = tpu.matmul %141, %143, %cst_120 {dimension_numbers = #tpu.dot_dimension_numbers<[1], [0], [0], [1], [0, 0, 1, 1], [], []>} : vector<256x128xbf16>, vector<128x128xbf16>, vector<256x128xf32> -> vector<256x128xf32>
    %145 = arith.addf %138, %144 : vector<256x128xf32>
    %c40_121 = arith.constant 40 : index
    %c0_122 = arith.constant 0 : index
    %146 = vector.load %arg14[%c40_121, %c0_122] : memref<304x128xbf16, #tpu.memory_space<vmem>>, vector<256x128xbf16>
    %c7_123 = arith.constant 7 : index
    %c0_124 = arith.constant 0 : index
    %c0_125 = arith.constant 0 : index
    %147 = vector.load %arg7[%c7_123, %c0_124, %c0_125] : memref<9x128x128xbf16, #tpu.memory_space<vmem>>, vector<1x128x128xbf16>
    %148 = vector.shape_cast %147 : vector<1x128x128xbf16> to vector<128x128xbf16>
    %cst_126 = arith.constant dense<0.000000e+00> : vector<256x128xf32>
    %149 = tpu.matmul %146, %148, %cst_126 {dimension_numbers = #tpu.dot_dimension_numbers<[1], [0], [0], [1], [0, 0, 1, 1], [], []>} : vector<256x128xbf16>, vector<128x128xbf16>, vector<256x128xf32> -> vector<256x128xf32>
    %150 = arith.addf %145, %149 : vector<256x128xf32>
    %c41_127 = arith.constant 41 : index
    %c0_128 = arith.constant 0 : index
    %151 = vector.load %arg14[%c41_127, %c0_128] : memref<304x128xbf16, #tpu.memory_space<vmem>>, vector<256x128xbf16>
    %152 = vector.broadcast %16 : vector<256x1xbf16> to vector<256x128xbf16>
    %153 = arith.mulf %151, %152 : vector<256x128xbf16>
    %c8_129 = arith.constant 8 : index
    %c0_130 = arith.constant 0 : index
    %c0_131 = arith.constant 0 : index
    %154 = vector.load %arg7[%c8_129, %c0_130, %c0_131] : memref<9x128x128xbf16, #tpu.memory_space<vmem>>, vector<1x128x128xbf16>
    %155 = vector.shape_cast %154 : vector<1x128x128xbf16> to vector<128x128xbf16>
    %cst_132 = arith.constant dense<0.000000e+00> : vector<256x128xf32>
    %156 = tpu.matmul %153, %155, %cst_132 {dimension_numbers = #tpu.dot_dimension_numbers<[1], [0], [0], [1], [0, 0, 1, 1], [], []>} : vector<256x128xbf16>, vector<128x128xbf16>, vector<256x128xf32> -> vector<256x128xf32>
    %157 = arith.addf %150, %156 : vector<256x128xf32>
    %c0_133 = arith.constant 0 : index
    %c0_134 = arith.constant 0 : index
    %158 = vector.load %arg8[%c0_133, %c0_134] : memref<1x128xf32, #tpu.memory_space<vmem>>, vector<1x128xf32>
    %159 = vector.broadcast %158 : vector<1x128xf32> to vector<256x128xf32>
    %160 = arith.addf %157, %159 : vector<256x128xf32>
    %cst_135 = arith.constant 0.000000e+00 : f32
    %161 = vector.broadcast %cst_135 : f32 to vector<256x128xf32>
    %162 = arith.maximumf %160, %161 : vector<256x128xf32>
    %c0_136 = arith.constant 0 : index
    %c0_137 = arith.constant 0 : index
    %c256 = arith.constant 256 : index
    %163 = vector.load %arg11[%c0_136, %c0_137, %c256] : memref<1x256x512xf32, #tpu.memory_space<vmem>>, vector<1x256x128xf32>
    %164 = vector.shape_cast %163 : vector<1x256x128xf32> to vector<256x128xf32>
    %165 = vector.shape_cast %162 : vector<256x128xf32> to vector<1x256x128xf32>
    tpu.vector_store %arg11[%c0_136, %c0_137, %c256], %165 {strides = array<i32>} : memref<1x256x512xf32, #tpu.memory_space<vmem>>, vector<1x256x128xf32>,
    %c24_138 = arith.constant 24 : index
    %c0_139 = arith.constant 0 : index
    %166 = vector.load %arg12[%c24_138, %c0_139] : memref<304x4xbf16, #tpu.memory_space<vmem>>, vector<256x4xbf16>
    tpu.vector_store %arg12[%c24_138, %c0_139], %13 {strides = array<i32>} : memref<304x4xbf16, #tpu.memory_space<vmem>>, vector<256x4xbf16>,
    %c8_140 = arith.constant 8 : index
    %c0_141 = arith.constant 0 : index
    %167 = vector.load %arg12[%c8_140, %c0_141] : memref<304x4xbf16, #tpu.memory_space<vmem>>, vector<256x4xbf16>
    %c24_142 = arith.constant 24 : index
    %c0_143 = arith.constant 0 : index
    %168 = vector.load %arg12[%c24_142, %c0_143] : memref<304x4xbf16, #tpu.memory_space<vmem>>, vector<256x4xbf16>
    %169 = arith.maximumf %167, %168 : vector<256x4xbf16>
    %c40_144 = arith.constant 40 : index
    %c0_145 = arith.constant 0 : index
    %170 = vector.load %arg12[%c40_144, %c0_145] : memref<304x4xbf16, #tpu.memory_space<vmem>>, vector<256x4xbf16>
    %171 = arith.maximumf %169, %170 : vector<256x4xbf16>
    %c7_146 = arith.constant 7 : index
    %c0_147 = arith.constant 0 : index
    %172 = vector.load %arg12[%c7_146, %c0_147] : memref<304x4xbf16, #tpu.memory_space<vmem>>, vector<256x4xbf16>
    %c23_148 = arith.constant 23 : index
    %c0_149 = arith.constant 0 : index
    %173 = vector.load %arg12[%c23_148, %c0_149] : memref<304x4xbf16, #tpu.memory_space<vmem>>, vector<256x4xbf16>
    %174 = arith.maximumf %172, %173 : vector<256x4xbf16>
    %c39_150 = arith.constant 39 : index
    %c0_151 = arith.constant 0 : index
    %175 = vector.load %arg12[%c39_150, %c0_151] : memref<304x4xbf16, #tpu.memory_space<vmem>>, vector<256x4xbf16>
    %176 = arith.maximumf %174, %175 : vector<256x4xbf16>
    %c9_152 = arith.constant 9 : index
    %c0_153 = arith.constant 0 : index
    %177 = vector.load %arg12[%c9_152, %c0_153] : memref<304x4xbf16, #tpu.memory_space<vmem>>, vector<256x4xbf16>
    %c25_154 = arith.constant 25 : index
    %c0_155 = arith.constant 0 : index
    %178 = vector.load %arg12[%c25_154, %c0_155] : memref<304x4xbf16, #tpu.memory_space<vmem>>, vector<256x4xbf16>
    %179 = arith.maximumf %177, %178 : vector<256x4xbf16>
    %c41_156 = arith.constant 41 : index
    %c0_157 = arith.constant 0 : index
    %180 = vector.load %arg12[%c41_156, %c0_157] : memref<304x4xbf16, #tpu.memory_space<vmem>>, vector<256x4xbf16>
    %181 = arith.maximumf %179, %180 : vector<256x4xbf16>
    %cst_158 = arith.constant 0xFF800000 : f32
    %182 = arith.truncf %cst_158 : f32 to bf16
    %183 = vector.shape_cast %18 : vector<256x1xi1> to vector<256x1xi1>
    %184 = vector.broadcast %183 : vector<256x1xi1> to vector<256x4xi1>
    %185 = vector.broadcast %182 : bf16 to vector<256x4xbf16>
    %186 = arith.select %184, %176, %185 : vector<256x4xi1>, vector<256x4xbf16>
    %187 = arith.maximumf %171, %186 : vector<256x4xbf16>
    %cst_159 = arith.constant 0xFF800000 : f32
    %188 = arith.truncf %cst_159 : f32 to bf16
    %189 = vector.shape_cast %20 : vector<256x1xi1> to vector<256x1xi1>
    %190 = vector.broadcast %189 : vector<256x1xi1> to vector<256x4xi1>
    %191 = vector.broadcast %188 : bf16 to vector<256x4xbf16>
    %192 = arith.select %190, %181, %191 : vector<256x4xi1>, vector<256x4xbf16>
    %193 = arith.maximumf %187, %192 : vector<256x4xbf16>
    %c0_160 = arith.constant 0 : index
    %c0_161 = arith.constant 0 : index
    %194 = vector.load %arg9[%c0_160, %c0_161] : memref<4x128xbf16, #tpu.memory_space<vmem>>, vector<4x128xbf16>
    %cst_162 = arith.constant dense<0.000000e+00> : vector<256x128xf32>
    %195 = tpu.matmul %193, %194, %cst_162 {dimension_numbers = #tpu.dot_dimension_numbers<[1], [0], [0], [1], [0, 0, 1, 1], [], []>} : vector<256x4xbf16>, vector<4x128xbf16>, vector<256x128xf32> -> vector<256x128xf32>
    %c0_163 = arith.constant 0 : index
    %c0_164 = arith.constant 0 : index
    %196 = vector.load %arg10[%c0_163, %c0_164] : memref<1x128xf32, #tpu.memory_space<vmem>>, vector<1x128xf32>
    %197 = vector.broadcast %196 : vector<1x128xf32> to vector<256x128xf32>
    %198 = arith.addf %195, %197 : vector<256x128xf32>
    %cst_165 = arith.constant 0.000000e+00 : f32
    %199 = vector.broadcast %cst_165 : f32 to vector<256x128xf32>
    %200 = arith.maximumf %198, %199 : vector<256x128xf32>
    %c0_166 = arith.constant 0 : index
    %c0_167 = arith.constant 0 : index
    %c384 = arith.constant 384 : index
    %201 = vector.load %arg11[%c0_166, %c0_167, %c384] : memref<1x256x512xf32, #tpu.memory_space<vmem>>, vector<1x256x128xf32>
    %202 = vector.shape_cast %201 : vector<1x256x128xf32> to vector<256x128xf32>
    %203 = vector.shape_cast %200 : vector<256x128xf32> to vector<1x256x128xf32>
    tpu.vector_store %arg11[%c0_166, %c0_167, %c384], %203 {strides = array<i32>} : memref<1x256x512xf32, #tpu.memory_space<vmem>>, vector<1x256x128xf32>,
    return
  }
  func.func @transform_0(%arg0: i32) -> (i32, i32, i32) {
    %c0_i32 = arith.constant 0 : i32
    %c0_i32_0 = arith.constant 0 : i32
    %c0_i32_1 = arith.constant 0 : i32
    return %arg0, %c0_i32, %c0_i32_0 : i32, i32, i32
  }
  func.func @transform_1(%arg0: i32) -> (i32, i32) {
    %c0_i32 = arith.constant 0 : i32
    %c0_i32_0 = arith.constant 0 : i32
    %c0_i32_1 = arith.constant 0 : i32
    return %c0_i32, %c0_i32_0 : i32, i32
  }
  func.func @transform_2(%arg0: i32) -> (i32, i32) {
    %c0_i32 = arith.constant 0 : i32
    %c0_i32_0 = arith.constant 0 : i32
    %c0_i32_1 = arith.constant 0 : i32
    return %c0_i32, %c0_i32_0 : i32, i32
  }
  func.func @transform_3(%arg0: i32) -> (i32, i32) {
    %c0_i32 = arith.constant 0 : i32
    %c0_i32_0 = arith.constant 0 : i32
    %c0_i32_1 = arith.constant 0 : i32
    return %c0_i32, %c0_i32_0 : i32, i32
  }
  func.func @transform_4(%arg0: i32) -> (i32, i32, i32) {
    %c0_i32 = arith.constant 0 : i32
    %c0_i32_0 = arith.constant 0 : i32
    %c0_i32_1 = arith.constant 0 : i32
    %c0_i32_2 = arith.constant 0 : i32
    return %c0_i32, %c0_i32_0, %c0_i32_1 : i32, i32, i32
  }
  func.func @transform_5(%arg0: i32) -> (i32, i32) {
    %c0_i32 = arith.constant 0 : i32
    %c0_i32_0 = arith.constant 0 : i32
    %c0_i32_1 = arith.constant 0 : i32
    return %c0_i32, %c0_i32_0 : i32, i32
  }
  func.func @transform_6(%arg0: i32) -> (i32, i32, i32) {
    %c0_i32 = arith.constant 0 : i32
    %c0_i32_0 = arith.constant 0 : i32
    %c0_i32_1 = arith.constant 0 : i32
    %c0_i32_2 = arith.constant 0 : i32
    return %c0_i32, %c0_i32_0, %c0_i32_1 : i32, i32, i32
  }
  func.func @transform_7(%arg0: i32) -> (i32, i32) {
    %c0_i32 = arith.constant 0 : i32
    %c0_i32_0 = arith.constant 0 : i32
    %c0_i32_1 = arith.constant 0 : i32
    return %c0_i32, %c0_i32_0 : i32, i32
  }
  func.func @transform_8(%arg0: i32) -> (i32, i32) {
    %c0_i32 = arith.constant 0 : i32
    %c0_i32_0 = arith.constant 0 : i32
    %c0_i32_1 = arith.constant 0 : i32
    return %c0_i32, %c0_i32_0 : i32, i32
  }
  func.func @transform_9(%arg0: i32) -> (i32, i32) {
    %c0_i32 = arith.constant 0 : i32
    %c0_i32_0 = arith.constant 0 : i32
    %c0_i32_1 = arith.constant 0 : i32
    return %c0_i32, %c0_i32_0 : i32, i32
  }
  func.func @transform_10(%arg0: i32) -> (i32, i32, i32) {
    %c0_i32 = arith.constant 0 : i32
    %c0_i32_0 = arith.constant 0 : i32
    %c0_i32_1 = arith.constant 0 : i32
    return %arg0, %c0_i32, %c0_i32_0 : i32, i32, i32
  }
}

</mosaic_0001>

<llo_original>
// kernel: inception_forward.1
$region0: #{inception_forward.1}
  #allocation0 [shape = 'u32[]', space=smem, size = 0x4, offset = 0x4, fixed_abs, tag = 'smem constant byte address 0x4 - core index']
  #allocation1 [shape = 'u32[72,128]{1,0:T(1,128)}', space=vmem, size = 0x9000, scoped, tag = 'internal scratch']
  #allocation2 [shape = 'bf16[304,4]{1,0:T(8,128)(2,1)}', space=vmem, size = 0x13000, scoped, tag = 'scratch operand']
  #allocation3 [shape = 'bf16[304,128]{1,0:T(8,128)(2,1)}', space=vmem, size = 0x13000, scoped, tag = 'scratch operand']
  #allocation4 [shape = 'bf16[304,128]{1,0:T(8,128)(2,1)}', space=vmem, size = 0x13000, scoped, tag = 'scratch operand']
  %s0 = inlined_call_operand.vmem [shape: bf16[2,256,4], index: 0, kind: input, shape index: {}]
  %s1 = inlined_call_operand.vmem [shape: bf16[256,2], index: 1, kind: input, shape index: {}]
  %s2 = inlined_call_operand.vmem [shape: bf16[4,384], index: 2, kind: input, shape index: {}]
  %s3 = inlined_call_operand.vmem [shape: f32[1,384], index: 3, kind: input, shape index: {}]
  %s4 = inlined_call_operand.hbm [shape: bf16[9,128,128], index: 4, kind: input, shape index: {}]
  %s5 = inlined_call_operand.vmem [shape: f32[1,128], index: 5, kind: input, shape index: {}]
  %s6 = inlined_call_operand.hbm [shape: bf16[9,128,128], index: 6, kind: input, shape index: {}]
  %s7 = inlined_call_operand.vmem [shape: f32[1,128], index: 7, kind: input, shape index: {}]
  %s8 = inlined_call_operand.vmem [shape: bf16[4,128], index: 8, kind: input, shape index: {}]
  %s9 = inlined_call_operand.vmem [shape: f32[1,128], index: 9, kind: input, shape index: {}]
  %s10 = inlined_call_operand.vmem [shape: f32[2,256,512], index: 10, kind: output, shape index: {}]
  %s11 = sld [smem:[#allocation0]]
  $region81: #{inception_forward.1} parent=0
    _
  %s13 = ssub.s32 1, %s11
  %s14 = scalar_select 0, %s13, %s11
  $region1: #{inception_forward.1} parent=0
    #allocation5 [shape = 'u8[294912]{0}', space=vmem, size = 0x48000, scoped, tag = 'input window, operand 4, single buffered']
    #allocation6 [shape = 's32[2]{0}', space=sflag, size = 0x8, scoped, tag = 'scoped memory for inception_forward.1']
    #allocation7 [shape = 'u8[294912]{0}', space=vmem, size = 0x48000, scoped, tag = 'input window, operand 6, single buffered']
    #allocation8 [shape = 's32[1]{0}', space=sflag, size = 0x4, scoped, tag = 'scoped memory for inception_forward.1']
    %15 = vsyncpa [#allocation6], 0
    %16 = vsyncpa [#allocation8], 0
    loop: start=0, step=1, limit=4
    $region2: #{inception_forward.1} parent=1 // loop_pre_header
      _
    $region3: #{inception_forward.1} parent=1 // loop_header
      %s18 = sphi 0, %s22
      %p19 = scmp.ge.s32.totalorder %s18, 4
      %s28 = sphi 0, %s30
      %s31 = sphi 0, %s28
      %s32 = sphi 0, %s31
      %s48 = sphi 0, %s32
      %s52 = sphi 0, %s52
      %s54 = sphi 0, %s52
      %s55 = sphi 0, %s54
      %s69 = sphi 0, %s55
      %s73 = sphi 0, %s73
      %s75 = sphi 0, %s73
      %s76 = sphi 0, %s75
      %s90 = sphi 0, %s76
      %s94 = sphi 0, %s94
      %s96 = sphi 0, %s94
      %s97 = sphi 0, %s96
      %s111 = sphi 0, %s97
      %s115 = sphi 0, %s115
      %s117 = sphi 0, %s115
      %s118 = sphi 0, %s117
      %s132 = sphi 0, %s118
      %s136 = sphi 0, %s136
      %s138 = sphi 0, %s136
      %s139 = sphi 0, %s138
      %s153 = sphi 0, %s139
      %s157 = sphi 0, %s157
      %s159 = sphi 0, %s157
      %s160 = sphi 0, %s159
      %s174 = sphi 0, %s160
      %s178 = sphi 0, %s178
      %s180 = sphi 0, %s178
      %s181 = sphi 0, %s180
      %s195 = sphi 0, %s181
      %s199 = sphi 0, %s199
      %s201 = sphi 0, %s199
      %s202 = sphi 0, %s201
      %s216 = sphi 0, %s202
      %s220 = sphi 0, %s220
      %s222 = sphi 0, %s220
      %s223 = sphi 0, %s222
      %s237 = sphi 0, %s223
      %s243 = sphi 0, %s245
      %s246 = sphi 0, %s243
      %s247 = sphi 0, %s246
      %s263 = sphi 0, %s247
    $region4: #{inception_forward.1} parent=1 // loop_header_branch
      %21 = sbr.rel (%p19) target = $region8
    $region5: #{inception_forward.1} parent=1 // loop_body
      %s23 = ssub.s32 %s18, 1
      %s24 = ssub.s32 %s18, 2
      %s25 = sadd.s32 %s18, 1
      %s26 = ssub.s32 %s18, %s25
      %p27 = scmp.eq.s32.totalorder %s26, 0
      %s29 = sadd.s32 %s28, 1
      %s30 = scalar_select %p27, %s28, %s29
      %p33 = pneg %p27
      %p34 = scmp.eq.s32.totalorder %s18, 1
      %p35 = por %p33, %p34
      %p36 = scmp.ne.s32.totalorder %s28, %s31
      %p37 = scmp.eq.s32.totalorder %s18, 0
      %p38 = por %p36, %p37
      %p39 = scmp.ne.s32.totalorder %s28, %s31
      %p40 = scmp.eq.s32.totalorder %s23, 1
      %p41 = por %p39, %p40
      %p42 = scmp.ne.s32.totalorder %s31, %s32
      %p43 = scmp.eq.s32.totalorder %s23, 0
      %p44 = por %p42, %p43
      %p45 = scmp.ne.s32.totalorder %s31, %s32
      %p46 = scmp.eq.s32.totalorder %s24, 1
      %p47 = por %p45, %p46
      %p49 = scmp.ne.s32.totalorder %s32, %s48
      %p50 = scmp.eq.s32.totalorder %s24, 0
      %p51 = por %p49, %p50
      %s53 = sadd.s32 %s52, 1
      %p56 = scmp.eq.s32.totalorder %s18, 1
      %p57 = scmp.ne.s32.totalorder %s52, %s54
      %p58 = scmp.eq.s32.totalorder %s18, 0
      %p59 = por %p57, %p58
      %p60 = scmp.ne.s32.totalorder %s52, %s54
      %p61 = scmp.eq.s32.totalorder %s23, 1
      %p62 = por %p60, %p61
      %p63 = scmp.ne.s32.totalorder %s54, %s55
      %p64 = scmp.eq.s32.totalorder %s23, 0
      %p65 = por %p63, %p64
      %p66 = scmp.ne.s32.totalorder %s54, %s55
      %p67 = scmp.eq.s32.totalorder %s24, 1
      %p68 = por %p66, %p67
      %p70 = scmp.ne.s32.totalorder %s55, %s69
      %p71 = scmp.eq.s32.totalorder %s24, 0
      %p72 = por %p70, %p71
      %s74 = sadd.s32 %s73, 1
      %p77 = scmp.eq.s32.totalorder %s18, 1
      %p78 = scmp.ne.s32.totalorder %s73, %s75
      %p79 = scmp.eq.s32.totalorder %s18, 0
      %p80 = por %p78, %p79
      %p81 = scmp.ne.s32.totalorder %s73, %s75
      %p82 = scmp.eq.s32.totalorder %s23, 1
      %p83 = por %p81, %p82
      %p84 = scmp.ne.s32.totalorder %s75, %s76
      %p85 = scmp.eq.s32.totalorder %s23, 0
      %p86 = por %p84, %p85
      %p87 = scmp.ne.s32.totalorder %s75, %s76
      %p88 = scmp.eq.s32.totalorder %s24, 1
      %p89 = por %p87, %p88
      %p91 = scmp.ne.s32.totalorder %s76, %s90
      %p92 = scmp.eq.s32.totalorder %s24, 0
      %p93 = por %p91, %p92
      %s95 = sadd.s32 %s94, 1
      %p98 = scmp.eq.s32.totalorder %s18, 1
      %p99 = scmp.ne.s32.totalorder %s94, %s96
      %p100 = scmp.eq.s32.totalorder %s18, 0
      %p101 = por %p99, %p100
      %p102 = scmp.ne.s32.totalorder %s94, %s96
      %p103 = scmp.eq.s32.totalorder %s23, 1
      %p104 = por %p102, %p103
      %p105 = scmp.ne.s32.totalorder %s96, %s97
      %p106 = scmp.eq.s32.totalorder %s23, 0
      %p107 = por %p105, %p106
      %p108 = scmp.ne.s32.totalorder %s96, %s97
      %p109 = scmp.eq.s32.totalorder %s24, 1
      %p110 = por %p108, %p109
      %p112 = scmp.ne.s32.totalorder %s97, %s111
      %p113 = scmp.eq.s32.totalorder %s24, 0
      %p114 = por %p112, %p113
      %s116 = sadd.s32 %s115, 1
      %p119 = scmp.eq.s32.totalorder %s18, 1
      %p120 = scmp.ne.s32.totalorder %s115, %s117
      %p121 = scmp.eq.s32.totalorder %s18, 0
      %p122 = por %p120, %p121
      %p123 = scmp.ne.s32.totalorder %s115, %s117
      %p124 = scmp.eq.s32.totalorder %s23, 1
      %p125 = por %p123, %p124
      %p126 = scmp.ne.s32.totalorder %s117, %s118
      %p127 = scmp.eq.s32.totalorder %s23, 0
      %p128 = por %p126, %p127
      %p129 = scmp.ne.s32.totalorder %s117, %s118
      %p130 = scmp.eq.s32.totalorder %s24, 1
      %p131 = por %p129, %p130
      %p133 = scmp.ne.s32.totalorder %s118, %s132
      %p134 = scmp.eq.s32.totalorder %s24, 0
      %p135 = por %p133, %p134
      %s137 = sadd.s32 %s136, 1
      %p140 = scmp.eq.s32.totalorder %s18, 1
      %p141 = scmp.ne.s32.totalorder %s136, %s138
      %p142 = scmp.eq.s32.totalorder %s18, 0
      %p143 = por %p141, %p142
      %p144 = scmp.ne.s32.totalorder %s136, %s138
      %p145 = scmp.eq.s32.totalorder %s23, 1
      %p146 = por %p144, %p145
      %p147 = scmp.ne.s32.totalorder %s138, %s139
      %p148 = scmp.eq.s32.totalorder %s23, 0
      %p149 = por %p147, %p148
      %p150 = scmp.ne.s32.totalorder %s138, %s139
      %p151 = scmp.eq.s32.totalorder %s24, 1
      %p152 = por %p150, %p151
      %p154 = scmp.ne.s32.totalorder %s139, %s153
      %p155 = scmp.eq.s32.totalorder %s24, 0
      %p156 = por %p154, %p155
      %s158 = sadd.s32 %s157, 1
      %p161 = scmp.eq.s32.totalorder %s18, 1
      %p162 = scmp.ne.s32.totalorder %s157, %s159
      %p163 = scmp.eq.s32.totalorder %s18, 0
      %p164 = por %p162, %p163
      %p165 = scmp.ne.s32.totalorder %s157, %s159
      %p166 = scmp.eq.s32.totalorder %s23, 1
      %p167 = por %p165, %p166
      %p168 = scmp.ne.s32.totalorder %s159, %s160
      %p169 = scmp.eq.s32.totalorder %s23, 0
      %p170 = por %p168, %p169
      %p171 = scmp.ne.s32.totalorder %s159, %s160
      %p172 = scmp.eq.s32.totalorder %s24, 1
      %p173 = por %p171, %p172
      %p175 = scmp.ne.s32.totalorder %s160, %s174
      %p176 = scmp.eq.s32.totalorder %s24, 0
      %p177 = por %p175, %p176
      %s179 = sadd.s32 %s178, 1
      %p182 = scmp.eq.s32.totalorder %s18, 1
      %p183 = scmp.ne.s32.totalorder %s178, %s180
      %p184 = scmp.eq.s32.totalorder %s18, 0
      %p185 = por %p183, %p184
      %p186 = scmp.ne.s32.totalorder %s178, %s180
      %p187 = scmp.eq.s32.totalorder %s23, 1
      %p188 = por %p186, %p187
      %p189 = scmp.ne.s32.totalorder %s180, %s181
      %p190 = scmp.eq.s32.totalorder %s23, 0
      %p191 = por %p189, %p190
      %p192 = scmp.ne.s32.totalorder %s180, %s181
      %p193 = scmp.eq.s32.totalorder %s24, 1
      %p194 = por %p192, %p193
      %p196 = scmp.ne.s32.totalorder %s181, %s195
      %p197 = scmp.eq.s32.totalorder %s24, 0
      %p198 = por %p196, %p197
      %s200 = sadd.s32 %s199, 1
      %p203 = scmp.eq.s32.totalorder %s18, 1
      %p204 = scmp.ne.s32.totalorder %s199, %s201
      %p205 = scmp.eq.s32.totalorder %s18, 0
      %p206 = por %p204, %p205
      %p207 = scmp.ne.s32.totalorder %s199, %s201
      %p208 = scmp.eq.s32.totalorder %s23, 1
      %p209 = por %p207, %p208
      %p210 = scmp.ne.s32.totalorder %s201, %s202
      %p211 = scmp.eq.s32.totalorder %s23, 0
      %p212 = por %p210, %p211
      %p213 = scmp.ne.s32.totalorder %s201, %s202
      %p214 = scmp.eq.s32.totalorder %s24, 1
      %p215 = por %p213, %p214
      %p217 = scmp.ne.s32.totalorder %s202, %s216
      %p218 = scmp.eq.s32.totalorder %s24, 0
      %p219 = por %p217, %p218
      %s221 = sadd.s32 %s220, 1
      %p224 = scmp.eq.s32.totalorder %s18, 1
      %p225 = scmp.ne.s32.totalorder %s220, %s222
      %p226 = scmp.eq.s32.totalorder %s18, 0
      %p227 = por %p225, %p226
      %p228 = scmp.ne.s32.totalorder %s220, %s222
      %p229 = scmp.eq.s32.totalorder %s23, 1
      %p230 = por %p228, %p229
      %p231 = scmp.ne.s32.totalorder %s222, %s223
      %p232 = scmp.eq.s32.totalorder %s23, 0
      %p233 = por %p231, %p232
      %p234 = scmp.ne.s32.totalorder %s222, %s223
      %p235 = scmp.eq.s32.totalorder %s24, 1
      %p236 = por %p234, %p235
      %p238 = scmp.ne.s32.totalorder %s223, %s237
      %p239 = scmp.eq.s32.totalorder %s24, 0
      %p240 = por %p238, %p239
      %s241 = ssub.s32 %s18, %s25
      %p242 = scmp.eq.s32.totalorder %s241, 0
      %s244 = sadd.s32 %s243, 1
      %s245 = scalar_select %p242, %s243, %s244
      %p248 = pneg %p242
      %p249 = scmp.eq.s32.totalorder %s18, 1
      %p250 = por %p248, %p249
      %p251 = scmp.ne.s32.totalorder %s243, %s246
      %p252 = scmp.eq.s32.totalorder %s18, 0
      %p253 = por %p251, %p252
      %p254 = scmp.ne.s32.totalorder %s243, %s246
      %p255 = scmp.eq.s32.totalorder %s23, 1
      %p256 = por %p254, %p255
      %p257 = scmp.ne.s32.totalorder %s246, %s247
      %p258 = scmp.eq.s32.totalorder %s23, 0
      %p259 = por %p257, %p258
      %p260 = scmp.ne.s32.totalorder %s246, %s247
      %p261 = scmp.eq.s32.totalorder %s24, 1
      %p262 = por %p260, %p261
      %p264 = scmp.ne.s32.totalorder %s247, %s263
      %p265 = scmp.eq.s32.totalorder %s24, 0
      %p266 = por %p264, %p265
      %p267 = scmp.le.s32.totalorder 1, %s18
      %p268 = scmp.lt.s32.totalorder %s18, 3
      %p269 = pnand %p267, %p268
      %p270 = pneg %p269
      // Predicated region
      $region9: #{inception_forward.1} parent=5 // pred_check
        _
      $region10: #{inception_forward.1} parent=5 // pred_check_branch
        %272 = sbr.rel (%p269) target = $region12
      $region11: #{inception_forward.1} parent=5 // pred_region
        %s273 = ssub.s32 %s18, 1
        // Predicated region
        $region13: #{inception_forward.1} parent=11 // pred_check
          %p274 = pneg %p65
        $region14: #{inception_forward.1} parent=11 // pred_check_branch
          %276 = sbr.rel (%p274) target = $region16
        $region15: #{inception_forward.1} parent=11 // pred_region
          _
        $region16: #{inception_forward.1} parent=11 // pred_fallthru
          _
        // Predicated region
        $region17: #{inception_forward.1} parent=11 // pred_check
          %p277 = pneg %p86
        $region18: #{inception_forward.1} parent=11 // pred_check_branch
          %279 = sbr.rel (%p277) target = $region20
        $region19: #{inception_forward.1} parent=11 // pred_region
          _
        $region20: #{inception_forward.1} parent=11 // pred_fallthru
          _
        // Predicated region
        $region21: #{inception_forward.1} parent=11 // pred_check
          %p280 = pneg %p107
        $region22: #{inception_forward.1} parent=11 // pred_check_branch
          %282 = sbr.rel (%p280) target = $region24
        $region23: #{inception_forward.1} parent=11 // pred_region
          _
        $region24: #{inception_forward.1} parent=11 // pred_fallthru
          _
        // Predicated region
        $region25: #{inception_forward.1} parent=11 // pred_check
          %p283 = pneg %p128
        $region26: #{inception_forward.1} parent=11 // pred_check_branch
          %285 = sbr.rel (%p283) target = $region28
        $region27: #{inception_forward.1} parent=11 // pred_region
          %287 = vsyncadd [#allocation6], 0
          %s288 = sshll.u32 %s4, 4
          %s289 = int_to_ptr.hbm [resolvable:$true] %s288
          %s290 = sshll.u32 [#allocation5], 4
          %s291 = int_to_ptr.vmem [resolvable:$true] %s290
          %296 = dma.hbm_to_vmem [thread:$0]  %s289, 9216, %s291, [#allocation6], 64, 64, 4
        $region28: #{inception_forward.1} parent=11 // pred_fallthru
          _
        // Predicated region
        $region29: #{inception_forward.1} parent=11 // pred_check
          %p297 = pneg %p149
        $region30: #{inception_forward.1} parent=11 // pred_check_branch
          %299 = sbr.rel (%p297) target = $region32
        $region31: #{inception_forward.1} parent=11 // pred_region
          _
        $region32: #{inception_forward.1} parent=11 // pred_fallthru
          _
        // Predicated region
        $region33: #{inception_forward.1} parent=11 // pred_check
          %p300 = pneg %p170
        $region34: #{inception_forward.1} parent=11 // pred_check_branch
          %302 = sbr.rel (%p300) target = $region36
        $region35: #{inception_forward.1} parent=11 // pred_region
          %304 = vsyncadd [#allocation8], 0
          %s305 = sshll.u32 %s6, 4
          %s306 = int_to_ptr.hbm [resolvable:$true] %s305
          %s307 = sshll.u32 [#allocation7], 4
          %s308 = int_to_ptr.vmem [resolvable:$true] %s307
          %313 = dma.hbm_to_vmem [thread:$0]  %s306, 9216, %s308, [#allocation8], 64, 64, 4
        $region36: #{inception_forward.1} parent=11 // pred_fallthru
          _
        // Predicated region
        $region37: #{inception_forward.1} parent=11 // pred_check
          %p314 = pneg %p191
        $region38: #{inception_forward.1} parent=11 // pred_check_branch
          %316 = sbr.rel (%p314) target = $region40
        $region39: #{inception_forward.1} parent=11 // pred_region
          _
        $region40: #{inception_forward.1} parent=11 // pred_fallthru
          _
        // Predicated region
        $region41: #{inception_forward.1} parent=11 // pred_check
          %p317 = pneg %p212
        $region42: #{inception_forward.1} parent=11 // pred_check_branch
          %319 = sbr.rel (%p317) target = $region44
        $region43: #{inception_forward.1} parent=11 // pred_region
          _
        $region44: #{inception_forward.1} parent=11 // pred_fallthru
          _
        // Predicated region
        $region45: #{inception_forward.1} parent=11 // pred_check
          %p320 = pneg %p233
        $region46: #{inception_forward.1} parent=11 // pred_check_branch
          %322 = sbr.rel (%p320) target = $region48
        $region47: #{inception_forward.1} parent=11 // pred_region
          _
        $region48: #{inception_forward.1} parent=11 // pred_fallthru
          _
      $region12: #{inception_forward.1} parent=5 // pred_fallthru
        _
      %p323 = scmp.lt.s32.totalorder %s18, 2
      // Predicated region
      $region49: #{inception_forward.1} parent=5 // pred_check
        %p324 = pneg %p323
      $region50: #{inception_forward.1} parent=5 // pred_check_branch
        %326 = sbr.rel (%p324) target = $region52
      $region51: #{inception_forward.1} parent=5 // pred_region
        // Predicated region
        $region53: #{inception_forward.1} parent=51 // pred_check
          %p327 = pneg %p38
        $region54: #{inception_forward.1} parent=51 // pred_check_branch
          %329 = sbr.rel (%p327) target = $region56
        $region55: #{inception_forward.1} parent=51 // pred_region
          %p330 = scmp.lt.s32.totalorder %s18, 1
          %s331 = scalar_select %p330, %s18, 1
          %s332 = smul.addr %s331, 32
          %s333 = smul.addr %s332, 4
          %s334 = scalar_lea.vmem %s0, %s333
        $region56: #{inception_forward.1} parent=51 // pred_fallthru
          _
      $region52: #{inception_forward.1} parent=5 // pred_fallthru
        _
      %p335 = scmp.le.s32.totalorder 1, %s18
      %p336 = scmp.lt.s32.totalorder %s18, 3
      %p337 = pnand %p335, %p336
      %p338 = pneg %p337
      // Predicated region
      $region57: #{inception_forward.1} parent=5 // pred_check
        _
      $region58: #{inception_forward.1} parent=5 // pred_check_branch
        %340 = sbr.rel (%p337) target = $region60
      $region59: #{inception_forward.1} parent=5 // pred_region
        %s341 = ssub.s32 %s18, 1
        // Predicated region
        $region61: #{inception_forward.1} parent=59 // pred_check
          %p342 = pneg %p128
        $region62: #{inception_forward.1} parent=59 // pred_check_branch
          %344 = sbr.rel (%p342) target = $region64
        $region63: #{inception_forward.1} parent=59 // pred_region
          %346 = dma.done [#allocation6], 9216
        $region64: #{inception_forward.1} parent=59 // pred_fallthru
          _
        // Predicated region
        $region65: #{inception_forward.1} parent=59 // pred_check
          %p347 = pneg %p170
        $region66: #{inception_forward.1} parent=59 // pred_check_branch
          %349 = sbr.rel (%p347) target = $region68
        $region67: #{inception_forward.1} parent=59 // pred_region
          %351 = dma.done [#allocation8], 9216
        $region68: #{inception_forward.1} parent=59 // pred_fallthru
          _
        %p352 = scmp.lt.s32.totalorder %s23, 1
        %s353 = scalar_select %p352, %s23, 1
        %s354 = smul.addr %s353, 32
        %s355 = smul.addr %s354, 4
        %s356 = scalar_lea.vmem %s0, %s355
        %p357 = pneg %p44
        %p358 = pneg %p41
        %p359 = pneg %p65
        %p360 = pneg %p62
        %p361 = pneg %p86
        %p362 = pneg %p83
        %p363 = pneg %p107
        %p364 = pneg %p104
        %p365 = pneg %p128
        %p366 = pneg %p125
        %p367 = pneg %p149
        %p368 = pneg %p146
        %p369 = pneg %p170
        %p370 = pneg %p167
        %p371 = pneg %p191
        %p372 = pneg %p188
        %p373 = pneg %p212
        %p374 = pneg %p209
        %p375 = pneg %p233
        %p376 = pneg %p230
        %p377 = pneg %p259
        %p378 = pneg %p256
        %p379 = scmp.lt.s32.totalorder %s23, 1
        %s380 = scalar_select %p379, %s23, 1
        %s381 = smul.addr %s380, 128
        %s382 = smul.addr %s381, 8
        %s383 = scalar_lea.vmem %s10, %s382
        %p384 = scmp.lt.s32.totalorder %s23, 1
        %s385 = scalar_select %p384, %s23, 1
        %s386 = smul.addr %s385, 32
        %s387 = smul.addr %s386, 4
        %s388 = scalar_lea.vmem %s0, %s387
        %p389 = scmp.lt.s32.totalorder %s23, 1
        %s390 = scalar_select %p389, %s23, 1
        %s391 = smul.addr %s390, 128
        %s392 = smul.addr %s391, 8
        %s393 = scalar_lea.vmem %s10, %s392
        %vm398 = vcmask 27648
        %399 = vst.msk [vmem:[#allocation2] sm:$0xf] %vm398, 4286644096
        %400 = vst.msk [vmem:[#allocation2 + $0x4] sm:$0xf] %vm398, 4286644096
        %401 = vst.msk [vmem:[#allocation2 + $0x8] sm:$0xf] %vm398, 4286644096
        %402 = vst.msk [vmem:[#allocation2 + $0x8c] sm:$0xf] %vm398, 4286644096
        %403 = vst.msk [vmem:[#allocation2 + $0x90] sm:$0xf] %vm398, 4286644096
        %404 = vst.msk [vmem:[#allocation2 + $0x94] sm:$0xf] %vm398, 4286644096
        %405 = vst [vmem:[#allocation3] sm:$0xf] 0
        %406 = vst [vmem:[#allocation3 + $0x4] sm:$0xf] 0
        %407 = vst [vmem:[#allocation3 + $0x8] sm:$0xf] 0
        %408 = vst [vmem:[#allocation3 + $0x8c] sm:$0xf] 0
        %409 = vst [vmem:[#allocation3 + $0x90] sm:$0xf] 0
        %410 = vst [vmem:[#allocation3 + $0x94] sm:$0xf] 0
        %411 = vst [vmem:[#allocation4] sm:$0xf] 0
        %412 = vst [vmem:[#allocation4 + $0x4] sm:$0xf] 0
        %413 = vst [vmem:[#allocation4 + $0x8] sm:$0xf] 0
        %414 = vst [vmem:[#allocation4 + $0x8c] sm:$0xf] 0
        %415 = vst [vmem:[#allocation4 + $0x90] sm:$0xf] 0
        %416 = vst [vmem:[#allocation4 + $0x94] sm:$0xf] 0
        %v417 = vld [vmem:[%s388] sm:$0xf]
        %v418 = vld [vmem:[%s388 + $0x4] sm:$0xf]
        %v419 = vld [vmem:[%s388 + $0x8] sm:$0xf]
        %v420 = vld [vmem:[%s388 + $0xc] sm:$0xf]
        %v421 = vld [vmem:[%s388 + $0x10] sm:$0xf]
        %v422 = vld [vmem:[%s388 + $0x14] sm:$0xf]
        %v423 = vld [vmem:[%s388 + $0x18] sm:$0xf]
        %v424 = vld [vmem:[%s388 + $0x1c] sm:$0xf]
        %v425 = vld [vmem:[%s388 + $0x20] sm:$0xf]
        %v426 = vld [vmem:[%s388 + $0x24] sm:$0xf]
        %v427 = vld [vmem:[%s388 + $0x28] sm:$0xf]
        %v428 = vld [vmem:[%s388 + $0x2c] sm:$0xf]
        %v429 = vld [vmem:[%s388 + $0x30] sm:$0xf]
        %v430 = vld [vmem:[%s388 + $0x34] sm:$0xf]
        %v431 = vld [vmem:[%s388 + $0x38] sm:$0xf]
        %v432 = vld [vmem:[%s388 + $0x3c] sm:$0xf]
        %v433 = vld [vmem:[%s388 + $0x40] sm:$0xf]
        %v434 = vld [vmem:[%s388 + $0x44] sm:$0xf]
        %v435 = vld [vmem:[%s388 + $0x48] sm:$0xf]
        %v436 = vld [vmem:[%s388 + $0x4c] sm:$0xf]
        %v437 = vld [vmem:[%s388 + $0x50] sm:$0xf]
        %v438 = vld [vmem:[%s388 + $0x54] sm:$0xf]
        %v439 = vld [vmem:[%s388 + $0x58] sm:$0xf]
        %v440 = vld [vmem:[%s388 + $0x5c] sm:$0xf]
        %v441 = vld [vmem:[%s388 + $0x60] sm:$0xf]
        %v442 = vld [vmem:[%s388 + $0x64] sm:$0xf]
        %v443 = vld [vmem:[%s388 + $0x68] sm:$0xf]
        %v444 = vld [vmem:[%s388 + $0x6c] sm:$0xf]
        %v445 = vld [vmem:[%s388 + $0x70] sm:$0xf]
        %v446 = vld [vmem:[%s388 + $0x74] sm:$0xf]
        %v447 = vld [vmem:[%s388 + $0x78] sm:$0xf]
        %v448 = vld [vmem:[%s388 + $0x7c] sm:$0xf]
        %v449 = vld [vmem:[%s1] sm:$0xf]
        %v450 = vld [vmem:[%s1 + $0x4] sm:$0xf]
        %v451 = vld [vmem:[%s1 + $0x8] sm:$0xf]
        %v452 = vld [vmem:[%s1 + $0xc] sm:$0xf]
        %v453 = vld [vmem:[%s1 + $0x10] sm:$0xf]
        %v454 = vld [vmem:[%s1 + $0x14] sm:$0xf]
        %v455 = vld [vmem:[%s1 + $0x18] sm:$0xf]
        %v456 = vld [vmem:[%s1 + $0x1c] sm:$0xf]
        %v457 = vld [vmem:[%s1 + $0x20] sm:$0xf]
        %v458 = vld [vmem:[%s1 + $0x24] sm:$0xf]
        %v459 = vld [vmem:[%s1 + $0x28] sm:$0xf]
        %v460 = vld [vmem:[%s1 + $0x2c] sm:$0xf]
        %v461 = vld [vmem:[%s1 + $0x30] sm:$0xf]
        %v462 = vld [vmem:[%s1 + $0x34] sm:$0xf]
        %v463 = vld [vmem:[%s1 + $0x38] sm:$0xf]
        %v464 = vld [vmem:[%s1 + $0x3c] sm:$0xf]
        %v465 = vld [vmem:[%s1 + $0x40] sm:$0xf]
        %v466 = vld [vmem:[%s1 + $0x44] sm:$0xf]
        %v467 = vld [vmem:[%s1 + $0x48] sm:$0xf]
        %v468 = vld [vmem:[%s1 + $0x4c] sm:$0xf]
        %v469 = vld [vmem:[%s1 + $0x50] sm:$0xf]
        %v470 = vld [vmem:[%s1 + $0x54] sm:$0xf]
        %v471 = vld [vmem:[%s1 + $0x58] sm:$0xf]
        %v472 = vld [vmem:[%s1 + $0x5c] sm:$0xf]
        %v473 = vld [vmem:[%s1 + $0x60] sm:$0xf]
        %v474 = vld [vmem:[%s1 + $0x64] sm:$0xf]
        %v475 = vld [vmem:[%s1 + $0x68] sm:$0xf]
        %v476 = vld [vmem:[%s1 + $0x6c] sm:$0xf]
        %v477 = vld [vmem:[%s1 + $0x70] sm:$0xf]
        %v478 = vld [vmem:[%s1 + $0x74] sm:$0xf]
        %v479 = vld [vmem:[%s1 + $0x78] sm:$0xf]
        %v480 = vld [vmem:[%s1 + $0x7c] sm:$0xf]
        %v481 = vunpack.c.l.bf16 %v449
        %v482 = vunpack.c.l.bf16 %v450
        %v483 = vunpack.c.l.bf16 %v451
        %v484 = vunpack.c.l.bf16 %v452
        %v485 = vunpack.c.l.bf16 %v453
        %v486 = vunpack.c.l.bf16 %v454
        %v487 = vunpack.c.l.bf16 %v455
        %v488 = vunpack.c.l.bf16 %v456
        %v489 = vunpack.c.l.bf16 %v457
        %v490 = vunpack.c.l.bf16 %v458
        %v491 = vunpack.c.l.bf16 %v459
        %v492 = vunpack.c.l.bf16 %v460
        %v493 = vunpack.c.l.bf16 %v461
        %v494 = vunpack.c.l.bf16 %v462
        %v495 = vunpack.c.l.bf16 %v463
        %v496 = vunpack.c.l.bf16 %v464
        %v497 = vunpack.c.l.bf16 %v465
        %v498 = vunpack.c.l.bf16 %v466
        %v499 = vunpack.c.l.bf16 %v467
        %v500 = vunpack.c.l.bf16 %v468
        %v501 = vunpack.c.l.bf16 %v469
        %v502 = vunpack.c.l.bf16 %v470
        %v503 = vunpack.c.l.bf16 %v471
        %v504 = vunpack.c.l.bf16 %v472
        %v505 = vunpack.c.l.bf16 %v473
        %v506 = vunpack.c.l.bf16 %v474
        %v507 = vunpack.c.l.bf16 %v475
        %v508 = vunpack.c.l.bf16 %v476
        %v509 = vunpack.c.l.bf16 %v477
        %v510 = vunpack.c.l.bf16 %v478
        %v511 = vunpack.c.l.bf16 %v479
        %v512 = vunpack.c.l.bf16 %v480
        %vm513 = vcmp.gt.f32.partialorder %v481, 0.0
        %vm514 = vcmp.gt.f32.partialorder %v482, 0.0
        %vm515 = vcmp.gt.f32.partialorder %v483, 0.0
        %vm516 = vcmp.gt.f32.partialorder %v484, 0.0
        %vm517 = vcmp.gt.f32.partialorder %v485, 0.0
        %vm518 = vcmp.gt.f32.partialorder %v486, 0.0
        %vm519 = vcmp.gt.f32.partialorder %v487, 0.0
        %vm520 = vcmp.gt.f32.partialorder %v488, 0.0
        %vm521 = vcmp.gt.f32.partialorder %v489, 0.0
        %vm522 = vcmp.gt.f32.partialorder %v490, 0.0
        %vm523 = vcmp.gt.f32.partialorder %v491, 0.0
        %vm524 = vcmp.gt.f32.partialorder %v492, 0.0
        %vm525 = vcmp.gt.f32.partialorder %v493, 0.0
        %vm526 = vcmp.gt.f32.partialorder %v494, 0.0
        %vm527 = vcmp.gt.f32.partialorder %v495, 0.0
        %vm528 = vcmp.gt.f32.partialorder %v496, 0.0
        %vm529 = vcmp.gt.f32.partialorder %v497, 0.0
        %vm530 = vcmp.gt.f32.partialorder %v498, 0.0
        %vm531 = vcmp.gt.f32.partialorder %v499, 0.0
        %vm532 = vcmp.gt.f32.partialorder %v500, 0.0
        %vm533 = vcmp.gt.f32.partialorder %v501, 0.0
        %vm534 = vcmp.gt.f32.partialorder %v502, 0.0
        %vm535 = vcmp.gt.f32.partialorder %v503, 0.0
        %vm536 = vcmp.gt.f32.partialorder %v504, 0.0
        %vm537 = vcmp.gt.f32.partialorder %v505, 0.0
        %vm538 = vcmp.gt.f32.partialorder %v506, 0.0
        %vm539 = vcmp.gt.f32.partialorder %v507, 0.0
        %vm540 = vcmp.gt.f32.partialorder %v508, 0.0
        %vm541 = vcmp.gt.f32.partialorder %v509, 0.0
        %vm542 = vcmp.gt.f32.partialorder %v510, 0.0
        %vm543 = vcmp.gt.f32.partialorder %v511, 0.0
        %vm544 = vcmp.gt.f32.partialorder %v512, 0.0
        %v545 = vld [vmem:[%s2] sm:$0x3f]
        %v546 = vld [vmem:[%s3] sm:$0x7]
        %v548 = vperm.slane %v546, 0
        %v549 = vperm.slane %v546, 1
        %v550 = vperm.slane %v546, 2
        %v586 = vunpack.c.l.b16 %v417
        %v587 = vunpack.c.l.b16 %v418
        %v588 = vunpack.c.l.b16 %v419
        %v589 = vunpack.c.l.b16 %v420
        %v590 = vunpack.c.l.b16 %v421
        %v591 = vunpack.c.l.b16 %v422
        %v592 = vunpack.c.l.b16 %v423
        %v593 = vunpack.c.l.b16 %v424
        %v594 = vunpack.c.l.b16 %v425
        %v595 = vunpack.c.l.b16 %v426
        %v596 = vunpack.c.l.b16 %v427
        %v597 = vunpack.c.l.b16 %v428
        %v598 = vunpack.c.l.b16 %v429
        %v599 = vunpack.c.l.b16 %v430
        %v600 = vunpack.c.l.b16 %v431
        %v601 = vunpack.c.l.b16 %v432
        %v602 = vunpack.c.l.b16 %v433
        %v603 = vunpack.c.l.b16 %v434
        %v604 = vunpack.c.l.b16 %v435
        %v605 = vunpack.c.l.b16 %v436
        %v606 = vunpack.c.l.b16 %v437
        %v607 = vunpack.c.l.b16 %v438
        %v608 = vunpack.c.l.b16 %v439
        %v609 = vunpack.c.l.b16 %v440
        %v610 = vunpack.c.l.b16 %v441
        %v611 = vunpack.c.l.b16 %v442
        %v612 = vunpack.c.l.b16 %v443
        %v613 = vunpack.c.l.b16 %v444
        %v614 = vunpack.c.l.b16 %v445
        %v615 = vunpack.c.l.b16 %v446
        %v616 = vunpack.c.l.b16 %v447
        %v617 = vunpack.c.l.b16 %v448
        %v618 = vpack.c.b16 %v587, %v586
        %v619 = vpack.c.b16 %v589, %v588
        %v620 = vpack.c.b16 %v591, %v590
        %v621 = vpack.c.b16 %v593, %v592
        %v622 = vpack.c.b16 %v595, %v594
        %v623 = vpack.c.b16 %v597, %v596
        %v624 = vpack.c.b16 %v599, %v598
        %v625 = vpack.c.b16 %v601, %v600
        %v626 = vpack.c.b16 %v603, %v602
        %v627 = vpack.c.b16 %v605, %v604
        %v628 = vpack.c.b16 %v607, %v606
        %v629 = vpack.c.b16 %v609, %v608
        %v630 = vpack.c.b16 %v611, %v610
        %v631 = vpack.c.b16 %v613, %v612
        %v632 = vpack.c.b16 %v615, %v614
        %v633 = vpack.c.b16 %v617, %v616
        %635 = vst [vmem:[#allocation1] ss:$4 sm:$0xff] %v545
        %v636 = vld.sshfl [vmem:[#allocation1] sm:$0xff pattern:$0x73625140]
        %v637 = vld.sshfl [vmem:[#allocation1 + $0x8] sm:$0xff pattern:$0x73625140]
        %v638 = vld.sshfl [vmem:[#allocation1 + $0x10] sm:$0xff pattern:$0x73625140]
        %vm639 = vcmask 31744
        %v641 = vsel %vm639, %v618, 0
        %v644 = vsel %vm639, %v619, 0
        %v647 = vsel %vm639, %v620, 0
        %v650 = vsel %vm639, %v621, 0
        %v653 = vsel %vm639, %v622, 0
        %v656 = vsel %vm639, %v623, 0
        %v659 = vsel %vm639, %v624, 0
        %v662 = vsel %vm639, %v625, 0
        %v665 = vsel %vm639, %v626, 0
        %v668 = vsel %vm639, %v627, 0
        %v671 = vsel %vm639, %v628, 0
        %v674 = vsel %vm639, %v629, 0
        %v677 = vsel %vm639, %v630, 0
        %v680 = vsel %vm639, %v631, 0
        %v683 = vsel %vm639, %v632, 0
        %v686 = vsel %vm639, %v633, 0
        %vm688 = vcmask 1041408
        %v689 = vsel %vm688, %v636, 0
        %v691 = vsel %vm688, %v637, 0
        %v693 = vsel %vm688, %v638, 0
        %695 = vmatpush.bf16.msra.mxu0 0
        %696 = vmatpush.bf16.msra.mxu0 0
        %697 = vmatpush.bf16.msra.mxu0 0
        %698 = vmatpush.bf16.msra.mxu0 0
        %699 = vmatpush.bf16.msra.mxu0 0
        %700 = vmatpush.bf16.msra.mxu0 0
        %701 = vmatpush.bf16.msra.mxu0 0
        %702 = vmatpush.bf16.msra.mxu0 %v689
        %703 = vmatmul.bf16.gmra.mxu0 %v641
        %v704 = vpop.f32.mrf.mxu0
        %v705 = vadd.f32 %v548, %v704
        %v706 = vpop.f32.mrf.mxu0
        %v707 = vadd.f32 %v548, %v706
        %708 = vmatmul.bf16.gmra.mxu0 %v644
        %v709 = vpop.f32.mrf.mxu0
        %v710 = vadd.f32 %v548, %v709
        %v711 = vpop.f32.mrf.mxu0
        %v712 = vadd.f32 %v548, %v711
        %713 = vmatmul.bf16.gmra.mxu0 %v647
        %v714 = vpop.f32.mrf.mxu0
        %v715 = vadd.f32 %v548, %v714
        %v716 = vpop.f32.mrf.mxu0
        %v717 = vadd.f32 %v548, %v716
        %718 = vmatmul.bf16.gmra.mxu0 %v650
        %v719 = vpop.f32.mrf.mxu0
        %v720 = vadd.f32 %v548, %v719
        %v721 = vpop.f32.mrf.mxu0
        %v722 = vadd.f32 %v548, %v721
        %723 = vmatmul.bf16.gmra.mxu0 %v653
        %v724 = vpop.f32.mrf.mxu0
        %v725 = vadd.f32 %v548, %v724
        %v726 = vpop.f32.mrf.mxu0
        %v727 = vadd.f32 %v548, %v726
        %728 = vmatmul.bf16.gmra.mxu0 %v656
        %v729 = vpop.f32.mrf.mxu0
        %v730 = vadd.f32 %v548, %v729
        %v731 = vpop.f32.mrf.mxu0
        %v732 = vadd.f32 %v548, %v731
        %733 = vmatmul.bf16.gmra.mxu0 %v659
        %v734 = vpop.f32.mrf.mxu0
        %v735 = vadd.f32 %v548, %v734
        %v736 = vpop.f32.mrf.mxu0
        %v737 = vadd.f32 %v548, %v736
        %738 = vmatmul.bf16.gmra.mxu0 %v662
        %v739 = vpop.f32.mrf.mxu0
        %v740 = vadd.f32 %v548, %v739
        %v741 = vpop.f32.mrf.mxu0
        %v742 = vadd.f32 %v548, %v741
        %743 = vmatmul.bf16.gmra.mxu0 %v665
        %v744 = vpop.f32.mrf.mxu0
        %v745 = vadd.f32 %v548, %v744
        %v746 = vpop.f32.mrf.mxu0
        %v747 = vadd.f32 %v548, %v746
        %748 = vmatmul.bf16.gmra.mxu0 %v668
        %v749 = vpop.f32.mrf.mxu0
        %v750 = vadd.f32 %v548, %v749
        %v751 = vpop.f32.mrf.mxu0
        %v752 = vadd.f32 %v548, %v751
        %753 = vmatmul.bf16.gmra.mxu0 %v671
        %v754 = vpop.f32.mrf.mxu0
        %v755 = vadd.f32 %v548, %v754
        %v756 = vpop.f32.mrf.mxu0
        %v757 = vadd.f32 %v548, %v756
        %758 = vmatmul.bf16.gmra.mxu0 %v674
        %v759 = vpop.f32.mrf.mxu0
        %v760 = vadd.f32 %v548, %v759
        %v761 = vpop.f32.mrf.mxu0
        %v762 = vadd.f32 %v548, %v761
        %763 = vmatmul.bf16.gmra.mxu0 %v677
        %v764 = vpop.f32.mrf.mxu0
        %v765 = vadd.f32 %v548, %v764
        %v766 = vpop.f32.mrf.mxu0
        %v767 = vadd.f32 %v548, %v766
        %768 = vmatmul.bf16.gmra.mxu0 %v680
        %v769 = vpop.f32.mrf.mxu0
        %v770 = vadd.f32 %v548, %v769
        %v771 = vpop.f32.mrf.mxu0
        %v772 = vadd.f32 %v548, %v771
        %773 = vmatmul.bf16.gmra.mxu0 %v683
        %v774 = vpop.f32.mrf.mxu0
        %v775 = vadd.f32 %v548, %v774
        %v776 = vpop.f32.mrf.mxu0
        %v777 = vadd.f32 %v548, %v776
        %778 = vmatmul.bf16.gmra.mxu0 %v686
        %v779 = vpop.f32.mrf.mxu0
        %v780 = vadd.f32 %v548, %v779
        %v781 = vpop.f32.mrf.mxu0
        %v782 = vadd.f32 %v548, %v781
        %783 = vdwg.mxu0
        %784 = vmatpush.bf16.msra.mxu0 0
        %785 = vmatpush.bf16.msra.mxu0 0
        %786 = vmatpush.bf16.msra.mxu0 0
        %787 = vmatpush.bf16.msra.mxu0 0
        %788 = vmatpush.bf16.msra.mxu0 0
        %789 = vmatpush.bf16.msra.mxu0 0
        %790 = vmatpush.bf16.msra.mxu0 0
        %791 = vmatpush.bf16.msra.mxu0 %v691
        %792 = vmatmul.bf16.gmra.mxu0 %v641
        %v793 = vpop.f32.mrf.mxu0
        %v794 = vadd.f32 %v549, %v793
        %v795 = vpop.f32.mrf.mxu0
        %v796 = vadd.f32 %v549, %v795
        %797 = vmatmul.bf16.gmra.mxu0 %v644
        %v798 = vpop.f32.mrf.mxu0
        %v799 = vadd.f32 %v549, %v798
        %v800 = vpop.f32.mrf.mxu0
        %v801 = vadd.f32 %v549, %v800
        %802 = vmatmul.bf16.gmra.mxu0 %v647
        %v803 = vpop.f32.mrf.mxu0
        %v804 = vadd.f32 %v549, %v803
        %v805 = vpop.f32.mrf.mxu0
        %v806 = vadd.f32 %v549, %v805
        %807 = vmatmul.bf16.gmra.mxu0 %v650
        %v808 = vpop.f32.mrf.mxu0
        %v809 = vadd.f32 %v549, %v808
        %v810 = vpop.f32.mrf.mxu0
        %v811 = vadd.f32 %v549, %v810
        %812 = vmatmul.bf16.gmra.mxu0 %v653
        %v813 = vpop.f32.mrf.mxu0
        %v814 = vadd.f32 %v549, %v813
        %v815 = vpop.f32.mrf.mxu0
        %v816 = vadd.f32 %v549, %v815
        %817 = vmatmul.bf16.gmra.mxu0 %v656
        %v818 = vpop.f32.mrf.mxu0
        %v819 = vadd.f32 %v549, %v818
        %v820 = vpop.f32.mrf.mxu0
        %v821 = vadd.f32 %v549, %v820
        %822 = vmatmul.bf16.gmra.mxu0 %v659
        %v823 = vpop.f32.mrf.mxu0
        %v824 = vadd.f32 %v549, %v823
        %v825 = vpop.f32.mrf.mxu0
        %v826 = vadd.f32 %v549, %v825
        %827 = vmatmul.bf16.gmra.mxu0 %v662
        %v828 = vpop.f32.mrf.mxu0
        %v829 = vadd.f32 %v549, %v828
        %v830 = vpop.f32.mrf.mxu0
        %v831 = vadd.f32 %v549, %v830
        %832 = vmatmul.bf16.gmra.mxu0 %v665
        %v833 = vpop.f32.mrf.mxu0
        %v834 = vadd.f32 %v549, %v833
        %v835 = vpop.f32.mrf.mxu0
        %v836 = vadd.f32 %v549, %v835
        %837 = vmatmul.bf16.gmra.mxu0 %v668
        %v838 = vpop.f32.mrf.mxu0
        %v839 = vadd.f32 %v549, %v838
        %v840 = vpop.f32.mrf.mxu0
        %v841 = vadd.f32 %v549, %v840
        %842 = vmatmul.bf16.gmra.mxu0 %v671
        %v843 = vpop.f32.mrf.mxu0
        %v844 = vadd.f32 %v549, %v843
        %v845 = vpop.f32.mrf.mxu0
        %v846 = vadd.f32 %v549, %v845
        %847 = vmatmul.bf16.gmra.mxu0 %v674
        %v848 = vpop.f32.mrf.mxu0
        %v849 = vadd.f32 %v549, %v848
        %v850 = vpop.f32.mrf.mxu0
        %v851 = vadd.f32 %v549, %v850
        %852 = vmatmul.bf16.gmra.mxu0 %v677
        %v853 = vpop.f32.mrf.mxu0
        %v854 = vadd.f32 %v549, %v853
        %v855 = vpop.f32.mrf.mxu0
        %v856 = vadd.f32 %v549, %v855
        %857 = vmatmul.bf16.gmra.mxu0 %v680
        %v858 = vpop.f32.mrf.mxu0
        %v859 = vadd.f32 %v549, %v858
        %v860 = vpop.f32.mrf.mxu0
        %v861 = vadd.f32 %v549, %v860
        %862 = vmatmul.bf16.gmra.mxu0 %v683
        %v863 = vpop.f32.mrf.mxu0
        %v864 = vadd.f32 %v549, %v863
        %v865 = vpop.f32.mrf.mxu0
        %v866 = vadd.f32 %v549, %v865
        %867 = vmatmul.bf16.gmra.mxu0 %v686
        %v868 = vpop.f32.mrf.mxu0
        %v869 = vadd.f32 %v549, %v868
        %v870 = vpop.f32.mrf.mxu0
        %v871 = vadd.f32 %v549, %v870
        %872 = vdwg.mxu0
        %873 = vmatpush.bf16.msra.mxu0 0
        %874 = vmatpush.bf16.msra.mxu0 0
        %875 = vmatpush.bf16.msra.mxu0 0
        %876 = vmatpush.bf16.msra.mxu0 0
        %877 = vmatpush.bf16.msra.mxu0 0
        %878 = vmatpush.bf16.msra.mxu0 0
        %879 = vmatpush.bf16.msra.mxu0 0
        %880 = vmatpush.bf16.msra.mxu0 %v693
        %881 = vmatmul.bf16.gmra.mxu0 %v641
        %v882 = vpop.f32.mrf.mxu0
        %v883 = vadd.f32 %v550, %v882
        %v884 = vpop.f32.mrf.mxu0
        %v885 = vadd.f32 %v550, %v884
        %886 = vmatmul.bf16.gmra.mxu0 %v644
        %v887 = vpop.f32.mrf.mxu0
        %v888 = vadd.f32 %v550, %v887
        %v889 = vpop.f32.mrf.mxu0
        %v890 = vadd.f32 %v550, %v889
        %891 = vmatmul.bf16.gmra.mxu0 %v647
        %v892 = vpop.f32.mrf.mxu0
        %v893 = vadd.f32 %v550, %v892
        %v894 = vpop.f32.mrf.mxu0
        %v895 = vadd.f32 %v550, %v894
        %896 = vmatmul.bf16.gmra.mxu0 %v650
        %v897 = vpop.f32.mrf.mxu0
        %v898 = vadd.f32 %v550, %v897
        %v899 = vpop.f32.mrf.mxu0
        %v900 = vadd.f32 %v550, %v899
        %901 = vmatmul.bf16.gmra.mxu0 %v653
        %v902 = vpop.f32.mrf.mxu0
        %v903 = vadd.f32 %v550, %v902
        %v904 = vpop.f32.mrf.mxu0
        %v905 = vadd.f32 %v550, %v904
        %906 = vmatmul.bf16.gmra.mxu0 %v656
        %v907 = vpop.f32.mrf.mxu0
        %v908 = vadd.f32 %v550, %v907
        %v909 = vpop.f32.mrf.mxu0
        %v910 = vadd.f32 %v550, %v909
        %911 = vmatmul.bf16.gmra.mxu0 %v659
        %v912 = vpop.f32.mrf.mxu0
        %v913 = vadd.f32 %v550, %v912
        %v914 = vpop.f32.mrf.mxu0
        %v915 = vadd.f32 %v550, %v914
        %916 = vmatmul.bf16.gmra.mxu0 %v662
        %v917 = vpop.f32.mrf.mxu0
        %v918 = vadd.f32 %v550, %v917
        %v919 = vpop.f32.mrf.mxu0
        %v920 = vadd.f32 %v550, %v919
        %921 = vmatmul.bf16.gmra.mxu0 %v665
        %v922 = vpop.f32.mrf.mxu0
        %v923 = vadd.f32 %v550, %v922
        %v924 = vpop.f32.mrf.mxu0
        %v925 = vadd.f32 %v550, %v924
        %926 = vmatmul.bf16.gmra.mxu0 %v668
        %v927 = vpop.f32.mrf.mxu0
        %v928 = vadd.f32 %v550, %v927
        %v929 = vpop.f32.mrf.mxu0
        %v930 = vadd.f32 %v550, %v929
        %931 = vmatmul.bf16.gmra.mxu0 %v671
        %v932 = vpop.f32.mrf.mxu0
        %v933 = vadd.f32 %v550, %v932
        %v934 = vpop.f32.mrf.mxu0
        %v935 = vadd.f32 %v550, %v934
        %936 = vmatmul.bf16.gmra.mxu0 %v674
        %v937 = vpop.f32.mrf.mxu0
        %v938 = vadd.f32 %v550, %v937
        %v939 = vpop.f32.mrf.mxu0
        %v940 = vadd.f32 %v550, %v939
        %941 = vmatmul.bf16.gmra.mxu0 %v677
        %v942 = vpop.f32.mrf.mxu0
        %v943 = vadd.f32 %v550, %v942
        %v944 = vpop.f32.mrf.mxu0
        %v945 = vadd.f32 %v550, %v944
        %946 = vmatmul.bf16.gmra.mxu0 %v680
        %v947 = vpop.f32.mrf.mxu0
        %v948 = vadd.f32 %v550, %v947
        %v949 = vpop.f32.mrf.mxu0
        %v950 = vadd.f32 %v550, %v949
        %951 = vmatmul.bf16.gmra.mxu0 %v683
        %v952 = vpop.f32.mrf.mxu0
        %v953 = vadd.f32 %v550, %v952
        %v954 = vpop.f32.mrf.mxu0
        %v955 = vadd.f32 %v550, %v954
        %956 = vmatmul.bf16.gmra.mxu0 %v686
        %v957 = vpop.f32.mrf.mxu0
        %v958 = vadd.f32 %v550, %v957
        %v959 = vpop.f32.mrf.mxu0
        %v960 = vadd.f32 %v550, %v959
        %961 = vdwg.mxu0
        %v962 = vmax.f32 %v705, 0.0
        %v963 = vmax.f32 %v794, 0.0
        %v964 = vmax.f32 %v883, 0.0
        %v965 = vmax.f32 %v707, 0.0
        %v966 = vmax.f32 %v796, 0.0
        %v967 = vmax.f32 %v885, 0.0
        %v968 = vmax.f32 %v710, 0.0
        %v969 = vmax.f32 %v799, 0.0
        %v970 = vmax.f32 %v888, 0.0
        %v971 = vmax.f32 %v712, 0.0
        %v972 = vmax.f32 %v801, 0.0
        %v973 = vmax.f32 %v890, 0.0
        %v974 = vmax.f32 %v715, 0.0
        %v975 = vmax.f32 %v804, 0.0
        %v976 = vmax.f32 %v893, 0.0
        %v977 = vmax.f32 %v717, 0.0
        %v978 = vmax.f32 %v806, 0.0
        %v979 = vmax.f32 %v895, 0.0
        %v980 = vmax.f32 %v720, 0.0
        %v981 = vmax.f32 %v809, 0.0
        %v982 = vmax.f32 %v898, 0.0
        %v983 = vmax.f32 %v722, 0.0
        %v984 = vmax.f32 %v811, 0.0
        %v985 = vmax.f32 %v900, 0.0
        %v986 = vmax.f32 %v725, 0.0
        %v987 = vmax.f32 %v814, 0.0
        %v988 = vmax.f32 %v903, 0.0
        %v989 = vmax.f32 %v727, 0.0
        %v990 = vmax.f32 %v816, 0.0
        %v991 = vmax.f32 %v905, 0.0
        %v992 = vmax.f32 %v730, 0.0
        %v993 = vmax.f32 %v819, 0.0
        %v994 = vmax.f32 %v908, 0.0
        %v995 = vmax.f32 %v732, 0.0
        %v996 = vmax.f32 %v821, 0.0
        %v997 = vmax.f32 %v910, 0.0
        %v998 = vmax.f32 %v735, 0.0
        %v999 = vmax.f32 %v824, 0.0
        %v1000 = vmax.f32 %v913, 0.0
        %v1001 = vmax.f32 %v737, 0.0
        %v1002 = vmax.f32 %v826, 0.0
        %v1003 = vmax.f32 %v915, 0.0
        %v1004 = vmax.f32 %v740, 0.0
        %v1005 = vmax.f32 %v829, 0.0
        %v1006 = vmax.f32 %v918, 0.0
        %v1007 = vmax.f32 %v742, 0.0
        %v1008 = vmax.f32 %v831, 0.0
        %v1009 = vmax.f32 %v920, 0.0
        %v1010 = vmax.f32 %v745, 0.0
        %v1011 = vmax.f32 %v834, 0.0
        %v1012 = vmax.f32 %v923, 0.0
        %v1013 = vmax.f32 %v747, 0.0
        %v1014 = vmax.f32 %v836, 0.0
        %v1015 = vmax.f32 %v925, 0.0
        %v1016 = vmax.f32 %v750, 0.0
        %v1017 = vmax.f32 %v839, 0.0
        %v1018 = vmax.f32 %v928, 0.0
        %v1019 = vmax.f32 %v752, 0.0
        %v1020 = vmax.f32 %v841, 0.0
        %v1021 = vmax.f32 %v930, 0.0
        %v1022 = vmax.f32 %v755, 0.0
        %v1023 = vmax.f32 %v844, 0.0
        %v1024 = vmax.f32 %v933, 0.0
        %v1025 = vmax.f32 %v757, 0.0
        %v1026 = vmax.f32 %v846, 0.0
        %v1027 = vmax.f32 %v935, 0.0
        %v1028 = vmax.f32 %v760, 0.0
        %v1029 = vmax.f32 %v849, 0.0
        %v1030 = vmax.f32 %v938, 0.0
        %v1031 = vmax.f32 %v762, 0.0
        %v1032 = vmax.f32 %v851, 0.0
        %v1033 = vmax.f32 %v940, 0.0
        %v1034 = vmax.f32 %v765, 0.0
        %v1035 = vmax.f32 %v854, 0.0
        %v1036 = vmax.f32 %v943, 0.0
        %v1037 = vmax.f32 %v767, 0.0
        %v1038 = vmax.f32 %v856, 0.0
        %v1039 = vmax.f32 %v945, 0.0
        %v1040 = vmax.f32 %v770, 0.0
        %v1041 = vmax.f32 %v859, 0.0
        %v1042 = vmax.f32 %v948, 0.0
        %v1043 = vmax.f32 %v772, 0.0
        %v1044 = vmax.f32 %v861, 0.0
        %v1045 = vmax.f32 %v950, 0.0
        %v1046 = vmax.f32 %v775, 0.0
        %v1047 = vmax.f32 %v864, 0.0
        %v1048 = vmax.f32 %v953, 0.0
        %v1049 = vmax.f32 %v777, 0.0
        %v1050 = vmax.f32 %v866, 0.0
        %v1051 = vmax.f32 %v955, 0.0
        %v1052 = vmax.f32 %v780, 0.0
        %v1053 = vmax.f32 %v869, 0.0
        %v1054 = vmax.f32 %v958, 0.0
        %v1055 = vmax.f32 %v782, 0.0
        %v1056 = vmax.f32 %v871, 0.0
        %v1057 = vmax.f32 %v960, 0.0
        %v1058 = vpack.c.bf16 %v963, %v963
        %v1059 = vpack.c.bf16 %v966, %v966
        %v1060 = vpack.c.bf16 %v969, %v969
        %v1061 = vpack.c.bf16 %v972, %v972
        %v1062 = vpack.c.bf16 %v975, %v975
        %v1063 = vpack.c.bf16 %v978, %v978
        %v1064 = vpack.c.bf16 %v981, %v981
        %v1065 = vpack.c.bf16 %v984, %v984
        %v1066 = vpack.c.bf16 %v987, %v987
        %v1067 = vpack.c.bf16 %v990, %v990
        %v1068 = vpack.c.bf16 %v993, %v993
        %v1069 = vpack.c.bf16 %v996, %v996
        %v1070 = vpack.c.bf16 %v999, %v999
        %v1071 = vpack.c.bf16 %v1002, %v1002
        %v1072 = vpack.c.bf16 %v1005, %v1005
        %v1073 = vpack.c.bf16 %v1008, %v1008
        %v1074 = vpack.c.bf16 %v1011, %v1011
        %v1075 = vpack.c.bf16 %v1014, %v1014
        %v1076 = vpack.c.bf16 %v1017, %v1017
        %v1077 = vpack.c.bf16 %v1020, %v1020
        %v1078 = vpack.c.bf16 %v1023, %v1023
        %v1079 = vpack.c.bf16 %v1026, %v1026
        %v1080 = vpack.c.bf16 %v1029, %v1029
        %v1081 = vpack.c.bf16 %v1032, %v1032
        %v1082 = vpack.c.bf16 %v1035, %v1035
        %v1083 = vpack.c.bf16 %v1038, %v1038
        %v1084 = vpack.c.bf16 %v1041, %v1041
        %v1085 = vpack.c.bf16 %v1044, %v1044
        %v1086 = vpack.c.bf16 %v1047, %v1047
        %v1087 = vpack.c.bf16 %v1050, %v1050
        %v1088 = vpack.c.bf16 %v1053, %v1053
        %v1089 = vpack.c.bf16 %v1056, %v1056
        %v1090 = vpack.c.bf16 %v964, %v964
        %v1091 = vpack.c.bf16 %v967, %v967
        %v1092 = vpack.c.bf16 %v970, %v970
        %v1093 = vpack.c.bf16 %v973, %v973
        %v1094 = vpack.c.bf16 %v976, %v976
        %v1095 = vpack.c.bf16 %v979, %v979
        %v1096 = vpack.c.bf16 %v982, %v982
        %v1097 = vpack.c.bf16 %v985, %v985
        %v1098 = vpack.c.bf16 %v988, %v988
        %v1099 = vpack.c.bf16 %v991, %v991
        %v1100 = vpack.c.bf16 %v994, %v994
        %v1101 = vpack.c.bf16 %v997, %v997
        %v1102 = vpack.c.bf16 %v1000, %v1000
        %v1103 = vpack.c.bf16 %v1003, %v1003
        %v1104 = vpack.c.bf16 %v1006, %v1006
        %v1105 = vpack.c.bf16 %v1009, %v1009
        %v1106 = vpack.c.bf16 %v1012, %v1012
        %v1107 = vpack.c.bf16 %v1015, %v1015
        %v1108 = vpack.c.bf16 %v1018, %v1018
        %v1109 = vpack.c.bf16 %v1021, %v1021
        %v1110 = vpack.c.bf16 %v1024, %v1024
        %v1111 = vpack.c.bf16 %v1027, %v1027
        %v1112 = vpack.c.bf16 %v1030, %v1030
        %v1113 = vpack.c.bf16 %v1033, %v1033
        %v1114 = vpack.c.bf16 %v1036, %v1036
        %v1115 = vpack.c.bf16 %v1039, %v1039
        %v1116 = vpack.c.bf16 %v1042, %v1042
        %v1117 = vpack.c.bf16 %v1045, %v1045
        %v1118 = vpack.c.bf16 %v1048, %v1048
        %v1119 = vpack.c.bf16 %v1051, %v1051
        %v1120 = vpack.c.bf16 %v1054, %v1054
        %v1121 = vpack.c.bf16 %v1057, %v1057
        %1122 = vst [vmem:[%s393] sm:$0xff] %v962
        %1123 = vst [vmem:[%s393 + $0x20] sm:$0xff] %v965
        %1124 = vst [vmem:[%s393 + $0x40] sm:$0xff] %v968
        %1125 = vst [vmem:[%s393 + $0x60] sm:$0xff] %v971
        %1126 = vst [vmem:[%s393 + $0x80] sm:$0xff] %v974
        %1127 = vst [vmem:[%s393 + $0xa0] sm:$0xff] %v977
        %1128 = vst [vmem:[%s393 + $0xc0] sm:$0xff] %v980
        %1129 = vst [vmem:[%s393 + $0xe0] sm:$0xff] %v983
        %1130 = vst [vmem:[%s393 + $0x100] sm:$0xff] %v986
        %1131 = vst [vmem:[%s393 + $0x120] sm:$0xff] %v989
        %1132 = vst [vmem:[%s393 + $0x140] sm:$0xff] %v992
        %1133 = vst [vmem:[%s393 + $0x160] sm:$0xff] %v995
        %1134 = vst [vmem:[%s393 + $0x180] sm:$0xff] %v998
        %1135 = vst [vmem:[%s393 + $0x1a0] sm:$0xff] %v1001
        %1136 = vst [vmem:[%s393 + $0x1c0] sm:$0xff] %v1004
        %1137 = vst [vmem:[%s393 + $0x1e0] sm:$0xff] %v1007
        %1138 = vst [vmem:[%s393 + $0x200] sm:$0xff] %v1010
        %1139 = vst [vmem:[%s393 + $0x220] sm:$0xff] %v1013
        %1140 = vst [vmem:[%s393 + $0x240] sm:$0xff] %v1016
        %1141 = vst [vmem:[%s393 + $0x260] sm:$0xff] %v1019
        %1142 = vst [vmem:[%s393 + $0x280] sm:$0xff] %v1022
        %1143 = vst [vmem:[%s393 + $0x2a0] sm:$0xff] %v1025
        %1144 = vst [vmem:[%s393 + $0x2c0] sm:$0xff] %v1028
        %1145 = vst [vmem:[%s393 + $0x2e0] sm:$0xff] %v1031
        %1146 = vst [vmem:[%s393 + $0x300] sm:$0xff] %v1034
        %1147 = vst [vmem:[%s393 + $0x320] sm:$0xff] %v1037
        %1148 = vst [vmem:[%s393 + $0x340] sm:$0xff] %v1040
        %1149 = vst [vmem:[%s393 + $0x360] sm:$0xff] %v1043
        %1150 = vst [vmem:[%s393 + $0x380] sm:$0xff] %v1046
        %1151 = vst [vmem:[%s393 + $0x3a0] sm:$0xff] %v1049
        %1152 = vst [vmem:[%s393 + $0x3c0] sm:$0xff] %v1052
        %1153 = vst [vmem:[%s393 + $0x3e0] sm:$0xff] %v1055
        %1154 = vst [vmem:[#allocation3 + $0xc] sm:$0xf] %v1058
        %1155 = vst [vmem:[#allocation3 + $0x10] sm:$0xf] %v1059
        %1156 = vst [vmem:[#allocation3 + $0x14] sm:$0xf] %v1060
        %1157 = vst [vmem:[#allocation3 + $0x18] sm:$0xf] %v1061
        %1158 = vst [vmem:[#allocation3 + $0x1c] sm:$0xf] %v1062
        %1159 = vst [vmem:[#allocation3 + $0x20] sm:$0xf] %v1063
        %1160 = vst [vmem:[#allocation3 + $0x24] sm:$0xf] %v1064
        %1161 = vst [vmem:[#allocation3 + $0x28] sm:$0xf] %v1065
        %1162 = vst [vmem:[#allocation3 + $0x2c] sm:$0xf] %v1066
        %1163 = vst [vmem:[#allocation3 + $0x30] sm:$0xf] %v1067
        %1164 = vst [vmem:[#allocation3 + $0x34] sm:$0xf] %v1068
        %1165 = vst [vmem:[#allocation3 + $0x38] sm:$0xf] %v1069
        %1166 = vst [vmem:[#allocation3 + $0x3c] sm:$0xf] %v1070
        %1167 = vst [vmem:[#allocation3 + $0x40] sm:$0xf] %v1071
        %1168 = vst [vmem:[#allocation3 + $0x44] sm:$0xf] %v1072
        %1169 = vst [vmem:[#allocation3 + $0x48] sm:$0xf] %v1073
        %1170 = vst [vmem:[#allocation3 + $0x4c] sm:$0xf] %v1074
        %1171 = vst [vmem:[#allocation3 + $0x50] sm:$0xf] %v1075
        %1172 = vst [vmem:[#allocation3 + $0x54] sm:$0xf] %v1076
        %1173 = vst [vmem:[#allocation3 + $0x58] sm:$0xf] %v1077
        %1174 = vst [vmem:[#allocation3 + $0x5c] sm:$0xf] %v1078
        %1175 = vst [vmem:[#allocation3 + $0x60] sm:$0xf] %v1079
        %1176 = vst [vmem:[#allocation3 + $0x64] sm:$0xf] %v1080
        %1177 = vst [vmem:[#allocation3 + $0x68] sm:$0xf] %v1081
        %1178 = vst [vmem:[#allocation3 + $0x6c] sm:$0xf] %v1082
        %1179 = vst [vmem:[#allocation3 + $0x70] sm:$0xf] %v1083
        %1180 = vst [vmem:[#allocation3 + $0x74] sm:$0xf] %v1084
        %1181 = vst [vmem:[#allocation3 + $0x78] sm:$0xf] %v1085
        %1182 = vst [vmem:[#allocation3 + $0x7c] sm:$0xf] %v1086
        %1183 = vst [vmem:[#allocation3 + $0x80] sm:$0xf] %v1087
        %1184 = vst [vmem:[#allocation3 + $0x84] sm:$0xf] %v1088
        %1185 = vst [vmem:[#allocation3 + $0x88] sm:$0xf] %v1089
        %v1186 = vld [vmem:[#allocation3] sm:$0x8]
        %v1187 = vld [vmem:[#allocation3 + $0x4] sm:$0xf]
        %v1188 = vld [vmem:[#allocation3 + $0x8] sm:$0xf]
        %v1189 = vld [vmem:[#allocation3 + $0xc] sm:$0xf]
        %v1190 = vld [vmem:[#allocation3 + $0x10] sm:$0xf]
        %v1191 = vld [vmem:[#allocation3 + $0x14] sm:$0xf]
        %v1192 = vld [vmem:[#allocation3 + $0x18] sm:$0xf]
        %v1193 = vld [vmem:[#allocation3 + $0x1c] sm:$0xf]
        %v1194 = vld [vmem:[#allocation3 + $0x20] sm:$0xf]
        %v1195 = vld [vmem:[#allocation3 + $0x24] sm:$0xf]
        %v1196 = vld [vmem:[#allocation3 + $0x28] sm:$0xf]
        %v1197 = vld [vmem:[#allocation3 + $0x2c] sm:$0xf]
        %v1198 = vld [vmem:[#allocation3 + $0x30] sm:$0xf]
        %v1199 = vld [vmem:[#allocation3 + $0x34] sm:$0xf]
        %v1200 = vld [vmem:[#allocation3 + $0x38] sm:$0xf]
        %v1201 = vld [vmem:[#allocation3 + $0x3c] sm:$0xf]
        %v1202 = vld [vmem:[#allocation3 + $0x40] sm:$0xf]
        %v1203 = vld [vmem:[#allocation3 + $0x44] sm:$0xf]
        %v1204 = vld [vmem:[#allocation3 + $0x48] sm:$0xf]
        %v1205 = vld [vmem:[#allocation3 + $0x4c] sm:$0xf]
        %v1206 = vld [vmem:[#allocation3 + $0x50] sm:$0xf]
        %v1207 = vld [vmem:[#allocation3 + $0x54] sm:$0xf]
        %v1208 = vld [vmem:[#allocation3 + $0x58] sm:$0xf]
        %v1209 = vld [vmem:[#allocation3 + $0x5c] sm:$0xf]
        %v1210 = vld [vmem:[#allocation3 + $0x60] sm:$0xf]
        %v1211 = vld [vmem:[#allocation3 + $0x64] sm:$0xf]
        %v1212 = vld [vmem:[#allocation3 + $0x68] sm:$0xf]
        %v1213 = vld [vmem:[#allocation3 + $0x6c] sm:$0xf]
        %v1214 = vld [vmem:[#allocation3 + $0x70] sm:$0xf]
        %v1215 = vld [vmem:[#allocation3 + $0x74] sm:$0xf]
        %v1216 = vld [vmem:[#allocation3 + $0x78] sm:$0xf]
        %v1217 = vld [vmem:[#allocation3 + $0x7c] sm:$0xf]
        %v1218 = vld [vmem:[#allocation3 + $0x80] sm:$0xf]
        %1220 = vset.pattern.permute.xlu0 0
        %1221 = vperm.xlu0 %1220, %v449
        %v1222 = vpop.permute.xlu0 %1221
        %v1225 = vunpack.c.l.s4 839922192
        %v1226 = vunpack.c.0.s8 %v1225
        %v1227 = vperm.slane %v1222, %v1226
        %1229 = vset.pattern.permute.xlu0 0
        %1230 = vperm.xlu0 %1229, %v450
        %v1231 = vpop.permute.xlu0 %1230
        %v1234 = vunpack.c.l.s4 839922192
        %v1235 = vunpack.c.0.s8 %v1234
        %v1236 = vperm.slane %v1231, %v1235
        %1238 = vset.pattern.permute.xlu0 0
        %1239 = vperm.xlu0 %1238, %v451
        %v1240 = vpop.permute.xlu0 %1239
        %v1243 = vunpack.c.l.s4 839922192
        %v1244 = vunpack.c.0.s8 %v1243
        %v1245 = vperm.slane %v1240, %v1244
        %1247 = vset.pattern.permute.xlu0 0
        %1248 = vperm.xlu0 %1247, %v452
        %v1249 = vpop.permute.xlu0 %1248
        %v1252 = vunpack.c.l.s4 839922192
        %v1253 = vunpack.c.0.s8 %v1252
        %v1254 = vperm.slane %v1249, %v1253
        %1256 = vset.pattern.permute.xlu0 0
        %1257 = vperm.xlu0 %1256, %v453
        %v1258 = vpop.permute.xlu0 %1257
        %v1261 = vunpack.c.l.s4 839922192
        %v1262 = vunpack.c.0.s8 %v1261
        %v1263 = vperm.slane %v1258, %v1262
        %1265 = vset.pattern.permute.xlu0 0
        %1266 = vperm.xlu0 %1265, %v454
        %v1267 = vpop.permute.xlu0 %1266
        %v1270 = vunpack.c.l.s4 839922192
        %v1271 = vunpack.c.0.s8 %v1270
        %v1272 = vperm.slane %v1267, %v1271
        %1274 = vset.pattern.permute.xlu0 0
        %1275 = vperm.xlu0 %1274, %v455
        %v1276 = vpop.permute.xlu0 %1275
        %v1279 = vunpack.c.l.s4 839922192
        %v1280 = vunpack.c.0.s8 %v1279
        %v1281 = vperm.slane %v1276, %v1280
        %1283 = vset.pattern.permute.xlu0 0
        %1284 = vperm.xlu0 %1283, %v456
        %v1285 = vpop.permute.xlu0 %1284
        %v1288 = vunpack.c.l.s4 839922192
        %v1289 = vunpack.c.0.s8 %v1288
        %v1290 = vperm.slane %v1285, %v1289
        %1292 = vset.pattern.permute.xlu0 0
        %1293 = vperm.xlu0 %1292, %v457
        %v1294 = vpop.permute.xlu0 %1293
        %v1297 = vunpack.c.l.s4 839922192
        %v1298 = vunpack.c.0.s8 %v1297
        %v1299 = vperm.slane %v1294, %v1298
        %1301 = vset.pattern.permute.xlu0 0
        %1302 = vperm.xlu0 %1301, %v458
        %v1303 = vpop.permute.xlu0 %1302
        %v1306 = vunpack.c.l.s4 839922192
        %v1307 = vunpack.c.0.s8 %v1306
        %v1308 = vperm.slane %v1303, %v1307
        %1310 = vset.pattern.permute.xlu0 0
        %1311 = vperm.xlu0 %1310, %v459
        %v1312 = vpop.permute.xlu0 %1311
        %v1315 = vunpack.c.l.s4 839922192
        %v1316 = vunpack.c.0.s8 %v1315
        %v1317 = vperm.slane %v1312, %v1316
        %1319 = vset.pattern.permute.xlu0 0
        %1320 = vperm.xlu0 %1319, %v460
        %v1321 = vpop.permute.xlu0 %1320
        %v1324 = vunpack.c.l.s4 839922192
        %v1325 = vunpack.c.0.s8 %v1324
        %v1326 = vperm.slane %v1321, %v1325
        %1328 = vset.pattern.permute.xlu0 0
        %1329 = vperm.xlu0 %1328, %v461
        %v1330 = vpop.permute.xlu0 %1329
        %v1333 = vunpack.c.l.s4 839922192
        %v1334 = vunpack.c.0.s8 %v1333
        %v1335 = vperm.slane %v1330, %v1334
        %1337 = vset.pattern.permute.xlu0 0
        %1338 = vperm.xlu0 %1337, %v462
        %v1339 = vpop.permute.xlu0 %1338
        %v1342 = vunpack.c.l.s4 839922192
        %v1343 = vunpack.c.0.s8 %v1342
        %v1344 = vperm.slane %v1339, %v1343
        %1346 = vset.pattern.permute.xlu0 0
        %1347 = vperm.xlu0 %1346, %v463
        %v1348 = vpop.permute.xlu0 %1347
        %v1351 = vunpack.c.l.s4 839922192
        %v1352 = vunpack.c.0.s8 %v1351
        %v1353 = vperm.slane %v1348, %v1352
        %1355 = vset.pattern.permute.xlu0 0
        %1356 = vperm.xlu0 %1355, %v464
        %v1357 = vpop.permute.xlu0 %1356
        %v1360 = vunpack.c.l.s4 839922192
        %v1361 = vunpack.c.0.s8 %v1360
        %v1362 = vperm.slane %v1357, %v1361
        %1364 = vset.pattern.permute.xlu0 0
        %1365 = vperm.xlu0 %1364, %v465
        %v1366 = vpop.permute.xlu0 %1365
        %v1369 = vunpack.c.l.s4 839922192
        %v1370 = vunpack.c.0.s8 %v1369
        %v1371 = vperm.slane %v1366, %v1370
        %1373 = vset.pattern.permute.xlu0 0
        %1374 = vperm.xlu0 %1373, %v466
        %v1375 = vpop.permute.xlu0 %1374
        %v1378 = vunpack.c.l.s4 839922192
        %v1379 = vunpack.c.0.s8 %v1378
        %v1380 = vperm.slane %v1375, %v1379
        %1382 = vset.pattern.permute.xlu0 0
        %1383 = vperm.xlu0 %1382, %v467
        %v1384 = vpop.permute.xlu0 %1383
        %v1387 = vunpack.c.l.s4 839922192
        %v1388 = vunpack.c.0.s8 %v1387
        %v1389 = vperm.slane %v1384, %v1388
        %1391 = vset.pattern.permute.xlu0 0
        %1392 = vperm.xlu0 %1391, %v468
        %v1393 = vpop.permute.xlu0 %1392
        %v1396 = vunpack.c.l.s4 839922192
        %v1397 = vunpack.c.0.s8 %v1396
        %v1398 = vperm.slane %v1393, %v1397
        %1400 = vset.pattern.permute.xlu0 0
        %1401 = vperm.xlu0 %1400, %v469
        %v1402 = vpop.permute.xlu0 %1401
        %v1405 = vunpack.c.l.s4 839922192
        %v1406 = vunpack.c.0.s8 %v1405
        %v1407 = vperm.slane %v1402, %v1406
        %1409 = vset.pattern.permute.xlu0 0
        %1410 = vperm.xlu0 %1409, %v470
        %v1411 = vpop.permute.xlu0 %1410
        %v1414 = vunpack.c.l.s4 839922192
        %v1415 = vunpack.c.0.s8 %v1414
        %v1416 = vperm.slane %v1411, %v1415
        %1418 = vset.pattern.permute.xlu0 0
        %1419 = vperm.xlu0 %1418, %v471
        %v1420 = vpop.permute.xlu0 %1419
        %v1423 = vunpack.c.l.s4 839922192
        %v1424 = vunpack.c.0.s8 %v1423
        %v1425 = vperm.slane %v1420, %v1424
        %1427 = vset.pattern.permute.xlu0 0
        %1428 = vperm.xlu0 %1427, %v472
        %v1429 = vpop.permute.xlu0 %1428
        %v1432 = vunpack.c.l.s4 839922192
        %v1433 = vunpack.c.0.s8 %v1432
        %v1434 = vperm.slane %v1429, %v1433
        %1436 = vset.pattern.permute.xlu0 0
        %1437 = vperm.xlu0 %1436, %v473
        %v1438 = vpop.permute.xlu0 %1437
        %v1441 = vunpack.c.l.s4 839922192
        %v1442 = vunpack.c.0.s8 %v1441
        %v1443 = vperm.slane %v1438, %v1442
        %1445 = vset.pattern.permute.xlu0 0
        %1446 = vperm.xlu0 %1445, %v474
        %v1447 = vpop.permute.xlu0 %1446
        %v1450 = vunpack.c.l.s4 839922192
        %v1451 = vunpack.c.0.s8 %v1450
        %v1452 = vperm.slane %v1447, %v1451
        %1454 = vset.pattern.permute.xlu0 0
        %1455 = vperm.xlu0 %1454, %v475
        %v1456 = vpop.permute.xlu0 %1455
        %v1459 = vunpack.c.l.s4 839922192
        %v1460 = vunpack.c.0.s8 %v1459
        %v1461 = vperm.slane %v1456, %v1460
        %1463 = vset.pattern.permute.xlu0 0
        %1464 = vperm.xlu0 %1463, %v476
        %v1465 = vpop.permute.xlu0 %1464
        %v1468 = vunpack.c.l.s4 839922192
        %v1469 = vunpack.c.0.s8 %v1468
        %v1470 = vperm.slane %v1465, %v1469
        %1472 = vset.pattern.permute.xlu0 0
        %1473 = vperm.xlu0 %1472, %v477
        %v1474 = vpop.permute.xlu0 %1473
        %v1477 = vunpack.c.l.s4 839922192
        %v1478 = vunpack.c.0.s8 %v1477
        %v1479 = vperm.slane %v1474, %v1478
        %1481 = vset.pattern.permute.xlu0 0
        %1482 = vperm.xlu0 %1481, %v478
        %v1483 = vpop.permute.xlu0 %1482
        %v1486 = vunpack.c.l.s4 839922192
        %v1487 = vunpack.c.0.s8 %v1486
        %v1488 = vperm.slane %v1483, %v1487
        %1490 = vset.pattern.permute.xlu0 0
        %1491 = vperm.xlu0 %1490, %v479
        %v1492 = vpop.permute.xlu0 %1491
        %v1495 = vunpack.c.l.s4 839922192
        %v1496 = vunpack.c.0.s8 %v1495
        %v1497 = vperm.slane %v1492, %v1496
        %1499 = vset.pattern.permute.xlu0 0
        %1500 = vperm.xlu0 %1499, %v480
        %v1501 = vpop.permute.xlu0 %1500
        %v1504 = vunpack.c.l.s4 839922192
        %v1505 = vunpack.c.0.s8 %v1504
        %v1506 = vperm.slane %v1501, %v1505
        %v1507 = vunpack.c.l.bf16 %v1186
        %v1508 = vunpack.c.l.bf16 %v1187
        %v1509 = vunpack.c.l.bf16 %v1188
        %v1510 = vunpack.c.l.bf16 %v1189
        %v1511 = vunpack.c.l.bf16 %v1190
        %v1512 = vunpack.c.l.bf16 %v1191
        %v1513 = vunpack.c.l.bf16 %v1192
        %v1514 = vunpack.c.l.bf16 %v1193
        %v1515 = vunpack.c.l.bf16 %v1194
        %v1516 = vunpack.c.l.bf16 %v1195
        %v1517 = vunpack.c.l.bf16 %v1196
        %v1518 = vunpack.c.l.bf16 %v1197
        %v1519 = vunpack.c.l.bf16 %v1198
        %v1520 = vunpack.c.l.bf16 %v1199
        %v1521 = vunpack.c.l.bf16 %v1200
        %v1522 = vunpack.c.l.bf16 %v1201
        %v1523 = vunpack.c.l.bf16 %v1202
        %v1524 = vunpack.c.l.bf16 %v1203
        %v1525 = vunpack.c.l.bf16 %v1204
        %v1526 = vunpack.c.l.bf16 %v1205
        %v1527 = vunpack.c.l.bf16 %v1206
        %v1528 = vunpack.c.l.bf16 %v1207
        %v1529 = vunpack.c.l.bf16 %v1208
        %v1530 = vunpack.c.l.bf16 %v1209
        %v1531 = vunpack.c.l.bf16 %v1210
        %v1532 = vunpack.c.l.bf16 %v1211
        %v1533 = vunpack.c.l.bf16 %v1212
        %v1534 = vunpack.c.l.bf16 %v1213
        %v1535 = vunpack.c.l.bf16 %v1214
        %v1536 = vunpack.c.l.bf16 %v1215
        %v1537 = vunpack.c.l.bf16 %v1216
        %v1538 = vunpack.c.l.bf16 %v1217
        %v1539 = vunpack.c.l.bf16 %v1218
        %v1540 = vunpack.c.l.bf16 %v1227
        %v1541 = vunpack.c.l.bf16 %v1236
        %v1542 = vunpack.c.l.bf16 %v1245
        %v1543 = vunpack.c.l.bf16 %v1254
        %v1544 = vunpack.c.l.bf16 %v1263
        %v1545 = vunpack.c.l.bf16 %v1272
        %v1546 = vunpack.c.l.bf16 %v1281
        %v1547 = vunpack.c.l.bf16 %v1290
        %v1548 = vunpack.c.l.bf16 %v1299
        %v1549 = vunpack.c.l.bf16 %v1308
        %v1550 = vunpack.c.l.bf16 %v1317
        %v1551 = vunpack.c.l.bf16 %v1326
        %v1552 = vunpack.c.l.bf16 %v1335
        %v1553 = vunpack.c.l.bf16 %v1344
        %v1554 = vunpack.c.l.bf16 %v1353
        %v1555 = vunpack.c.l.bf16 %v1362
        %v1556 = vunpack.c.l.bf16 %v1371
        %v1557 = vunpack.c.l.bf16 %v1380
        %v1558 = vunpack.c.l.bf16 %v1389
        %v1559 = vunpack.c.l.bf16 %v1398
        %v1560 = vunpack.c.l.bf16 %v1407
        %v1561 = vunpack.c.l.bf16 %v1416
        %v1562 = vunpack.c.l.bf16 %v1425
        %v1563 = vunpack.c.l.bf16 %v1434
        %v1564 = vunpack.c.l.bf16 %v1443
        %v1565 = vunpack.c.l.bf16 %v1452
        %v1566 = vunpack.c.l.bf16 %v1461
        %v1567 = vunpack.c.l.bf16 %v1470
        %v1568 = vunpack.c.l.bf16 %v1479
        %v1569 = vunpack.c.l.bf16 %v1488
        %v1570 = vunpack.c.l.bf16 %v1497
        %v1571 = vunpack.c.l.bf16 %v1506
        %vm1604 = vcmask 1046528
        %v1605 = vrot.slane %v1540, 1
        %v1606 = vrot.slane %v1541, 1
        %v1607 = vsel %vm1604, %v1605, %v1606
        %v1608 = vrot.slane %v1542, 1
        %v1609 = vsel %vm1604, %v1606, %v1608
        %v1610 = vrot.slane %v1543, 1
        %v1611 = vsel %vm1604, %v1608, %v1610
        %v1612 = vrot.slane %v1544, 1
        %v1613 = vsel %vm1604, %v1610, %v1612
        %v1614 = vrot.slane %v1545, 1
        %v1615 = vsel %vm1604, %v1612, %v1614
        %v1616 = vrot.slane %v1546, 1
        %v1617 = vsel %vm1604, %v1614, %v1616
        %v1618 = vrot.slane %v1547, 1
        %v1619 = vsel %vm1604, %v1616, %v1618
        %v1620 = vrot.slane %v1548, 1
        %v1621 = vsel %vm1604, %v1618, %v1620
        %v1622 = vrot.slane %v1549, 1
        %v1623 = vsel %vm1604, %v1620, %v1622
        %v1624 = vrot.slane %v1550, 1
        %v1625 = vsel %vm1604, %v1622, %v1624
        %v1626 = vrot.slane %v1551, 1
        %v1627 = vsel %vm1604, %v1624, %v1626
        %v1628 = vrot.slane %v1552, 1
        %v1629 = vsel %vm1604, %v1626, %v1628
        %v1630 = vrot.slane %v1553, 1
        %v1631 = vsel %vm1604, %v1628, %v1630
        %v1632 = vrot.slane %v1554, 1
        %v1633 = vsel %vm1604, %v1630, %v1632
        %v1634 = vrot.slane %v1555, 1
        %v1635 = vsel %vm1604, %v1632, %v1634
        %v1636 = vrot.slane %v1556, 1
        %v1637 = vsel %vm1604, %v1634, %v1636
        %v1638 = vrot.slane %v1557, 1
        %v1639 = vsel %vm1604, %v1636, %v1638
        %v1640 = vrot.slane %v1558, 1
        %v1641 = vsel %vm1604, %v1638, %v1640
        %v1642 = vrot.slane %v1559, 1
        %v1643 = vsel %vm1604, %v1640, %v1642
        %v1644 = vrot.slane %v1560, 1
        %v1645 = vsel %vm1604, %v1642, %v1644
        %v1646 = vrot.slane %v1561, 1
        %v1647 = vsel %vm1604, %v1644, %v1646
        %v1648 = vrot.slane %v1562, 1
        %v1649 = vsel %vm1604, %v1646, %v1648
        %v1650 = vrot.slane %v1563, 1
        %v1651 = vsel %vm1604, %v1648, %v1650
        %v1652 = vrot.slane %v1564, 1
        %v1653 = vsel %vm1604, %v1650, %v1652
        %v1654 = vrot.slane %v1565, 1
        %v1655 = vsel %vm1604, %v1652, %v1654
        %v1656 = vrot.slane %v1566, 1
        %v1657 = vsel %vm1604, %v1654, %v1656
        %v1658 = vrot.slane %v1567, 1
        %v1659 = vsel %vm1604, %v1656, %v1658
        %v1660 = vrot.slane %v1568, 1
        %v1661 = vsel %vm1604, %v1658, %v1660
        %v1662 = vrot.slane %v1569, 1
        %v1663 = vsel %vm1604, %v1660, %v1662
        %v1664 = vrot.slane %v1570, 1
        %v1665 = vsel %vm1604, %v1662, %v1664
        %v1666 = vrot.slane %v1571, 1
        %v1667 = vsel %vm1604, %v1664, %v1666
        %v1701 = vmul.f32 %v1507, %v1605
        %v1702 = vmul.f32 %v1508, %v1607
        %v1703 = vmul.f32 %v1509, %v1609
        %v1704 = vmul.f32 %v1510, %v1611
        %v1705 = vmul.f32 %v1511, %v1613
        %v1706 = vmul.f32 %v1512, %v1615
        %v1707 = vmul.f32 %v1513, %v1617
        %v1708 = vmul.f32 %v1514, %v1619
        %v1709 = vmul.f32 %v1515, %v1621
        %v1710 = vmul.f32 %v1516, %v1623
        %v1711 = vmul.f32 %v1517, %v1625
        %v1712 = vmul.f32 %v1518, %v1627
        %v1713 = vmul.f32 %v1519, %v1629
        %v1714 = vmul.f32 %v1520, %v1631
        %v1715 = vmul.f32 %v1521, %v1633
        %v1716 = vmul.f32 %v1522, %v1635
        %v1717 = vmul.f32 %v1523, %v1637
        %v1718 = vmul.f32 %v1524, %v1639
        %v1719 = vmul.f32 %v1525, %v1641
        %v1720 = vmul.f32 %v1526, %v1643
        %v1721 = vmul.f32 %v1527, %v1645
        %v1722 = vmul.f32 %v1528, %v1647
        %v1723 = vmul.f32 %v1529, %v1649
        %v1724 = vmul.f32 %v1530, %v1651
        %v1725 = vmul.f32 %v1531, %v1653
        %v1726 = vmul.f32 %v1532, %v1655
        %v1727 = vmul.f32 %v1533, %v1657
        %v1728 = vmul.f32 %v1534, %v1659
        %v1729 = vmul.f32 %v1535, %v1661
        %v1730 = vmul.f32 %v1536, %v1663
        %v1731 = vmul.f32 %v1537, %v1665
        %v1732 = vmul.f32 %v1538, %v1667
        %v1733 = vmul.f32 %v1539, %v1666
        %v1734 = vpack.c.bf16 %v1702, %v1701
        %v1735 = vpack.c.bf16 %v1704, %v1703
        %v1736 = vpack.c.bf16 %v1706, %v1705
        %v1737 = vpack.c.bf16 %v1708, %v1707
        %v1738 = vpack.c.bf16 %v1710, %v1709
        %v1739 = vpack.c.bf16 %v1712, %v1711
        %v1740 = vpack.c.bf16 %v1714, %v1713
        %v1741 = vpack.c.bf16 %v1716, %v1715
        %v1742 = vpack.c.bf16 %v1718, %v1717
        %v1743 = vpack.c.bf16 %v1720, %v1719
        %v1744 = vpack.c.bf16 %v1722, %v1721
        %v1745 = vpack.c.bf16 %v1724, %v1723
        %v1746 = vpack.c.bf16 %v1726, %v1725
        %v1747 = vpack.c.bf16 %v1728, %v1727
        %v1748 = vpack.c.bf16 %v1730, %v1729
        %v1749 = vpack.c.bf16 %v1732, %v1731
        %v1750 = vpack.c.bf16 %v1733, %v1733
        %v1751 = vld [vmem:[#allocation5] sm:$0xf]
        %v1752 = vld [vmem:[#allocation5 + $0x4] sm:$0xf]
        %v1753 = vld [vmem:[#allocation5 + $0x8] sm:$0xf]
        %v1754 = vld [vmem:[#allocation5 + $0xc] sm:$0xf]
        %v1755 = vld [vmem:[#allocation5 + $0x10] sm:$0xf]
        %v1756 = vld [vmem:[#allocation5 + $0x14] sm:$0xf]
        %v1757 = vld [vmem:[#allocation5 + $0x18] sm:$0xf]
        %v1758 = vld [vmem:[#allocation5 + $0x1c] sm:$0xf]
        %v1759 = vld [vmem:[#allocation5 + $0x20] sm:$0xf]
        %v1760 = vld [vmem:[#allocation5 + $0x24] sm:$0xf]
        %v1761 = vld [vmem:[#allocation5 + $0x28] sm:$0xf]
        %v1762 = vld [vmem:[#allocation5 + $0x2c] sm:$0xf]
        %v1763 = vld [vmem:[#allocation5 + $0x30] sm:$0xf]
        %v1764 = vld [vmem:[#allocation5 + $0x34] sm:$0xf]
        %v1765 = vld [vmem:[#allocation5 + $0x38] sm:$0xf]
        %v1766 = vld [vmem:[#allocation5 + $0x3c] sm:$0xf]
        %s1767 = scalar_lea.vmem [#allocation5], 64
        %v1768 = vld [vmem:[%s1767] sm:$0xf]
        %v1769 = vld [vmem:[%s1767 + $0x4] sm:$0xf]
        %v1770 = vld [vmem:[%s1767 + $0x8] sm:$0xf]
        %v1771 = vld [vmem:[%s1767 + $0xc] sm:$0xf]
        %v1772 = vld [vmem:[%s1767 + $0x10] sm:$0xf]
        %v1773 = vld [vmem:[%s1767 + $0x14] sm:$0xf]
        %v1774 = vld [vmem:[%s1767 + $0x18] sm:$0xf]
        %v1775 = vld [vmem:[%s1767 + $0x1c] sm:$0xf]
        %v1776 = vld [vmem:[%s1767 + $0x20] sm:$0xf]
        %v1777 = vld [vmem:[%s1767 + $0x24] sm:$0xf]
        %v1778 = vld [vmem:[%s1767 + $0x28] sm:$0xf]
        %v1779 = vld [vmem:[%s1767 + $0x2c] sm:$0xf]
        %v1780 = vld [vmem:[%s1767 + $0x30] sm:$0xf]
        %v1781 = vld [vmem:[%s1767 + $0x34] sm:$0xf]
        %v1782 = vld [vmem:[%s1767 + $0x38] sm:$0xf]
        %v1783 = vld [vmem:[%s1767 + $0x3c] sm:$0xf]
        %v1816 = vunpack.c.l.b16 %v1187
        %v1817 = vunpack.c.l.b16 %v1188
        %v1818 = vunpack.c.l.b16 %v1189
        %v1819 = vunpack.c.l.b16 %v1190
        %v1820 = vunpack.c.l.b16 %v1191
        %v1821 = vunpack.c.l.b16 %v1192
        %v1822 = vunpack.c.l.b16 %v1193
        %v1823 = vunpack.c.l.b16 %v1194
        %v1824 = vunpack.c.l.b16 %v1195
        %v1825 = vunpack.c.l.b16 %v1196
        %v1826 = vunpack.c.l.b16 %v1197
        %v1827 = vunpack.c.l.b16 %v1198
        %v1828 = vunpack.c.l.b16 %v1199
        %v1829 = vunpack.c.l.b16 %v1200
        %v1830 = vunpack.c.l.b16 %v1201
        %v1831 = vunpack.c.l.b16 %v1202
        %v1832 = vunpack.c.l.b16 %v1203
        %v1833 = vunpack.c.l.b16 %v1204
        %v1834 = vunpack.c.l.b16 %v1205
        %v1835 = vunpack.c.l.b16 %v1206
        %v1836 = vunpack.c.l.b16 %v1207
        %v1837 = vunpack.c.l.b16 %v1208
        %v1838 = vunpack.c.l.b16 %v1209
        %v1839 = vunpack.c.l.b16 %v1210
        %v1840 = vunpack.c.l.b16 %v1211
        %v1841 = vunpack.c.l.b16 %v1212
        %v1842 = vunpack.c.l.b16 %v1213
        %v1843 = vunpack.c.l.b16 %v1214
        %v1844 = vunpack.c.l.b16 %v1215
        %v1845 = vunpack.c.l.b16 %v1216
        %v1846 = vunpack.c.l.b16 %v1217
        %v1847 = vunpack.c.l.b16 %v1218
        %v1848 = vpack.c.b16 %v1817, %v1816
        %v1849 = vpack.c.b16 %v1819, %v1818
        %v1850 = vpack.c.b16 %v1821, %v1820
        %v1851 = vpack.c.b16 %v1823, %v1822
        %v1852 = vpack.c.b16 %v1825, %v1824
        %v1853 = vpack.c.b16 %v1827, %v1826
        %v1854 = vpack.c.b16 %v1829, %v1828
        %v1855 = vpack.c.b16 %v1831, %v1830
        %v1856 = vpack.c.b16 %v1833, %v1832
        %v1857 = vpack.c.b16 %v1835, %v1834
        %v1858 = vpack.c.b16 %v1837, %v1836
        %v1859 = vpack.c.b16 %v1839, %v1838
        %v1860 = vpack.c.b16 %v1841, %v1840
        %v1861 = vpack.c.b16 %v1843, %v1842
        %v1862 = vpack.c.b16 %v1845, %v1844
        %v1863 = vpack.c.b16 %v1847, %v1846
        %v1896 = vunpack.c.l.b16 %v1768
        %v1897 = vunpack.c.l.b16 %v1769
        %v1898 = vunpack.c.l.b16 %v1770
        %v1899 = vunpack.c.l.b16 %v1771
        %v1900 = vunpack.c.l.b16 %v1772
        %v1901 = vunpack.c.l.b16 %v1773
        %v1902 = vunpack.c.l.b16 %v1774
        %v1903 = vunpack.c.l.b16 %v1775
        %v1904 = vunpack.c.l.b16 %v1776
        %v1905 = vunpack.c.l.b16 %v1777
        %v1906 = vunpack.c.l.b16 %v1778
        %v1907 = vunpack.c.l.b16 %v1779
        %v1908 = vunpack.c.l.b16 %v1780
        %v1909 = vunpack.c.l.b16 %v1781
        %v1910 = vunpack.c.l.b16 %v1782
        %v1911 = vunpack.c.l.b16 %v1783
        %v1912 = vpack.c.b16 %v1897, %v1896
        %v1913 = vpack.c.b16 %v1899, %v1898
        %v1914 = vpack.c.b16 %v1901, %v1900
        %v1915 = vpack.c.b16 %v1903, %v1902
        %v1916 = vpack.c.b16 %v1905, %v1904
        %v1917 = vpack.c.b16 %v1907, %v1906
        %v1918 = vpack.c.b16 %v1909, %v1908
        %v1919 = vpack.c.b16 %v1911, %v1910
        %1928 = vmatpush.bf16.msra.mxu0 %v1919
        %1929 = vmatpush.bf16.msra.mxu0 %v1918
        %1930 = vmatpush.bf16.msra.mxu0 %v1917
        %1931 = vmatpush.bf16.msra.mxu0 %v1916
        %1932 = vmatpush.bf16.msra.mxu0 %v1915
        %1933 = vmatpush.bf16.msra.mxu0 %v1914
        %1934 = vmatpush.bf16.msra.mxu0 %v1913
        %1935 = vmatpush.bf16.msra.mxu0 %v1912
        %1936 = vmatmul.bf16.gmra.mxu0 %v1848
        %v1937 = vpop.f32.mrf.mxu0
        %v1938 = vadd.f32 0.0, %v1937
        %v1939 = vpop.f32.mrf.mxu0
        %v1940 = vadd.f32 0.0, %v1939
        %1941 = vmatmul.bf16.gmra.mxu0 %v1849
        %v1942 = vpop.f32.mrf.mxu0
        %v1943 = vadd.f32 0.0, %v1942
        %v1944 = vpop.f32.mrf.mxu0
        %v1945 = vadd.f32 0.0, %v1944
        %1946 = vmatmul.bf16.gmra.mxu0 %v1850
        %v1947 = vpop.f32.mrf.mxu0
        %v1948 = vadd.f32 0.0, %v1947
        %v1949 = vpop.f32.mrf.mxu0
        %v1950 = vadd.f32 0.0, %v1949
        %1951 = vmatmul.bf16.gmra.mxu0 %v1851
        %v1952 = vpop.f32.mrf.mxu0
        %v1953 = vadd.f32 0.0, %v1952
        %v1954 = vpop.f32.mrf.mxu0
        %v1955 = vadd.f32 0.0, %v1954
        %1956 = vmatmul.bf16.gmra.mxu0 %v1852
        %v1957 = vpop.f32.mrf.mxu0
        %v1958 = vadd.f32 0.0, %v1957
        %v1959 = vpop.f32.mrf.mxu0
        %v1960 = vadd.f32 0.0, %v1959
        %1961 = vmatmul.bf16.gmra.mxu0 %v1853
        %v1962 = vpop.f32.mrf.mxu0
        %v1963 = vadd.f32 0.0, %v1962
        %v1964 = vpop.f32.mrf.mxu0
        %v1965 = vadd.f32 0.0, %v1964
        %1966 = vmatmul.bf16.gmra.mxu0 %v1854
        %v1967 = vpop.f32.mrf.mxu0
        %v1968 = vadd.f32 0.0, %v1967
        %v1969 = vpop.f32.mrf.mxu0
        %v1970 = vadd.f32 0.0, %v1969
        %1971 = vmatmul.bf16.gmra.mxu0 %v1855
        %v1972 = vpop.f32.mrf.mxu0
        %v1973 = vadd.f32 0.0, %v1972
        %v1974 = vpop.f32.mrf.mxu0
        %v1975 = vadd.f32 0.0, %v1974
        %1976 = vmatmul.bf16.gmra.mxu0 %v1856
        %v1977 = vpop.f32.mrf.mxu0
        %v1978 = vadd.f32 0.0, %v1977
        %v1979 = vpop.f32.mrf.mxu0
        %v1980 = vadd.f32 0.0, %v1979
        %1981 = vmatmul.bf16.gmra.mxu0 %v1857
        %v1982 = vpop.f32.mrf.mxu0
        %v1983 = vadd.f32 0.0, %v1982
        %v1984 = vpop.f32.mrf.mxu0
        %v1985 = vadd.f32 0.0, %v1984
        %1986 = vmatmul.bf16.gmra.mxu0 %v1858
        %v1987 = vpop.f32.mrf.mxu0
        %v1988 = vadd.f32 0.0, %v1987
        %v1989 = vpop.f32.mrf.mxu0
        %v1990 = vadd.f32 0.0, %v1989
        %1991 = vmatmul.bf16.gmra.mxu0 %v1859
        %v1992 = vpop.f32.mrf.mxu0
        %v1993 = vadd.f32 0.0, %v1992
        %v1994 = vpop.f32.mrf.mxu0
        %v1995 = vadd.f32 0.0, %v1994
        %1996 = vmatmul.bf16.gmra.mxu0 %v1860
        %v1997 = vpop.f32.mrf.mxu0
        %v1998 = vadd.f32 0.0, %v1997
        %v1999 = vpop.f32.mrf.mxu0
        %v2000 = vadd.f32 0.0, %v1999
        %2001 = vmatmul.bf16.gmra.mxu0 %v1861
        %v2002 = vpop.f32.mrf.mxu0
        %v2003 = vadd.f32 0.0, %v2002
        %v2004 = vpop.f32.mrf.mxu0
        %v2005 = vadd.f32 0.0, %v2004
        %2006 = vmatmul.bf16.gmra.mxu0 %v1862
        %v2007 = vpop.f32.mrf.mxu0
        %v2008 = vadd.f32 0.0, %v2007
        %v2009 = vpop.f32.mrf.mxu0
        %v2010 = vadd.f32 0.0, %v2009
        %2011 = vmatmul.bf16.gmra.mxu0 %v1863
        %v2012 = vpop.f32.mrf.mxu0
        %v2013 = vadd.f32 0.0, %v2012
        %v2014 = vpop.f32.mrf.mxu0
        %v2015 = vadd.f32 0.0, %v2014
        %2016 = vdwg.mxu0
        %vm2017 = vsmask.f32 4352
        %v2019 = vshrl.u32 %v1734, 16
        %v2021 = vrot.slane %v2019, 3
        %v2022 = vshll.u32 %v1734, 16
        %v2024 = vrot.slane %v2022, 4
        %v2025 = vor.u32 %v2021, %v2024
        %v2027 = vshrl.u32 %v1735, 16
        %v2029 = vrot.slane %v2027, 3
        %v2030 = vshll.u32 %v1735, 16
        %v2032 = vrot.slane %v2030, 4
        %v2033 = vor.u32 %v2029, %v2032
        %v2034 = vsel %vm2017, %v2025, %v2033
        %v2036 = vshrl.u32 %v1736, 16
        %v2038 = vrot.slane %v2036, 3
        %v2039 = vshll.u32 %v1736, 16
        %v2041 = vrot.slane %v2039, 4
        %v2042 = vor.u32 %v2038, %v2041
        %v2043 = vsel %vm2017, %v2033, %v2042
        %v2045 = vshrl.u32 %v1737, 16
        %v2047 = vrot.slane %v2045, 3
        %v2048 = vshll.u32 %v1737, 16
        %v2050 = vrot.slane %v2048, 4
        %v2051 = vor.u32 %v2047, %v2050
        %v2052 = vsel %vm2017, %v2042, %v2051
        %v2054 = vshrl.u32 %v1738, 16
        %v2056 = vrot.slane %v2054, 3
        %v2057 = vshll.u32 %v1738, 16
        %v2059 = vrot.slane %v2057, 4
        %v2060 = vor.u32 %v2056, %v2059
        %v2061 = vsel %vm2017, %v2051, %v2060
        %v2063 = vshrl.u32 %v1739, 16
        %v2065 = vrot.slane %v2063, 3
        %v2066 = vshll.u32 %v1739, 16
        %v2068 = vrot.slane %v2066, 4
        %v2069 = vor.u32 %v2065, %v2068
        %v2070 = vsel %vm2017, %v2060, %v2069
        %v2072 = vshrl.u32 %v1740, 16
        %v2074 = vrot.slane %v2072, 3
        %v2075 = vshll.u32 %v1740, 16
        %v2077 = vrot.slane %v2075, 4
        %v2078 = vor.u32 %v2074, %v2077
        %v2079 = vsel %vm2017, %v2069, %v2078
        %v2081 = vshrl.u32 %v1741, 16
        %v2083 = vrot.slane %v2081, 3
        %v2084 = vshll.u32 %v1741, 16
        %v2086 = vrot.slane %v2084, 4
        %v2087 = vor.u32 %v2083, %v2086
        %v2088 = vsel %vm2017, %v2078, %v2087
        %v2090 = vshrl.u32 %v1742, 16
        %v2092 = vrot.slane %v2090, 3
        %v2093 = vshll.u32 %v1742, 16
        %v2095 = vrot.slane %v2093, 4
        %v2096 = vor.u32 %v2092, %v2095
        %v2097 = vsel %vm2017, %v2087, %v2096
        %v2099 = vshrl.u32 %v1743, 16
        %v2101 = vrot.slane %v2099, 3
        %v2102 = vshll.u32 %v1743, 16
        %v2104 = vrot.slane %v2102, 4
        %v2105 = vor.u32 %v2101, %v2104
        %v2106 = vsel %vm2017, %v2096, %v2105
        %v2108 = vshrl.u32 %v1744, 16
        %v2110 = vrot.slane %v2108, 3
        %v2111 = vshll.u32 %v1744, 16
        %v2113 = vrot.slane %v2111, 4
        %v2114 = vor.u32 %v2110, %v2113
        %v2115 = vsel %vm2017, %v2105, %v2114
        %v2117 = vshrl.u32 %v1745, 16
        %v2119 = vrot.slane %v2117, 3
        %v2120 = vshll.u32 %v1745, 16
        %v2122 = vrot.slane %v2120, 4
        %v2123 = vor.u32 %v2119, %v2122
        %v2124 = vsel %vm2017, %v2114, %v2123
        %v2126 = vshrl.u32 %v1746, 16
        %v2128 = vrot.slane %v2126, 3
        %v2129 = vshll.u32 %v1746, 16
        %v2131 = vrot.slane %v2129, 4
        %v2132 = vor.u32 %v2128, %v2131
        %v2133 = vsel %vm2017, %v2123, %v2132
        %v2135 = vshrl.u32 %v1747, 16
        %v2137 = vrot.slane %v2135, 3
        %v2138 = vshll.u32 %v1747, 16
        %v2140 = vrot.slane %v2138, 4
        %v2141 = vor.u32 %v2137, %v2140
        %v2142 = vsel %vm2017, %v2132, %v2141
        %v2144 = vshrl.u32 %v1748, 16
        %v2146 = vrot.slane %v2144, 3
        %v2147 = vshll.u32 %v1748, 16
        %v2149 = vrot.slane %v2147, 4
        %v2150 = vor.u32 %v2146, %v2149
        %v2151 = vsel %vm2017, %v2141, %v2150
        %v2153 = vshrl.u32 %v1749, 16
        %v2155 = vrot.slane %v2153, 3
        %v2156 = vshll.u32 %v1749, 16
        %v2158 = vrot.slane %v2156, 4
        %v2159 = vor.u32 %v2155, %v2158
        %v2160 = vsel %vm2017, %v2150, %v2159
        %v2162 = vshrl.u32 %v1750, 16
        %v2164 = vrot.slane %v2162, 3
        %v2165 = vshll.u32 %v1750, 16
        %v2167 = vrot.slane %v2165, 4
        %v2168 = vor.u32 %v2164, %v2167
        %v2169 = vsel %vm2017, %v2159, %v2168
        %v2202 = vunpack.c.l.b16 %v1751
        %v2203 = vunpack.c.l.b16 %v1752
        %v2204 = vunpack.c.l.b16 %v1753
        %v2205 = vunpack.c.l.b16 %v1754
        %v2206 = vunpack.c.l.b16 %v1755
        %v2207 = vunpack.c.l.b16 %v1756
        %v2208 = vunpack.c.l.b16 %v1757
        %v2209 = vunpack.c.l.b16 %v1758
        %v2210 = vunpack.c.l.b16 %v1759
        %v2211 = vunpack.c.l.b16 %v1760
        %v2212 = vunpack.c.l.b16 %v1761
        %v2213 = vunpack.c.l.b16 %v1762
        %v2214 = vunpack.c.l.b16 %v1763
        %v2215 = vunpack.c.l.b16 %v1764
        %v2216 = vunpack.c.l.b16 %v1765
        %v2217 = vunpack.c.l.b16 %v1766
        %v2218 = vpack.c.b16 %v2203, %v2202
        %v2219 = vpack.c.b16 %v2205, %v2204
        %v2220 = vpack.c.b16 %v2207, %v2206
        %v2221 = vpack.c.b16 %v2209, %v2208
        %v2222 = vpack.c.b16 %v2211, %v2210
        %v2223 = vpack.c.b16 %v2213, %v2212
        %v2224 = vpack.c.b16 %v2215, %v2214
        %v2225 = vpack.c.b16 %v2217, %v2216
        %2234 = vmatpush.bf16.msra.mxu0 %v2225
        %2235 = vmatpush.bf16.msra.mxu0 %v2224
        %2236 = vmatpush.bf16.msra.mxu0 %v2223
        %2237 = vmatpush.bf16.msra.mxu0 %v2222
        %2238 = vmatpush.bf16.msra.mxu0 %v2221
        %2239 = vmatpush.bf16.msra.mxu0 %v2220
        %2240 = vmatpush.bf16.msra.mxu0 %v2219
        %2241 = vmatpush.bf16.msra.mxu0 %v2218
        %2242 = vmatmul.bf16.gmra.mxu0 %v2034
        %v2243 = vpop.f32.mrf.mxu0
        %v2244 = vadd.f32 %v1938, %v2243
        %v2245 = vpop.f32.mrf.mxu0
        %v2246 = vadd.f32 %v1940, %v2245
        %2247 = vmatmul.bf16.gmra.mxu0 %v2043
        %v2248 = vpop.f32.mrf.mxu0
        %v2249 = vadd.f32 %v1943, %v2248
        %v2250 = vpop.f32.mrf.mxu0
        %v2251 = vadd.f32 %v1945, %v2250
        %2252 = vmatmul.bf16.gmra.mxu0 %v2052
        %v2253 = vpop.f32.mrf.mxu0
        %v2254 = vadd.f32 %v1948, %v2253
        %v2255 = vpop.f32.mrf.mxu0
        %v2256 = vadd.f32 %v1950, %v2255
        %2257 = vmatmul.bf16.gmra.mxu0 %v2061
        %v2258 = vpop.f32.mrf.mxu0
        %v2259 = vadd.f32 %v1953, %v2258
        %v2260 = vpop.f32.mrf.mxu0
        %v2261 = vadd.f32 %v1955, %v2260
        %2262 = vmatmul.bf16.gmra.mxu0 %v2070
        %v2263 = vpop.f32.mrf.mxu0
        %v2264 = vadd.f32 %v1958, %v2263
        %v2265 = vpop.f32.mrf.mxu0
        %v2266 = vadd.f32 %v1960, %v2265
        %2267 = vmatmul.bf16.gmra.mxu0 %v2079
        %v2268 = vpop.f32.mrf.mxu0
        %v2269 = vadd.f32 %v1963, %v2268
        %v2270 = vpop.f32.mrf.mxu0
        %v2271 = vadd.f32 %v1965, %v2270
        %2272 = vmatmul.bf16.gmra.mxu0 %v2088
        %v2273 = vpop.f32.mrf.mxu0
        %v2274 = vadd.f32 %v1968, %v2273
        %v2275 = vpop.f32.mrf.mxu0
        %v2276 = vadd.f32 %v1970, %v2275
        %2277 = vmatmul.bf16.gmra.mxu0 %v2097
        %v2278 = vpop.f32.mrf.mxu0
        %v2279 = vadd.f32 %v1973, %v2278
        %v2280 = vpop.f32.mrf.mxu0
        %v2281 = vadd.f32 %v1975, %v2280
        %2282 = vmatmul.bf16.gmra.mxu0 %v2106
        %v2283 = vpop.f32.mrf.mxu0
        %v2284 = vadd.f32 %v1978, %v2283
        %v2285 = vpop.f32.mrf.mxu0
        %v2286 = vadd.f32 %v1980, %v2285
        %2287 = vmatmul.bf16.gmra.mxu0 %v2115
        %v2288 = vpop.f32.mrf.mxu0
        %v2289 = vadd.f32 %v1983, %v2288
        %v2290 = vpop.f32.mrf.mxu0
        %v2291 = vadd.f32 %v1985, %v2290
        %2292 = vmatmul.bf16.gmra.mxu0 %v2124
        %v2293 = vpop.f32.mrf.mxu0
        %v2294 = vadd.f32 %v1988, %v2293
        %v2295 = vpop.f32.mrf.mxu0
        %v2296 = vadd.f32 %v1990, %v2295
        %2297 = vmatmul.bf16.gmra.mxu0 %v2133
        %v2298 = vpop.f32.mrf.mxu0
        %v2299 = vadd.f32 %v1993, %v2298
        %v2300 = vpop.f32.mrf.mxu0
        %v2301 = vadd.f32 %v1995, %v2300
        %2302 = vmatmul.bf16.gmra.mxu0 %v2142
        %v2303 = vpop.f32.mrf.mxu0
        %v2304 = vadd.f32 %v1998, %v2303
        %v2305 = vpop.f32.mrf.mxu0
        %v2306 = vadd.f32 %v2000, %v2305
        %2307 = vmatmul.bf16.gmra.mxu0 %v2151
        %v2308 = vpop.f32.mrf.mxu0
        %v2309 = vadd.f32 %v2003, %v2308
        %v2310 = vpop.f32.mrf.mxu0
        %v2311 = vadd.f32 %v2005, %v2310
        %2312 = vmatmul.bf16.gmra.mxu0 %v2160
        %v2313 = vpop.f32.mrf.mxu0
        %v2314 = vadd.f32 %v2008, %v2313
        %v2315 = vpop.f32.mrf.mxu0
        %v2316 = vadd.f32 %v2010, %v2315
        %2317 = vmatmul.bf16.gmra.mxu0 %v2169
        %v2318 = vpop.f32.mrf.mxu0
        %v2319 = vadd.f32 %v2013, %v2318
        %v2320 = vpop.f32.mrf.mxu0
        %v2321 = vadd.f32 %v2015, %v2320
        %2322 = vdwg.mxu0
        %v2323 = vld [vmem:[#allocation3 + $0x4] sm:$0xf]
        %v2324 = vld [vmem:[#allocation3 + $0x8] sm:$0xf]
        %v2325 = vld [vmem:[#allocation3 + $0xc] sm:$0xf]
        %v2326 = vld [vmem:[#allocation3 + $0x10] sm:$0xf]
        %v2327 = vld [vmem:[#allocation3 + $0x14] sm:$0xf]
        %v2328 = vld [vmem:[#allocation3 + $0x18] sm:$0xf]
        %v2329 = vld [vmem:[#allocation3 + $0x1c] sm:$0xf]
        %v2330 = vld [vmem:[#allocation3 + $0x20] sm:$0xf]
        %v2331 = vld [vmem:[#allocation3 + $0x24] sm:$0xf]
        %v2332 = vld [vmem:[#allocation3 + $0x28] sm:$0xf]
        %v2333 = vld [vmem:[#allocation3 + $0x2c] sm:$0xf]
        %v2334 = vld [vmem:[#allocation3 + $0x30] sm:$0xf]
        %v2335 = vld [vmem:[#allocation3 + $0x34] sm:$0xf]
        %v2336 = vld [vmem:[#allocation3 + $0x38] sm:$0xf]
        %v2337 = vld [vmem:[#allocation3 + $0x3c] sm:$0xf]
        %v2338 = vld [vmem:[#allocation3 + $0x40] sm:$0xf]
        %v2339 = vld [vmem:[#allocation3 + $0x44] sm:$0xf]
        %v2340 = vld [vmem:[#allocation3 + $0x48] sm:$0xf]
        %v2341 = vld [vmem:[#allocation3 + $0x4c] sm:$0xf]
        %v2342 = vld [vmem:[#allocation3 + $0x50] sm:$0xf]
        %v2343 = vld [vmem:[#allocation3 + $0x54] sm:$0xf]
        %v2344 = vld [vmem:[#allocation3 + $0x58] sm:$0xf]
        %v2345 = vld [vmem:[#allocation3 + $0x5c] sm:$0xf]
        %v2346 = vld [vmem:[#allocation3 + $0x60] sm:$0xf]
        %v2347 = vld [vmem:[#allocation3 + $0x64] sm:$0xf]
        %v2348 = vld [vmem:[#allocation3 + $0x68] sm:$0xf]
        %v2349 = vld [vmem:[#allocation3 + $0x6c] sm:$0xf]
        %v2350 = vld [vmem:[#allocation3 + $0x70] sm:$0xf]
        %v2351 = vld [vmem:[#allocation3 + $0x74] sm:$0xf]
        %v2352 = vld [vmem:[#allocation3 + $0x78] sm:$0xf]
        %v2353 = vld [vmem:[#allocation3 + $0x7c] sm:$0xf]
        %v2354 = vld [vmem:[#allocation3 + $0x80] sm:$0xf]
        %v2355 = vld [vmem:[#allocation3 + $0x84] sm:$0x1]
        %2356 = vset.pattern.permute.xlu0 1
        %2357 = vperm.xlu0 %2356, %v449
        %v2358 = vpop.permute.xlu0 %2357
        %v2361 = vunpack.c.l.s4 839922192
        %v2362 = vunpack.c.0.s8 %v2361
        %v2363 = vperm.slane %v2358, %v2362
        %2364 = vset.pattern.permute.xlu0 1
        %2365 = vperm.xlu0 %2364, %v450
        %v2366 = vpop.permute.xlu0 %2365
        %v2369 = vunpack.c.l.s4 839922192
        %v2370 = vunpack.c.0.s8 %v2369
        %v2371 = vperm.slane %v2366, %v2370
        %2372 = vset.pattern.permute.xlu0 1
        %2373 = vperm.xlu0 %2372, %v451
        %v2374 = vpop.permute.xlu0 %2373
        %v2377 = vunpack.c.l.s4 839922192
        %v2378 = vunpack.c.0.s8 %v2377
        %v2379 = vperm.slane %v2374, %v2378
        %2380 = vset.pattern.permute.xlu0 1
        %2381 = vperm.xlu0 %2380, %v452
        %v2382 = vpop.permute.xlu0 %2381
        %v2385 = vunpack.c.l.s4 839922192
        %v2386 = vunpack.c.0.s8 %v2385
        %v2387 = vperm.slane %v2382, %v2386
        %2388 = vset.pattern.permute.xlu0 1
        %2389 = vperm.xlu0 %2388, %v453
        %v2390 = vpop.permute.xlu0 %2389
        %v2393 = vunpack.c.l.s4 839922192
        %v2394 = vunpack.c.0.s8 %v2393
        %v2395 = vperm.slane %v2390, %v2394
        %2396 = vset.pattern.permute.xlu0 1
        %2397 = vperm.xlu0 %2396, %v454
        %v2398 = vpop.permute.xlu0 %2397
        %v2401 = vunpack.c.l.s4 839922192
        %v2402 = vunpack.c.0.s8 %v2401
        %v2403 = vperm.slane %v2398, %v2402
        %2404 = vset.pattern.permute.xlu0 1
        %2405 = vperm.xlu0 %2404, %v455
        %v2406 = vpop.permute.xlu0 %2405
        %v2409 = vunpack.c.l.s4 839922192
        %v2410 = vunpack.c.0.s8 %v2409
        %v2411 = vperm.slane %v2406, %v2410
        %2412 = vset.pattern.permute.xlu0 1
        %2413 = vperm.xlu0 %2412, %v456
        %v2414 = vpop.permute.xlu0 %2413
        %v2417 = vunpack.c.l.s4 839922192
        %v2418 = vunpack.c.0.s8 %v2417
        %v2419 = vperm.slane %v2414, %v2418
        %2420 = vset.pattern.permute.xlu0 1
        %2421 = vperm.xlu0 %2420, %v457
        %v2422 = vpop.permute.xlu0 %2421
        %v2425 = vunpack.c.l.s4 839922192
        %v2426 = vunpack.c.0.s8 %v2425
        %v2427 = vperm.slane %v2422, %v2426
        %2428 = vset.pattern.permute.xlu0 1
        %2429 = vperm.xlu0 %2428, %v458
        %v2430 = vpop.permute.xlu0 %2429
        %v2433 = vunpack.c.l.s4 839922192
        %v2434 = vunpack.c.0.s8 %v2433
        %v2435 = vperm.slane %v2430, %v2434
        %2436 = vset.pattern.permute.xlu0 1
        %2437 = vperm.xlu0 %2436, %v459
        %v2438 = vpop.permute.xlu0 %2437
        %v2441 = vunpack.c.l.s4 839922192
        %v2442 = vunpack.c.0.s8 %v2441
        %v2443 = vperm.slane %v2438, %v2442
        %2444 = vset.pattern.permute.xlu0 1
        %2445 = vperm.xlu0 %2444, %v460
        %v2446 = vpop.permute.xlu0 %2445
        %v2449 = vunpack.c.l.s4 839922192
        %v2450 = vunpack.c.0.s8 %v2449
        %v2451 = vperm.slane %v2446, %v2450
        %2452 = vset.pattern.permute.xlu0 1
        %2453 = vperm.xlu0 %2452, %v461
        %v2454 = vpop.permute.xlu0 %2453
        %v2457 = vunpack.c.l.s4 839922192
        %v2458 = vunpack.c.0.s8 %v2457
        %v2459 = vperm.slane %v2454, %v2458
        %2460 = vset.pattern.permute.xlu0 1
        %2461 = vperm.xlu0 %2460, %v462
        %v2462 = vpop.permute.xlu0 %2461
        %v2465 = vunpack.c.l.s4 839922192
        %v2466 = vunpack.c.0.s8 %v2465
        %v2467 = vperm.slane %v2462, %v2466
        %2468 = vset.pattern.permute.xlu0 1
        %2469 = vperm.xlu0 %2468, %v463
        %v2470 = vpop.permute.xlu0 %2469
        %v2473 = vunpack.c.l.s4 839922192
        %v2474 = vunpack.c.0.s8 %v2473
        %v2475 = vperm.slane %v2470, %v2474
        %2476 = vset.pattern.permute.xlu0 1
        %2477 = vperm.xlu0 %2476, %v464
        %v2478 = vpop.permute.xlu0 %2477
        %v2481 = vunpack.c.l.s4 839922192
        %v2482 = vunpack.c.0.s8 %v2481
        %v2483 = vperm.slane %v2478, %v2482
        %2484 = vset.pattern.permute.xlu0 1
        %2485 = vperm.xlu0 %2484, %v465
        %v2486 = vpop.permute.xlu0 %2485
        %v2489 = vunpack.c.l.s4 839922192
        %v2490 = vunpack.c.0.s8 %v2489
        %v2491 = vperm.slane %v2486, %v2490
        %2492 = vset.pattern.permute.xlu0 1
        %2493 = vperm.xlu0 %2492, %v466
        %v2494 = vpop.permute.xlu0 %2493
        %v2497 = vunpack.c.l.s4 839922192
        %v2498 = vunpack.c.0.s8 %v2497
        %v2499 = vperm.slane %v2494, %v2498
        %2500 = vset.pattern.permute.xlu0 1
        %2501 = vperm.xlu0 %2500, %v467
        %v2502 = vpop.permute.xlu0 %2501
        %v2505 = vunpack.c.l.s4 839922192
        %v2506 = vunpack.c.0.s8 %v2505
        %v2507 = vperm.slane %v2502, %v2506
        %2508 = vset.pattern.permute.xlu0 1
        %2509 = vperm.xlu0 %2508, %v468
        %v2510 = vpop.permute.xlu0 %2509
        %v2513 = vunpack.c.l.s4 839922192
        %v2514 = vunpack.c.0.s8 %v2513
        %v2515 = vperm.slane %v2510, %v2514
        %2516 = vset.pattern.permute.xlu0 1
        %2517 = vperm.xlu0 %2516, %v469
        %v2518 = vpop.permute.xlu0 %2517
        %v2521 = vunpack.c.l.s4 839922192
        %v2522 = vunpack.c.0.s8 %v2521
        %v2523 = vperm.slane %v2518, %v2522
        %2524 = vset.pattern.permute.xlu0 1
        %2525 = vperm.xlu0 %2524, %v470
        %v2526 = vpop.permute.xlu0 %2525
        %v2529 = vunpack.c.l.s4 839922192
        %v2530 = vunpack.c.0.s8 %v2529
        %v2531 = vperm.slane %v2526, %v2530
        %2532 = vset.pattern.permute.xlu0 1
        %2533 = vperm.xlu0 %2532, %v471
        %v2534 = vpop.permute.xlu0 %2533
        %v2537 = vunpack.c.l.s4 839922192
        %v2538 = vunpack.c.0.s8 %v2537
        %v2539 = vperm.slane %v2534, %v2538
        %2540 = vset.pattern.permute.xlu0 1
        %2541 = vperm.xlu0 %2540, %v472
        %v2542 = vpop.permute.xlu0 %2541
        %v2545 = vunpack.c.l.s4 839922192
        %v2546 = vunpack.c.0.s8 %v2545
        %v2547 = vperm.slane %v2542, %v2546
        %2548 = vset.pattern.permute.xlu0 1
        %2549 = vperm.xlu0 %2548, %v473
        %v2550 = vpop.permute.xlu0 %2549
        %v2553 = vunpack.c.l.s4 839922192
        %v2554 = vunpack.c.0.s8 %v2553
        %v2555 = vperm.slane %v2550, %v2554
        %2556 = vset.pattern.permute.xlu0 1
        %2557 = vperm.xlu0 %2556, %v474
        %v2558 = vpop.permute.xlu0 %2557
        %v2561 = vunpack.c.l.s4 839922192
        %v2562 = vunpack.c.0.s8 %v2561
        %v2563 = vperm.slane %v2558, %v2562
        %2564 = vset.pattern.permute.xlu0 1
        %2565 = vperm.xlu0 %2564, %v475
        %v2566 = vpop.permute.xlu0 %2565
        %v2569 = vunpack.c.l.s4 839922192
        %v2570 = vunpack.c.0.s8 %v2569
        %v2571 = vperm.slane %v2566, %v2570
        %2572 = vset.pattern.permute.xlu0 1
        %2573 = vperm.xlu0 %2572, %v476
        %v2574 = vpop.permute.xlu0 %2573
        %v2577 = vunpack.c.l.s4 839922192
        %v2578 = vunpack.c.0.s8 %v2577
        %v2579 = vperm.slane %v2574, %v2578
        %2580 = vset.pattern.permute.xlu0 1
        %2581 = vperm.xlu0 %2580, %v477
        %v2582 = vpop.permute.xlu0 %2581
        %v2585 = vunpack.c.l.s4 839922192
        %v2586 = vunpack.c.0.s8 %v2585
        %v2587 = vperm.slane %v2582, %v2586
        %2588 = vset.pattern.permute.xlu0 1
        %2589 = vperm.xlu0 %2588, %v478
        %v2590 = vpop.permute.xlu0 %2589
        %v2593 = vunpack.c.l.s4 839922192
        %v2594 = vunpack.c.0.s8 %v2593
        %v2595 = vperm.slane %v2590, %v2594
        %2596 = vset.pattern.permute.xlu0 1
        %2597 = vperm.xlu0 %2596, %v479
        %v2598 = vpop.permute.xlu0 %2597
        %v2601 = vunpack.c.l.s4 839922192
        %v2602 = vunpack.c.0.s8 %v2601
        %v2603 = vperm.slane %v2598, %v2602
        %2604 = vset.pattern.permute.xlu0 1
        %2605 = vperm.xlu0 %2604, %v480
        %v2606 = vpop.permute.xlu0 %2605
        %v2609 = vunpack.c.l.s4 839922192
        %v2610 = vunpack.c.0.s8 %v2609
        %v2611 = vperm.slane %v2606, %v2610
        %v2612 = vunpack.c.l.bf16 %v2323
        %v2613 = vunpack.c.l.bf16 %v2324
        %v2614 = vunpack.c.l.bf16 %v2325
        %v2615 = vunpack.c.l.bf16 %v2326
        %v2616 = vunpack.c.l.bf16 %v2327
        %v2617 = vunpack.c.l.bf16 %v2328
        %v2618 = vunpack.c.l.bf16 %v2329
        %v2619 = vunpack.c.l.bf16 %v2330
        %v2620 = vunpack.c.l.bf16 %v2331
        %v2621 = vunpack.c.l.bf16 %v2332
        %v2622 = vunpack.c.l.bf16 %v2333
        %v2623 = vunpack.c.l.bf16 %v2334
        %v2624 = vunpack.c.l.bf16 %v2335
        %v2625 = vunpack.c.l.bf16 %v2336
        %v2626 = vunpack.c.l.bf16 %v2337
        %v2627 = vunpack.c.l.bf16 %v2338
        %v2628 = vunpack.c.l.bf16 %v2339
        %v2629 = vunpack.c.l.bf16 %v2340
        %v2630 = vunpack.c.l.bf16 %v2341
        %v2631 = vunpack.c.l.bf16 %v2342
        %v2632 = vunpack.c.l.bf16 %v2343
        %v2633 = vunpack.c.l.bf16 %v2344
        %v2634 = vunpack.c.l.bf16 %v2345
        %v2635 = vunpack.c.l.bf16 %v2346
        %v2636 = vunpack.c.l.bf16 %v2347
        %v2637 = vunpack.c.l.bf16 %v2348
        %v2638 = vunpack.c.l.bf16 %v2349
        %v2639 = vunpack.c.l.bf16 %v2350
        %v2640 = vunpack.c.l.bf16 %v2351
        %v2641 = vunpack.c.l.bf16 %v2352
        %v2642 = vunpack.c.l.bf16 %v2353
        %v2643 = vunpack.c.l.bf16 %v2354
        %v2644 = vunpack.c.l.bf16 %v2355
        %v2645 = vunpack.c.l.bf16 %v2363
        %v2646 = vunpack.c.l.bf16 %v2371
        %v2647 = vunpack.c.l.bf16 %v2379
        %v2648 = vunpack.c.l.bf16 %v2387
        %v2649 = vunpack.c.l.bf16 %v2395
        %v2650 = vunpack.c.l.bf16 %v2403
        %v2651 = vunpack.c.l.bf16 %v2411
        %v2652 = vunpack.c.l.bf16 %v2419
        %v2653 = vunpack.c.l.bf16 %v2427
        %v2654 = vunpack.c.l.bf16 %v2435
        %v2655 = vunpack.c.l.bf16 %v2443
        %v2656 = vunpack.c.l.bf16 %v2451
        %v2657 = vunpack.c.l.bf16 %v2459
        %v2658 = vunpack.c.l.bf16 %v2467
        %v2659 = vunpack.c.l.bf16 %v2475
        %v2660 = vunpack.c.l.bf16 %v2483
        %v2661 = vunpack.c.l.bf16 %v2491
        %v2662 = vunpack.c.l.bf16 %v2499
        %v2663 = vunpack.c.l.bf16 %v2507
        %v2664 = vunpack.c.l.bf16 %v2515
        %v2665 = vunpack.c.l.bf16 %v2523
        %v2666 = vunpack.c.l.bf16 %v2531
        %v2667 = vunpack.c.l.bf16 %v2539
        %v2668 = vunpack.c.l.bf16 %v2547
        %v2669 = vunpack.c.l.bf16 %v2555
        %v2670 = vunpack.c.l.bf16 %v2563
        %v2671 = vunpack.c.l.bf16 %v2571
        %v2672 = vunpack.c.l.bf16 %v2579
        %v2673 = vunpack.c.l.bf16 %v2587
        %v2674 = vunpack.c.l.bf16 %v2595
        %v2675 = vunpack.c.l.bf16 %v2603
        %v2676 = vunpack.c.l.bf16 %v2611
        %vm2709 = vcmask 1040384
        %v2710 = vrot.slane %v2645, 7
        %v2711 = vrot.slane %v2646, 7
        %v2712 = vsel %vm2709, %v2710, %v2711
        %v2713 = vrot.slane %v2647, 7
        %v2714 = vsel %vm2709, %v2711, %v2713
        %v2715 = vrot.slane %v2648, 7
        %v2716 = vsel %vm2709, %v2713, %v2715
        %v2717 = vrot.slane %v2649, 7
        %v2718 = vsel %vm2709, %v2715, %v2717
        %v2719 = vrot.slane %v2650, 7
        %v2720 = vsel %vm2709, %v2717, %v2719
        %v2721 = vrot.slane %v2651, 7
        %v2722 = vsel %vm2709, %v2719, %v2721
        %v2723 = vrot.slane %v2652, 7
        %v2724 = vsel %vm2709, %v2721, %v2723
        %v2725 = vrot.slane %v2653, 7
        %v2726 = vsel %vm2709, %v2723, %v2725
        %v2727 = vrot.slane %v2654, 7
        %v2728 = vsel %vm2709, %v2725, %v2727
        %v2729 = vrot.slane %v2655, 7
        %v2730 = vsel %vm2709, %v2727, %v2729
        %v2731 = vrot.slane %v2656, 7
        %v2732 = vsel %vm2709, %v2729, %v2731
        %v2733 = vrot.slane %v2657, 7
        %v2734 = vsel %vm2709, %v2731, %v2733
        %v2735 = vrot.slane %v2658, 7
        %v2736 = vsel %vm2709, %v2733, %v2735
        %v2737 = vrot.slane %v2659, 7
        %v2738 = vsel %vm2709, %v2735, %v2737
        %v2739 = vrot.slane %v2660, 7
        %v2740 = vsel %vm2709, %v2737, %v2739
        %v2741 = vrot.slane %v2661, 7
        %v2742 = vsel %vm2709, %v2739, %v2741
        %v2743 = vrot.slane %v2662, 7
        %v2744 = vsel %vm2709, %v2741, %v2743
        %v2745 = vrot.slane %v2663, 7
        %v2746 = vsel %vm2709, %v2743, %v2745
        %v2747 = vrot.slane %v2664, 7
        %v2748 = vsel %vm2709, %v2745, %v2747
        %v2749 = vrot.slane %v2665, 7
        %v2750 = vsel %vm2709, %v2747, %v2749
        %v2751 = vrot.slane %v2666, 7
        %v2752 = vsel %vm2709, %v2749, %v2751
        %v2753 = vrot.slane %v2667, 7
        %v2754 = vsel %vm2709, %v2751, %v2753
        %v2755 = vrot.slane %v2668, 7
        %v2756 = vsel %vm2709, %v2753, %v2755
        %v2757 = vrot.slane %v2669, 7
        %v2758 = vsel %vm2709, %v2755, %v2757
        %v2759 = vrot.slane %v2670, 7
        %v2760 = vsel %vm2709, %v2757, %v2759
        %v2761 = vrot.slane %v2671, 7
        %v2762 = vsel %vm2709, %v2759, %v2761
        %v2763 = vrot.slane %v2672, 7
        %v2764 = vsel %vm2709, %v2761, %v2763
        %v2765 = vrot.slane %v2673, 7
        %v2766 = vsel %vm2709, %v2763, %v2765
        %v2767 = vrot.slane %v2674, 7
        %v2768 = vsel %vm2709, %v2765, %v2767
        %v2769 = vrot.slane %v2675, 7
        %v2770 = vsel %vm2709, %v2767, %v2769
        %v2771 = vrot.slane %v2676, 7
        %v2772 = vsel %vm2709, %v2769, %v2771
        %v2806 = vmul.f32 %v2612, %v2710
        %v2807 = vmul.f32 %v2613, %v2712
        %v2808 = vmul.f32 %v2614, %v2714
        %v2809 = vmul.f32 %v2615, %v2716
        %v2810 = vmul.f32 %v2616, %v2718
        %v2811 = vmul.f32 %v2617, %v2720
        %v2812 = vmul.f32 %v2618, %v2722
        %v2813 = vmul.f32 %v2619, %v2724
        %v2814 = vmul.f32 %v2620, %v2726
        %v2815 = vmul.f32 %v2621, %v2728
        %v2816 = vmul.f32 %v2622, %v2730
        %v2817 = vmul.f32 %v2623, %v2732
        %v2818 = vmul.f32 %v2624, %v2734
        %v2819 = vmul.f32 %v2625, %v2736
        %v2820 = vmul.f32 %v2626, %v2738
        %v2821 = vmul.f32 %v2627, %v2740
        %v2822 = vmul.f32 %v2628, %v2742
        %v2823 = vmul.f32 %v2629, %v2744
        %v2824 = vmul.f32 %v2630, %v2746
        %v2825 = vmul.f32 %v2631, %v2748
        %v2826 = vmul.f32 %v2632, %v2750
        %v2827 = vmul.f32 %v2633, %v2752
        %v2828 = vmul.f32 %v2634, %v2754
        %v2829 = vmul.f32 %v2635, %v2756
        %v2830 = vmul.f32 %v2636, %v2758
        %v2831 = vmul.f32 %v2637, %v2760
        %v2832 = vmul.f32 %v2638, %v2762
        %v2833 = vmul.f32 %v2639, %v2764
        %v2834 = vmul.f32 %v2640, %v2766
        %v2835 = vmul.f32 %v2641, %v2768
        %v2836 = vmul.f32 %v2642, %v2770
        %v2837 = vmul.f32 %v2643, %v2772
        %v2838 = vmul.f32 %v2644, %v2771
        %v2839 = vpack.c.bf16 %v2807, %v2806
        %v2840 = vpack.c.bf16 %v2809, %v2808
        %v2841 = vpack.c.bf16 %v2811, %v2810
        %v2842 = vpack.c.bf16 %v2813, %v2812
        %v2843 = vpack.c.bf16 %v2815, %v2814
        %v2844 = vpack.c.bf16 %v2817, %v2816
        %v2845 = vpack.c.bf16 %v2819, %v2818
        %v2846 = vpack.c.bf16 %v2821, %v2820
        %v2847 = vpack.c.bf16 %v2823, %v2822
        %v2848 = vpack.c.bf16 %v2825, %v2824
        %v2849 = vpack.c.bf16 %v2827, %v2826
        %v2850 = vpack.c.bf16 %v2829, %v2828
        %v2851 = vpack.c.bf16 %v2831, %v2830
        %v2852 = vpack.c.bf16 %v2833, %v2832
        %v2853 = vpack.c.bf16 %v2835, %v2834
        %v2854 = vpack.c.bf16 %v2837, %v2836
        %v2855 = vpack.c.bf16 %v2838, %v2838
        %s2856 = scalar_lea.vmem [#allocation5], 128
        %v2857 = vld [vmem:[%s2856] sm:$0xf]
        %v2858 = vld [vmem:[%s2856 + $0x4] sm:$0xf]
        %v2859 = vld [vmem:[%s2856 + $0x8] sm:$0xf]
        %v2860 = vld [vmem:[%s2856 + $0xc] sm:$0xf]
        %v2861 = vld [vmem:[%s2856 + $0x10] sm:$0xf]
        %v2862 = vld [vmem:[%s2856 + $0x14] sm:$0xf]
        %v2863 = vld [vmem:[%s2856 + $0x18] sm:$0xf]
        %v2864 = vld [vmem:[%s2856 + $0x1c] sm:$0xf]
        %v2865 = vld [vmem:[%s2856 + $0x20] sm:$0xf]
        %v2866 = vld [vmem:[%s2856 + $0x24] sm:$0xf]
        %v2867 = vld [vmem:[%s2856 + $0x28] sm:$0xf]
        %v2868 = vld [vmem:[%s2856 + $0x2c] sm:$0xf]
        %v2869 = vld [vmem:[%s2856 + $0x30] sm:$0xf]
        %v2870 = vld [vmem:[%s2856 + $0x34] sm:$0xf]
        %v2871 = vld [vmem:[%s2856 + $0x38] sm:$0xf]
        %v2872 = vld [vmem:[%s2856 + $0x3c] sm:$0xf]
        %vm2873 = vsmask.f32 7424
        %v2875 = vshrl.u32 %v2839, 16
        %v2877 = vshll.u32 %v2839, 16
        %v2879 = vrot.slane %v2877, 1
        %v2880 = vor.u32 %v2875, %v2879
        %v2882 = vshll.u32 %v2840, 16
        %v2884 = vrot.slane %v2882, 1
        %v2885 = vsel %vm2873, %v2880, %v2884
        %v2886 = vshrl.u32 %v2840, 16
        %v2888 = vor.u32 %v2886, %v2884
        %v2890 = vshll.u32 %v2841, 16
        %v2892 = vrot.slane %v2890, 1
        %v2893 = vsel %vm2873, %v2888, %v2892
        %v2894 = vshrl.u32 %v2841, 16
        %v2896 = vor.u32 %v2894, %v2892
        %v2898 = vshll.u32 %v2842, 16
        %v2900 = vrot.slane %v2898, 1
        %v2901 = vsel %vm2873, %v2896, %v2900
        %v2902 = vshrl.u32 %v2842, 16
        %v2904 = vor.u32 %v2902, %v2900
        %v2906 = vshll.u32 %v2843, 16
        %v2908 = vrot.slane %v2906, 1
        %v2909 = vsel %vm2873, %v2904, %v2908
        %v2910 = vshrl.u32 %v2843, 16
        %v2912 = vor.u32 %v2910, %v2908
        %v2914 = vshll.u32 %v2844, 16
        %v2916 = vrot.slane %v2914, 1
        %v2917 = vsel %vm2873, %v2912, %v2916
        %v2918 = vshrl.u32 %v2844, 16
        %v2920 = vor.u32 %v2918, %v2916
        %v2922 = vshll.u32 %v2845, 16
        %v2924 = vrot.slane %v2922, 1
        %v2925 = vsel %vm2873, %v2920, %v2924
        %v2926 = vshrl.u32 %v2845, 16
        %v2928 = vor.u32 %v2926, %v2924
        %v2930 = vshll.u32 %v2846, 16
        %v2932 = vrot.slane %v2930, 1
        %v2933 = vsel %vm2873, %v2928, %v2932
        %v2934 = vshrl.u32 %v2846, 16
        %v2936 = vor.u32 %v2934, %v2932
        %v2938 = vshll.u32 %v2847, 16
        %v2940 = vrot.slane %v2938, 1
        %v2941 = vsel %vm2873, %v2936, %v2940
        %v2942 = vshrl.u32 %v2847, 16
        %v2944 = vor.u32 %v2942, %v2940
        %v2946 = vshll.u32 %v2848, 16
        %v2948 = vrot.slane %v2946, 1
        %v2949 = vsel %vm2873, %v2944, %v2948
        %v2950 = vshrl.u32 %v2848, 16
        %v2952 = vor.u32 %v2950, %v2948
        %v2954 = vshll.u32 %v2849, 16
        %v2956 = vrot.slane %v2954, 1
        %v2957 = vsel %vm2873, %v2952, %v2956
        %v2958 = vshrl.u32 %v2849, 16
        %v2960 = vor.u32 %v2958, %v2956
        %v2962 = vshll.u32 %v2850, 16
        %v2964 = vrot.slane %v2962, 1
        %v2965 = vsel %vm2873, %v2960, %v2964
        %v2966 = vshrl.u32 %v2850, 16
        %v2968 = vor.u32 %v2966, %v2964
        %v2970 = vshll.u32 %v2851, 16
        %v2972 = vrot.slane %v2970, 1
        %v2973 = vsel %vm2873, %v2968, %v2972
        %v2974 = vshrl.u32 %v2851, 16
        %v2976 = vor.u32 %v2974, %v2972
        %v2978 = vshll.u32 %v2852, 16
        %v2980 = vrot.slane %v2978, 1
        %v2981 = vsel %vm2873, %v2976, %v2980
        %v2982 = vshrl.u32 %v2852, 16
        %v2984 = vor.u32 %v2982, %v2980
        %v2986 = vshll.u32 %v2853, 16
        %v2988 = vrot.slane %v2986, 1
        %v2989 = vsel %vm2873, %v2984, %v2988
        %v2990 = vshrl.u32 %v2853, 16
        %v2992 = vor.u32 %v2990, %v2988
        %v2994 = vshll.u32 %v2854, 16
        %v2996 = vrot.slane %v2994, 1
        %v2997 = vsel %vm2873, %v2992, %v2996
        %v2998 = vshrl.u32 %v2854, 16
        %v3000 = vor.u32 %v2998, %v2996
        %v3002 = vshll.u32 %v2855, 16
        %v3004 = vrot.slane %v3002, 1
        %v3005 = vsel %vm2873, %v3000, %v3004
        %v3038 = vunpack.c.l.b16 %v2857
        %v3039 = vunpack.c.l.b16 %v2858
        %v3040 = vunpack.c.l.b16 %v2859
        %v3041 = vunpack.c.l.b16 %v2860
        %v3042 = vunpack.c.l.b16 %v2861
        %v3043 = vunpack.c.l.b16 %v2862
        %v3044 = vunpack.c.l.b16 %v2863
        %v3045 = vunpack.c.l.b16 %v2864
        %v3046 = vunpack.c.l.b16 %v2865
        %v3047 = vunpack.c.l.b16 %v2866
        %v3048 = vunpack.c.l.b16 %v2867
        %v3049 = vunpack.c.l.b16 %v2868
        %v3050 = vunpack.c.l.b16 %v2869
        %v3051 = vunpack.c.l.b16 %v2870
        %v3052 = vunpack.c.l.b16 %v2871
        %v3053 = vunpack.c.l.b16 %v2872
        %v3054 = vpack.c.b16 %v3039, %v3038
        %v3055 = vpack.c.b16 %v3041, %v3040
        %v3056 = vpack.c.b16 %v3043, %v3042
        %v3057 = vpack.c.b16 %v3045, %v3044
        %v3058 = vpack.c.b16 %v3047, %v3046
        %v3059 = vpack.c.b16 %v3049, %v3048
        %v3060 = vpack.c.b16 %v3051, %v3050
        %v3061 = vpack.c.b16 %v3053, %v3052
        %3070 = vmatpush.bf16.msra.mxu0 %v3061
        %3071 = vmatpush.bf16.msra.mxu0 %v3060
        %3072 = vmatpush.bf16.msra.mxu0 %v3059
        %3073 = vmatpush.bf16.msra.mxu0 %v3058
        %3074 = vmatpush.bf16.msra.mxu0 %v3057
        %3075 = vmatpush.bf16.msra.mxu0 %v3056
        %3076 = vmatpush.bf16.msra.mxu0 %v3055
        %3077 = vmatpush.bf16.msra.mxu0 %v3054
        %3078 = vmatmul.bf16.gmra.mxu0 %v2885
        %v3079 = vpop.f32.mrf.mxu0
        %v3080 = vadd.f32 0.0, %v3079
        %v3081 = vpop.f32.mrf.mxu0
        %v3082 = vadd.f32 0.0, %v3081
        %3083 = vmatmul.bf16.gmra.mxu0 %v2893
        %v3084 = vpop.f32.mrf.mxu0
        %v3085 = vadd.f32 0.0, %v3084
        %v3086 = vpop.f32.mrf.mxu0
        %v3087 = vadd.f32 0.0, %v3086
        %3088 = vmatmul.bf16.gmra.mxu0 %v2901
        %v3089 = vpop.f32.mrf.mxu0
        %v3090 = vadd.f32 0.0, %v3089
        %v3091 = vpop.f32.mrf.mxu0
        %v3092 = vadd.f32 0.0, %v3091
        %3093 = vmatmul.bf16.gmra.mxu0 %v2909
        %v3094 = vpop.f32.mrf.mxu0
        %v3095 = vadd.f32 0.0, %v3094
        %v3096 = vpop.f32.mrf.mxu0
        %v3097 = vadd.f32 0.0, %v3096
        %3098 = vmatmul.bf16.gmra.mxu0 %v2917
        %v3099 = vpop.f32.mrf.mxu0
        %v3100 = vadd.f32 0.0, %v3099
        %v3101 = vpop.f32.mrf.mxu0
        %v3102 = vadd.f32 0.0, %v3101
        %3103 = vmatmul.bf16.gmra.mxu0 %v2925
        %v3104 = vpop.f32.mrf.mxu0
        %v3105 = vadd.f32 0.0, %v3104
        %v3106 = vpop.f32.mrf.mxu0
        %v3107 = vadd.f32 0.0, %v3106
        %3108 = vmatmul.bf16.gmra.mxu0 %v2933
        %v3109 = vpop.f32.mrf.mxu0
        %v3110 = vadd.f32 0.0, %v3109
        %v3111 = vpop.f32.mrf.mxu0
        %v3112 = vadd.f32 0.0, %v3111
        %3113 = vmatmul.bf16.gmra.mxu0 %v2941
        %v3114 = vpop.f32.mrf.mxu0
        %v3115 = vadd.f32 0.0, %v3114
        %v3116 = vpop.f32.mrf.mxu0
        %v3117 = vadd.f32 0.0, %v3116
        %3118 = vmatmul.bf16.gmra.mxu0 %v2949
        %v3119 = vpop.f32.mrf.mxu0
        %v3120 = vadd.f32 0.0, %v3119
        %v3121 = vpop.f32.mrf.mxu0
        %v3122 = vadd.f32 0.0, %v3121
        %3123 = vmatmul.bf16.gmra.mxu0 %v2957
        %v3124 = vpop.f32.mrf.mxu0
        %v3125 = vadd.f32 0.0, %v3124
        %v3126 = vpop.f32.mrf.mxu0
        %v3127 = vadd.f32 0.0, %v3126
        %3128 = vmatmul.bf16.gmra.mxu0 %v2965
        %v3129 = vpop.f32.mrf.mxu0
        %v3130 = vadd.f32 0.0, %v3129
        %v3131 = vpop.f32.mrf.mxu0
        %v3132 = vadd.f32 0.0, %v3131
        %3133 = vmatmul.bf16.gmra.mxu0 %v2973
        %v3134 = vpop.f32.mrf.mxu0
        %v3135 = vadd.f32 0.0, %v3134
        %v3136 = vpop.f32.mrf.mxu0
        %v3137 = vadd.f32 0.0, %v3136
        %3138 = vmatmul.bf16.gmra.mxu0 %v2981
        %v3139 = vpop.f32.mrf.mxu0
        %v3140 = vadd.f32 0.0, %v3139
        %v3141 = vpop.f32.mrf.mxu0
        %v3142 = vadd.f32 0.0, %v3141
        %3143 = vmatmul.bf16.gmra.mxu0 %v2989
        %v3144 = vpop.f32.mrf.mxu0
        %v3145 = vadd.f32 0.0, %v3144
        %v3146 = vpop.f32.mrf.mxu0
        %v3147 = vadd.f32 0.0, %v3146
        %3148 = vmatmul.bf16.gmra.mxu0 %v2997
        %v3149 = vpop.f32.mrf.mxu0
        %v3150 = vadd.f32 0.0, %v3149
        %v3151 = vpop.f32.mrf.mxu0
        %v3152 = vadd.f32 0.0, %v3151
        %3153 = vmatmul.bf16.gmra.mxu0 %v3005
        %v3154 = vpop.f32.mrf.mxu0
        %v3155 = vadd.f32 0.0, %v3154
        %v3156 = vpop.f32.mrf.mxu0
        %v3157 = vadd.f32 0.0, %v3156
        %3158 = vdwg.mxu0
        %v3159 = vadd.f32 %v2244, %v3080
        %v3160 = vadd.f32 %v2246, %v3082
        %v3161 = vadd.f32 %v2249, %v3085
        %v3162 = vadd.f32 %v2251, %v3087
        %v3163 = vadd.f32 %v2254, %v3090
        %v3164 = vadd.f32 %v2256, %v3092
        %v3165 = vadd.f32 %v2259, %v3095
        %v3166 = vadd.f32 %v2261, %v3097
        %v3167 = vadd.f32 %v2264, %v3100
        %v3168 = vadd.f32 %v2266, %v3102
        %v3169 = vadd.f32 %v2269, %v3105
        %v3170 = vadd.f32 %v2271, %v3107
        %v3171 = vadd.f32 %v2274, %v3110
        %v3172 = vadd.f32 %v2276, %v3112
        %v3173 = vadd.f32 %v2279, %v3115
        %v3174 = vadd.f32 %v2281, %v3117
        %v3175 = vadd.f32 %v2284, %v3120
        %v3176 = vadd.f32 %v2286, %v3122
        %v3177 = vadd.f32 %v2289, %v3125
        %v3178 = vadd.f32 %v2291, %v3127
        %v3179 = vadd.f32 %v2294, %v3130
        %v3180 = vadd.f32 %v2296, %v3132
        %v3181 = vadd.f32 %v2299, %v3135
        %v3182 = vadd.f32 %v2301, %v3137
        %v3183 = vadd.f32 %v2304, %v3140
        %v3184 = vadd.f32 %v2306, %v3142
        %v3185 = vadd.f32 %v2309, %v3145
        %v3186 = vadd.f32 %v2311, %v3147
        %v3187 = vadd.f32 %v2314, %v3150
        %v3188 = vadd.f32 %v2316, %v3152
        %v3189 = vadd.f32 %v2319, %v3155
        %v3190 = vadd.f32 %v2321, %v3157
        %v3191 = vld [vmem:[#allocation3 + $0x8] sm:$0x8]
        %v3192 = vld [vmem:[#allocation3 + $0xc] sm:$0xf]
        %v3193 = vld [vmem:[#allocation3 + $0x10] sm:$0xf]
        %v3194 = vld [vmem:[#allocation3 + $0x14] sm:$0xf]
        %v3195 = vld [vmem:[#allocation3 + $0x18] sm:$0xf]
        %v3196 = vld [vmem:[#allocation3 + $0x1c] sm:$0xf]
        %v3197 = vld [vmem:[#allocation3 + $0x20] sm:$0xf]
        %v3198 = vld [vmem:[#allocation3 + $0x24] sm:$0xf]
        %v3199 = vld [vmem:[#allocation3 + $0x28] sm:$0xf]
        %v3200 = vld [vmem:[#allocation3 + $0x2c] sm:$0xf]
        %v3201 = vld [vmem:[#allocation3 + $0x30] sm:$0xf]
        %v3202 = vld [vmem:[#allocation3 + $0x34] sm:$0xf]
        %v3203 = vld [vmem:[#allocation3 + $0x38] sm:$0xf]
        %v3204 = vld [vmem:[#allocation3 + $0x3c] sm:$0xf]
        %v3205 = vld [vmem:[#allocation3 + $0x40] sm:$0xf]
        %v3206 = vld [vmem:[#allocation3 + $0x44] sm:$0xf]
        %v3207 = vld [vmem:[#allocation3 + $0x48] sm:$0xf]
        %v3208 = vld [vmem:[#allocation3 + $0x4c] sm:$0xf]
        %v3209 = vld [vmem:[#allocation3 + $0x50] sm:$0xf]
        %v3210 = vld [vmem:[#allocation3 + $0x54] sm:$0xf]
        %v3211 = vld [vmem:[#allocation3 + $0x58] sm:$0xf]
        %v3212 = vld [vmem:[#allocation3 + $0x5c] sm:$0xf]
        %v3213 = vld [vmem:[#allocation3 + $0x60] sm:$0xf]
        %v3214 = vld [vmem:[#allocation3 + $0x64] sm:$0xf]
        %v3215 = vld [vmem:[#allocation3 + $0x68] sm:$0xf]
        %v3216 = vld [vmem:[#allocation3 + $0x6c] sm:$0xf]
        %v3217 = vld [vmem:[#allocation3 + $0x70] sm:$0xf]
        %v3218 = vld [vmem:[#allocation3 + $0x74] sm:$0xf]
        %v3219 = vld [vmem:[#allocation3 + $0x78] sm:$0xf]
        %v3220 = vld [vmem:[#allocation3 + $0x7c] sm:$0xf]
        %v3221 = vld [vmem:[#allocation3 + $0x80] sm:$0xf]
        %v3222 = vld [vmem:[#allocation3 + $0x84] sm:$0xf]
        %v3223 = vld [vmem:[#allocation3 + $0x88] sm:$0xf]
        %v3224 = vunpack.c.l.bf16 %v3191
        %v3225 = vunpack.c.l.bf16 %v3192
        %v3226 = vunpack.c.l.bf16 %v3193
        %v3227 = vunpack.c.l.bf16 %v3194
        %v3228 = vunpack.c.l.bf16 %v3195
        %v3229 = vunpack.c.l.bf16 %v3196
        %v3230 = vunpack.c.l.bf16 %v3197
        %v3231 = vunpack.c.l.bf16 %v3198
        %v3232 = vunpack.c.l.bf16 %v3199
        %v3233 = vunpack.c.l.bf16 %v3200
        %v3234 = vunpack.c.l.bf16 %v3201
        %v3235 = vunpack.c.l.bf16 %v3202
        %v3236 = vunpack.c.l.bf16 %v3203
        %v3237 = vunpack.c.l.bf16 %v3204
        %v3238 = vunpack.c.l.bf16 %v3205
        %v3239 = vunpack.c.l.bf16 %v3206
        %v3240 = vunpack.c.l.bf16 %v3207
        %v3241 = vunpack.c.l.bf16 %v3208
        %v3242 = vunpack.c.l.bf16 %v3209
        %v3243 = vunpack.c.l.bf16 %v3210
        %v3244 = vunpack.c.l.bf16 %v3211
        %v3245 = vunpack.c.l.bf16 %v3212
        %v3246 = vunpack.c.l.bf16 %v3213
        %v3247 = vunpack.c.l.bf16 %v3214
        %v3248 = vunpack.c.l.bf16 %v3215
        %v3249 = vunpack.c.l.bf16 %v3216
        %v3250 = vunpack.c.l.bf16 %v3217
        %v3251 = vunpack.c.l.bf16 %v3218
        %v3252 = vunpack.c.l.bf16 %v3219
        %v3253 = vunpack.c.l.bf16 %v3220
        %v3254 = vunpack.c.l.bf16 %v3221
        %v3255 = vunpack.c.l.bf16 %v3222
        %v3256 = vunpack.c.l.bf16 %v3223
        %v3257 = vmul.f32 %v3224, %v1605
        %v3258 = vmul.f32 %v3225, %v1607
        %v3259 = vmul.f32 %v3226, %v1609
        %v3260 = vmul.f32 %v3227, %v1611
        %v3261 = vmul.f32 %v3228, %v1613
        %v3262 = vmul.f32 %v3229, %v1615
        %v3263 = vmul.f32 %v3230, %v1617
        %v3264 = vmul.f32 %v3231, %v1619
        %v3265 = vmul.f32 %v3232, %v1621
        %v3266 = vmul.f32 %v3233, %v1623
        %v3267 = vmul.f32 %v3234, %v1625
        %v3268 = vmul.f32 %v3235, %v1627
        %v3269 = vmul.f32 %v3236, %v1629
        %v3270 = vmul.f32 %v3237, %v1631
        %v3271 = vmul.f32 %v3238, %v1633
        %v3272 = vmul.f32 %v3239, %v1635
        %v3273 = vmul.f32 %v3240, %v1637
        %v3274 = vmul.f32 %v3241, %v1639
        %v3275 = vmul.f32 %v3242, %v1641
        %v3276 = vmul.f32 %v3243, %v1643
        %v3277 = vmul.f32 %v3244, %v1645
        %v3278 = vmul.f32 %v3245, %v1647
        %v3279 = vmul.f32 %v3246, %v1649
        %v3280 = vmul.f32 %v3247, %v1651
        %v3281 = vmul.f32 %v3248, %v1653
        %v3282 = vmul.f32 %v3249, %v1655
        %v3283 = vmul.f32 %v3250, %v1657
        %v3284 = vmul.f32 %v3251, %v1659
        %v3285 = vmul.f32 %v3252, %v1661
        %v3286 = vmul.f32 %v3253, %v1663
        %v3287 = vmul.f32 %v3254, %v1665
        %v3288 = vmul.f32 %v3255, %v1667
        %v3289 = vmul.f32 %v3256, %v1666
        %v3290 = vpack.c.bf16 %v3258, %v3257
        %v3291 = vpack.c.bf16 %v3260, %v3259
        %v3292 = vpack.c.bf16 %v3262, %v3261
        %v3293 = vpack.c.bf16 %v3264, %v3263
        %v3294 = vpack.c.bf16 %v3266, %v3265
        %v3295 = vpack.c.bf16 %v3268, %v3267
        %v3296 = vpack.c.bf16 %v3270, %v3269
        %v3297 = vpack.c.bf16 %v3272, %v3271
        %v3298 = vpack.c.bf16 %v3274, %v3273
        %v3299 = vpack.c.bf16 %v3276, %v3275
        %v3300 = vpack.c.bf16 %v3278, %v3277
        %v3301 = vpack.c.bf16 %v3280, %v3279
        %v3302 = vpack.c.bf16 %v3282, %v3281
        %v3303 = vpack.c.bf16 %v3284, %v3283
        %v3304 = vpack.c.bf16 %v3286, %v3285
        %v3305 = vpack.c.bf16 %v3288, %v3287
        %v3306 = vpack.c.bf16 %v3289, %v3289
        %s3307 = scalar_lea.vmem [#allocation5], 192
        %v3308 = vld [vmem:[%s3307] sm:$0xf]
        %v3309 = vld [vmem:[%s3307 + $0x4] sm:$0xf]
        %v3310 = vld [vmem:[%s3307 + $0x8] sm:$0xf]
        %v3311 = vld [vmem:[%s3307 + $0xc] sm:$0xf]
        %v3312 = vld [vmem:[%s3307 + $0x10] sm:$0xf]
        %v3313 = vld [vmem:[%s3307 + $0x14] sm:$0xf]
        %v3314 = vld [vmem:[%s3307 + $0x18] sm:$0xf]
        %v3315 = vld [vmem:[%s3307 + $0x1c] sm:$0xf]
        %v3316 = vld [vmem:[%s3307 + $0x20] sm:$0xf]
        %v3317 = vld [vmem:[%s3307 + $0x24] sm:$0xf]
        %v3318 = vld [vmem:[%s3307 + $0x28] sm:$0xf]
        %v3319 = vld [vmem:[%s3307 + $0x2c] sm:$0xf]
        %v3320 = vld [vmem:[%s3307 + $0x30] sm:$0xf]
        %v3321 = vld [vmem:[%s3307 + $0x34] sm:$0xf]
        %v3322 = vld [vmem:[%s3307 + $0x38] sm:$0xf]
        %v3323 = vld [vmem:[%s3307 + $0x3c] sm:$0xf]
        %v3325 = vshrl.u32 %v3290, 16
        %v3327 = vrot.slane %v3325, 3
        %v3328 = vshll.u32 %v3290, 16
        %v3330 = vrot.slane %v3328, 4
        %v3331 = vor.u32 %v3327, %v3330
        %v3333 = vshrl.u32 %v3291, 16
        %v3335 = vrot.slane %v3333, 3
        %v3336 = vshll.u32 %v3291, 16
        %v3338 = vrot.slane %v3336, 4
        %v3339 = vor.u32 %v3335, %v3338
        %v3340 = vsel %vm2017, %v3331, %v3339
        %v3342 = vshrl.u32 %v3292, 16
        %v3344 = vrot.slane %v3342, 3
        %v3345 = vshll.u32 %v3292, 16
        %v3347 = vrot.slane %v3345, 4
        %v3348 = vor.u32 %v3344, %v3347
        %v3349 = vsel %vm2017, %v3339, %v3348
        %v3351 = vshrl.u32 %v3293, 16
        %v3353 = vrot.slane %v3351, 3
        %v3354 = vshll.u32 %v3293, 16
        %v3356 = vrot.slane %v3354, 4
        %v3357 = vor.u32 %v3353, %v3356
        %v3358 = vsel %vm2017, %v3348, %v3357
        %v3360 = vshrl.u32 %v3294, 16
        %v3362 = vrot.slane %v3360, 3
        %v3363 = vshll.u32 %v3294, 16
        %v3365 = vrot.slane %v3363, 4
        %v3366 = vor.u32 %v3362, %v3365
        %v3367 = vsel %vm2017, %v3357, %v3366
        %v3369 = vshrl.u32 %v3295, 16
        %v3371 = vrot.slane %v3369, 3
        %v3372 = vshll.u32 %v3295, 16
        %v3374 = vrot.slane %v3372, 4
        %v3375 = vor.u32 %v3371, %v3374
        %v3376 = vsel %vm2017, %v3366, %v3375
        %v3378 = vshrl.u32 %v3296, 16
        %v3380 = vrot.slane %v3378, 3
        %v3381 = vshll.u32 %v3296, 16
        %v3383 = vrot.slane %v3381, 4
        %v3384 = vor.u32 %v3380, %v3383
        %v3385 = vsel %vm2017, %v3375, %v3384
        %v3387 = vshrl.u32 %v3297, 16
        %v3389 = vrot.slane %v3387, 3
        %v3390 = vshll.u32 %v3297, 16
        %v3392 = vrot.slane %v3390, 4
        %v3393 = vor.u32 %v3389, %v3392
        %v3394 = vsel %vm2017, %v3384, %v3393
        %v3396 = vshrl.u32 %v3298, 16
        %v3398 = vrot.slane %v3396, 3
        %v3399 = vshll.u32 %v3298, 16
        %v3401 = vrot.slane %v3399, 4
        %v3402 = vor.u32 %v3398, %v3401
        %v3403 = vsel %vm2017, %v3393, %v3402
        %v3405 = vshrl.u32 %v3299, 16
        %v3407 = vrot.slane %v3405, 3
        %v3408 = vshll.u32 %v3299, 16
        %v3410 = vrot.slane %v3408, 4
        %v3411 = vor.u32 %v3407, %v3410
        %v3412 = vsel %vm2017, %v3402, %v3411
        %v3414 = vshrl.u32 %v3300, 16
        %v3416 = vrot.slane %v3414, 3
        %v3417 = vshll.u32 %v3300, 16
        %v3419 = vrot.slane %v3417, 4
        %v3420 = vor.u32 %v3416, %v3419
        %v3421 = vsel %vm2017, %v3411, %v3420
        %v3423 = vshrl.u32 %v3301, 16
        %v3425 = vrot.slane %v3423, 3
        %v3426 = vshll.u32 %v3301, 16
        %v3428 = vrot.slane %v3426, 4
        %v3429 = vor.u32 %v3425, %v3428
        %v3430 = vsel %vm2017, %v3420, %v3429
        %v3432 = vshrl.u32 %v3302, 16
        %v3434 = vrot.slane %v3432, 3
        %v3435 = vshll.u32 %v3302, 16
        %v3437 = vrot.slane %v3435, 4
        %v3438 = vor.u32 %v3434, %v3437
        %v3439 = vsel %vm2017, %v3429, %v3438
        %v3441 = vshrl.u32 %v3303, 16
        %v3443 = vrot.slane %v3441, 3
        %v3444 = vshll.u32 %v3303, 16
        %v3446 = vrot.slane %v3444, 4
        %v3447 = vor.u32 %v3443, %v3446
        %v3448 = vsel %vm2017, %v3438, %v3447
        %v3450 = vshrl.u32 %v3304, 16
        %v3452 = vrot.slane %v3450, 3
        %v3453 = vshll.u32 %v3304, 16
        %v3455 = vrot.slane %v3453, 4
        %v3456 = vor.u32 %v3452, %v3455
        %v3457 = vsel %vm2017, %v3447, %v3456
        %v3459 = vshrl.u32 %v3305, 16
        %v3461 = vrot.slane %v3459, 3
        %v3462 = vshll.u32 %v3305, 16
        %v3464 = vrot.slane %v3462, 4
        %v3465 = vor.u32 %v3461, %v3464
        %v3466 = vsel %vm2017, %v3456, %v3465
        %v3468 = vshrl.u32 %v3306, 16
        %v3470 = vrot.slane %v3468, 3
        %v3471 = vshll.u32 %v3306, 16
        %v3473 = vrot.slane %v3471, 4
        %v3474 = vor.u32 %v3470, %v3473
        %v3475 = vsel %vm2017, %v3465, %v3474
        %v3508 = vunpack.c.l.b16 %v3308
        %v3509 = vunpack.c.l.b16 %v3309
        %v3510 = vunpack.c.l.b16 %v3310
        %v3511 = vunpack.c.l.b16 %v3311
        %v3512 = vunpack.c.l.b16 %v3312
        %v3513 = vunpack.c.l.b16 %v3313
        %v3514 = vunpack.c.l.b16 %v3314
        %v3515 = vunpack.c.l.b16 %v3315
        %v3516 = vunpack.c.l.b16 %v3316
        %v3517 = vunpack.c.l.b16 %v3317
        %v3518 = vunpack.c.l.b16 %v3318
        %v3519 = vunpack.c.l.b16 %v3319
        %v3520 = vunpack.c.l.b16 %v3320
        %v3521 = vunpack.c.l.b16 %v3321
        %v3522 = vunpack.c.l.b16 %v3322
        %v3523 = vunpack.c.l.b16 %v3323
        %v3524 = vpack.c.b16 %v3509, %v3508
        %v3525 = vpack.c.b16 %v3511, %v3510
        %v3526 = vpack.c.b16 %v3513, %v3512
        %v3527 = vpack.c.b16 %v3515, %v3514
        %v3528 = vpack.c.b16 %v3517, %v3516
        %v3529 = vpack.c.b16 %v3519, %v3518
        %v3530 = vpack.c.b16 %v3521, %v3520
        %v3531 = vpack.c.b16 %v3523, %v3522
        %3540 = vmatpush.bf16.msra.mxu0 %v3531
        %3541 = vmatpush.bf16.msra.mxu0 %v3530
        %3542 = vmatpush.bf16.msra.mxu0 %v3529
        %3543 = vmatpush.bf16.msra.mxu0 %v3528
        %3544 = vmatpush.bf16.msra.mxu0 %v3527
        %3545 = vmatpush.bf16.msra.mxu0 %v3526
        %3546 = vmatpush.bf16.msra.mxu0 %v3525
        %3547 = vmatpush.bf16.msra.mxu0 %v3524
        %3548 = vmatmul.bf16.gmra.mxu0 %v3340
        %v3549 = vpop.f32.mrf.mxu0
        %v3550 = vadd.f32 0.0, %v3549
        %v3551 = vpop.f32.mrf.mxu0
        %v3552 = vadd.f32 0.0, %v3551
        %3553 = vmatmul.bf16.gmra.mxu0 %v3349
        %v3554 = vpop.f32.mrf.mxu0
        %v3555 = vadd.f32 0.0, %v3554
        %v3556 = vpop.f32.mrf.mxu0
        %v3557 = vadd.f32 0.0, %v3556
        %3558 = vmatmul.bf16.gmra.mxu0 %v3358
        %v3559 = vpop.f32.mrf.mxu0
        %v3560 = vadd.f32 0.0, %v3559
        %v3561 = vpop.f32.mrf.mxu0
        %v3562 = vadd.f32 0.0, %v3561
        %3563 = vmatmul.bf16.gmra.mxu0 %v3367
        %v3564 = vpop.f32.mrf.mxu0
        %v3565 = vadd.f32 0.0, %v3564
        %v3566 = vpop.f32.mrf.mxu0
        %v3567 = vadd.f32 0.0, %v3566
        %3568 = vmatmul.bf16.gmra.mxu0 %v3376
        %v3569 = vpop.f32.mrf.mxu0
        %v3570 = vadd.f32 0.0, %v3569
        %v3571 = vpop.f32.mrf.mxu0
        %v3572 = vadd.f32 0.0, %v3571
        %3573 = vmatmul.bf16.gmra.mxu0 %v3385
        %v3574 = vpop.f32.mrf.mxu0
        %v3575 = vadd.f32 0.0, %v3574
        %v3576 = vpop.f32.mrf.mxu0
        %v3577 = vadd.f32 0.0, %v3576
        %3578 = vmatmul.bf16.gmra.mxu0 %v3394
        %v3579 = vpop.f32.mrf.mxu0
        %v3580 = vadd.f32 0.0, %v3579
        %v3581 = vpop.f32.mrf.mxu0
        %v3582 = vadd.f32 0.0, %v3581
        %3583 = vmatmul.bf16.gmra.mxu0 %v3403
        %v3584 = vpop.f32.mrf.mxu0
        %v3585 = vadd.f32 0.0, %v3584
        %v3586 = vpop.f32.mrf.mxu0
        %v3587 = vadd.f32 0.0, %v3586
        %3588 = vmatmul.bf16.gmra.mxu0 %v3412
        %v3589 = vpop.f32.mrf.mxu0
        %v3590 = vadd.f32 0.0, %v3589
        %v3591 = vpop.f32.mrf.mxu0
        %v3592 = vadd.f32 0.0, %v3591
        %3593 = vmatmul.bf16.gmra.mxu0 %v3421
        %v3594 = vpop.f32.mrf.mxu0
        %v3595 = vadd.f32 0.0, %v3594
        %v3596 = vpop.f32.mrf.mxu0
        %v3597 = vadd.f32 0.0, %v3596
        %3598 = vmatmul.bf16.gmra.mxu0 %v3430
        %v3599 = vpop.f32.mrf.mxu0
        %v3600 = vadd.f32 0.0, %v3599
        %v3601 = vpop.f32.mrf.mxu0
        %v3602 = vadd.f32 0.0, %v3601
        %3603 = vmatmul.bf16.gmra.mxu0 %v3439
        %v3604 = vpop.f32.mrf.mxu0
        %v3605 = vadd.f32 0.0, %v3604
        %v3606 = vpop.f32.mrf.mxu0
        %v3607 = vadd.f32 0.0, %v3606
        %3608 = vmatmul.bf16.gmra.mxu0 %v3448
        %v3609 = vpop.f32.mrf.mxu0
        %v3610 = vadd.f32 0.0, %v3609
        %v3611 = vpop.f32.mrf.mxu0
        %v3612 = vadd.f32 0.0, %v3611
        %3613 = vmatmul.bf16.gmra.mxu0 %v3457
        %v3614 = vpop.f32.mrf.mxu0
        %v3615 = vadd.f32 0.0, %v3614
        %v3616 = vpop.f32.mrf.mxu0
        %v3617 = vadd.f32 0.0, %v3616
        %3618 = vmatmul.bf16.gmra.mxu0 %v3466
        %v3619 = vpop.f32.mrf.mxu0
        %v3620 = vadd.f32 0.0, %v3619
        %v3621 = vpop.f32.mrf.mxu0
        %v3622 = vadd.f32 0.0, %v3621
        %3623 = vmatmul.bf16.gmra.mxu0 %v3475
        %v3624 = vpop.f32.mrf.mxu0
        %v3625 = vadd.f32 0.0, %v3624
        %v3626 = vpop.f32.mrf.mxu0
        %v3627 = vadd.f32 0.0, %v3626
        %3628 = vdwg.mxu0
        %v3629 = vadd.f32 %v3159, %v3550
        %v3630 = vadd.f32 %v3160, %v3552
        %v3631 = vadd.f32 %v3161, %v3555
        %v3632 = vadd.f32 %v3162, %v3557
        %v3633 = vadd.f32 %v3163, %v3560
        %v3634 = vadd.f32 %v3164, %v3562
        %v3635 = vadd.f32 %v3165, %v3565
        %v3636 = vadd.f32 %v3166, %v3567
        %v3637 = vadd.f32 %v3167, %v3570
        %v3638 = vadd.f32 %v3168, %v3572
        %v3639 = vadd.f32 %v3169, %v3575
        %v3640 = vadd.f32 %v3170, %v3577
        %v3641 = vadd.f32 %v3171, %v3580
        %v3642 = vadd.f32 %v3172, %v3582
        %v3643 = vadd.f32 %v3173, %v3585
        %v3644 = vadd.f32 %v3174, %v3587
        %v3645 = vadd.f32 %v3175, %v3590
        %v3646 = vadd.f32 %v3176, %v3592
        %v3647 = vadd.f32 %v3177, %v3595
        %v3648 = vadd.f32 %v3178, %v3597
        %v3649 = vadd.f32 %v3179, %v3600
        %v3650 = vadd.f32 %v3180, %v3602
        %v3651 = vadd.f32 %v3181, %v3605
        %v3652 = vadd.f32 %v3182, %v3607
        %v3653 = vadd.f32 %v3183, %v3610
        %v3654 = vadd.f32 %v3184, %v3612
        %v3655 = vadd.f32 %v3185, %v3615
        %v3656 = vadd.f32 %v3186, %v3617
        %v3657 = vadd.f32 %v3187, %v3620
        %v3658 = vadd.f32 %v3188, %v3622
        %v3659 = vadd.f32 %v3189, %v3625
        %v3660 = vadd.f32 %v3190, %v3627
        %s3661 = scalar_lea.vmem [#allocation5], 256
        %v3662 = vld [vmem:[%s3661] sm:$0xf]
        %v3663 = vld [vmem:[%s3661 + $0x4] sm:$0xf]
        %v3664 = vld [vmem:[%s3661 + $0x8] sm:$0xf]
        %v3665 = vld [vmem:[%s3661 + $0xc] sm:$0xf]
        %v3666 = vld [vmem:[%s3661 + $0x10] sm:$0xf]
        %v3667 = vld [vmem:[%s3661 + $0x14] sm:$0xf]
        %v3668 = vld [vmem:[%s3661 + $0x18] sm:$0xf]
        %v3669 = vld [vmem:[%s3661 + $0x1c] sm:$0xf]
        %v3670 = vld [vmem:[%s3661 + $0x20] sm:$0xf]
        %v3671 = vld [vmem:[%s3661 + $0x24] sm:$0xf]
        %v3672 = vld [vmem:[%s3661 + $0x28] sm:$0xf]
        %v3673 = vld [vmem:[%s3661 + $0x2c] sm:$0xf]
        %v3674 = vld [vmem:[%s3661 + $0x30] sm:$0xf]
        %v3675 = vld [vmem:[%s3661 + $0x34] sm:$0xf]
        %v3676 = vld [vmem:[%s3661 + $0x38] sm:$0xf]
        %v3677 = vld [vmem:[%s3661 + $0x3c] sm:$0xf]
        %v3710 = vunpack.c.l.b16 %v3192
        %v3711 = vunpack.c.l.b16 %v3193
        %v3712 = vunpack.c.l.b16 %v3194
        %v3713 = vunpack.c.l.b16 %v3195
        %v3714 = vunpack.c.l.b16 %v3196
        %v3715 = vunpack.c.l.b16 %v3197
        %v3716 = vunpack.c.l.b16 %v3198
        %v3717 = vunpack.c.l.b16 %v3199
        %v3718 = vunpack.c.l.b16 %v3200
        %v3719 = vunpack.c.l.b16 %v3201
        %v3720 = vunpack.c.l.b16 %v3202
        %v3721 = vunpack.c.l.b16 %v3203
        %v3722 = vunpack.c.l.b16 %v3204
        %v3723 = vunpack.c.l.b16 %v3205
        %v3724 = vunpack.c.l.b16 %v3206
        %v3725 = vunpack.c.l.b16 %v3207
        %v3726 = vunpack.c.l.b16 %v3208
        %v3727 = vunpack.c.l.b16 %v3209
        %v3728 = vunpack.c.l.b16 %v3210
        %v3729 = vunpack.c.l.b16 %v3211
        %v3730 = vunpack.c.l.b16 %v3212
        %v3731 = vunpack.c.l.b16 %v3213
        %v3732 = vunpack.c.l.b16 %v3214
        %v3733 = vunpack.c.l.b16 %v3215
        %v3734 = vunpack.c.l.b16 %v3216
        %v3735 = vunpack.c.l.b16 %v3217
        %v3736 = vunpack.c.l.b16 %v3218
        %v3737 = vunpack.c.l.b16 %v3219
        %v3738 = vunpack.c.l.b16 %v3220
        %v3739 = vunpack.c.l.b16 %v3221
        %v3740 = vunpack.c.l.b16 %v3222
        %v3741 = vunpack.c.l.b16 %v3223
        %v3742 = vpack.c.b16 %v3711, %v3710
        %v3743 = vpack.c.b16 %v3713, %v3712
        %v3744 = vpack.c.b16 %v3715, %v3714
        %v3745 = vpack.c.b16 %v3717, %v3716
        %v3746 = vpack.c.b16 %v3719, %v3718
        %v3747 = vpack.c.b16 %v3721, %v3720
        %v3748 = vpack.c.b16 %v3723, %v3722
        %v3749 = vpack.c.b16 %v3725, %v3724
        %v3750 = vpack.c.b16 %v3727, %v3726
        %v3751 = vpack.c.b16 %v3729, %v3728
        %v3752 = vpack.c.b16 %v3731, %v3730
        %v3753 = vpack.c.b16 %v3733, %v3732
        %v3754 = vpack.c.b16 %v3735, %v3734
        %v3755 = vpack.c.b16 %v3737, %v3736
        %v3756 = vpack.c.b16 %v3739, %v3738
        %v3757 = vpack.c.b16 %v3741, %v3740
        %v3790 = vunpack.c.l.b16 %v3662
        %v3791 = vunpack.c.l.b16 %v3663
        %v3792 = vunpack.c.l.b16 %v3664
        %v3793 = vunpack.c.l.b16 %v3665
        %v3794 = vunpack.c.l.b16 %v3666
        %v3795 = vunpack.c.l.b16 %v3667
        %v3796 = vunpack.c.l.b16 %v3668
        %v3797 = vunpack.c.l.b16 %v3669
        %v3798 = vunpack.c.l.b16 %v3670
        %v3799 = vunpack.c.l.b16 %v3671
        %v3800 = vunpack.c.l.b16 %v3672
        %v3801 = vunpack.c.l.b16 %v3673
        %v3802 = vunpack.c.l.b16 %v3674
        %v3803 = vunpack.c.l.b16 %v3675
        %v3804 = vunpack.c.l.b16 %v3676
        %v3805 = vunpack.c.l.b16 %v3677
        %v3806 = vpack.c.b16 %v3791, %v3790
        %v3807 = vpack.c.b16 %v3793, %v3792
        %v3808 = vpack.c.b16 %v3795, %v3794
        %v3809 = vpack.c.b16 %v3797, %v3796
        %v3810 = vpack.c.b16 %v3799, %v3798
        %v3811 = vpack.c.b16 %v3801, %v3800
        %v3812 = vpack.c.b16 %v3803, %v3802
        %v3813 = vpack.c.b16 %v3805, %v3804
        %3822 = vmatpush.bf16.msra.mxu0 %v3813
        %3823 = vmatpush.bf16.msra.mxu0 %v3812
        %3824 = vmatpush.bf16.msra.mxu0 %v3811
        %3825 = vmatpush.bf16.msra.mxu0 %v3810
        %3826 = vmatpush.bf16.msra.mxu0 %v3809
        %3827 = vmatpush.bf16.msra.mxu0 %v3808
        %3828 = vmatpush.bf16.msra.mxu0 %v3807
        %3829 = vmatpush.bf16.msra.mxu0 %v3806
        %3830 = vmatmul.bf16.gmra.mxu0 %v3742
        %v3831 = vpop.f32.mrf.mxu0
        %v3832 = vadd.f32 0.0, %v3831
        %v3833 = vpop.f32.mrf.mxu0
        %v3834 = vadd.f32 0.0, %v3833
        %3835 = vmatmul.bf16.gmra.mxu0 %v3743
        %v3836 = vpop.f32.mrf.mxu0
        %v3837 = vadd.f32 0.0, %v3836
        %v3838 = vpop.f32.mrf.mxu0
        %v3839 = vadd.f32 0.0, %v3838
        %3840 = vmatmul.bf16.gmra.mxu0 %v3744
        %v3841 = vpop.f32.mrf.mxu0
        %v3842 = vadd.f32 0.0, %v3841
        %v3843 = vpop.f32.mrf.mxu0
        %v3844 = vadd.f32 0.0, %v3843
        %3845 = vmatmul.bf16.gmra.mxu0 %v3745
        %v3846 = vpop.f32.mrf.mxu0
        %v3847 = vadd.f32 0.0, %v3846
        %v3848 = vpop.f32.mrf.mxu0
        %v3849 = vadd.f32 0.0, %v3848
        %3850 = vmatmul.bf16.gmra.mxu0 %v3746
        %v3851 = vpop.f32.mrf.mxu0
        %v3852 = vadd.f32 0.0, %v3851
        %v3853 = vpop.f32.mrf.mxu0
        %v3854 = vadd.f32 0.0, %v3853
        %3855 = vmatmul.bf16.gmra.mxu0 %v3747
        %v3856 = vpop.f32.mrf.mxu0
        %v3857 = vadd.f32 0.0, %v3856
        %v3858 = vpop.f32.mrf.mxu0
        %v3859 = vadd.f32 0.0, %v3858
        %3860 = vmatmul.bf16.gmra.mxu0 %v3748
        %v3861 = vpop.f32.mrf.mxu0
        %v3862 = vadd.f32 0.0, %v3861
        %v3863 = vpop.f32.mrf.mxu0
        %v3864 = vadd.f32 0.0, %v3863
        %3865 = vmatmul.bf16.gmra.mxu0 %v3749
        %v3866 = vpop.f32.mrf.mxu0
        %v3867 = vadd.f32 0.0, %v3866
        %v3868 = vpop.f32.mrf.mxu0
        %v3869 = vadd.f32 0.0, %v3868
        %3870 = vmatmul.bf16.gmra.mxu0 %v3750
        %v3871 = vpop.f32.mrf.mxu0
        %v3872 = vadd.f32 0.0, %v3871
        %v3873 = vpop.f32.mrf.mxu0
        %v3874 = vadd.f32 0.0, %v3873
        %3875 = vmatmul.bf16.gmra.mxu0 %v3751
        %v3876 = vpop.f32.mrf.mxu0
        %v3877 = vadd.f32 0.0, %v3876
        %v3878 = vpop.f32.mrf.mxu0
        %v3879 = vadd.f32 0.0, %v3878
        %3880 = vmatmul.bf16.gmra.mxu0 %v3752
        %v3881 = vpop.f32.mrf.mxu0
        %v3882 = vadd.f32 0.0, %v3881
        %v3883 = vpop.f32.mrf.mxu0
        %v3884 = vadd.f32 0.0, %v3883
        %3885 = vmatmul.bf16.gmra.mxu0 %v3753
        %v3886 = vpop.f32.mrf.mxu0
        %v3887 = vadd.f32 0.0, %v3886
        %v3888 = vpop.f32.mrf.mxu0
        %v3889 = vadd.f32 0.0, %v3888
        %3890 = vmatmul.bf16.gmra.mxu0 %v3754
        %v3891 = vpop.f32.mrf.mxu0
        %v3892 = vadd.f32 0.0, %v3891
        %v3893 = vpop.f32.mrf.mxu0
        %v3894 = vadd.f32 0.0, %v3893
        %3895 = vmatmul.bf16.gmra.mxu0 %v3755
        %v3896 = vpop.f32.mrf.mxu0
        %v3897 = vadd.f32 0.0, %v3896
        %v3898 = vpop.f32.mrf.mxu0
        %v3899 = vadd.f32 0.0, %v3898
        %3900 = vmatmul.bf16.gmra.mxu0 %v3756
        %v3901 = vpop.f32.mrf.mxu0
        %v3902 = vadd.f32 0.0, %v3901
        %v3903 = vpop.f32.mrf.mxu0
        %v3904 = vadd.f32 0.0, %v3903
        %3905 = vmatmul.bf16.gmra.mxu0 %v3757
        %v3906 = vpop.f32.mrf.mxu0
        %v3907 = vadd.f32 0.0, %v3906
        %v3908 = vpop.f32.mrf.mxu0
        %v3909 = vadd.f32 0.0, %v3908
        %3910 = vdwg.mxu0
        %v3911 = vadd.f32 %v3629, %v3832
        %v3912 = vadd.f32 %v3630, %v3834
        %v3913 = vadd.f32 %v3631, %v3837
        %v3914 = vadd.f32 %v3632, %v3839
        %v3915 = vadd.f32 %v3633, %v3842
        %v3916 = vadd.f32 %v3634, %v3844
        %v3917 = vadd.f32 %v3635, %v3847
        %v3918 = vadd.f32 %v3636, %v3849
        %v3919 = vadd.f32 %v3637, %v3852
        %v3920 = vadd.f32 %v3638, %v3854
        %v3921 = vadd.f32 %v3639, %v3857
        %v3922 = vadd.f32 %v3640, %v3859
        %v3923 = vadd.f32 %v3641, %v3862
        %v3924 = vadd.f32 %v3642, %v3864
        %v3925 = vadd.f32 %v3643, %v3867
        %v3926 = vadd.f32 %v3644, %v3869
        %v3927 = vadd.f32 %v3645, %v3872
        %v3928 = vadd.f32 %v3646, %v3874
        %v3929 = vadd.f32 %v3647, %v3877
        %v3930 = vadd.f32 %v3648, %v3879
        %v3931 = vadd.f32 %v3649, %v3882
        %v3932 = vadd.f32 %v3650, %v3884
        %v3933 = vadd.f32 %v3651, %v3887
        %v3934 = vadd.f32 %v3652, %v3889
        %v3935 = vadd.f32 %v3653, %v3892
        %v3936 = vadd.f32 %v3654, %v3894
        %v3937 = vadd.f32 %v3655, %v3897
        %v3938 = vadd.f32 %v3656, %v3899
        %v3939 = vadd.f32 %v3657, %v3902
        %v3940 = vadd.f32 %v3658, %v3904
        %v3941 = vadd.f32 %v3659, %v3907
        %v3942 = vadd.f32 %v3660, %v3909
        %v3943 = vld [vmem:[#allocation3 + $0xc] sm:$0xf]
        %v3944 = vld [vmem:[#allocation3 + $0x10] sm:$0xf]
        %v3945 = vld [vmem:[#allocation3 + $0x14] sm:$0xf]
        %v3946 = vld [vmem:[#allocation3 + $0x18] sm:$0xf]
        %v3947 = vld [vmem:[#allocation3 + $0x1c] sm:$0xf]
        %v3948 = vld [vmem:[#allocation3 + $0x20] sm:$0xf]
        %v3949 = vld [vmem:[#allocation3 + $0x24] sm:$0xf]
        %v3950 = vld [vmem:[#allocation3 + $0x28] sm:$0xf]
        %v3951 = vld [vmem:[#allocation3 + $0x2c] sm:$0xf]
        %v3952 = vld [vmem:[#allocation3 + $0x30] sm:$0xf]
        %v3953 = vld [vmem:[#allocation3 + $0x34] sm:$0xf]
        %v3954 = vld [vmem:[#allocation3 + $0x38] sm:$0xf]
        %v3955 = vld [vmem:[#allocation3 + $0x3c] sm:$0xf]
        %v3956 = vld [vmem:[#allocation3 + $0x40] sm:$0xf]
        %v3957 = vld [vmem:[#allocation3 + $0x44] sm:$0xf]
        %v3958 = vld [vmem:[#allocation3 + $0x48] sm:$0xf]
        %v3959 = vld [vmem:[#allocation3 + $0x4c] sm:$0xf]
        %v3960 = vld [vmem:[#allocation3 + $0x50] sm:$0xf]
        %v3961 = vld [vmem:[#allocation3 + $0x54] sm:$0xf]
        %v3962 = vld [vmem:[#allocation3 + $0x58] sm:$0xf]
        %v3963 = vld [vmem:[#allocation3 + $0x5c] sm:$0xf]
        %v3964 = vld [vmem:[#allocation3 + $0x60] sm:$0xf]
        %v3965 = vld [vmem:[#allocation3 + $0x64] sm:$0xf]
        %v3966 = vld [vmem:[#allocation3 + $0x68] sm:$0xf]
        %v3967 = vld [vmem:[#allocation3 + $0x6c] sm:$0xf]
        %v3968 = vld [vmem:[#allocation3 + $0x70] sm:$0xf]
        %v3969 = vld [vmem:[#allocation3 + $0x74] sm:$0xf]
        %v3970 = vld [vmem:[#allocation3 + $0x78] sm:$0xf]
        %v3971 = vld [vmem:[#allocation3 + $0x7c] sm:$0xf]
        %v3972 = vld [vmem:[#allocation3 + $0x80] sm:$0xf]
        %v3973 = vld [vmem:[#allocation3 + $0x84] sm:$0xf]
        %v3974 = vld [vmem:[#allocation3 + $0x88] sm:$0xf]
        %v3975 = vld [vmem:[#allocation3 + $0x8c] sm:$0x1]
        %v3976 = vunpack.c.l.bf16 %v3943
        %v3977 = vunpack.c.l.bf16 %v3944
        %v3978 = vunpack.c.l.bf16 %v3945
        %v3979 = vunpack.c.l.bf16 %v3946
        %v3980 = vunpack.c.l.bf16 %v3947
        %v3981 = vunpack.c.l.bf16 %v3948
        %v3982 = vunpack.c.l.bf16 %v3949
        %v3983 = vunpack.c.l.bf16 %v3950
        %v3984 = vunpack.c.l.bf16 %v3951
        %v3985 = vunpack.c.l.bf16 %v3952
        %v3986 = vunpack.c.l.bf16 %v3953
        %v3987 = vunpack.c.l.bf16 %v3954
        %v3988 = vunpack.c.l.bf16 %v3955
        %v3989 = vunpack.c.l.bf16 %v3956
        %v3990 = vunpack.c.l.bf16 %v3957
        %v3991 = vunpack.c.l.bf16 %v3958
        %v3992 = vunpack.c.l.bf16 %v3959
        %v3993 = vunpack.c.l.bf16 %v3960
        %v3994 = vunpack.c.l.bf16 %v3961
        %v3995 = vunpack.c.l.bf16 %v3962
        %v3996 = vunpack.c.l.bf16 %v3963
        %v3997 = vunpack.c.l.bf16 %v3964
        %v3998 = vunpack.c.l.bf16 %v3965
        %v3999 = vunpack.c.l.bf16 %v3966
        %v4000 = vunpack.c.l.bf16 %v3967
        %v4001 = vunpack.c.l.bf16 %v3968
        %v4002 = vunpack.c.l.bf16 %v3969
        %v4003 = vunpack.c.l.bf16 %v3970
        %v4004 = vunpack.c.l.bf16 %v3971
        %v4005 = vunpack.c.l.bf16 %v3972
        %v4006 = vunpack.c.l.bf16 %v3973
        %v4007 = vunpack.c.l.bf16 %v3974
        %v4008 = vunpack.c.l.bf16 %v3975
        %v4009 = vmul.f32 %v3976, %v2710
        %v4010 = vmul.f32 %v3977, %v2712
        %v4011 = vmul.f32 %v3978, %v2714
        %v4012 = vmul.f32 %v3979, %v2716
        %v4013 = vmul.f32 %v3980, %v2718
        %v4014 = vmul.f32 %v3981, %v2720
        %v4015 = vmul.f32 %v3982, %v2722
        %v4016 = vmul.f32 %v3983, %v2724
        %v4017 = vmul.f32 %v3984, %v2726
        %v4018 = vmul.f32 %v3985, %v2728
        %v4019 = vmul.f32 %v3986, %v2730
        %v4020 = vmul.f32 %v3987, %v2732
        %v4021 = vmul.f32 %v3988, %v2734
        %v4022 = vmul.f32 %v3989, %v2736
        %v4023 = vmul.f32 %v3990, %v2738
        %v4024 = vmul.f32 %v3991, %v2740
        %v4025 = vmul.f32 %v3992, %v2742
        %v4026 = vmul.f32 %v3993, %v2744
        %v4027 = vmul.f32 %v3994, %v2746
        %v4028 = vmul.f32 %v3995, %v2748
        %v4029 = vmul.f32 %v3996, %v2750
        %v4030 = vmul.f32 %v3997, %v2752
        %v4031 = vmul.f32 %v3998, %v2754
        %v4032 = vmul.f32 %v3999, %v2756
        %v4033 = vmul.f32 %v4000, %v2758
        %v4034 = vmul.f32 %v4001, %v2760
        %v4035 = vmul.f32 %v4002, %v2762
        %v4036 = vmul.f32 %v4003, %v2764
        %v4037 = vmul.f32 %v4004, %v2766
        %v4038 = vmul.f32 %v4005, %v2768
        %v4039 = vmul.f32 %v4006, %v2770
        %v4040 = vmul.f32 %v4007, %v2772
        %v4041 = vmul.f32 %v4008, %v2771
        %v4042 = vpack.c.bf16 %v4010, %v4009
        %v4043 = vpack.c.bf16 %v4012, %v4011
        %v4044 = vpack.c.bf16 %v4014, %v4013
        %v4045 = vpack.c.bf16 %v4016, %v4015
        %v4046 = vpack.c.bf16 %v4018, %v4017
        %v4047 = vpack.c.bf16 %v4020, %v4019
        %v4048 = vpack.c.bf16 %v4022, %v4021
        %v4049 = vpack.c.bf16 %v4024, %v4023
        %v4050 = vpack.c.bf16 %v4026, %v4025
        %v4051 = vpack.c.bf16 %v4028, %v4027
        %v4052 = vpack.c.bf16 %v4030, %v4029
        %v4053 = vpack.c.bf16 %v4032, %v4031
        %v4054 = vpack.c.bf16 %v4034, %v4033
        %v4055 = vpack.c.bf16 %v4036, %v4035
        %v4056 = vpack.c.bf16 %v4038, %v4037
        %v4057 = vpack.c.bf16 %v4040, %v4039
        %v4058 = vpack.c.bf16 %v4041, %v4041
        %s4059 = scalar_lea.vmem [#allocation5], 320
        %v4060 = vld [vmem:[%s4059] sm:$0xf]
        %v4061 = vld [vmem:[%s4059 + $0x4] sm:$0xf]
        %v4062 = vld [vmem:[%s4059 + $0x8] sm:$0xf]
        %v4063 = vld [vmem:[%s4059 + $0xc] sm:$0xf]
        %v4064 = vld [vmem:[%s4059 + $0x10] sm:$0xf]
        %v4065 = vld [vmem:[%s4059 + $0x14] sm:$0xf]
        %v4066 = vld [vmem:[%s4059 + $0x18] sm:$0xf]
        %v4067 = vld [vmem:[%s4059 + $0x1c] sm:$0xf]
        %v4068 = vld [vmem:[%s4059 + $0x20] sm:$0xf]
        %v4069 = vld [vmem:[%s4059 + $0x24] sm:$0xf]
        %v4070 = vld [vmem:[%s4059 + $0x28] sm:$0xf]
        %v4071 = vld [vmem:[%s4059 + $0x2c] sm:$0xf]
        %v4072 = vld [vmem:[%s4059 + $0x30] sm:$0xf]
        %v4073 = vld [vmem:[%s4059 + $0x34] sm:$0xf]
        %v4074 = vld [vmem:[%s4059 + $0x38] sm:$0xf]
        %v4075 = vld [vmem:[%s4059 + $0x3c] sm:$0xf]
        %v4077 = vshrl.u32 %v4042, 16
        %v4079 = vshll.u32 %v4042, 16
        %v4081 = vrot.slane %v4079, 1
        %v4082 = vor.u32 %v4077, %v4081
        %v4084 = vshll.u32 %v4043, 16
        %v4086 = vrot.slane %v4084, 1
        %v4087 = vsel %vm2873, %v4082, %v4086
        %v4088 = vshrl.u32 %v4043, 16
        %v4090 = vor.u32 %v4088, %v4086
        %v4092 = vshll.u32 %v4044, 16
        %v4094 = vrot.slane %v4092, 1
        %v4095 = vsel %vm2873, %v4090, %v4094
        %v4096 = vshrl.u32 %v4044, 16
        %v4098 = vor.u32 %v4096, %v4094
        %v4100 = vshll.u32 %v4045, 16
        %v4102 = vrot.slane %v4100, 1
        %v4103 = vsel %vm2873, %v4098, %v4102
        %v4104 = vshrl.u32 %v4045, 16
        %v4106 = vor.u32 %v4104, %v4102
        %v4108 = vshll.u32 %v4046, 16
        %v4110 = vrot.slane %v4108, 1
        %v4111 = vsel %vm2873, %v4106, %v4110
        %v4112 = vshrl.u32 %v4046, 16
        %v4114 = vor.u32 %v4112, %v4110
        %v4116 = vshll.u32 %v4047, 16
        %v4118 = vrot.slane %v4116, 1
        %v4119 = vsel %vm2873, %v4114, %v4118
        %v4120 = vshrl.u32 %v4047, 16
        %v4122 = vor.u32 %v4120, %v4118
        %v4124 = vshll.u32 %v4048, 16
        %v4126 = vrot.slane %v4124, 1
        %v4127 = vsel %vm2873, %v4122, %v4126
        %v4128 = vshrl.u32 %v4048, 16
        %v4130 = vor.u32 %v4128, %v4126
        %v4132 = vshll.u32 %v4049, 16
        %v4134 = vrot.slane %v4132, 1
        %v4135 = vsel %vm2873, %v4130, %v4134
        %v4136 = vshrl.u32 %v4049, 16
        %v4138 = vor.u32 %v4136, %v4134
        %v4140 = vshll.u32 %v4050, 16
        %v4142 = vrot.slane %v4140, 1
        %v4143 = vsel %vm2873, %v4138, %v4142
        %v4144 = vshrl.u32 %v4050, 16
        %v4146 = vor.u32 %v4144, %v4142
        %v4148 = vshll.u32 %v4051, 16
        %v4150 = vrot.slane %v4148, 1
        %v4151 = vsel %vm2873, %v4146, %v4150
        %v4152 = vshrl.u32 %v4051, 16
        %v4154 = vor.u32 %v4152, %v4150
        %v4156 = vshll.u32 %v4052, 16
        %v4158 = vrot.slane %v4156, 1
        %v4159 = vsel %vm2873, %v4154, %v4158
        %v4160 = vshrl.u32 %v4052, 16
        %v4162 = vor.u32 %v4160, %v4158
        %v4164 = vshll.u32 %v4053, 16
        %v4166 = vrot.slane %v4164, 1
        %v4167 = vsel %vm2873, %v4162, %v4166
        %v4168 = vshrl.u32 %v4053, 16
        %v4170 = vor.u32 %v4168, %v4166
        %v4172 = vshll.u32 %v4054, 16
        %v4174 = vrot.slane %v4172, 1
        %v4175 = vsel %vm2873, %v4170, %v4174
        %v4176 = vshrl.u32 %v4054, 16
        %v4178 = vor.u32 %v4176, %v4174
        %v4180 = vshll.u32 %v4055, 16
        %v4182 = vrot.slane %v4180, 1
        %v4183 = vsel %vm2873, %v4178, %v4182
        %v4184 = vshrl.u32 %v4055, 16
        %v4186 = vor.u32 %v4184, %v4182
        %v4188 = vshll.u32 %v4056, 16
        %v4190 = vrot.slane %v4188, 1
        %v4191 = vsel %vm2873, %v4186, %v4190
        %v4192 = vshrl.u32 %v4056, 16
        %v4194 = vor.u32 %v4192, %v4190
        %v4196 = vshll.u32 %v4057, 16
        %v4198 = vrot.slane %v4196, 1
        %v4199 = vsel %vm2873, %v4194, %v4198
        %v4200 = vshrl.u32 %v4057, 16
        %v4202 = vor.u32 %v4200, %v4198
        %v4204 = vshll.u32 %v4058, 16
        %v4206 = vrot.slane %v4204, 1
        %v4207 = vsel %vm2873, %v4202, %v4206
        %v4240 = vunpack.c.l.b16 %v4060
        %v4241 = vunpack.c.l.b16 %v4061
        %v4242 = vunpack.c.l.b16 %v4062
        %v4243 = vunpack.c.l.b16 %v4063
        %v4244 = vunpack.c.l.b16 %v4064
        %v4245 = vunpack.c.l.b16 %v4065
        %v4246 = vunpack.c.l.b16 %v4066
        %v4247 = vunpack.c.l.b16 %v4067
        %v4248 = vunpack.c.l.b16 %v4068
        %v4249 = vunpack.c.l.b16 %v4069
        %v4250 = vunpack.c.l.b16 %v4070
        %v4251 = vunpack.c.l.b16 %v4071
        %v4252 = vunpack.c.l.b16 %v4072
        %v4253 = vunpack.c.l.b16 %v4073
        %v4254 = vunpack.c.l.b16 %v4074
        %v4255 = vunpack.c.l.b16 %v4075
        %v4256 = vpack.c.b16 %v4241, %v4240
        %v4257 = vpack.c.b16 %v4243, %v4242
        %v4258 = vpack.c.b16 %v4245, %v4244
        %v4259 = vpack.c.b16 %v4247, %v4246
        %v4260 = vpack.c.b16 %v4249, %v4248
        %v4261 = vpack.c.b16 %v4251, %v4250
        %v4262 = vpack.c.b16 %v4253, %v4252
        %v4263 = vpack.c.b16 %v4255, %v4254
        %4272 = vmatpush.bf16.msra.mxu0 %v4263
        %4273 = vmatpush.bf16.msra.mxu0 %v4262
        %4274 = vmatpush.bf16.msra.mxu0 %v4261
        %4275 = vmatpush.bf16.msra.mxu0 %v4260
        %4276 = vmatpush.bf16.msra.mxu0 %v4259
        %4277 = vmatpush.bf16.msra.mxu0 %v4258
        %4278 = vmatpush.bf16.msra.mxu0 %v4257
        %4279 = vmatpush.bf16.msra.mxu0 %v4256
        %4280 = vmatmul.bf16.gmra.mxu0 %v4087
        %v4281 = vpop.f32.mrf.mxu0
        %v4282 = vadd.f32 0.0, %v4281
        %v4283 = vpop.f32.mrf.mxu0
        %v4284 = vadd.f32 0.0, %v4283
        %4285 = vmatmul.bf16.gmra.mxu0 %v4095
        %v4286 = vpop.f32.mrf.mxu0
        %v4287 = vadd.f32 0.0, %v4286
        %v4288 = vpop.f32.mrf.mxu0
        %v4289 = vadd.f32 0.0, %v4288
        %4290 = vmatmul.bf16.gmra.mxu0 %v4103
        %v4291 = vpop.f32.mrf.mxu0
        %v4292 = vadd.f32 0.0, %v4291
        %v4293 = vpop.f32.mrf.mxu0
        %v4294 = vadd.f32 0.0, %v4293
        %4295 = vmatmul.bf16.gmra.mxu0 %v4111
        %v4296 = vpop.f32.mrf.mxu0
        %v4297 = vadd.f32 0.0, %v4296
        %v4298 = vpop.f32.mrf.mxu0
        %v4299 = vadd.f32 0.0, %v4298
        %4300 = vmatmul.bf16.gmra.mxu0 %v4119
        %v4301 = vpop.f32.mrf.mxu0
        %v4302 = vadd.f32 0.0, %v4301
        %v4303 = vpop.f32.mrf.mxu0
        %v4304 = vadd.f32 0.0, %v4303
        %4305 = vmatmul.bf16.gmra.mxu0 %v4127
        %v4306 = vpop.f32.mrf.mxu0
        %v4307 = vadd.f32 0.0, %v4306
        %v4308 = vpop.f32.mrf.mxu0
        %v4309 = vadd.f32 0.0, %v4308
        %4310 = vmatmul.bf16.gmra.mxu0 %v4135
        %v4311 = vpop.f32.mrf.mxu0
        %v4312 = vadd.f32 0.0, %v4311
        %v4313 = vpop.f32.mrf.mxu0
        %v4314 = vadd.f32 0.0, %v4313
        %4315 = vmatmul.bf16.gmra.mxu0 %v4143
        %v4316 = vpop.f32.mrf.mxu0
        %v4317 = vadd.f32 0.0, %v4316
        %v4318 = vpop.f32.mrf.mxu0
        %v4319 = vadd.f32 0.0, %v4318
        %4320 = vmatmul.bf16.gmra.mxu0 %v4151
        %v4321 = vpop.f32.mrf.mxu0
        %v4322 = vadd.f32 0.0, %v4321
        %v4323 = vpop.f32.mrf.mxu0
        %v4324 = vadd.f32 0.0, %v4323
        %4325 = vmatmul.bf16.gmra.mxu0 %v4159
        %v4326 = vpop.f32.mrf.mxu0
        %v4327 = vadd.f32 0.0, %v4326
        %v4328 = vpop.f32.mrf.mxu0
        %v4329 = vadd.f32 0.0, %v4328
        %4330 = vmatmul.bf16.gmra.mxu0 %v4167
        %v4331 = vpop.f32.mrf.mxu0
        %v4332 = vadd.f32 0.0, %v4331
        %v4333 = vpop.f32.mrf.mxu0
        %v4334 = vadd.f32 0.0, %v4333
        %4335 = vmatmul.bf16.gmra.mxu0 %v4175
        %v4336 = vpop.f32.mrf.mxu0
        %v4337 = vadd.f32 0.0, %v4336
        %v4338 = vpop.f32.mrf.mxu0
        %v4339 = vadd.f32 0.0, %v4338
        %4340 = vmatmul.bf16.gmra.mxu0 %v4183
        %v4341 = vpop.f32.mrf.mxu0
        %v4342 = vadd.f32 0.0, %v4341
        %v4343 = vpop.f32.mrf.mxu0
        %v4344 = vadd.f32 0.0, %v4343
        %4345 = vmatmul.bf16.gmra.mxu0 %v4191
        %v4346 = vpop.f32.mrf.mxu0
        %v4347 = vadd.f32 0.0, %v4346
        %v4348 = vpop.f32.mrf.mxu0
        %v4349 = vadd.f32 0.0, %v4348
        %4350 = vmatmul.bf16.gmra.mxu0 %v4199
        %v4351 = vpop.f32.mrf.mxu0
        %v4352 = vadd.f32 0.0, %v4351
        %v4353 = vpop.f32.mrf.mxu0
        %v4354 = vadd.f32 0.0, %v4353
        %4355 = vmatmul.bf16.gmra.mxu0 %v4207
        %v4356 = vpop.f32.mrf.mxu0
        %v4357 = vadd.f32 0.0, %v4356
        %v4358 = vpop.f32.mrf.mxu0
        %v4359 = vadd.f32 0.0, %v4358
        %4360 = vdwg.mxu0
        %v4361 = vadd.f32 %v3911, %v4282
        %v4362 = vadd.f32 %v3912, %v4284
        %v4363 = vadd.f32 %v3913, %v4287
        %v4364 = vadd.f32 %v3914, %v4289
        %v4365 = vadd.f32 %v3915, %v4292
        %v4366 = vadd.f32 %v3916, %v4294
        %v4367 = vadd.f32 %v3917, %v4297
        %v4368 = vadd.f32 %v3918, %v4299
        %v4369 = vadd.f32 %v3919, %v4302
        %v4370 = vadd.f32 %v3920, %v4304
        %v4371 = vadd.f32 %v3921, %v4307
        %v4372 = vadd.f32 %v3922, %v4309
        %v4373 = vadd.f32 %v3923, %v4312
        %v4374 = vadd.f32 %v3924, %v4314
        %v4375 = vadd.f32 %v3925, %v4317
        %v4376 = vadd.f32 %v3926, %v4319
        %v4377 = vadd.f32 %v3927, %v4322
        %v4378 = vadd.f32 %v3928, %v4324
        %v4379 = vadd.f32 %v3929, %v4327
        %v4380 = vadd.f32 %v3930, %v4329
        %v4381 = vadd.f32 %v3931, %v4332
        %v4382 = vadd.f32 %v3932, %v4334
        %v4383 = vadd.f32 %v3933, %v4337
        %v4384 = vadd.f32 %v3934, %v4339
        %v4385 = vadd.f32 %v3935, %v4342
        %v4386 = vadd.f32 %v3936, %v4344
        %v4387 = vadd.f32 %v3937, %v4347
        %v4388 = vadd.f32 %v3938, %v4349
        %v4389 = vadd.f32 %v3939, %v4352
        %v4390 = vadd.f32 %v3940, %v4354
        %v4391 = vadd.f32 %v3941, %v4357
        %v4392 = vadd.f32 %v3942, %v4359
        %v4393 = vld [vmem:[#allocation3 + $0x10] sm:$0x8]
        %v4394 = vld [vmem:[#allocation3 + $0x14] sm:$0xf]
        %v4395 = vld [vmem:[#allocation3 + $0x18] sm:$0xf]
        %v4396 = vld [vmem:[#allocation3 + $0x1c] sm:$0xf]
        %v4397 = vld [vmem:[#allocation3 + $0x20] sm:$0xf]
        %v4398 = vld [vmem:[#allocation3 + $0x24] sm:$0xf]
        %v4399 = vld [vmem:[#allocation3 + $0x28] sm:$0xf]
        %v4400 = vld [vmem:[#allocation3 + $0x2c] sm:$0xf]
        %v4401 = vld [vmem:[#allocation3 + $0x30] sm:$0xf]
        %v4402 = vld [vmem:[#allocation3 + $0x34] sm:$0xf]
        %v4403 = vld [vmem:[#allocation3 + $0x38] sm:$0xf]
        %v4404 = vld [vmem:[#allocation3 + $0x3c] sm:$0xf]
        %v4405 = vld [vmem:[#allocation3 + $0x40] sm:$0xf]
        %v4406 = vld [vmem:[#allocation3 + $0x44] sm:$0xf]
        %v4407 = vld [vmem:[#allocation3 + $0x48] sm:$0xf]
        %v4408 = vld [vmem:[#allocation3 + $0x4c] sm:$0xf]
        %v4409 = vld [vmem:[#allocation3 + $0x50] sm:$0xf]
        %v4410 = vld [vmem:[#allocation3 + $0x54] sm:$0xf]
        %v4411 = vld [vmem:[#allocation3 + $0x58] sm:$0xf]
        %v4412 = vld [vmem:[#allocation3 + $0x5c] sm:$0xf]
        %v4413 = vld [vmem:[#allocation3 + $0x60] sm:$0xf]
        %v4414 = vld [vmem:[#allocation3 + $0x64] sm:$0xf]
        %v4415 = vld [vmem:[#allocation3 + $0x68] sm:$0xf]
        %v4416 = vld [vmem:[#allocation3 + $0x6c] sm:$0xf]
        %v4417 = vld [vmem:[#allocation3 + $0x70] sm:$0xf]
        %v4418 = vld [vmem:[#allocation3 + $0x74] sm:$0xf]
        %v4419 = vld [vmem:[#allocation3 + $0x78] sm:$0xf]
        %v4420 = vld [vmem:[#allocation3 + $0x7c] sm:$0xf]
        %v4421 = vld [vmem:[#allocation3 + $0x80] sm:$0xf]
        %v4422 = vld [vmem:[#allocation3 + $0x84] sm:$0xf]
        %v4423 = vld [vmem:[#allocation3 + $0x88] sm:$0xf]
        %v4424 = vld [vmem:[#allocation3 + $0x8c] sm:$0xf]
        %v4425 = vld [vmem:[#allocation3 + $0x90] sm:$0xf]
        %v4426 = vunpack.c.l.bf16 %v4393
        %v4427 = vunpack.c.l.bf16 %v4394
        %v4428 = vunpack.c.l.bf16 %v4395
        %v4429 = vunpack.c.l.bf16 %v4396
        %v4430 = vunpack.c.l.bf16 %v4397
        %v4431 = vunpack.c.l.bf16 %v4398
        %v4432 = vunpack.c.l.bf16 %v4399
        %v4433 = vunpack.c.l.bf16 %v4400
        %v4434 = vunpack.c.l.bf16 %v4401
        %v4435 = vunpack.c.l.bf16 %v4402
        %v4436 = vunpack.c.l.bf16 %v4403
        %v4437 = vunpack.c.l.bf16 %v4404
        %v4438 = vunpack.c.l.bf16 %v4405
        %v4439 = vunpack.c.l.bf16 %v4406
        %v4440 = vunpack.c.l.bf16 %v4407
        %v4441 = vunpack.c.l.bf16 %v4408
        %v4442 = vunpack.c.l.bf16 %v4409
        %v4443 = vunpack.c.l.bf16 %v4410
        %v4444 = vunpack.c.l.bf16 %v4411
        %v4445 = vunpack.c.l.bf16 %v4412
        %v4446 = vunpack.c.l.bf16 %v4413
        %v4447 = vunpack.c.l.bf16 %v4414
        %v4448 = vunpack.c.l.bf16 %v4415
        %v4449 = vunpack.c.l.bf16 %v4416
        %v4450 = vunpack.c.l.bf16 %v4417
        %v4451 = vunpack.c.l.bf16 %v4418
        %v4452 = vunpack.c.l.bf16 %v4419
        %v4453 = vunpack.c.l.bf16 %v4420
        %v4454 = vunpack.c.l.bf16 %v4421
        %v4455 = vunpack.c.l.bf16 %v4422
        %v4456 = vunpack.c.l.bf16 %v4423
        %v4457 = vunpack.c.l.bf16 %v4424
        %v4458 = vunpack.c.l.bf16 %v4425
        %v4459 = vmul.f32 %v4426, %v1605
        %v4460 = vmul.f32 %v4427, %v1607
        %v4461 = vmul.f32 %v4428, %v1609
        %v4462 = vmul.f32 %v4429, %v1611
        %v4463 = vmul.f32 %v4430, %v1613
        %v4464 = vmul.f32 %v4431, %v1615
        %v4465 = vmul.f32 %v4432, %v1617
        %v4466 = vmul.f32 %v4433, %v1619
        %v4467 = vmul.f32 %v4434, %v1621
        %v4468 = vmul.f32 %v4435, %v1623
        %v4469 = vmul.f32 %v4436, %v1625
        %v4470 = vmul.f32 %v4437, %v1627
        %v4471 = vmul.f32 %v4438, %v1629
        %v4472 = vmul.f32 %v4439, %v1631
        %v4473 = vmul.f32 %v4440, %v1633
        %v4474 = vmul.f32 %v4441, %v1635
        %v4475 = vmul.f32 %v4442, %v1637
        %v4476 = vmul.f32 %v4443, %v1639
        %v4477 = vmul.f32 %v4444, %v1641
        %v4478 = vmul.f32 %v4445, %v1643
        %v4479 = vmul.f32 %v4446, %v1645
        %v4480 = vmul.f32 %v4447, %v1647
        %v4481 = vmul.f32 %v4448, %v1649
        %v4482 = vmul.f32 %v4449, %v1651
        %v4483 = vmul.f32 %v4450, %v1653
        %v4484 = vmul.f32 %v4451, %v1655
        %v4485 = vmul.f32 %v4452, %v1657
        %v4486 = vmul.f32 %v4453, %v1659
        %v4487 = vmul.f32 %v4454, %v1661
        %v4488 = vmul.f32 %v4455, %v1663
        %v4489 = vmul.f32 %v4456, %v1665
        %v4490 = vmul.f32 %v4457, %v1667
        %v4491 = vmul.f32 %v4458, %v1666
        %v4492 = vpack.c.bf16 %v4460, %v4459
        %v4493 = vpack.c.bf16 %v4462, %v4461
        %v4494 = vpack.c.bf16 %v4464, %v4463
        %v4495 = vpack.c.bf16 %v4466, %v4465
        %v4496 = vpack.c.bf16 %v4468, %v4467
        %v4497 = vpack.c.bf16 %v4470, %v4469
        %v4498 = vpack.c.bf16 %v4472, %v4471
        %v4499 = vpack.c.bf16 %v4474, %v4473
        %v4500 = vpack.c.bf16 %v4476, %v4475
        %v4501 = vpack.c.bf16 %v4478, %v4477
        %v4502 = vpack.c.bf16 %v4480, %v4479
        %v4503 = vpack.c.bf16 %v4482, %v4481
        %v4504 = vpack.c.bf16 %v4484, %v4483
        %v4505 = vpack.c.bf16 %v4486, %v4485
        %v4506 = vpack.c.bf16 %v4488, %v4487
        %v4507 = vpack.c.bf16 %v4490, %v4489
        %v4508 = vpack.c.bf16 %v4491, %v4491
        %s4509 = scalar_lea.vmem [#allocation5], 384
        %v4510 = vld [vmem:[%s4509] sm:$0xf]
        %v4511 = vld [vmem:[%s4509 + $0x4] sm:$0xf]
        %v4512 = vld [vmem:[%s4509 + $0x8] sm:$0xf]
        %v4513 = vld [vmem:[%s4509 + $0xc] sm:$0xf]
        %v4514 = vld [vmem:[%s4509 + $0x10] sm:$0xf]
        %v4515 = vld [vmem:[%s4509 + $0x14] sm:$0xf]
        %v4516 = vld [vmem:[%s4509 + $0x18] sm:$0xf]
        %v4517 = vld [vmem:[%s4509 + $0x1c] sm:$0xf]
        %v4518 = vld [vmem:[%s4509 + $0x20] sm:$0xf]
        %v4519 = vld [vmem:[%s4509 + $0x24] sm:$0xf]
        %v4520 = vld [vmem:[%s4509 + $0x28] sm:$0xf]
        %v4521 = vld [vmem:[%s4509 + $0x2c] sm:$0xf]
        %v4522 = vld [vmem:[%s4509 + $0x30] sm:$0xf]
        %v4523 = vld [vmem:[%s4509 + $0x34] sm:$0xf]
        %v4524 = vld [vmem:[%s4509 + $0x38] sm:$0xf]
        %v4525 = vld [vmem:[%s4509 + $0x3c] sm:$0xf]
        %v4527 = vshrl.u32 %v4492, 16
        %v4529 = vrot.slane %v4527, 3
        %v4530 = vshll.u32 %v4492, 16
        %v4532 = vrot.slane %v4530, 4
        %v4533 = vor.u32 %v4529, %v4532
        %v4535 = vshrl.u32 %v4493, 16
        %v4537 = vrot.slane %v4535, 3
        %v4538 = vshll.u32 %v4493, 16
        %v4540 = vrot.slane %v4538, 4
        %v4541 = vor.u32 %v4537, %v4540
        %v4542 = vsel %vm2017, %v4533, %v4541
        %v4544 = vshrl.u32 %v4494, 16
        %v4546 = vrot.slane %v4544, 3
        %v4547 = vshll.u32 %v4494, 16
        %v4549 = vrot.slane %v4547, 4
        %v4550 = vor.u32 %v4546, %v4549
        %v4551 = vsel %vm2017, %v4541, %v4550
        %v4553 = vshrl.u32 %v4495, 16
        %v4555 = vrot.slane %v4553, 3
        %v4556 = vshll.u32 %v4495, 16
        %v4558 = vrot.slane %v4556, 4
        %v4559 = vor.u32 %v4555, %v4558
        %v4560 = vsel %vm2017, %v4550, %v4559
        %v4562 = vshrl.u32 %v4496, 16
        %v4564 = vrot.slane %v4562, 3
        %v4565 = vshll.u32 %v4496, 16
        %v4567 = vrot.slane %v4565, 4
        %v4568 = vor.u32 %v4564, %v4567
        %v4569 = vsel %vm2017, %v4559, %v4568
        %v4571 = vshrl.u32 %v4497, 16
        %v4573 = vrot.slane %v4571, 3
        %v4574 = vshll.u32 %v4497, 16
        %v4576 = vrot.slane %v4574, 4
        %v4577 = vor.u32 %v4573, %v4576
        %v4578 = vsel %vm2017, %v4568, %v4577
        %v4580 = vshrl.u32 %v4498, 16
        %v4582 = vrot.slane %v4580, 3
        %v4583 = vshll.u32 %v4498, 16
        %v4585 = vrot.slane %v4583, 4
        %v4586 = vor.u32 %v4582, %v4585
        %v4587 = vsel %vm2017, %v4577, %v4586
        %v4589 = vshrl.u32 %v4499, 16
        %v4591 = vrot.slane %v4589, 3
        %v4592 = vshll.u32 %v4499, 16
        %v4594 = vrot.slane %v4592, 4
        %v4595 = vor.u32 %v4591, %v4594
        %v4596 = vsel %vm2017, %v4586, %v4595
        %v4598 = vshrl.u32 %v4500, 16
        %v4600 = vrot.slane %v4598, 3
        %v4601 = vshll.u32 %v4500, 16
        %v4603 = vrot.slane %v4601, 4
        %v4604 = vor.u32 %v4600, %v4603
        %v4605 = vsel %vm2017, %v4595, %v4604
        %v4607 = vshrl.u32 %v4501, 16
        %v4609 = vrot.slane %v4607, 3
        %v4610 = vshll.u32 %v4501, 16
        %v4612 = vrot.slane %v4610, 4
        %v4613 = vor.u32 %v4609, %v4612
        %v4614 = vsel %vm2017, %v4604, %v4613
        %v4616 = vshrl.u32 %v4502, 16
        %v4618 = vrot.slane %v4616, 3
        %v4619 = vshll.u32 %v4502, 16
        %v4621 = vrot.slane %v4619, 4
        %v4622 = vor.u32 %v4618, %v4621
        %v4623 = vsel %vm2017, %v4613, %v4622
        %v4625 = vshrl.u32 %v4503, 16
        %v4627 = vrot.slane %v4625, 3
        %v4628 = vshll.u32 %v4503, 16
        %v4630 = vrot.slane %v4628, 4
        %v4631 = vor.u32 %v4627, %v4630
        %v4632 = vsel %vm2017, %v4622, %v4631
        %v4634 = vshrl.u32 %v4504, 16
        %v4636 = vrot.slane %v4634, 3
        %v4637 = vshll.u32 %v4504, 16
        %v4639 = vrot.slane %v4637, 4
        %v4640 = vor.u32 %v4636, %v4639
        %v4641 = vsel %vm2017, %v4631, %v4640
        %v4643 = vshrl.u32 %v4505, 16
        %v4645 = vrot.slane %v4643, 3
        %v4646 = vshll.u32 %v4505, 16
        %v4648 = vrot.slane %v4646, 4
        %v4649 = vor.u32 %v4645, %v4648
        %v4650 = vsel %vm2017, %v4640, %v4649
        %v4652 = vshrl.u32 %v4506, 16
        %v4654 = vrot.slane %v4652, 3
        %v4655 = vshll.u32 %v4506, 16
        %v4657 = vrot.slane %v4655, 4
        %v4658 = vor.u32 %v4654, %v4657
        %v4659 = vsel %vm2017, %v4649, %v4658
        %v4661 = vshrl.u32 %v4507, 16
        %v4663 = vrot.slane %v4661, 3
        %v4664 = vshll.u32 %v4507, 16
        %v4666 = vrot.slane %v4664, 4
        %v4667 = vor.u32 %v4663, %v4666
        %v4668 = vsel %vm2017, %v4658, %v4667
        %v4670 = vshrl.u32 %v4508, 16
        %v4672 = vrot.slane %v4670, 3
        %v4673 = vshll.u32 %v4508, 16
        %v4675 = vrot.slane %v4673, 4
        %v4676 = vor.u32 %v4672, %v4675
        %v4677 = vsel %vm2017, %v4667, %v4676
        %v4710 = vunpack.c.l.b16 %v4510
        %v4711 = vunpack.c.l.b16 %v4511
        %v4712 = vunpack.c.l.b16 %v4512
        %v4713 = vunpack.c.l.b16 %v4513
        %v4714 = vunpack.c.l.b16 %v4514
        %v4715 = vunpack.c.l.b16 %v4515
        %v4716 = vunpack.c.l.b16 %v4516
        %v4717 = vunpack.c.l.b16 %v4517
        %v4718 = vunpack.c.l.b16 %v4518
        %v4719 = vunpack.c.l.b16 %v4519
        %v4720 = vunpack.c.l.b16 %v4520
        %v4721 = vunpack.c.l.b16 %v4521
        %v4722 = vunpack.c.l.b16 %v4522
        %v4723 = vunpack.c.l.b16 %v4523
        %v4724 = vunpack.c.l.b16 %v4524
        %v4725 = vunpack.c.l.b16 %v4525
        %v4726 = vpack.c.b16 %v4711, %v4710
        %v4727 = vpack.c.b16 %v4713, %v4712
        %v4728 = vpack.c.b16 %v4715, %v4714
        %v4729 = vpack.c.b16 %v4717, %v4716
        %v4730 = vpack.c.b16 %v4719, %v4718
        %v4731 = vpack.c.b16 %v4721, %v4720
        %v4732 = vpack.c.b16 %v4723, %v4722
        %v4733 = vpack.c.b16 %v4725, %v4724
        %4742 = vmatpush.bf16.msra.mxu0 %v4733
        %4743 = vmatpush.bf16.msra.mxu0 %v4732
        %4744 = vmatpush.bf16.msra.mxu0 %v4731
        %4745 = vmatpush.bf16.msra.mxu0 %v4730
        %4746 = vmatpush.bf16.msra.mxu0 %v4729
        %4747 = vmatpush.bf16.msra.mxu0 %v4728
        %4748 = vmatpush.bf16.msra.mxu0 %v4727
        %4749 = vmatpush.bf16.msra.mxu0 %v4726
        %4750 = vmatmul.bf16.gmra.mxu0 %v4542
        %v4751 = vpop.f32.mrf.mxu0
        %v4752 = vadd.f32 0.0, %v4751
        %v4753 = vpop.f32.mrf.mxu0
        %v4754 = vadd.f32 0.0, %v4753
        %4755 = vmatmul.bf16.gmra.mxu0 %v4551
        %v4756 = vpop.f32.mrf.mxu0
        %v4757 = vadd.f32 0.0, %v4756
        %v4758 = vpop.f32.mrf.mxu0
        %v4759 = vadd.f32 0.0, %v4758
        %4760 = vmatmul.bf16.gmra.mxu0 %v4560
        %v4761 = vpop.f32.mrf.mxu0
        %v4762 = vadd.f32 0.0, %v4761
        %v4763 = vpop.f32.mrf.mxu0
        %v4764 = vadd.f32 0.0, %v4763
        %4765 = vmatmul.bf16.gmra.mxu0 %v4569
        %v4766 = vpop.f32.mrf.mxu0
        %v4767 = vadd.f32 0.0, %v4766
        %v4768 = vpop.f32.mrf.mxu0
        %v4769 = vadd.f32 0.0, %v4768
        %4770 = vmatmul.bf16.gmra.mxu0 %v4578
        %v4771 = vpop.f32.mrf.mxu0
        %v4772 = vadd.f32 0.0, %v4771
        %v4773 = vpop.f32.mrf.mxu0
        %v4774 = vadd.f32 0.0, %v4773
        %4775 = vmatmul.bf16.gmra.mxu0 %v4587
        %v4776 = vpop.f32.mrf.mxu0
        %v4777 = vadd.f32 0.0, %v4776
        %v4778 = vpop.f32.mrf.mxu0
        %v4779 = vadd.f32 0.0, %v4778
        %4780 = vmatmul.bf16.gmra.mxu0 %v4596
        %v4781 = vpop.f32.mrf.mxu0
        %v4782 = vadd.f32 0.0, %v4781
        %v4783 = vpop.f32.mrf.mxu0
        %v4784 = vadd.f32 0.0, %v4783
        %4785 = vmatmul.bf16.gmra.mxu0 %v4605
        %v4786 = vpop.f32.mrf.mxu0
        %v4787 = vadd.f32 0.0, %v4786
        %v4788 = vpop.f32.mrf.mxu0
        %v4789 = vadd.f32 0.0, %v4788
        %4790 = vmatmul.bf16.gmra.mxu0 %v4614
        %v4791 = vpop.f32.mrf.mxu0
        %v4792 = vadd.f32 0.0, %v4791
        %v4793 = vpop.f32.mrf.mxu0
        %v4794 = vadd.f32 0.0, %v4793
        %4795 = vmatmul.bf16.gmra.mxu0 %v4623
        %v4796 = vpop.f32.mrf.mxu0
        %v4797 = vadd.f32 0.0, %v4796
        %v4798 = vpop.f32.mrf.mxu0
        %v4799 = vadd.f32 0.0, %v4798
        %4800 = vmatmul.bf16.gmra.mxu0 %v4632
        %v4801 = vpop.f32.mrf.mxu0
        %v4802 = vadd.f32 0.0, %v4801
        %v4803 = vpop.f32.mrf.mxu0
        %v4804 = vadd.f32 0.0, %v4803
        %4805 = vmatmul.bf16.gmra.mxu0 %v4641
        %v4806 = vpop.f32.mrf.mxu0
        %v4807 = vadd.f32 0.0, %v4806
        %v4808 = vpop.f32.mrf.mxu0
        %v4809 = vadd.f32 0.0, %v4808
        %4810 = vmatmul.bf16.gmra.mxu0 %v4650
        %v4811 = vpop.f32.mrf.mxu0
        %v4812 = vadd.f32 0.0, %v4811
        %v4813 = vpop.f32.mrf.mxu0
        %v4814 = vadd.f32 0.0, %v4813
        %4815 = vmatmul.bf16.gmra.mxu0 %v4659
        %v4816 = vpop.f32.mrf.mxu0
        %v4817 = vadd.f32 0.0, %v4816
        %v4818 = vpop.f32.mrf.mxu0
        %v4819 = vadd.f32 0.0, %v4818
        %4820 = vmatmul.bf16.gmra.mxu0 %v4668
        %v4821 = vpop.f32.mrf.mxu0
        %v4822 = vadd.f32 0.0, %v4821
        %v4823 = vpop.f32.mrf.mxu0
        %v4824 = vadd.f32 0.0, %v4823
        %4825 = vmatmul.bf16.gmra.mxu0 %v4677
        %v4826 = vpop.f32.mrf.mxu0
        %v4827 = vadd.f32 0.0, %v4826
        %v4828 = vpop.f32.mrf.mxu0
        %v4829 = vadd.f32 0.0, %v4828
        %4830 = vdwg.mxu0
        %v4831 = vadd.f32 %v4361, %v4752
        %v4832 = vadd.f32 %v4362, %v4754
        %v4833 = vadd.f32 %v4363, %v4757
        %v4834 = vadd.f32 %v4364, %v4759
        %v4835 = vadd.f32 %v4365, %v4762
        %v4836 = vadd.f32 %v4366, %v4764
        %v4837 = vadd.f32 %v4367, %v4767
        %v4838 = vadd.f32 %v4368, %v4769
        %v4839 = vadd.f32 %v4369, %v4772
        %v4840 = vadd.f32 %v4370, %v4774
        %v4841 = vadd.f32 %v4371, %v4777
        %v4842 = vadd.f32 %v4372, %v4779
        %v4843 = vadd.f32 %v4373, %v4782
        %v4844 = vadd.f32 %v4374, %v4784
        %v4845 = vadd.f32 %v4375, %v4787
        %v4846 = vadd.f32 %v4376, %v4789
        %v4847 = vadd.f32 %v4377, %v4792
        %v4848 = vadd.f32 %v4378, %v4794
        %v4849 = vadd.f32 %v4379, %v4797
        %v4850 = vadd.f32 %v4380, %v4799
        %v4851 = vadd.f32 %v4381, %v4802
        %v4852 = vadd.f32 %v4382, %v4804
        %v4853 = vadd.f32 %v4383, %v4807
        %v4854 = vadd.f32 %v4384, %v4809
        %v4855 = vadd.f32 %v4385, %v4812
        %v4856 = vadd.f32 %v4386, %v4814
        %v4857 = vadd.f32 %v4387, %v4817
        %v4858 = vadd.f32 %v4388, %v4819
        %v4859 = vadd.f32 %v4389, %v4822
        %v4860 = vadd.f32 %v4390, %v4824
        %v4861 = vadd.f32 %v4391, %v4827
        %v4862 = vadd.f32 %v4392, %v4829
        %s4863 = scalar_lea.vmem [#allocation5], 448
        %v4864 = vld [vmem:[%s4863] sm:$0xf]
        %v4865 = vld [vmem:[%s4863 + $0x4] sm:$0xf]
        %v4866 = vld [vmem:[%s4863 + $0x8] sm:$0xf]
        %v4867 = vld [vmem:[%s4863 + $0xc] sm:$0xf]
        %v4868 = vld [vmem:[%s4863 + $0x10] sm:$0xf]
        %v4869 = vld [vmem:[%s4863 + $0x14] sm:$0xf]
        %v4870 = vld [vmem:[%s4863 + $0x18] sm:$0xf]
        %v4871 = vld [vmem:[%s4863 + $0x1c] sm:$0xf]
        %v4872 = vld [vmem:[%s4863 + $0x20] sm:$0xf]
        %v4873 = vld [vmem:[%s4863 + $0x24] sm:$0xf]
        %v4874 = vld [vmem:[%s4863 + $0x28] sm:$0xf]
        %v4875 = vld [vmem:[%s4863 + $0x2c] sm:$0xf]
        %v4876 = vld [vmem:[%s4863 + $0x30] sm:$0xf]
        %v4877 = vld [vmem:[%s4863 + $0x34] sm:$0xf]
        %v4878 = vld [vmem:[%s4863 + $0x38] sm:$0xf]
        %v4879 = vld [vmem:[%s4863 + $0x3c] sm:$0xf]
        %v4912 = vunpack.c.l.b16 %v4394
        %v4913 = vunpack.c.l.b16 %v4395
        %v4914 = vunpack.c.l.b16 %v4396
        %v4915 = vunpack.c.l.b16 %v4397
        %v4916 = vunpack.c.l.b16 %v4398
        %v4917 = vunpack.c.l.b16 %v4399
        %v4918 = vunpack.c.l.b16 %v4400
        %v4919 = vunpack.c.l.b16 %v4401
        %v4920 = vunpack.c.l.b16 %v4402
        %v4921 = vunpack.c.l.b16 %v4403
        %v4922 = vunpack.c.l.b16 %v4404
        %v4923 = vunpack.c.l.b16 %v4405
        %v4924 = vunpack.c.l.b16 %v4406
        %v4925 = vunpack.c.l.b16 %v4407
        %v4926 = vunpack.c.l.b16 %v4408
        %v4927 = vunpack.c.l.b16 %v4409
        %v4928 = vunpack.c.l.b16 %v4410
        %v4929 = vunpack.c.l.b16 %v4411
        %v4930 = vunpack.c.l.b16 %v4412
        %v4931 = vunpack.c.l.b16 %v4413
        %v4932 = vunpack.c.l.b16 %v4414
        %v4933 = vunpack.c.l.b16 %v4415
        %v4934 = vunpack.c.l.b16 %v4416
        %v4935 = vunpack.c.l.b16 %v4417
        %v4936 = vunpack.c.l.b16 %v4418
        %v4937 = vunpack.c.l.b16 %v4419
        %v4938 = vunpack.c.l.b16 %v4420
        %v4939 = vunpack.c.l.b16 %v4421
        %v4940 = vunpack.c.l.b16 %v4422
        %v4941 = vunpack.c.l.b16 %v4423
        %v4942 = vunpack.c.l.b16 %v4424
        %v4943 = vunpack.c.l.b16 %v4425
        %v4944 = vpack.c.b16 %v4913, %v4912
        %v4945 = vpack.c.b16 %v4915, %v4914
        %v4946 = vpack.c.b16 %v4917, %v4916
        %v4947 = vpack.c.b16 %v4919, %v4918
        %v4948 = vpack.c.b16 %v4921, %v4920
        %v4949 = vpack.c.b16 %v4923, %v4922
        %v4950 = vpack.c.b16 %v4925, %v4924
        %v4951 = vpack.c.b16 %v4927, %v4926
        %v4952 = vpack.c.b16 %v4929, %v4928
        %v4953 = vpack.c.b16 %v4931, %v4930
        %v4954 = vpack.c.b16 %v4933, %v4932
        %v4955 = vpack.c.b16 %v4935, %v4934
        %v4956 = vpack.c.b16 %v4937, %v4936
        %v4957 = vpack.c.b16 %v4939, %v4938
        %v4958 = vpack.c.b16 %v4941, %v4940
        %v4959 = vpack.c.b16 %v4943, %v4942
        %v4992 = vunpack.c.l.b16 %v4864
        %v4993 = vunpack.c.l.b16 %v4865
        %v4994 = vunpack.c.l.b16 %v4866
        %v4995 = vunpack.c.l.b16 %v4867
        %v4996 = vunpack.c.l.b16 %v4868
        %v4997 = vunpack.c.l.b16 %v4869
        %v4998 = vunpack.c.l.b16 %v4870
        %v4999 = vunpack.c.l.b16 %v4871
        %v5000 = vunpack.c.l.b16 %v4872
        %v5001 = vunpack.c.l.b16 %v4873
        %v5002 = vunpack.c.l.b16 %v4874
        %v5003 = vunpack.c.l.b16 %v4875
        %v5004 = vunpack.c.l.b16 %v4876
        %v5005 = vunpack.c.l.b16 %v4877
        %v5006 = vunpack.c.l.b16 %v4878
        %v5007 = vunpack.c.l.b16 %v4879
        %v5008 = vpack.c.b16 %v4993, %v4992
        %v5009 = vpack.c.b16 %v4995, %v4994
        %v5010 = vpack.c.b16 %v4997, %v4996
        %v5011 = vpack.c.b16 %v4999, %v4998
        %v5012 = vpack.c.b16 %v5001, %v5000
        %v5013 = vpack.c.b16 %v5003, %v5002
        %v5014 = vpack.c.b16 %v5005, %v5004
        %v5015 = vpack.c.b16 %v5007, %v5006
        %5024 = vmatpush.bf16.msra.mxu0 %v5015
        %5025 = vmatpush.bf16.msra.mxu0 %v5014
        %5026 = vmatpush.bf16.msra.mxu0 %v5013
        %5027 = vmatpush.bf16.msra.mxu0 %v5012
        %5028 = vmatpush.bf16.msra.mxu0 %v5011
        %5029 = vmatpush.bf16.msra.mxu0 %v5010
        %5030 = vmatpush.bf16.msra.mxu0 %v5009
        %5031 = vmatpush.bf16.msra.mxu0 %v5008
        %5032 = vmatmul.bf16.gmra.mxu0 %v4944
        %v5033 = vpop.f32.mrf.mxu0
        %v5034 = vadd.f32 0.0, %v5033
        %v5035 = vpop.f32.mrf.mxu0
        %v5036 = vadd.f32 0.0, %v5035
        %5037 = vmatmul.bf16.gmra.mxu0 %v4945
        %v5038 = vpop.f32.mrf.mxu0
        %v5039 = vadd.f32 0.0, %v5038
        %v5040 = vpop.f32.mrf.mxu0
        %v5041 = vadd.f32 0.0, %v5040
        %5042 = vmatmul.bf16.gmra.mxu0 %v4946
        %v5043 = vpop.f32.mrf.mxu0
        %v5044 = vadd.f32 0.0, %v5043
        %v5045 = vpop.f32.mrf.mxu0
        %v5046 = vadd.f32 0.0, %v5045
        %5047 = vmatmul.bf16.gmra.mxu0 %v4947
        %v5048 = vpop.f32.mrf.mxu0
        %v5049 = vadd.f32 0.0, %v5048
        %v5050 = vpop.f32.mrf.mxu0
        %v5051 = vadd.f32 0.0, %v5050
        %5052 = vmatmul.bf16.gmra.mxu0 %v4948
        %v5053 = vpop.f32.mrf.mxu0
        %v5054 = vadd.f32 0.0, %v5053
        %v5055 = vpop.f32.mrf.mxu0
        %v5056 = vadd.f32 0.0, %v5055
        %5057 = vmatmul.bf16.gmra.mxu0 %v4949
        %v5058 = vpop.f32.mrf.mxu0
        %v5059 = vadd.f32 0.0, %v5058
        %v5060 = vpop.f32.mrf.mxu0
        %v5061 = vadd.f32 0.0, %v5060
        %5062 = vmatmul.bf16.gmra.mxu0 %v4950
        %v5063 = vpop.f32.mrf.mxu0
        %v5064 = vadd.f32 0.0, %v5063
        %v5065 = vpop.f32.mrf.mxu0
        %v5066 = vadd.f32 0.0, %v5065
        %5067 = vmatmul.bf16.gmra.mxu0 %v4951
        %v5068 = vpop.f32.mrf.mxu0
        %v5069 = vadd.f32 0.0, %v5068
        %v5070 = vpop.f32.mrf.mxu0
        %v5071 = vadd.f32 0.0, %v5070
        %5072 = vmatmul.bf16.gmra.mxu0 %v4952
        %v5073 = vpop.f32.mrf.mxu0
        %v5074 = vadd.f32 0.0, %v5073
        %v5075 = vpop.f32.mrf.mxu0
        %v5076 = vadd.f32 0.0, %v5075
        %5077 = vmatmul.bf16.gmra.mxu0 %v4953
        %v5078 = vpop.f32.mrf.mxu0
        %v5079 = vadd.f32 0.0, %v5078
        %v5080 = vpop.f32.mrf.mxu0
        %v5081 = vadd.f32 0.0, %v5080
        %5082 = vmatmul.bf16.gmra.mxu0 %v4954
        %v5083 = vpop.f32.mrf.mxu0
        %v5084 = vadd.f32 0.0, %v5083
        %v5085 = vpop.f32.mrf.mxu0
        %v5086 = vadd.f32 0.0, %v5085
        %5087 = vmatmul.bf16.gmra.mxu0 %v4955
        %v5088 = vpop.f32.mrf.mxu0
        %v5089 = vadd.f32 0.0, %v5088
        %v5090 = vpop.f32.mrf.mxu0
        %v5091 = vadd.f32 0.0, %v5090
        %5092 = vmatmul.bf16.gmra.mxu0 %v4956
        %v5093 = vpop.f32.mrf.mxu0
        %v5094 = vadd.f32 0.0, %v5093
        %v5095 = vpop.f32.mrf.mxu0
        %v5096 = vadd.f32 0.0, %v5095
        %5097 = vmatmul.bf16.gmra.mxu0 %v4957
        %v5098 = vpop.f32.mrf.mxu0
        %v5099 = vadd.f32 0.0, %v5098
        %v5100 = vpop.f32.mrf.mxu0
        %v5101 = vadd.f32 0.0, %v5100
        %5102 = vmatmul.bf16.gmra.mxu0 %v4958
        %v5103 = vpop.f32.mrf.mxu0
        %v5104 = vadd.f32 0.0, %v5103
        %v5105 = vpop.f32.mrf.mxu0
        %v5106 = vadd.f32 0.0, %v5105
        %5107 = vmatmul.bf16.gmra.mxu0 %v4959
        %v5108 = vpop.f32.mrf.mxu0
        %v5109 = vadd.f32 0.0, %v5108
        %v5110 = vpop.f32.mrf.mxu0
        %v5111 = vadd.f32 0.0, %v5110
        %5112 = vdwg.mxu0
        %v5113 = vadd.f32 %v4831, %v5034
        %v5114 = vadd.f32 %v4832, %v5036
        %v5115 = vadd.f32 %v4833, %v5039
        %v5116 = vadd.f32 %v4834, %v5041
        %v5117 = vadd.f32 %v4835, %v5044
        %v5118 = vadd.f32 %v4836, %v5046
        %v5119 = vadd.f32 %v4837, %v5049
        %v5120 = vadd.f32 %v4838, %v5051
        %v5121 = vadd.f32 %v4839, %v5054
        %v5122 = vadd.f32 %v4840, %v5056
        %v5123 = vadd.f32 %v4841, %v5059
        %v5124 = vadd.f32 %v4842, %v5061
        %v5125 = vadd.f32 %v4843, %v5064
        %v5126 = vadd.f32 %v4844, %v5066
        %v5127 = vadd.f32 %v4845, %v5069
        %v5128 = vadd.f32 %v4846, %v5071
        %v5129 = vadd.f32 %v4847, %v5074
        %v5130 = vadd.f32 %v4848, %v5076
        %v5131 = vadd.f32 %v4849, %v5079
        %v5132 = vadd.f32 %v4850, %v5081
        %v5133 = vadd.f32 %v4851, %v5084
        %v5134 = vadd.f32 %v4852, %v5086
        %v5135 = vadd.f32 %v4853, %v5089
        %v5136 = vadd.f32 %v4854, %v5091
        %v5137 = vadd.f32 %v4855, %v5094
        %v5138 = vadd.f32 %v4856, %v5096
        %v5139 = vadd.f32 %v4857, %v5099
        %v5140 = vadd.f32 %v4858, %v5101
        %v5141 = vadd.f32 %v4859, %v5104
        %v5142 = vadd.f32 %v4860, %v5106
        %v5143 = vadd.f32 %v4861, %v5109
        %v5144 = vadd.f32 %v4862, %v5111
        %v5145 = vld [vmem:[#allocation3 + $0x14] sm:$0xf]
        %v5146 = vld [vmem:[#allocation3 + $0x18] sm:$0xf]
        %v5147 = vld [vmem:[#allocation3 + $0x1c] sm:$0xf]
        %v5148 = vld [vmem:[#allocation3 + $0x20] sm:$0xf]
        %v5149 = vld [vmem:[#allocation3 + $0x24] sm:$0xf]
        %v5150 = vld [vmem:[#allocation3 + $0x28] sm:$0xf]
        %v5151 = vld [vmem:[#allocation3 + $0x2c] sm:$0xf]
        %v5152 = vld [vmem:[#allocation3 + $0x30] sm:$0xf]
        %v5153 = vld [vmem:[#allocation3 + $0x34] sm:$0xf]
        %v5154 = vld [vmem:[#allocation3 + $0x38] sm:$0xf]
        %v5155 = vld [vmem:[#allocation3 + $0x3c] sm:$0xf]
        %v5156 = vld [vmem:[#allocation3 + $0x40] sm:$0xf]
        %v5157 = vld [vmem:[#allocation3 + $0x44] sm:$0xf]
        %v5158 = vld [vmem:[#allocation3 + $0x48] sm:$0xf]
        %v5159 = vld [vmem:[#allocation3 + $0x4c] sm:$0xf]
        %v5160 = vld [vmem:[#allocation3 + $0x50] sm:$0xf]
        %v5161 = vld [vmem:[#allocation3 + $0x54] sm:$0xf]
        %v5162 = vld [vmem:[#allocation3 + $0x58] sm:$0xf]
        %v5163 = vld [vmem:[#allocation3 + $0x5c] sm:$0xf]
        %v5164 = vld [vmem:[#allocation3 + $0x60] sm:$0xf]
        %v5165 = vld [vmem:[#allocation3 + $0x64] sm:$0xf]
        %v5166 = vld [vmem:[#allocation3 + $0x68] sm:$0xf]
        %v5167 = vld [vmem:[#allocation3 + $0x6c] sm:$0xf]
        %v5168 = vld [vmem:[#allocation3 + $0x70] sm:$0xf]
        %v5169 = vld [vmem:[#allocation3 + $0x74] sm:$0xf]
        %v5170 = vld [vmem:[#allocation3 + $0x78] sm:$0xf]
        %v5171 = vld [vmem:[#allocation3 + $0x7c] sm:$0xf]
        %v5172 = vld [vmem:[#allocation3 + $0x80] sm:$0xf]
        %v5173 = vld [vmem:[#allocation3 + $0x84] sm:$0xf]
        %v5174 = vld [vmem:[#allocation3 + $0x88] sm:$0xf]
        %v5175 = vld [vmem:[#allocation3 + $0x8c] sm:$0xf]
        %v5176 = vld [vmem:[#allocation3 + $0x90] sm:$0xf]
        %v5177 = vld [vmem:[#allocation3 + $0x94] sm:$0x1]
        %v5178 = vunpack.c.l.bf16 %v5145
        %v5179 = vunpack.c.l.bf16 %v5146
        %v5180 = vunpack.c.l.bf16 %v5147
        %v5181 = vunpack.c.l.bf16 %v5148
        %v5182 = vunpack.c.l.bf16 %v5149
        %v5183 = vunpack.c.l.bf16 %v5150
        %v5184 = vunpack.c.l.bf16 %v5151
        %v5185 = vunpack.c.l.bf16 %v5152
        %v5186 = vunpack.c.l.bf16 %v5153
        %v5187 = vunpack.c.l.bf16 %v5154
        %v5188 = vunpack.c.l.bf16 %v5155
        %v5189 = vunpack.c.l.bf16 %v5156
        %v5190 = vunpack.c.l.bf16 %v5157
        %v5191 = vunpack.c.l.bf16 %v5158
        %v5192 = vunpack.c.l.bf16 %v5159
        %v5193 = vunpack.c.l.bf16 %v5160
        %v5194 = vunpack.c.l.bf16 %v5161
        %v5195 = vunpack.c.l.bf16 %v5162
        %v5196 = vunpack.c.l.bf16 %v5163
        %v5197 = vunpack.c.l.bf16 %v5164
        %v5198 = vunpack.c.l.bf16 %v5165
        %v5199 = vunpack.c.l.bf16 %v5166
        %v5200 = vunpack.c.l.bf16 %v5167
        %v5201 = vunpack.c.l.bf16 %v5168
        %v5202 = vunpack.c.l.bf16 %v5169
        %v5203 = vunpack.c.l.bf16 %v5170
        %v5204 = vunpack.c.l.bf16 %v5171
        %v5205 = vunpack.c.l.bf16 %v5172
        %v5206 = vunpack.c.l.bf16 %v5173
        %v5207 = vunpack.c.l.bf16 %v5174
        %v5208 = vunpack.c.l.bf16 %v5175
        %v5209 = vunpack.c.l.bf16 %v5176
        %v5210 = vunpack.c.l.bf16 %v5177
        %v5211 = vmul.f32 %v5178, %v2710
        %v5212 = vmul.f32 %v5179, %v2712
        %v5213 = vmul.f32 %v5180, %v2714
        %v5214 = vmul.f32 %v5181, %v2716
        %v5215 = vmul.f32 %v5182, %v2718
        %v5216 = vmul.f32 %v5183, %v2720
        %v5217 = vmul.f32 %v5184, %v2722
        %v5218 = vmul.f32 %v5185, %v2724
        %v5219 = vmul.f32 %v5186, %v2726
        %v5220 = vmul.f32 %v5187, %v2728
        %v5221 = vmul.f32 %v5188, %v2730
        %v5222 = vmul.f32 %v5189, %v2732
        %v5223 = vmul.f32 %v5190, %v2734
        %v5224 = vmul.f32 %v5191, %v2736
        %v5225 = vmul.f32 %v5192, %v2738
        %v5226 = vmul.f32 %v5193, %v2740
        %v5227 = vmul.f32 %v5194, %v2742
        %v5228 = vmul.f32 %v5195, %v2744
        %v5229 = vmul.f32 %v5196, %v2746
        %v5230 = vmul.f32 %v5197, %v2748
        %v5231 = vmul.f32 %v5198, %v2750
        %v5232 = vmul.f32 %v5199, %v2752
        %v5233 = vmul.f32 %v5200, %v2754
        %v5234 = vmul.f32 %v5201, %v2756
        %v5235 = vmul.f32 %v5202, %v2758
        %v5236 = vmul.f32 %v5203, %v2760
        %v5237 = vmul.f32 %v5204, %v2762
        %v5238 = vmul.f32 %v5205, %v2764
        %v5239 = vmul.f32 %v5206, %v2766
        %v5240 = vmul.f32 %v5207, %v2768
        %v5241 = vmul.f32 %v5208, %v2770
        %v5242 = vmul.f32 %v5209, %v2772
        %v5243 = vmul.f32 %v5210, %v2771
        %v5244 = vpack.c.bf16 %v5212, %v5211
        %v5245 = vpack.c.bf16 %v5214, %v5213
        %v5246 = vpack.c.bf16 %v5216, %v5215
        %v5247 = vpack.c.bf16 %v5218, %v5217
        %v5248 = vpack.c.bf16 %v5220, %v5219
        %v5249 = vpack.c.bf16 %v5222, %v5221
        %v5250 = vpack.c.bf16 %v5224, %v5223
        %v5251 = vpack.c.bf16 %v5226, %v5225
        %v5252 = vpack.c.bf16 %v5228, %v5227
        %v5253 = vpack.c.bf16 %v5230, %v5229
        %v5254 = vpack.c.bf16 %v5232, %v5231
        %v5255 = vpack.c.bf16 %v5234, %v5233
        %v5256 = vpack.c.bf16 %v5236, %v5235
        %v5257 = vpack.c.bf16 %v5238, %v5237
        %v5258 = vpack.c.bf16 %v5240, %v5239
        %v5259 = vpack.c.bf16 %v5242, %v5241
        %v5260 = vpack.c.bf16 %v5243, %v5243
        %s5261 = scalar_lea.vmem [#allocation5], 512
        %v5262 = vld [vmem:[%s5261] sm:$0xf]
        %v5263 = vld [vmem:[%s5261 + $0x4] sm:$0xf]
        %v5264 = vld [vmem:[%s5261 + $0x8] sm:$0xf]
        %v5265 = vld [vmem:[%s5261 + $0xc] sm:$0xf]
        %v5266 = vld [vmem:[%s5261 + $0x10] sm:$0xf]
        %v5267 = vld [vmem:[%s5261 + $0x14] sm:$0xf]
        %v5268 = vld [vmem:[%s5261 + $0x18] sm:$0xf]
        %v5269 = vld [vmem:[%s5261 + $0x1c] sm:$0xf]
        %v5270 = vld [vmem:[%s5261 + $0x20] sm:$0xf]
        %v5271 = vld [vmem:[%s5261 + $0x24] sm:$0xf]
        %v5272 = vld [vmem:[%s5261 + $0x28] sm:$0xf]
        %v5273 = vld [vmem:[%s5261 + $0x2c] sm:$0xf]
        %v5274 = vld [vmem:[%s5261 + $0x30] sm:$0xf]
        %v5275 = vld [vmem:[%s5261 + $0x34] sm:$0xf]
        %v5276 = vld [vmem:[%s5261 + $0x38] sm:$0xf]
        %v5277 = vld [vmem:[%s5261 + $0x3c] sm:$0xf]
        %v5279 = vshrl.u32 %v5244, 16
        %v5281 = vshll.u32 %v5244, 16
        %v5283 = vrot.slane %v5281, 1
        %v5284 = vor.u32 %v5279, %v5283
        %v5286 = vshll.u32 %v5245, 16
        %v5288 = vrot.slane %v5286, 1
        %v5289 = vsel %vm2873, %v5284, %v5288
        %v5290 = vshrl.u32 %v5245, 16
        %v5292 = vor.u32 %v5290, %v5288
        %v5294 = vshll.u32 %v5246, 16
        %v5296 = vrot.slane %v5294, 1
        %v5297 = vsel %vm2873, %v5292, %v5296
        %v5298 = vshrl.u32 %v5246, 16
        %v5300 = vor.u32 %v5298, %v5296
        %v5302 = vshll.u32 %v5247, 16
        %v5304 = vrot.slane %v5302, 1
        %v5305 = vsel %vm2873, %v5300, %v5304
        %v5306 = vshrl.u32 %v5247, 16
        %v5308 = vor.u32 %v5306, %v5304
        %v5310 = vshll.u32 %v5248, 16
        %v5312 = vrot.slane %v5310, 1
        %v5313 = vsel %vm2873, %v5308, %v5312
        %v5314 = vshrl.u32 %v5248, 16
        %v5316 = vor.u32 %v5314, %v5312
        %v5318 = vshll.u32 %v5249, 16
        %v5320 = vrot.slane %v5318, 1
        %v5321 = vsel %vm2873, %v5316, %v5320
        %v5322 = vshrl.u32 %v5249, 16
        %v5324 = vor.u32 %v5322, %v5320
        %v5326 = vshll.u32 %v5250, 16
        %v5328 = vrot.slane %v5326, 1
        %v5329 = vsel %vm2873, %v5324, %v5328
        %v5330 = vshrl.u32 %v5250, 16
        %v5332 = vor.u32 %v5330, %v5328
        %v5334 = vshll.u32 %v5251, 16
        %v5336 = vrot.slane %v5334, 1
        %v5337 = vsel %vm2873, %v5332, %v5336
        %v5338 = vshrl.u32 %v5251, 16
        %v5340 = vor.u32 %v5338, %v5336
        %v5342 = vshll.u32 %v5252, 16
        %v5344 = vrot.slane %v5342, 1
        %v5345 = vsel %vm2873, %v5340, %v5344
        %v5346 = vshrl.u32 %v5252, 16
        %v5348 = vor.u32 %v5346, %v5344
        %v5350 = vshll.u32 %v5253, 16
        %v5352 = vrot.slane %v5350, 1
        %v5353 = vsel %vm2873, %v5348, %v5352
        %v5354 = vshrl.u32 %v5253, 16
        %v5356 = vor.u32 %v5354, %v5352
        %v5358 = vshll.u32 %v5254, 16
        %v5360 = vrot.slane %v5358, 1
        %v5361 = vsel %vm2873, %v5356, %v5360
        %v5362 = vshrl.u32 %v5254, 16
        %v5364 = vor.u32 %v5362, %v5360
        %v5366 = vshll.u32 %v5255, 16
        %v5368 = vrot.slane %v5366, 1
        %v5369 = vsel %vm2873, %v5364, %v5368
        %v5370 = vshrl.u32 %v5255, 16
        %v5372 = vor.u32 %v5370, %v5368
        %v5374 = vshll.u32 %v5256, 16
        %v5376 = vrot.slane %v5374, 1
        %v5377 = vsel %vm2873, %v5372, %v5376
        %v5378 = vshrl.u32 %v5256, 16
        %v5380 = vor.u32 %v5378, %v5376
        %v5382 = vshll.u32 %v5257, 16
        %v5384 = vrot.slane %v5382, 1
        %v5385 = vsel %vm2873, %v5380, %v5384
        %v5386 = vshrl.u32 %v5257, 16
        %v5388 = vor.u32 %v5386, %v5384
        %v5390 = vshll.u32 %v5258, 16
        %v5392 = vrot.slane %v5390, 1
        %v5393 = vsel %vm2873, %v5388, %v5392
        %v5394 = vshrl.u32 %v5258, 16
        %v5396 = vor.u32 %v5394, %v5392
        %v5398 = vshll.u32 %v5259, 16
        %v5400 = vrot.slane %v5398, 1
        %v5401 = vsel %vm2873, %v5396, %v5400
        %v5402 = vshrl.u32 %v5259, 16
        %v5404 = vor.u32 %v5402, %v5400
        %v5406 = vshll.u32 %v5260, 16
        %v5408 = vrot.slane %v5406, 1
        %v5409 = vsel %vm2873, %v5404, %v5408
        %v5442 = vunpack.c.l.b16 %v5262
        %v5443 = vunpack.c.l.b16 %v5263
        %v5444 = vunpack.c.l.b16 %v5264
        %v5445 = vunpack.c.l.b16 %v5265
        %v5446 = vunpack.c.l.b16 %v5266
        %v5447 = vunpack.c.l.b16 %v5267
        %v5448 = vunpack.c.l.b16 %v5268
        %v5449 = vunpack.c.l.b16 %v5269
        %v5450 = vunpack.c.l.b16 %v5270
        %v5451 = vunpack.c.l.b16 %v5271
        %v5452 = vunpack.c.l.b16 %v5272
        %v5453 = vunpack.c.l.b16 %v5273
        %v5454 = vunpack.c.l.b16 %v5274
        %v5455 = vunpack.c.l.b16 %v5275
        %v5456 = vunpack.c.l.b16 %v5276
        %v5457 = vunpack.c.l.b16 %v5277
        %v5458 = vpack.c.b16 %v5443, %v5442
        %v5459 = vpack.c.b16 %v5445, %v5444
        %v5460 = vpack.c.b16 %v5447, %v5446
        %v5461 = vpack.c.b16 %v5449, %v5448
        %v5462 = vpack.c.b16 %v5451, %v5450
        %v5463 = vpack.c.b16 %v5453, %v5452
        %v5464 = vpack.c.b16 %v5455, %v5454
        %v5465 = vpack.c.b16 %v5457, %v5456
        %5474 = vmatpush.bf16.msra.mxu0 %v5465
        %5475 = vmatpush.bf16.msra.mxu0 %v5464
        %5476 = vmatpush.bf16.msra.mxu0 %v5463
        %5477 = vmatpush.bf16.msra.mxu0 %v5462
        %5478 = vmatpush.bf16.msra.mxu0 %v5461
        %5479 = vmatpush.bf16.msra.mxu0 %v5460
        %5480 = vmatpush.bf16.msra.mxu0 %v5459
        %5481 = vmatpush.bf16.msra.mxu0 %v5458
        %5482 = vmatmul.bf16.gmra.mxu0 %v5289
        %v5483 = vpop.f32.mrf.mxu0
        %v5484 = vadd.f32 0.0, %v5483
        %v5485 = vpop.f32.mrf.mxu0
        %v5486 = vadd.f32 0.0, %v5485
        %5487 = vmatmul.bf16.gmra.mxu0 %v5297
        %v5488 = vpop.f32.mrf.mxu0
        %v5489 = vadd.f32 0.0, %v5488
        %v5490 = vpop.f32.mrf.mxu0
        %v5491 = vadd.f32 0.0, %v5490
        %5492 = vmatmul.bf16.gmra.mxu0 %v5305
        %v5493 = vpop.f32.mrf.mxu0
        %v5494 = vadd.f32 0.0, %v5493
        %v5495 = vpop.f32.mrf.mxu0
        %v5496 = vadd.f32 0.0, %v5495
        %5497 = vmatmul.bf16.gmra.mxu0 %v5313
        %v5498 = vpop.f32.mrf.mxu0
        %v5499 = vadd.f32 0.0, %v5498
        %v5500 = vpop.f32.mrf.mxu0
        %v5501 = vadd.f32 0.0, %v5500
        %5502 = vmatmul.bf16.gmra.mxu0 %v5321
        %v5503 = vpop.f32.mrf.mxu0
        %v5504 = vadd.f32 0.0, %v5503
        %v5505 = vpop.f32.mrf.mxu0
        %v5506 = vadd.f32 0.0, %v5505
        %5507 = vmatmul.bf16.gmra.mxu0 %v5329
        %v5508 = vpop.f32.mrf.mxu0
        %v5509 = vadd.f32 0.0, %v5508
        %v5510 = vpop.f32.mrf.mxu0
        %v5511 = vadd.f32 0.0, %v5510
        %5512 = vmatmul.bf16.gmra.mxu0 %v5337
        %v5513 = vpop.f32.mrf.mxu0
        %v5514 = vadd.f32 0.0, %v5513
        %v5515 = vpop.f32.mrf.mxu0
        %v5516 = vadd.f32 0.0, %v5515
        %5517 = vmatmul.bf16.gmra.mxu0 %v5345
        %v5518 = vpop.f32.mrf.mxu0
        %v5519 = vadd.f32 0.0, %v5518
        %v5520 = vpop.f32.mrf.mxu0
        %v5521 = vadd.f32 0.0, %v5520
        %5522 = vmatmul.bf16.gmra.mxu0 %v5353
        %v5523 = vpop.f32.mrf.mxu0
        %v5524 = vadd.f32 0.0, %v5523
        %v5525 = vpop.f32.mrf.mxu0
        %v5526 = vadd.f32 0.0, %v5525
        %5527 = vmatmul.bf16.gmra.mxu0 %v5361
        %v5528 = vpop.f32.mrf.mxu0
        %v5529 = vadd.f32 0.0, %v5528
        %v5530 = vpop.f32.mrf.mxu0
        %v5531 = vadd.f32 0.0, %v5530
        %5532 = vmatmul.bf16.gmra.mxu0 %v5369
        %v5533 = vpop.f32.mrf.mxu0
        %v5534 = vadd.f32 0.0, %v5533
        %v5535 = vpop.f32.mrf.mxu0
        %v5536 = vadd.f32 0.0, %v5535
        %5537 = vmatmul.bf16.gmra.mxu0 %v5377
        %v5538 = vpop.f32.mrf.mxu0
        %v5539 = vadd.f32 0.0, %v5538
        %v5540 = vpop.f32.mrf.mxu0
        %v5541 = vadd.f32 0.0, %v5540
        %5542 = vmatmul.bf16.gmra.mxu0 %v5385
        %v5543 = vpop.f32.mrf.mxu0
        %v5544 = vadd.f32 0.0, %v5543
        %v5545 = vpop.f32.mrf.mxu0
        %v5546 = vadd.f32 0.0, %v5545
        %5547 = vmatmul.bf16.gmra.mxu0 %v5393
        %v5548 = vpop.f32.mrf.mxu0
        %v5549 = vadd.f32 0.0, %v5548
        %v5550 = vpop.f32.mrf.mxu0
        %v5551 = vadd.f32 0.0, %v5550
        %5552 = vmatmul.bf16.gmra.mxu0 %v5401
        %v5553 = vpop.f32.mrf.mxu0
        %v5554 = vadd.f32 0.0, %v5553
        %v5555 = vpop.f32.mrf.mxu0
        %v5556 = vadd.f32 0.0, %v5555
        %5557 = vmatmul.bf16.gmra.mxu0 %v5409
        %v5558 = vpop.f32.mrf.mxu0
        %v5559 = vadd.f32 0.0, %v5558
        %v5560 = vpop.f32.mrf.mxu0
        %v5561 = vadd.f32 0.0, %v5560
        %5562 = vdwg.mxu0
        %v5563 = vadd.f32 %v5113, %v5484
        %v5564 = vadd.f32 %v5114, %v5486
        %v5565 = vadd.f32 %v5115, %v5489
        %v5566 = vadd.f32 %v5116, %v5491
        %v5567 = vadd.f32 %v5117, %v5494
        %v5568 = vadd.f32 %v5118, %v5496
        %v5569 = vadd.f32 %v5119, %v5499
        %v5570 = vadd.f32 %v5120, %v5501
        %v5571 = vadd.f32 %v5121, %v5504
        %v5572 = vadd.f32 %v5122, %v5506
        %v5573 = vadd.f32 %v5123, %v5509
        %v5574 = vadd.f32 %v5124, %v5511
        %v5575 = vadd.f32 %v5125, %v5514
        %v5576 = vadd.f32 %v5126, %v5516
        %v5577 = vadd.f32 %v5127, %v5519
        %v5578 = vadd.f32 %v5128, %v5521
        %v5579 = vadd.f32 %v5129, %v5524
        %v5580 = vadd.f32 %v5130, %v5526
        %v5581 = vadd.f32 %v5131, %v5529
        %v5582 = vadd.f32 %v5132, %v5531
        %v5583 = vadd.f32 %v5133, %v5534
        %v5584 = vadd.f32 %v5134, %v5536
        %v5585 = vadd.f32 %v5135, %v5539
        %v5586 = vadd.f32 %v5136, %v5541
        %v5587 = vadd.f32 %v5137, %v5544
        %v5588 = vadd.f32 %v5138, %v5546
        %v5589 = vadd.f32 %v5139, %v5549
        %v5590 = vadd.f32 %v5140, %v5551
        %v5591 = vadd.f32 %v5141, %v5554
        %v5592 = vadd.f32 %v5142, %v5556
        %v5593 = vadd.f32 %v5143, %v5559
        %v5594 = vadd.f32 %v5144, %v5561
        %v5595 = vld [vmem:[%s5] sm:$0x1]
        %v5597 = vperm.slane %v5595, 0
        %v5599 = vadd.f32 %v5563, %v5597
        %v5600 = vadd.f32 %v5564, %v5597
        %v5601 = vadd.f32 %v5565, %v5597
        %v5602 = vadd.f32 %v5566, %v5597
        %v5603 = vadd.f32 %v5567, %v5597
        %v5604 = vadd.f32 %v5568, %v5597
        %v5605 = vadd.f32 %v5569, %v5597
        %v5606 = vadd.f32 %v5570, %v5597
        %v5607 = vadd.f32 %v5571, %v5597
        %v5608 = vadd.f32 %v5572, %v5597
        %v5609 = vadd.f32 %v5573, %v5597
        %v5610 = vadd.f32 %v5574, %v5597
        %v5611 = vadd.f32 %v5575, %v5597
        %v5612 = vadd.f32 %v5576, %v5597
        %v5613 = vadd.f32 %v5577, %v5597
        %v5614 = vadd.f32 %v5578, %v5597
        %v5615 = vadd.f32 %v5579, %v5597
        %v5616 = vadd.f32 %v5580, %v5597
        %v5617 = vadd.f32 %v5581, %v5597
        %v5618 = vadd.f32 %v5582, %v5597
        %v5619 = vadd.f32 %v5583, %v5597
        %v5620 = vadd.f32 %v5584, %v5597
        %v5621 = vadd.f32 %v5585, %v5597
        %v5622 = vadd.f32 %v5586, %v5597
        %v5623 = vadd.f32 %v5587, %v5597
        %v5624 = vadd.f32 %v5588, %v5597
        %v5625 = vadd.f32 %v5589, %v5597
        %v5626 = vadd.f32 %v5590, %v5597
        %v5627 = vadd.f32 %v5591, %v5597
        %v5628 = vadd.f32 %v5592, %v5597
        %v5629 = vadd.f32 %v5593, %v5597
        %v5630 = vadd.f32 %v5594, %v5597
        %v5631 = vmax.f32 %v5599, 0.0
        %v5632 = vmax.f32 %v5600, 0.0
        %v5633 = vmax.f32 %v5601, 0.0
        %v5634 = vmax.f32 %v5602, 0.0
        %v5635 = vmax.f32 %v5603, 0.0
        %v5636 = vmax.f32 %v5604, 0.0
        %v5637 = vmax.f32 %v5605, 0.0
        %v5638 = vmax.f32 %v5606, 0.0
        %v5639 = vmax.f32 %v5607, 0.0
        %v5640 = vmax.f32 %v5608, 0.0
        %v5641 = vmax.f32 %v5609, 0.0
        %v5642 = vmax.f32 %v5610, 0.0
        %v5643 = vmax.f32 %v5611, 0.0
        %v5644 = vmax.f32 %v5612, 0.0
        %v5645 = vmax.f32 %v5613, 0.0
        %v5646 = vmax.f32 %v5614, 0.0
        %v5647 = vmax.f32 %v5615, 0.0
        %v5648 = vmax.f32 %v5616, 0.0
        %v5649 = vmax.f32 %v5617, 0.0
        %v5650 = vmax.f32 %v5618, 0.0
        %v5651 = vmax.f32 %v5619, 0.0
        %v5652 = vmax.f32 %v5620, 0.0
        %v5653 = vmax.f32 %v5621, 0.0
        %v5654 = vmax.f32 %v5622, 0.0
        %v5655 = vmax.f32 %v5623, 0.0
        %v5656 = vmax.f32 %v5624, 0.0
        %v5657 = vmax.f32 %v5625, 0.0
        %v5658 = vmax.f32 %v5626, 0.0
        %v5659 = vmax.f32 %v5627, 0.0
        %v5660 = vmax.f32 %v5628, 0.0
        %v5661 = vmax.f32 %v5629, 0.0
        %v5662 = vmax.f32 %v5630, 0.0
        %5663 = vst [vmem:[%s393 + $0x8] sm:$0xff] %v5631
        %5664 = vst [vmem:[%s393 + $0x28] sm:$0xff] %v5632
        %5665 = vst [vmem:[%s393 + $0x48] sm:$0xff] %v5633
        %5666 = vst [vmem:[%s393 + $0x68] sm:$0xff] %v5634
        %5667 = vst [vmem:[%s393 + $0x88] sm:$0xff] %v5635
        %5668 = vst [vmem:[%s393 + $0xa8] sm:$0xff] %v5636
        %5669 = vst [vmem:[%s393 + $0xc8] sm:$0xff] %v5637
        %5670 = vst [vmem:[%s393 + $0xe8] sm:$0xff] %v5638
        %5671 = vst [vmem:[%s393 + $0x108] sm:$0xff] %v5639
        %5672 = vst [vmem:[%s393 + $0x128] sm:$0xff] %v5640
        %5673 = vst [vmem:[%s393 + $0x148] sm:$0xff] %v5641
        %5674 = vst [vmem:[%s393 + $0x168] sm:$0xff] %v5642
        %5675 = vst [vmem:[%s393 + $0x188] sm:$0xff] %v5643
        %5676 = vst [vmem:[%s393 + $0x1a8] sm:$0xff] %v5644
        %5677 = vst [vmem:[%s393 + $0x1c8] sm:$0xff] %v5645
        %5678 = vst [vmem:[%s393 + $0x1e8] sm:$0xff] %v5646
        %5679 = vst [vmem:[%s393 + $0x208] sm:$0xff] %v5647
        %5680 = vst [vmem:[%s393 + $0x228] sm:$0xff] %v5648
        %5681 = vst [vmem:[%s393 + $0x248] sm:$0xff] %v5649
        %5682 = vst [vmem:[%s393 + $0x268] sm:$0xff] %v5650
        %5683 = vst [vmem:[%s393 + $0x288] sm:$0xff] %v5651
        %5684 = vst [vmem:[%s393 + $0x2a8] sm:$0xff] %v5652
        %5685 = vst [vmem:[%s393 + $0x2c8] sm:$0xff] %v5653
        %5686 = vst [vmem:[%s393 + $0x2e8] sm:$0xff] %v5654
        %5687 = vst [vmem:[%s393 + $0x308] sm:$0xff] %v5655
        %5688 = vst [vmem:[%s393 + $0x328] sm:$0xff] %v5656
        %5689 = vst [vmem:[%s393 + $0x348] sm:$0xff] %v5657
        %5690 = vst [vmem:[%s393 + $0x368] sm:$0xff] %v5658
        %5691 = vst [vmem:[%s393 + $0x388] sm:$0xff] %v5659
        %5692 = vst [vmem:[%s393 + $0x3a8] sm:$0xff] %v5660
        %5693 = vst [vmem:[%s393 + $0x3c8] sm:$0xff] %v5661
        %5694 = vst [vmem:[%s393 + $0x3e8] sm:$0xff] %v5662
        %5695 = vst [vmem:[#allocation4 + $0xc] sm:$0xf] %v1090
        %5696 = vst [vmem:[#allocation4 + $0x10] sm:$0xf] %v1091
        %5697 = vst [vmem:[#allocation4 + $0x14] sm:$0xf] %v1092
        %5698 = vst [vmem:[#allocation4 + $0x18] sm:$0xf] %v1093
        %5699 = vst [vmem:[#allocation4 + $0x1c] sm:$0xf] %v1094
        %5700 = vst [vmem:[#allocation4 + $0x20] sm:$0xf] %v1095
        %5701 = vst [vmem:[#allocation4 + $0x24] sm:$0xf] %v1096
        %5702 = vst [vmem:[#allocation4 + $0x28] sm:$0xf] %v1097
        %5703 = vst [vmem:[#allocation4 + $0x2c] sm:$0xf] %v1098
        %5704 = vst [vmem:[#allocation4 + $0x30] sm:$0xf] %v1099
        %5705 = vst [vmem:[#allocation4 + $0x34] sm:$0xf] %v1100
        %5706 = vst [vmem:[#allocation4 + $0x38] sm:$0xf] %v1101
        %5707 = vst [vmem:[#allocation4 + $0x3c] sm:$0xf] %v1102
        %5708 = vst [vmem:[#allocation4 + $0x40] sm:$0xf] %v1103
        %5709 = vst [vmem:[#allocation4 + $0x44] sm:$0xf] %v1104
        %5710 = vst [vmem:[#allocation4 + $0x48] sm:$0xf] %v1105
        %5711 = vst [vmem:[#allocation4 + $0x4c] sm:$0xf] %v1106
        %5712 = vst [vmem:[#allocation4 + $0x50] sm:$0xf] %v1107
        %5713 = vst [vmem:[#allocation4 + $0x54] sm:$0xf] %v1108
        %5714 = vst [vmem:[#allocation4 + $0x58] sm:$0xf] %v1109
        %5715 = vst [vmem:[#allocation4 + $0x5c] sm:$0xf] %v1110
        %5716 = vst [vmem:[#allocation4 + $0x60] sm:$0xf] %v1111
        %5717 = vst [vmem:[#allocation4 + $0x64] sm:$0xf] %v1112
        %5718 = vst [vmem:[#allocation4 + $0x68] sm:$0xf] %v1113
        %5719 = vst [vmem:[#allocation4 + $0x6c] sm:$0xf] %v1114
        %5720 = vst [vmem:[#allocation4 + $0x70] sm:$0xf] %v1115
        %5721 = vst [vmem:[#allocation4 + $0x74] sm:$0xf] %v1116
        %5722 = vst [vmem:[#allocation4 + $0x78] sm:$0xf] %v1117
        %5723 = vst [vmem:[#allocation4 + $0x7c] sm:$0xf] %v1118
        %5724 = vst [vmem:[#allocation4 + $0x80] sm:$0xf] %v1119
        %5725 = vst [vmem:[#allocation4 + $0x84] sm:$0xf] %v1120
        %5726 = vst [vmem:[#allocation4 + $0x88] sm:$0xf] %v1121
        %v5727 = vld [vmem:[#allocation4] sm:$0x8]
        %v5728 = vld [vmem:[#allocation4 + $0x4] sm:$0xf]
        %v5729 = vld [vmem:[#allocation4 + $0x8] sm:$0xf]
        %v5730 = vld [vmem:[#allocation4 + $0xc] sm:$0xf]
        %v5731 = vld [vmem:[#allocation4 + $0x10] sm:$0xf]
        %v5732 = vld [vmem:[#allocation4 + $0x14] sm:$0xf]
        %v5733 = vld [vmem:[#allocation4 + $0x18] sm:$0xf]
        %v5734 = vld [vmem:[#allocation4 + $0x1c] sm:$0xf]
        %v5735 = vld [vmem:[#allocation4 + $0x20] sm:$0xf]
        %v5736 = vld [vmem:[#allocation4 + $0x24] sm:$0xf]
        %v5737 = vld [vmem:[#allocation4 + $0x28] sm:$0xf]
        %v5738 = vld [vmem:[#allocation4 + $0x2c] sm:$0xf]
        %v5739 = vld [vmem:[#allocation4 + $0x30] sm:$0xf]
        %v5740 = vld [vmem:[#allocation4 + $0x34] sm:$0xf]
        %v5741 = vld [vmem:[#allocation4 + $0x38] sm:$0xf]
        %v5742 = vld [vmem:[#allocation4 + $0x3c] sm:$0xf]
        %v5743 = vld [vmem:[#allocation4 + $0x40] sm:$0xf]
        %v5744 = vld [vmem:[#allocation4 + $0x44] sm:$0xf]
        %v5745 = vld [vmem:[#allocation4 + $0x48] sm:$0xf]
        %v5746 = vld [vmem:[#allocation4 + $0x4c] sm:$0xf]
        %v5747 = vld [vmem:[#allocation4 + $0x50] sm:$0xf]
        %v5748 = vld [vmem:[#allocation4 + $0x54] sm:$0xf]
        %v5749 = vld [vmem:[#allocation4 + $0x58] sm:$0xf]
        %v5750 = vld [vmem:[#allocation4 + $0x5c] sm:$0xf]
        %v5751 = vld [vmem:[#allocation4 + $0x60] sm:$0xf]
        %v5752 = vld [vmem:[#allocation4 + $0x64] sm:$0xf]
        %v5753 = vld [vmem:[#allocation4 + $0x68] sm:$0xf]
        %v5754 = vld [vmem:[#allocation4 + $0x6c] sm:$0xf]
        %v5755 = vld [vmem:[#allocation4 + $0x70] sm:$0xf]
        %v5756 = vld [vmem:[#allocation4 + $0x74] sm:$0xf]
        %v5757 = vld [vmem:[#allocation4 + $0x78] sm:$0xf]
        %v5758 = vld [vmem:[#allocation4 + $0x7c] sm:$0xf]
        %v5759 = vld [vmem:[#allocation4 + $0x80] sm:$0xf]
        %v5760 = vunpack.c.l.bf16 %v5727
        %v5761 = vunpack.c.l.bf16 %v5728
        %v5762 = vunpack.c.l.bf16 %v5729
        %v5763 = vunpack.c.l.bf16 %v5730
        %v5764 = vunpack.c.l.bf16 %v5731
        %v5765 = vunpack.c.l.bf16 %v5732
        %v5766 = vunpack.c.l.bf16 %v5733
        %v5767 = vunpack.c.l.bf16 %v5734
        %v5768 = vunpack.c.l.bf16 %v5735
        %v5769 = vunpack.c.l.bf16 %v5736
        %v5770 = vunpack.c.l.bf16 %v5737
        %v5771 = vunpack.c.l.bf16 %v5738
        %v5772 = vunpack.c.l.bf16 %v5739
        %v5773 = vunpack.c.l.bf16 %v5740
        %v5774 = vunpack.c.l.bf16 %v5741
        %v5775 = vunpack.c.l.bf16 %v5742
        %v5776 = vunpack.c.l.bf16 %v5743
        %v5777 = vunpack.c.l.bf16 %v5744
        %v5778 = vunpack.c.l.bf16 %v5745
        %v5779 = vunpack.c.l.bf16 %v5746
        %v5780 = vunpack.c.l.bf16 %v5747
        %v5781 = vunpack.c.l.bf16 %v5748
        %v5782 = vunpack.c.l.bf16 %v5749
        %v5783 = vunpack.c.l.bf16 %v5750
        %v5784 = vunpack.c.l.bf16 %v5751
        %v5785 = vunpack.c.l.bf16 %v5752
        %v5786 = vunpack.c.l.bf16 %v5753
        %v5787 = vunpack.c.l.bf16 %v5754
        %v5788 = vunpack.c.l.bf16 %v5755
        %v5789 = vunpack.c.l.bf16 %v5756
        %v5790 = vunpack.c.l.bf16 %v5757
        %v5791 = vunpack.c.l.bf16 %v5758
        %v5792 = vunpack.c.l.bf16 %v5759
        %v5793 = vmul.f32 %v5760, %v1605
        %v5794 = vmul.f32 %v5761, %v1607
        %v5795 = vmul.f32 %v5762, %v1609
        %v5796 = vmul.f32 %v5763, %v1611
        %v5797 = vmul.f32 %v5764, %v1613
        %v5798 = vmul.f32 %v5765, %v1615
        %v5799 = vmul.f32 %v5766, %v1617
        %v5800 = vmul.f32 %v5767, %v1619
        %v5801 = vmul.f32 %v5768, %v1621
        %v5802 = vmul.f32 %v5769, %v1623
        %v5803 = vmul.f32 %v5770, %v1625
        %v5804 = vmul.f32 %v5771, %v1627
        %v5805 = vmul.f32 %v5772, %v1629
        %v5806 = vmul.f32 %v5773, %v1631
        %v5807 = vmul.f32 %v5774, %v1633
        %v5808 = vmul.f32 %v5775, %v1635
        %v5809 = vmul.f32 %v5776, %v1637
        %v5810 = vmul.f32 %v5777, %v1639
        %v5811 = vmul.f32 %v5778, %v1641
        %v5812 = vmul.f32 %v5779, %v1643
        %v5813 = vmul.f32 %v5780, %v1645
        %v5814 = vmul.f32 %v5781, %v1647
        %v5815 = vmul.f32 %v5782, %v1649
        %v5816 = vmul.f32 %v5783, %v1651
        %v5817 = vmul.f32 %v5784, %v1653
        %v5818 = vmul.f32 %v5785, %v1655
        %v5819 = vmul.f32 %v5786, %v1657
        %v5820 = vmul.f32 %v5787, %v1659
        %v5821 = vmul.f32 %v5788, %v1661
        %v5822 = vmul.f32 %v5789, %v1663
        %v5823 = vmul.f32 %v5790, %v1665
        %v5824 = vmul.f32 %v5791, %v1667
        %v5825 = vmul.f32 %v5792, %v1666
        %v5826 = vpack.c.bf16 %v5794, %v5793
        %v5827 = vpack.c.bf16 %v5796, %v5795
        %v5828 = vpack.c.bf16 %v5798, %v5797
        %v5829 = vpack.c.bf16 %v5800, %v5799
        %v5830 = vpack.c.bf16 %v5802, %v5801
        %v5831 = vpack.c.bf16 %v5804, %v5803
        %v5832 = vpack.c.bf16 %v5806, %v5805
        %v5833 = vpack.c.bf16 %v5808, %v5807
        %v5834 = vpack.c.bf16 %v5810, %v5809
        %v5835 = vpack.c.bf16 %v5812, %v5811
        %v5836 = vpack.c.bf16 %v5814, %v5813
        %v5837 = vpack.c.bf16 %v5816, %v5815
        %v5838 = vpack.c.bf16 %v5818, %v5817
        %v5839 = vpack.c.bf16 %v5820, %v5819
        %v5840 = vpack.c.bf16 %v5822, %v5821
        %v5841 = vpack.c.bf16 %v5824, %v5823
        %v5842 = vpack.c.bf16 %v5825, %v5825
        %v5843 = vld [vmem:[#allocation7] sm:$0xf]
        %v5844 = vld [vmem:[#allocation7 + $0x4] sm:$0xf]
        %v5845 = vld [vmem:[#allocation7 + $0x8] sm:$0xf]
        %v5846 = vld [vmem:[#allocation7 + $0xc] sm:$0xf]
        %v5847 = vld [vmem:[#allocation7 + $0x10] sm:$0xf]
        %v5848 = vld [vmem:[#allocation7 + $0x14] sm:$0xf]
        %v5849 = vld [vmem:[#allocation7 + $0x18] sm:$0xf]
        %v5850 = vld [vmem:[#allocation7 + $0x1c] sm:$0xf]
        %v5851 = vld [vmem:[#allocation7 + $0x20] sm:$0xf]
        %v5852 = vld [vmem:[#allocation7 + $0x24] sm:$0xf]
        %v5853 = vld [vmem:[#allocation7 + $0x28] sm:$0xf]
        %v5854 = vld [vmem:[#allocation7 + $0x2c] sm:$0xf]
        %v5855 = vld [vmem:[#allocation7 + $0x30] sm:$0xf]
        %v5856 = vld [vmem:[#allocation7 + $0x34] sm:$0xf]
        %v5857 = vld [vmem:[#allocation7 + $0x38] sm:$0xf]
        %v5858 = vld [vmem:[#allocation7 + $0x3c] sm:$0xf]
        %s5859 = scalar_lea.vmem [#allocation7], 64
        %v5860 = vld [vmem:[%s5859] sm:$0xf]
        %v5861 = vld [vmem:[%s5859 + $0x4] sm:$0xf]
        %v5862 = vld [vmem:[%s5859 + $0x8] sm:$0xf]
        %v5863 = vld [vmem:[%s5859 + $0xc] sm:$0xf]
        %v5864 = vld [vmem:[%s5859 + $0x10] sm:$0xf]
        %v5865 = vld [vmem:[%s5859 + $0x14] sm:$0xf]
        %v5866 = vld [vmem:[%s5859 + $0x18] sm:$0xf]
        %v5867 = vld [vmem:[%s5859 + $0x1c] sm:$0xf]
        %v5868 = vld [vmem:[%s5859 + $0x20] sm:$0xf]
        %v5869 = vld [vmem:[%s5859 + $0x24] sm:$0xf]
        %v5870 = vld [vmem:[%s5859 + $0x28] sm:$0xf]
        %v5871 = vld [vmem:[%s5859 + $0x2c] sm:$0xf]
        %v5872 = vld [vmem:[%s5859 + $0x30] sm:$0xf]
        %v5873 = vld [vmem:[%s5859 + $0x34] sm:$0xf]
        %v5874 = vld [vmem:[%s5859 + $0x38] sm:$0xf]
        %v5875 = vld [vmem:[%s5859 + $0x3c] sm:$0xf]
        %v5908 = vunpack.c.l.b16 %v5728
        %v5909 = vunpack.c.l.b16 %v5729
        %v5910 = vunpack.c.l.b16 %v5730
        %v5911 = vunpack.c.l.b16 %v5731
        %v5912 = vunpack.c.l.b16 %v5732
        %v5913 = vunpack.c.l.b16 %v5733
        %v5914 = vunpack.c.l.b16 %v5734
        %v5915 = vunpack.c.l.b16 %v5735
        %v5916 = vunpack.c.l.b16 %v5736
        %v5917 = vunpack.c.l.b16 %v5737
        %v5918 = vunpack.c.l.b16 %v5738
        %v5919 = vunpack.c.l.b16 %v5739
        %v5920 = vunpack.c.l.b16 %v5740
        %v5921 = vunpack.c.l.b16 %v5741
        %v5922 = vunpack.c.l.b16 %v5742
        %v5923 = vunpack.c.l.b16 %v5743
        %v5924 = vunpack.c.l.b16 %v5744
        %v5925 = vunpack.c.l.b16 %v5745
        %v5926 = vunpack.c.l.b16 %v5746
        %v5927 = vunpack.c.l.b16 %v5747
        %v5928 = vunpack.c.l.b16 %v5748
        %v5929 = vunpack.c.l.b16 %v5749
        %v5930 = vunpack.c.l.b16 %v5750
        %v5931 = vunpack.c.l.b16 %v5751
        %v5932 = vunpack.c.l.b16 %v5752
        %v5933 = vunpack.c.l.b16 %v5753
        %v5934 = vunpack.c.l.b16 %v5754
        %v5935 = vunpack.c.l.b16 %v5755
        %v5936 = vunpack.c.l.b16 %v5756
        %v5937 = vunpack.c.l.b16 %v5757
        %v5938 = vunpack.c.l.b16 %v5758
        %v5939 = vunpack.c.l.b16 %v5759
        %v5940 = vpack.c.b16 %v5909, %v5908
        %v5941 = vpack.c.b16 %v5911, %v5910
        %v5942 = vpack.c.b16 %v5913, %v5912
        %v5943 = vpack.c.b16 %v5915, %v5914
        %v5944 = vpack.c.b16 %v5917, %v5916
        %v5945 = vpack.c.b16 %v5919, %v5918
        %v5946 = vpack.c.b16 %v5921, %v5920
        %v5947 = vpack.c.b16 %v5923, %v5922
        %v5948 = vpack.c.b16 %v5925, %v5924
        %v5949 = vpack.c.b16 %v5927, %v5926
        %v5950 = vpack.c.b16 %v5929, %v5928
        %v5951 = vpack.c.b16 %v5931, %v5930
        %v5952 = vpack.c.b16 %v5933, %v5932
        %v5953 = vpack.c.b16 %v5935, %v5934
        %v5954 = vpack.c.b16 %v5937, %v5936
        %v5955 = vpack.c.b16 %v5939, %v5938
        %v5988 = vunpack.c.l.b16 %v5860
        %v5989 = vunpack.c.l.b16 %v5861
        %v5990 = vunpack.c.l.b16 %v5862
        %v5991 = vunpack.c.l.b16 %v5863
        %v5992 = vunpack.c.l.b16 %v5864
        %v5993 = vunpack.c.l.b16 %v5865
        %v5994 = vunpack.c.l.b16 %v5866
        %v5995 = vunpack.c.l.b16 %v5867
        %v5996 = vunpack.c.l.b16 %v5868
        %v5997 = vunpack.c.l.b16 %v5869
        %v5998 = vunpack.c.l.b16 %v5870
        %v5999 = vunpack.c.l.b16 %v5871
        %v6000 = vunpack.c.l.b16 %v5872
        %v6001 = vunpack.c.l.b16 %v5873
        %v6002 = vunpack.c.l.b16 %v5874
        %v6003 = vunpack.c.l.b16 %v5875
        %v6004 = vpack.c.b16 %v5989, %v5988
        %v6005 = vpack.c.b16 %v5991, %v5990
        %v6006 = vpack.c.b16 %v5993, %v5992
        %v6007 = vpack.c.b16 %v5995, %v5994
        %v6008 = vpack.c.b16 %v5997, %v5996
        %v6009 = vpack.c.b16 %v5999, %v5998
        %v6010 = vpack.c.b16 %v6001, %v6000
        %v6011 = vpack.c.b16 %v6003, %v6002
        %6020 = vmatpush.bf16.msra.mxu0 %v6011
        %6021 = vmatpush.bf16.msra.mxu0 %v6010
        %6022 = vmatpush.bf16.msra.mxu0 %v6009
        %6023 = vmatpush.bf16.msra.mxu0 %v6008
        %6024 = vmatpush.bf16.msra.mxu0 %v6007
        %6025 = vmatpush.bf16.msra.mxu0 %v6006
        %6026 = vmatpush.bf16.msra.mxu0 %v6005
        %6027 = vmatpush.bf16.msra.mxu0 %v6004
        %6028 = vmatmul.bf16.gmra.mxu0 %v5940
        %v6029 = vpop.f32.mrf.mxu0
        %v6030 = vadd.f32 0.0, %v6029
        %v6031 = vpop.f32.mrf.mxu0
        %v6032 = vadd.f32 0.0, %v6031
        %6033 = vmatmul.bf16.gmra.mxu0 %v5941
        %v6034 = vpop.f32.mrf.mxu0
        %v6035 = vadd.f32 0.0, %v6034
        %v6036 = vpop.f32.mrf.mxu0
        %v6037 = vadd.f32 0.0, %v6036
        %6038 = vmatmul.bf16.gmra.mxu0 %v5942
        %v6039 = vpop.f32.mrf.mxu0
        %v6040 = vadd.f32 0.0, %v6039
        %v6041 = vpop.f32.mrf.mxu0
        %v6042 = vadd.f32 0.0, %v6041
        %6043 = vmatmul.bf16.gmra.mxu0 %v5943
        %v6044 = vpop.f32.mrf.mxu0
        %v6045 = vadd.f32 0.0, %v6044
        %v6046 = vpop.f32.mrf.mxu0
        %v6047 = vadd.f32 0.0, %v6046
        %6048 = vmatmul.bf16.gmra.mxu0 %v5944
        %v6049 = vpop.f32.mrf.mxu0
        %v6050 = vadd.f32 0.0, %v6049
        %v6051 = vpop.f32.mrf.mxu0
        %v6052 = vadd.f32 0.0, %v6051
        %6053 = vmatmul.bf16.gmra.mxu0 %v5945
        %v6054 = vpop.f32.mrf.mxu0
        %v6055 = vadd.f32 0.0, %v6054
        %v6056 = vpop.f32.mrf.mxu0
        %v6057 = vadd.f32 0.0, %v6056
        %6058 = vmatmul.bf16.gmra.mxu0 %v5946
        %v6059 = vpop.f32.mrf.mxu0
        %v6060 = vadd.f32 0.0, %v6059
        %v6061 = vpop.f32.mrf.mxu0
        %v6062 = vadd.f32 0.0, %v6061
        %6063 = vmatmul.bf16.gmra.mxu0 %v5947
        %v6064 = vpop.f32.mrf.mxu0
        %v6065 = vadd.f32 0.0, %v6064
        %v6066 = vpop.f32.mrf.mxu0
        %v6067 = vadd.f32 0.0, %v6066
        %6068 = vmatmul.bf16.gmra.mxu0 %v5948
        %v6069 = vpop.f32.mrf.mxu0
        %v6070 = vadd.f32 0.0, %v6069
        %v6071 = vpop.f32.mrf.mxu0
        %v6072 = vadd.f32 0.0, %v6071
        %6073 = vmatmul.bf16.gmra.mxu0 %v5949
        %v6074 = vpop.f32.mrf.mxu0
        %v6075 = vadd.f32 0.0, %v6074
        %v6076 = vpop.f32.mrf.mxu0
        %v6077 = vadd.f32 0.0, %v6076
        %6078 = vmatmul.bf16.gmra.mxu0 %v5950
        %v6079 = vpop.f32.mrf.mxu0
        %v6080 = vadd.f32 0.0, %v6079
        %v6081 = vpop.f32.mrf.mxu0
        %v6082 = vadd.f32 0.0, %v6081
        %6083 = vmatmul.bf16.gmra.mxu0 %v5951
        %v6084 = vpop.f32.mrf.mxu0
        %v6085 = vadd.f32 0.0, %v6084
        %v6086 = vpop.f32.mrf.mxu0
        %v6087 = vadd.f32 0.0, %v6086
        %6088 = vmatmul.bf16.gmra.mxu0 %v5952
        %v6089 = vpop.f32.mrf.mxu0
        %v6090 = vadd.f32 0.0, %v6089
        %v6091 = vpop.f32.mrf.mxu0
        %v6092 = vadd.f32 0.0, %v6091
        %6093 = vmatmul.bf16.gmra.mxu0 %v5953
        %v6094 = vpop.f32.mrf.mxu0
        %v6095 = vadd.f32 0.0, %v6094
        %v6096 = vpop.f32.mrf.mxu0
        %v6097 = vadd.f32 0.0, %v6096
        %6098 = vmatmul.bf16.gmra.mxu0 %v5954
        %v6099 = vpop.f32.mrf.mxu0
        %v6100 = vadd.f32 0.0, %v6099
        %v6101 = vpop.f32.mrf.mxu0
        %v6102 = vadd.f32 0.0, %v6101
        %6103 = vmatmul.bf16.gmra.mxu0 %v5955
        %v6104 = vpop.f32.mrf.mxu0
        %v6105 = vadd.f32 0.0, %v6104
        %v6106 = vpop.f32.mrf.mxu0
        %v6107 = vadd.f32 0.0, %v6106
        %6108 = vdwg.mxu0
        %v6110 = vshrl.u32 %v5826, 16
        %v6112 = vrot.slane %v6110, 3
        %v6113 = vshll.u32 %v5826, 16
        %v6115 = vrot.slane %v6113, 4
        %v6116 = vor.u32 %v6112, %v6115
        %v6118 = vshrl.u32 %v5827, 16
        %v6120 = vrot.slane %v6118, 3
        %v6121 = vshll.u32 %v5827, 16
        %v6123 = vrot.slane %v6121, 4
        %v6124 = vor.u32 %v6120, %v6123
        %v6125 = vsel %vm2017, %v6116, %v6124
        %v6127 = vshrl.u32 %v5828, 16
        %v6129 = vrot.slane %v6127, 3
        %v6130 = vshll.u32 %v5828, 16
        %v6132 = vrot.slane %v6130, 4
        %v6133 = vor.u32 %v6129, %v6132
        %v6134 = vsel %vm2017, %v6124, %v6133
        %v6136 = vshrl.u32 %v5829, 16
        %v6138 = vrot.slane %v6136, 3
        %v6139 = vshll.u32 %v5829, 16
        %v6141 = vrot.slane %v6139, 4
        %v6142 = vor.u32 %v6138, %v6141
        %v6143 = vsel %vm2017, %v6133, %v6142
        %v6145 = vshrl.u32 %v5830, 16
        %v6147 = vrot.slane %v6145, 3
        %v6148 = vshll.u32 %v5830, 16
        %v6150 = vrot.slane %v6148, 4
        %v6151 = vor.u32 %v6147, %v6150
        %v6152 = vsel %vm2017, %v6142, %v6151
        %v6154 = vshrl.u32 %v5831, 16
        %v6156 = vrot.slane %v6154, 3
        %v6157 = vshll.u32 %v5831, 16
        %v6159 = vrot.slane %v6157, 4
        %v6160 = vor.u32 %v6156, %v6159
        %v6161 = vsel %vm2017, %v6151, %v6160
        %v6163 = vshrl.u32 %v5832, 16
        %v6165 = vrot.slane %v6163, 3
        %v6166 = vshll.u32 %v5832, 16
        %v6168 = vrot.slane %v6166, 4
        %v6169 = vor.u32 %v6165, %v6168
        %v6170 = vsel %vm2017, %v6160, %v6169
        %v6172 = vshrl.u32 %v5833, 16
        %v6174 = vrot.slane %v6172, 3
        %v6175 = vshll.u32 %v5833, 16
        %v6177 = vrot.slane %v6175, 4
        %v6178 = vor.u32 %v6174, %v6177
        %v6179 = vsel %vm2017, %v6169, %v6178
        %v6181 = vshrl.u32 %v5834, 16
        %v6183 = vrot.slane %v6181, 3
        %v6184 = vshll.u32 %v5834, 16
        %v6186 = vrot.slane %v6184, 4
        %v6187 = vor.u32 %v6183, %v6186
        %v6188 = vsel %vm2017, %v6178, %v6187
        %v6190 = vshrl.u32 %v5835, 16
        %v6192 = vrot.slane %v6190, 3
        %v6193 = vshll.u32 %v5835, 16
        %v6195 = vrot.slane %v6193, 4
        %v6196 = vor.u32 %v6192, %v6195
        %v6197 = vsel %vm2017, %v6187, %v6196
        %v6199 = vshrl.u32 %v5836, 16
        %v6201 = vrot.slane %v6199, 3
        %v6202 = vshll.u32 %v5836, 16
        %v6204 = vrot.slane %v6202, 4
        %v6205 = vor.u32 %v6201, %v6204
        %v6206 = vsel %vm2017, %v6196, %v6205
        %v6208 = vshrl.u32 %v5837, 16
        %v6210 = vrot.slane %v6208, 3
        %v6211 = vshll.u32 %v5837, 16
        %v6213 = vrot.slane %v6211, 4
        %v6214 = vor.u32 %v6210, %v6213
        %v6215 = vsel %vm2017, %v6205, %v6214
        %v6217 = vshrl.u32 %v5838, 16
        %v6219 = vrot.slane %v6217, 3
        %v6220 = vshll.u32 %v5838, 16
        %v6222 = vrot.slane %v6220, 4
        %v6223 = vor.u32 %v6219, %v6222
        %v6224 = vsel %vm2017, %v6214, %v6223
        %v6226 = vshrl.u32 %v5839, 16
        %v6228 = vrot.slane %v6226, 3
        %v6229 = vshll.u32 %v5839, 16
        %v6231 = vrot.slane %v6229, 4
        %v6232 = vor.u32 %v6228, %v6231
        %v6233 = vsel %vm2017, %v6223, %v6232
        %v6235 = vshrl.u32 %v5840, 16
        %v6237 = vrot.slane %v6235, 3
        %v6238 = vshll.u32 %v5840, 16
        %v6240 = vrot.slane %v6238, 4
        %v6241 = vor.u32 %v6237, %v6240
        %v6242 = vsel %vm2017, %v6232, %v6241
        %v6244 = vshrl.u32 %v5841, 16
        %v6246 = vrot.slane %v6244, 3
        %v6247 = vshll.u32 %v5841, 16
        %v6249 = vrot.slane %v6247, 4
        %v6250 = vor.u32 %v6246, %v6249
        %v6251 = vsel %vm2017, %v6241, %v6250
        %v6253 = vshrl.u32 %v5842, 16
        %v6255 = vrot.slane %v6253, 3
        %v6256 = vshll.u32 %v5842, 16
        %v6258 = vrot.slane %v6256, 4
        %v6259 = vor.u32 %v6255, %v6258
        %v6260 = vsel %vm2017, %v6250, %v6259
        %v6293 = vunpack.c.l.b16 %v5843
        %v6294 = vunpack.c.l.b16 %v5844
        %v6295 = vunpack.c.l.b16 %v5845
        %v6296 = vunpack.c.l.b16 %v5846
        %v6297 = vunpack.c.l.b16 %v5847
        %v6298 = vunpack.c.l.b16 %v5848
        %v6299 = vunpack.c.l.b16 %v5849
        %v6300 = vunpack.c.l.b16 %v5850
        %v6301 = vunpack.c.l.b16 %v5851
        %v6302 = vunpack.c.l.b16 %v5852
        %v6303 = vunpack.c.l.b16 %v5853
        %v6304 = vunpack.c.l.b16 %v5854
        %v6305 = vunpack.c.l.b16 %v5855
        %v6306 = vunpack.c.l.b16 %v5856
        %v6307 = vunpack.c.l.b16 %v5857
        %v6308 = vunpack.c.l.b16 %v5858
        %v6309 = vpack.c.b16 %v6294, %v6293
        %v6310 = vpack.c.b16 %v6296, %v6295
        %v6311 = vpack.c.b16 %v6298, %v6297
        %v6312 = vpack.c.b16 %v6300, %v6299
        %v6313 = vpack.c.b16 %v6302, %v6301
        %v6314 = vpack.c.b16 %v6304, %v6303
        %v6315 = vpack.c.b16 %v6306, %v6305
        %v6316 = vpack.c.b16 %v6308, %v6307
        %6325 = vmatpush.bf16.msra.mxu0 %v6316
        %6326 = vmatpush.bf16.msra.mxu0 %v6315
        %6327 = vmatpush.bf16.msra.mxu0 %v6314
        %6328 = vmatpush.bf16.msra.mxu0 %v6313
        %6329 = vmatpush.bf16.msra.mxu0 %v6312
        %6330 = vmatpush.bf16.msra.mxu0 %v6311
        %6331 = vmatpush.bf16.msra.mxu0 %v6310
        %6332 = vmatpush.bf16.msra.mxu0 %v6309
        %6333 = vmatmul.bf16.gmra.mxu0 %v6125
        %v6334 = vpop.f32.mrf.mxu0
        %v6335 = vadd.f32 %v6030, %v6334
        %v6336 = vpop.f32.mrf.mxu0
        %v6337 = vadd.f32 %v6032, %v6336
        %6338 = vmatmul.bf16.gmra.mxu0 %v6134
        %v6339 = vpop.f32.mrf.mxu0
        %v6340 = vadd.f32 %v6035, %v6339
        %v6341 = vpop.f32.mrf.mxu0
        %v6342 = vadd.f32 %v6037, %v6341
        %6343 = vmatmul.bf16.gmra.mxu0 %v6143
        %v6344 = vpop.f32.mrf.mxu0
        %v6345 = vadd.f32 %v6040, %v6344
        %v6346 = vpop.f32.mrf.mxu0
        %v6347 = vadd.f32 %v6042, %v6346
        %6348 = vmatmul.bf16.gmra.mxu0 %v6152
        %v6349 = vpop.f32.mrf.mxu0
        %v6350 = vadd.f32 %v6045, %v6349
        %v6351 = vpop.f32.mrf.mxu0
        %v6352 = vadd.f32 %v6047, %v6351
        %6353 = vmatmul.bf16.gmra.mxu0 %v6161
        %v6354 = vpop.f32.mrf.mxu0
        %v6355 = vadd.f32 %v6050, %v6354
        %v6356 = vpop.f32.mrf.mxu0
        %v6357 = vadd.f32 %v6052, %v6356
        %6358 = vmatmul.bf16.gmra.mxu0 %v6170
        %v6359 = vpop.f32.mrf.mxu0
        %v6360 = vadd.f32 %v6055, %v6359
        %v6361 = vpop.f32.mrf.mxu0
        %v6362 = vadd.f32 %v6057, %v6361
        %6363 = vmatmul.bf16.gmra.mxu0 %v6179
        %v6364 = vpop.f32.mrf.mxu0
        %v6365 = vadd.f32 %v6060, %v6364
        %v6366 = vpop.f32.mrf.mxu0
        %v6367 = vadd.f32 %v6062, %v6366
        %6368 = vmatmul.bf16.gmra.mxu0 %v6188
        %v6369 = vpop.f32.mrf.mxu0
        %v6370 = vadd.f32 %v6065, %v6369
        %v6371 = vpop.f32.mrf.mxu0
        %v6372 = vadd.f32 %v6067, %v6371
        %6373 = vmatmul.bf16.gmra.mxu0 %v6197
        %v6374 = vpop.f32.mrf.mxu0
        %v6375 = vadd.f32 %v6070, %v6374
        %v6376 = vpop.f32.mrf.mxu0
        %v6377 = vadd.f32 %v6072, %v6376
        %6378 = vmatmul.bf16.gmra.mxu0 %v6206
        %v6379 = vpop.f32.mrf.mxu0
        %v6380 = vadd.f32 %v6075, %v6379
        %v6381 = vpop.f32.mrf.mxu0
        %v6382 = vadd.f32 %v6077, %v6381
        %6383 = vmatmul.bf16.gmra.mxu0 %v6215
        %v6384 = vpop.f32.mrf.mxu0
        %v6385 = vadd.f32 %v6080, %v6384
        %v6386 = vpop.f32.mrf.mxu0
        %v6387 = vadd.f32 %v6082, %v6386
        %6388 = vmatmul.bf16.gmra.mxu0 %v6224
        %v6389 = vpop.f32.mrf.mxu0
        %v6390 = vadd.f32 %v6085, %v6389
        %v6391 = vpop.f32.mrf.mxu0
        %v6392 = vadd.f32 %v6087, %v6391
        %6393 = vmatmul.bf16.gmra.mxu0 %v6233
        %v6394 = vpop.f32.mrf.mxu0
        %v6395 = vadd.f32 %v6090, %v6394
        %v6396 = vpop.f32.mrf.mxu0
        %v6397 = vadd.f32 %v6092, %v6396
        %6398 = vmatmul.bf16.gmra.mxu0 %v6242
        %v6399 = vpop.f32.mrf.mxu0
        %v6400 = vadd.f32 %v6095, %v6399
        %v6401 = vpop.f32.mrf.mxu0
        %v6402 = vadd.f32 %v6097, %v6401
        %6403 = vmatmul.bf16.gmra.mxu0 %v6251
        %v6404 = vpop.f32.mrf.mxu0
        %v6405 = vadd.f32 %v6100, %v6404
        %v6406 = vpop.f32.mrf.mxu0
        %v6407 = vadd.f32 %v6102, %v6406
        %6408 = vmatmul.bf16.gmra.mxu0 %v6260
        %v6409 = vpop.f32.mrf.mxu0
        %v6410 = vadd.f32 %v6105, %v6409
        %v6411 = vpop.f32.mrf.mxu0
        %v6412 = vadd.f32 %v6107, %v6411
        %6413 = vdwg.mxu0
        %v6414 = vld [vmem:[#allocation4 + $0x4] sm:$0xf]
        %v6415 = vld [vmem:[#allocation4 + $0x8] sm:$0xf]
        %v6416 = vld [vmem:[#allocation4 + $0xc] sm:$0xf]
        %v6417 = vld [vmem:[#allocation4 + $0x10] sm:$0xf]
        %v6418 = vld [vmem:[#allocation4 + $0x14] sm:$0xf]
        %v6419 = vld [vmem:[#allocation4 + $0x18] sm:$0xf]
        %v6420 = vld [vmem:[#allocation4 + $0x1c] sm:$0xf]
        %v6421 = vld [vmem:[#allocation4 + $0x20] sm:$0xf]
        %v6422 = vld [vmem:[#allocation4 + $0x24] sm:$0xf]
        %v6423 = vld [vmem:[#allocation4 + $0x28] sm:$0xf]
        %v6424 = vld [vmem:[#allocation4 + $0x2c] sm:$0xf]
        %v6425 = vld [vmem:[#allocation4 + $0x30] sm:$0xf]
        %v6426 = vld [vmem:[#allocation4 + $0x34] sm:$0xf]
        %v6427 = vld [vmem:[#allocation4 + $0x38] sm:$0xf]
        %v6428 = vld [vmem:[#allocation4 + $0x3c] sm:$0xf]
        %v6429 = vld [vmem:[#allocation4 + $0x40] sm:$0xf]
        %v6430 = vld [vmem:[#allocation4 + $0x44] sm:$0xf]
        %v6431 = vld [vmem:[#allocation4 + $0x48] sm:$0xf]
        %v6432 = vld [vmem:[#allocation4 + $0x4c] sm:$0xf]
        %v6433 = vld [vmem:[#allocation4 + $0x50] sm:$0xf]
        %v6434 = vld [vmem:[#allocation4 + $0x54] sm:$0xf]
        %v6435 = vld [vmem:[#allocation4 + $0x58] sm:$0xf]
        %v6436 = vld [vmem:[#allocation4 + $0x5c] sm:$0xf]
        %v6437 = vld [vmem:[#allocation4 + $0x60] sm:$0xf]
        %v6438 = vld [vmem:[#allocation4 + $0x64] sm:$0xf]
        %v6439 = vld [vmem:[#allocation4 + $0x68] sm:$0xf]
        %v6440 = vld [vmem:[#allocation4 + $0x6c] sm:$0xf]
        %v6441 = vld [vmem:[#allocation4 + $0x70] sm:$0xf]
        %v6442 = vld [vmem:[#allocation4 + $0x74] sm:$0xf]
        %v6443 = vld [vmem:[#allocation4 + $0x78] sm:$0xf]
        %v6444 = vld [vmem:[#allocation4 + $0x7c] sm:$0xf]
        %v6445 = vld [vmem:[#allocation4 + $0x80] sm:$0xf]
        %v6446 = vld [vmem:[#allocation4 + $0x84] sm:$0x1]
        %v6447 = vunpack.c.l.bf16 %v6414
        %v6448 = vunpack.c.l.bf16 %v6415
        %v6449 = vunpack.c.l.bf16 %v6416
        %v6450 = vunpack.c.l.bf16 %v6417
        %v6451 = vunpack.c.l.bf16 %v6418
        %v6452 = vunpack.c.l.bf16 %v6419
        %v6453 = vunpack.c.l.bf16 %v6420
        %v6454 = vunpack.c.l.bf16 %v6421
        %v6455 = vunpack.c.l.bf16 %v6422
        %v6456 = vunpack.c.l.bf16 %v6423
        %v6457 = vunpack.c.l.bf16 %v6424
        %v6458 = vunpack.c.l.bf16 %v6425
        %v6459 = vunpack.c.l.bf16 %v6426
        %v6460 = vunpack.c.l.bf16 %v6427
        %v6461 = vunpack.c.l.bf16 %v6428
        %v6462 = vunpack.c.l.bf16 %v6429
        %v6463 = vunpack.c.l.bf16 %v6430
        %v6464 = vunpack.c.l.bf16 %v6431
        %v6465 = vunpack.c.l.bf16 %v6432
        %v6466 = vunpack.c.l.bf16 %v6433
        %v6467 = vunpack.c.l.bf16 %v6434
        %v6468 = vunpack.c.l.bf16 %v6435
        %v6469 = vunpack.c.l.bf16 %v6436
        %v6470 = vunpack.c.l.bf16 %v6437
        %v6471 = vunpack.c.l.bf16 %v6438
        %v6472 = vunpack.c.l.bf16 %v6439
        %v6473 = vunpack.c.l.bf16 %v6440
        %v6474 = vunpack.c.l.bf16 %v6441
        %v6475 = vunpack.c.l.bf16 %v6442
        %v6476 = vunpack.c.l.bf16 %v6443
        %v6477 = vunpack.c.l.bf16 %v6444
        %v6478 = vunpack.c.l.bf16 %v6445
        %v6479 = vunpack.c.l.bf16 %v6446
        %v6480 = vmul.f32 %v6447, %v2710
        %v6481 = vmul.f32 %v6448, %v2712
        %v6482 = vmul.f32 %v6449, %v2714
        %v6483 = vmul.f32 %v6450, %v2716
        %v6484 = vmul.f32 %v6451, %v2718
        %v6485 = vmul.f32 %v6452, %v2720
        %v6486 = vmul.f32 %v6453, %v2722
        %v6487 = vmul.f32 %v6454, %v2724
        %v6488 = vmul.f32 %v6455, %v2726
        %v6489 = vmul.f32 %v6456, %v2728
        %v6490 = vmul.f32 %v6457, %v2730
        %v6491 = vmul.f32 %v6458, %v2732
        %v6492 = vmul.f32 %v6459, %v2734
        %v6493 = vmul.f32 %v6460, %v2736
        %v6494 = vmul.f32 %v6461, %v2738
        %v6495 = vmul.f32 %v6462, %v2740
        %v6496 = vmul.f32 %v6463, %v2742
        %v6497 = vmul.f32 %v6464, %v2744
        %v6498 = vmul.f32 %v6465, %v2746
        %v6499 = vmul.f32 %v6466, %v2748
        %v6500 = vmul.f32 %v6467, %v2750
        %v6501 = vmul.f32 %v6468, %v2752
        %v6502 = vmul.f32 %v6469, %v2754
        %v6503 = vmul.f32 %v6470, %v2756
        %v6504 = vmul.f32 %v6471, %v2758
        %v6505 = vmul.f32 %v6472, %v2760
        %v6506 = vmul.f32 %v6473, %v2762
        %v6507 = vmul.f32 %v6474, %v2764
        %v6508 = vmul.f32 %v6475, %v2766
        %v6509 = vmul.f32 %v6476, %v2768
        %v6510 = vmul.f32 %v6477, %v2770
        %v6511 = vmul.f32 %v6478, %v2772
        %v6512 = vmul.f32 %v6479, %v2771
        %v6513 = vpack.c.bf16 %v6481, %v6480
        %v6514 = vpack.c.bf16 %v6483, %v6482
        %v6515 = vpack.c.bf16 %v6485, %v6484
        %v6516 = vpack.c.bf16 %v6487, %v6486
        %v6517 = vpack.c.bf16 %v6489, %v6488
        %v6518 = vpack.c.bf16 %v6491, %v6490
        %v6519 = vpack.c.bf16 %v6493, %v6492
        %v6520 = vpack.c.bf16 %v6495, %v6494
        %v6521 = vpack.c.bf16 %v6497, %v6496
        %v6522 = vpack.c.bf16 %v6499, %v6498
        %v6523 = vpack.c.bf16 %v6501, %v6500
        %v6524 = vpack.c.bf16 %v6503, %v6502
        %v6525 = vpack.c.bf16 %v6505, %v6504
        %v6526 = vpack.c.bf16 %v6507, %v6506
        %v6527 = vpack.c.bf16 %v6509, %v6508
        %v6528 = vpack.c.bf16 %v6511, %v6510
        %v6529 = vpack.c.bf16 %v6512, %v6512
        %s6530 = scalar_lea.vmem [#allocation7], 128
        %v6531 = vld [vmem:[%s6530] sm:$0xf]
        %v6532 = vld [vmem:[%s6530 + $0x4] sm:$0xf]
        %v6533 = vld [vmem:[%s6530 + $0x8] sm:$0xf]
        %v6534 = vld [vmem:[%s6530 + $0xc] sm:$0xf]
        %v6535 = vld [vmem:[%s6530 + $0x10] sm:$0xf]
        %v6536 = vld [vmem:[%s6530 + $0x14] sm:$0xf]
        %v6537 = vld [vmem:[%s6530 + $0x18] sm:$0xf]
        %v6538 = vld [vmem:[%s6530 + $0x1c] sm:$0xf]
        %v6539 = vld [vmem:[%s6530 + $0x20] sm:$0xf]
        %v6540 = vld [vmem:[%s6530 + $0x24] sm:$0xf]
        %v6541 = vld [vmem:[%s6530 + $0x28] sm:$0xf]
        %v6542 = vld [vmem:[%s6530 + $0x2c] sm:$0xf]
        %v6543 = vld [vmem:[%s6530 + $0x30] sm:$0xf]
        %v6544 = vld [vmem:[%s6530 + $0x34] sm:$0xf]
        %v6545 = vld [vmem:[%s6530 + $0x38] sm:$0xf]
        %v6546 = vld [vmem:[%s6530 + $0x3c] sm:$0xf]
        %v6548 = vshrl.u32 %v6513, 16
        %v6550 = vshll.u32 %v6513, 16
        %v6552 = vrot.slane %v6550, 1
        %v6553 = vor.u32 %v6548, %v6552
        %v6555 = vshll.u32 %v6514, 16
        %v6557 = vrot.slane %v6555, 1
        %v6558 = vsel %vm2873, %v6553, %v6557
        %v6559 = vshrl.u32 %v6514, 16
        %v6561 = vor.u32 %v6559, %v6557
        %v6563 = vshll.u32 %v6515, 16
        %v6565 = vrot.slane %v6563, 1
        %v6566 = vsel %vm2873, %v6561, %v6565
        %v6567 = vshrl.u32 %v6515, 16
        %v6569 = vor.u32 %v6567, %v6565
        %v6571 = vshll.u32 %v6516, 16
        %v6573 = vrot.slane %v6571, 1
        %v6574 = vsel %vm2873, %v6569, %v6573
        %v6575 = vshrl.u32 %v6516, 16
        %v6577 = vor.u32 %v6575, %v6573
        %v6579 = vshll.u32 %v6517, 16
        %v6581 = vrot.slane %v6579, 1
        %v6582 = vsel %vm2873, %v6577, %v6581
        %v6583 = vshrl.u32 %v6517, 16
        %v6585 = vor.u32 %v6583, %v6581
        %v6587 = vshll.u32 %v6518, 16
        %v6589 = vrot.slane %v6587, 1
        %v6590 = vsel %vm2873, %v6585, %v6589
        %v6591 = vshrl.u32 %v6518, 16
        %v6593 = vor.u32 %v6591, %v6589
        %v6595 = vshll.u32 %v6519, 16
        %v6597 = vrot.slane %v6595, 1
        %v6598 = vsel %vm2873, %v6593, %v6597
        %v6599 = vshrl.u32 %v6519, 16
        %v6601 = vor.u32 %v6599, %v6597
        %v6603 = vshll.u32 %v6520, 16
        %v6605 = vrot.slane %v6603, 1
        %v6606 = vsel %vm2873, %v6601, %v6605
        %v6607 = vshrl.u32 %v6520, 16
        %v6609 = vor.u32 %v6607, %v6605
        %v6611 = vshll.u32 %v6521, 16
        %v6613 = vrot.slane %v6611, 1
        %v6614 = vsel %vm2873, %v6609, %v6613
        %v6615 = vshrl.u32 %v6521, 16
        %v6617 = vor.u32 %v6615, %v6613
        %v6619 = vshll.u32 %v6522, 16
        %v6621 = vrot.slane %v6619, 1
        %v6622 = vsel %vm2873, %v6617, %v6621
        %v6623 = vshrl.u32 %v6522, 16
        %v6625 = vor.u32 %v6623, %v6621
        %v6627 = vshll.u32 %v6523, 16
        %v6629 = vrot.slane %v6627, 1
        %v6630 = vsel %vm2873, %v6625, %v6629
        %v6631 = vshrl.u32 %v6523, 16
        %v6633 = vor.u32 %v6631, %v6629
        %v6635 = vshll.u32 %v6524, 16
        %v6637 = vrot.slane %v6635, 1
        %v6638 = vsel %vm2873, %v6633, %v6637
        %v6639 = vshrl.u32 %v6524, 16
        %v6641 = vor.u32 %v6639, %v6637
        %v6643 = vshll.u32 %v6525, 16
        %v6645 = vrot.slane %v6643, 1
        %v6646 = vsel %vm2873, %v6641, %v6645
        %v6647 = vshrl.u32 %v6525, 16
        %v6649 = vor.u32 %v6647, %v6645
        %v6651 = vshll.u32 %v6526, 16
        %v6653 = vrot.slane %v6651, 1
        %v6654 = vsel %vm2873, %v6649, %v6653
        %v6655 = vshrl.u32 %v6526, 16
        %v6657 = vor.u32 %v6655, %v6653
        %v6659 = vshll.u32 %v6527, 16
        %v6661 = vrot.slane %v6659, 1
        %v6662 = vsel %vm2873, %v6657, %v6661
        %v6663 = vshrl.u32 %v6527, 16
        %v6665 = vor.u32 %v6663, %v6661
        %v6667 = vshll.u32 %v6528, 16
        %v6669 = vrot.slane %v6667, 1
        %v6670 = vsel %vm2873, %v6665, %v6669
        %v6671 = vshrl.u32 %v6528, 16
        %v6673 = vor.u32 %v6671, %v6669
        %v6675 = vshll.u32 %v6529, 16
        %v6677 = vrot.slane %v6675, 1
        %v6678 = vsel %vm2873, %v6673, %v6677
        %v6711 = vunpack.c.l.b16 %v6531
        %v6712 = vunpack.c.l.b16 %v6532
        %v6713 = vunpack.c.l.b16 %v6533
        %v6714 = vunpack.c.l.b16 %v6534
        %v6715 = vunpack.c.l.b16 %v6535
        %v6716 = vunpack.c.l.b16 %v6536
        %v6717 = vunpack.c.l.b16 %v6537
        %v6718 = vunpack.c.l.b16 %v6538
        %v6719 = vunpack.c.l.b16 %v6539
        %v6720 = vunpack.c.l.b16 %v6540
        %v6721 = vunpack.c.l.b16 %v6541
        %v6722 = vunpack.c.l.b16 %v6542
        %v6723 = vunpack.c.l.b16 %v6543
        %v6724 = vunpack.c.l.b16 %v6544
        %v6725 = vunpack.c.l.b16 %v6545
        %v6726 = vunpack.c.l.b16 %v6546
        %v6727 = vpack.c.b16 %v6712, %v6711
        %v6728 = vpack.c.b16 %v6714, %v6713
        %v6729 = vpack.c.b16 %v6716, %v6715
        %v6730 = vpack.c.b16 %v6718, %v6717
        %v6731 = vpack.c.b16 %v6720, %v6719
        %v6732 = vpack.c.b16 %v6722, %v6721
        %v6733 = vpack.c.b16 %v6724, %v6723
        %v6734 = vpack.c.b16 %v6726, %v6725
        %6743 = vmatpush.bf16.msra.mxu0 %v6734
        %6744 = vmatpush.bf16.msra.mxu0 %v6733
        %6745 = vmatpush.bf16.msra.mxu0 %v6732
        %6746 = vmatpush.bf16.msra.mxu0 %v6731
        %6747 = vmatpush.bf16.msra.mxu0 %v6730
        %6748 = vmatpush.bf16.msra.mxu0 %v6729
        %6749 = vmatpush.bf16.msra.mxu0 %v6728
        %6750 = vmatpush.bf16.msra.mxu0 %v6727
        %6751 = vmatmul.bf16.gmra.mxu0 %v6558
        %v6752 = vpop.f32.mrf.mxu0
        %v6753 = vadd.f32 0.0, %v6752
        %v6754 = vpop.f32.mrf.mxu0
        %v6755 = vadd.f32 0.0, %v6754
        %6756 = vmatmul.bf16.gmra.mxu0 %v6566
        %v6757 = vpop.f32.mrf.mxu0
        %v6758 = vadd.f32 0.0, %v6757
        %v6759 = vpop.f32.mrf.mxu0
        %v6760 = vadd.f32 0.0, %v6759
        %6761 = vmatmul.bf16.gmra.mxu0 %v6574
        %v6762 = vpop.f32.mrf.mxu0
        %v6763 = vadd.f32 0.0, %v6762
        %v6764 = vpop.f32.mrf.mxu0
        %v6765 = vadd.f32 0.0, %v6764
        %6766 = vmatmul.bf16.gmra.mxu0 %v6582
        %v6767 = vpop.f32.mrf.mxu0
        %v6768 = vadd.f32 0.0, %v6767
        %v6769 = vpop.f32.mrf.mxu0
        %v6770 = vadd.f32 0.0, %v6769
        %6771 = vmatmul.bf16.gmra.mxu0 %v6590
        %v6772 = vpop.f32.mrf.mxu0
        %v6773 = vadd.f32 0.0, %v6772
        %v6774 = vpop.f32.mrf.mxu0
        %v6775 = vadd.f32 0.0, %v6774
        %6776 = vmatmul.bf16.gmra.mxu0 %v6598
        %v6777 = vpop.f32.mrf.mxu0
        %v6778 = vadd.f32 0.0, %v6777
        %v6779 = vpop.f32.mrf.mxu0
        %v6780 = vadd.f32 0.0, %v6779
        %6781 = vmatmul.bf16.gmra.mxu0 %v6606
        %v6782 = vpop.f32.mrf.mxu0
        %v6783 = vadd.f32 0.0, %v6782
        %v6784 = vpop.f32.mrf.mxu0
        %v6785 = vadd.f32 0.0, %v6784
        %6786 = vmatmul.bf16.gmra.mxu0 %v6614
        %v6787 = vpop.f32.mrf.mxu0
        %v6788 = vadd.f32 0.0, %v6787
        %v6789 = vpop.f32.mrf.mxu0
        %v6790 = vadd.f32 0.0, %v6789
        %6791 = vmatmul.bf16.gmra.mxu0 %v6622
        %v6792 = vpop.f32.mrf.mxu0
        %v6793 = vadd.f32 0.0, %v6792
        %v6794 = vpop.f32.mrf.mxu0
        %v6795 = vadd.f32 0.0, %v6794
        %6796 = vmatmul.bf16.gmra.mxu0 %v6630
        %v6797 = vpop.f32.mrf.mxu0
        %v6798 = vadd.f32 0.0, %v6797
        %v6799 = vpop.f32.mrf.mxu0
        %v6800 = vadd.f32 0.0, %v6799
        %6801 = vmatmul.bf16.gmra.mxu0 %v6638
        %v6802 = vpop.f32.mrf.mxu0
        %v6803 = vadd.f32 0.0, %v6802
        %v6804 = vpop.f32.mrf.mxu0
        %v6805 = vadd.f32 0.0, %v6804
        %6806 = vmatmul.bf16.gmra.mxu0 %v6646
        %v6807 = vpop.f32.mrf.mxu0
        %v6808 = vadd.f32 0.0, %v6807
        %v6809 = vpop.f32.mrf.mxu0
        %v6810 = vadd.f32 0.0, %v6809
        %6811 = vmatmul.bf16.gmra.mxu0 %v6654
        %v6812 = vpop.f32.mrf.mxu0
        %v6813 = vadd.f32 0.0, %v6812
        %v6814 = vpop.f32.mrf.mxu0
        %v6815 = vadd.f32 0.0, %v6814
        %6816 = vmatmul.bf16.gmra.mxu0 %v6662
        %v6817 = vpop.f32.mrf.mxu0
        %v6818 = vadd.f32 0.0, %v6817
        %v6819 = vpop.f32.mrf.mxu0
        %v6820 = vadd.f32 0.0, %v6819
        %6821 = vmatmul.bf16.gmra.mxu0 %v6670
        %v6822 = vpop.f32.mrf.mxu0
        %v6823 = vadd.f32 0.0, %v6822
        %v6824 = vpop.f32.mrf.mxu0
        %v6825 = vadd.f32 0.0, %v6824
        %6826 = vmatmul.bf16.gmra.mxu0 %v6678
        %v6827 = vpop.f32.mrf.mxu0
        %v6828 = vadd.f32 0.0, %v6827
        %v6829 = vpop.f32.mrf.mxu0
        %v6830 = vadd.f32 0.0, %v6829
        %6831 = vdwg.mxu0
        %v6832 = vadd.f32 %v6335, %v6753
        %v6833 = vadd.f32 %v6337, %v6755
        %v6834 = vadd.f32 %v6340, %v6758
        %v6835 = vadd.f32 %v6342, %v6760
        %v6836 = vadd.f32 %v6345, %v6763
        %v6837 = vadd.f32 %v6347, %v6765
        %v6838 = vadd.f32 %v6350, %v6768
        %v6839 = vadd.f32 %v6352, %v6770
        %v6840 = vadd.f32 %v6355, %v6773
        %v6841 = vadd.f32 %v6357, %v6775
        %v6842 = vadd.f32 %v6360, %v6778
        %v6843 = vadd.f32 %v6362, %v6780
        %v6844 = vadd.f32 %v6365, %v6783
        %v6845 = vadd.f32 %v6367, %v6785
        %v6846 = vadd.f32 %v6370, %v6788
        %v6847 = vadd.f32 %v6372, %v6790
        %v6848 = vadd.f32 %v6375, %v6793
        %v6849 = vadd.f32 %v6377, %v6795
        %v6850 = vadd.f32 %v6380, %v6798
        %v6851 = vadd.f32 %v6382, %v6800
        %v6852 = vadd.f32 %v6385, %v6803
        %v6853 = vadd.f32 %v6387, %v6805
        %v6854 = vadd.f32 %v6390, %v6808
        %v6855 = vadd.f32 %v6392, %v6810
        %v6856 = vadd.f32 %v6395, %v6813
        %v6857 = vadd.f32 %v6397, %v6815
        %v6858 = vadd.f32 %v6400, %v6818
        %v6859 = vadd.f32 %v6402, %v6820
        %v6860 = vadd.f32 %v6405, %v6823
        %v6861 = vadd.f32 %v6407, %v6825
        %v6862 = vadd.f32 %v6410, %v6828
        %v6863 = vadd.f32 %v6412, %v6830
        %v6864 = vld [vmem:[#allocation4 + $0x8] sm:$0x8]
        %v6865 = vld [vmem:[#allocation4 + $0xc] sm:$0xf]
        %v6866 = vld [vmem:[#allocation4 + $0x10] sm:$0xf]
        %v6867 = vld [vmem:[#allocation4 + $0x14] sm:$0xf]
        %v6868 = vld [vmem:[#allocation4 + $0x18] sm:$0xf]
        %v6869 = vld [vmem:[#allocation4 + $0x1c] sm:$0xf]
        %v6870 = vld [vmem:[#allocation4 + $0x20] sm:$0xf]
        %v6871 = vld [vmem:[#allocation4 + $0x24] sm:$0xf]
        %v6872 = vld [vmem:[#allocation4 + $0x28] sm:$0xf]
        %v6873 = vld [vmem:[#allocation4 + $0x2c] sm:$0xf]
        %v6874 = vld [vmem:[#allocation4 + $0x30] sm:$0xf]
        %v6875 = vld [vmem:[#allocation4 + $0x34] sm:$0xf]
        %v6876 = vld [vmem:[#allocation4 + $0x38] sm:$0xf]
        %v6877 = vld [vmem:[#allocation4 + $0x3c] sm:$0xf]
        %v6878 = vld [vmem:[#allocation4 + $0x40] sm:$0xf]
        %v6879 = vld [vmem:[#allocation4 + $0x44] sm:$0xf]
        %v6880 = vld [vmem:[#allocation4 + $0x48] sm:$0xf]
        %v6881 = vld [vmem:[#allocation4 + $0x4c] sm:$0xf]
        %v6882 = vld [vmem:[#allocation4 + $0x50] sm:$0xf]
        %v6883 = vld [vmem:[#allocation4 + $0x54] sm:$0xf]
        %v6884 = vld [vmem:[#allocation4 + $0x58] sm:$0xf]
        %v6885 = vld [vmem:[#allocation4 + $0x5c] sm:$0xf]
        %v6886 = vld [vmem:[#allocation4 + $0x60] sm:$0xf]
        %v6887 = vld [vmem:[#allocation4 + $0x64] sm:$0xf]
        %v6888 = vld [vmem:[#allocation4 + $0x68] sm:$0xf]
        %v6889 = vld [vmem:[#allocation4 + $0x6c] sm:$0xf]
        %v6890 = vld [vmem:[#allocation4 + $0x70] sm:$0xf]
        %v6891 = vld [vmem:[#allocation4 + $0x74] sm:$0xf]
        %v6892 = vld [vmem:[#allocation4 + $0x78] sm:$0xf]
        %v6893 = vld [vmem:[#allocation4 + $0x7c] sm:$0xf]
        %v6894 = vld [vmem:[#allocation4 + $0x80] sm:$0xf]
        %v6895 = vld [vmem:[#allocation4 + $0x84] sm:$0xf]
        %v6896 = vld [vmem:[#allocation4 + $0x88] sm:$0xf]
        %v6897 = vunpack.c.l.bf16 %v6864
        %v6898 = vunpack.c.l.bf16 %v6865
        %v6899 = vunpack.c.l.bf16 %v6866
        %v6900 = vunpack.c.l.bf16 %v6867
        %v6901 = vunpack.c.l.bf16 %v6868
        %v6902 = vunpack.c.l.bf16 %v6869
        %v6903 = vunpack.c.l.bf16 %v6870
        %v6904 = vunpack.c.l.bf16 %v6871
        %v6905 = vunpack.c.l.bf16 %v6872
        %v6906 = vunpack.c.l.bf16 %v6873
        %v6907 = vunpack.c.l.bf16 %v6874
        %v6908 = vunpack.c.l.bf16 %v6875
        %v6909 = vunpack.c.l.bf16 %v6876
        %v6910 = vunpack.c.l.bf16 %v6877
        %v6911 = vunpack.c.l.bf16 %v6878
        %v6912 = vunpack.c.l.bf16 %v6879
        %v6913 = vunpack.c.l.bf16 %v6880
        %v6914 = vunpack.c.l.bf16 %v6881
        %v6915 = vunpack.c.l.bf16 %v6882
        %v6916 = vunpack.c.l.bf16 %v6883
        %v6917 = vunpack.c.l.bf16 %v6884
        %v6918 = vunpack.c.l.bf16 %v6885
        %v6919 = vunpack.c.l.bf16 %v6886
        %v6920 = vunpack.c.l.bf16 %v6887
        %v6921 = vunpack.c.l.bf16 %v6888
        %v6922 = vunpack.c.l.bf16 %v6889
        %v6923 = vunpack.c.l.bf16 %v6890
        %v6924 = vunpack.c.l.bf16 %v6891
        %v6925 = vunpack.c.l.bf16 %v6892
        %v6926 = vunpack.c.l.bf16 %v6893
        %v6927 = vunpack.c.l.bf16 %v6894
        %v6928 = vunpack.c.l.bf16 %v6895
        %v6929 = vunpack.c.l.bf16 %v6896
        %v6930 = vmul.f32 %v6897, %v1605
        %v6931 = vmul.f32 %v6898, %v1607
        %v6932 = vmul.f32 %v6899, %v1609
        %v6933 = vmul.f32 %v6900, %v1611
        %v6934 = vmul.f32 %v6901, %v1613
        %v6935 = vmul.f32 %v6902, %v1615
        %v6936 = vmul.f32 %v6903, %v1617
        %v6937 = vmul.f32 %v6904, %v1619
        %v6938 = vmul.f32 %v6905, %v1621
        %v6939 = vmul.f32 %v6906, %v1623
        %v6940 = vmul.f32 %v6907, %v1625
        %v6941 = vmul.f32 %v6908, %v1627
        %v6942 = vmul.f32 %v6909, %v1629
        %v6943 = vmul.f32 %v6910, %v1631
        %v6944 = vmul.f32 %v6911, %v1633
        %v6945 = vmul.f32 %v6912, %v1635
        %v6946 = vmul.f32 %v6913, %v1637
        %v6947 = vmul.f32 %v6914, %v1639
        %v6948 = vmul.f32 %v6915, %v1641
        %v6949 = vmul.f32 %v6916, %v1643
        %v6950 = vmul.f32 %v6917, %v1645
        %v6951 = vmul.f32 %v6918, %v1647
        %v6952 = vmul.f32 %v6919, %v1649
        %v6953 = vmul.f32 %v6920, %v1651
        %v6954 = vmul.f32 %v6921, %v1653
        %v6955 = vmul.f32 %v6922, %v1655
        %v6956 = vmul.f32 %v6923, %v1657
        %v6957 = vmul.f32 %v6924, %v1659
        %v6958 = vmul.f32 %v6925, %v1661
        %v6959 = vmul.f32 %v6926, %v1663
        %v6960 = vmul.f32 %v6927, %v1665
        %v6961 = vmul.f32 %v6928, %v1667
        %v6962 = vmul.f32 %v6929, %v1666
        %v6963 = vpack.c.bf16 %v6931, %v6930
        %v6964 = vpack.c.bf16 %v6933, %v6932
        %v6965 = vpack.c.bf16 %v6935, %v6934
        %v6966 = vpack.c.bf16 %v6937, %v6936
        %v6967 = vpack.c.bf16 %v6939, %v6938
        %v6968 = vpack.c.bf16 %v6941, %v6940
        %v6969 = vpack.c.bf16 %v6943, %v6942
        %v6970 = vpack.c.bf16 %v6945, %v6944
        %v6971 = vpack.c.bf16 %v6947, %v6946
        %v6972 = vpack.c.bf16 %v6949, %v6948
        %v6973 = vpack.c.bf16 %v6951, %v6950
        %v6974 = vpack.c.bf16 %v6953, %v6952
        %v6975 = vpack.c.bf16 %v6955, %v6954
        %v6976 = vpack.c.bf16 %v6957, %v6956
        %v6977 = vpack.c.bf16 %v6959, %v6958
        %v6978 = vpack.c.bf16 %v6961, %v6960
        %v6979 = vpack.c.bf16 %v6962, %v6962
        %s6980 = scalar_lea.vmem [#allocation7], 192
        %v6981 = vld [vmem:[%s6980] sm:$0xf]
        %v6982 = vld [vmem:[%s6980 + $0x4] sm:$0xf]
        %v6983 = vld [vmem:[%s6980 + $0x8] sm:$0xf]
        %v6984 = vld [vmem:[%s6980 + $0xc] sm:$0xf]
        %v6985 = vld [vmem:[%s6980 + $0x10] sm:$0xf]
        %v6986 = vld [vmem:[%s6980 + $0x14] sm:$0xf]
        %v6987 = vld [vmem:[%s6980 + $0x18] sm:$0xf]
        %v6988 = vld [vmem:[%s6980 + $0x1c] sm:$0xf]
        %v6989 = vld [vmem:[%s6980 + $0x20] sm:$0xf]
        %v6990 = vld [vmem:[%s6980 + $0x24] sm:$0xf]
        %v6991 = vld [vmem:[%s6980 + $0x28] sm:$0xf]
        %v6992 = vld [vmem:[%s6980 + $0x2c] sm:$0xf]
        %v6993 = vld [vmem:[%s6980 + $0x30] sm:$0xf]
        %v6994 = vld [vmem:[%s6980 + $0x34] sm:$0xf]
        %v6995 = vld [vmem:[%s6980 + $0x38] sm:$0xf]
        %v6996 = vld [vmem:[%s6980 + $0x3c] sm:$0xf]
        %v6998 = vshrl.u32 %v6963, 16
        %v7000 = vrot.slane %v6998, 3
        %v7001 = vshll.u32 %v6963, 16
        %v7003 = vrot.slane %v7001, 4
        %v7004 = vor.u32 %v7000, %v7003
        %v7006 = vshrl.u32 %v6964, 16
        %v7008 = vrot.slane %v7006, 3
        %v7009 = vshll.u32 %v6964, 16
        %v7011 = vrot.slane %v7009, 4
        %v7012 = vor.u32 %v7008, %v7011
        %v7013 = vsel %vm2017, %v7004, %v7012
        %v7015 = vshrl.u32 %v6965, 16
        %v7017 = vrot.slane %v7015, 3
        %v7018 = vshll.u32 %v6965, 16
        %v7020 = vrot.slane %v7018, 4
        %v7021 = vor.u32 %v7017, %v7020
        %v7022 = vsel %vm2017, %v7012, %v7021
        %v7024 = vshrl.u32 %v6966, 16
        %v7026 = vrot.slane %v7024, 3
        %v7027 = vshll.u32 %v6966, 16
        %v7029 = vrot.slane %v7027, 4
        %v7030 = vor.u32 %v7026, %v7029
        %v7031 = vsel %vm2017, %v7021, %v7030
        %v7033 = vshrl.u32 %v6967, 16
        %v7035 = vrot.slane %v7033, 3
        %v7036 = vshll.u32 %v6967, 16
        %v7038 = vrot.slane %v7036, 4
        %v7039 = vor.u32 %v7035, %v7038
        %v7040 = vsel %vm2017, %v7030, %v7039
        %v7042 = vshrl.u32 %v6968, 16
        %v7044 = vrot.slane %v7042, 3
        %v7045 = vshll.u32 %v6968, 16
        %v7047 = vrot.slane %v7045, 4
        %v7048 = vor.u32 %v7044, %v7047
        %v7049 = vsel %vm2017, %v7039, %v7048
        %v7051 = vshrl.u32 %v6969, 16
        %v7053 = vrot.slane %v7051, 3
        %v7054 = vshll.u32 %v6969, 16
        %v7056 = vrot.slane %v7054, 4
        %v7057 = vor.u32 %v7053, %v7056
        %v7058 = vsel %vm2017, %v7048, %v7057
        %v7060 = vshrl.u32 %v6970, 16
        %v7062 = vrot.slane %v7060, 3
        %v7063 = vshll.u32 %v6970, 16
        %v7065 = vrot.slane %v7063, 4
        %v7066 = vor.u32 %v7062, %v7065
        %v7067 = vsel %vm2017, %v7057, %v7066
        %v7069 = vshrl.u32 %v6971, 16
        %v7071 = vrot.slane %v7069, 3
        %v7072 = vshll.u32 %v6971, 16
        %v7074 = vrot.slane %v7072, 4
        %v7075 = vor.u32 %v7071, %v7074
        %v7076 = vsel %vm2017, %v7066, %v7075
        %v7078 = vshrl.u32 %v6972, 16
        %v7080 = vrot.slane %v7078, 3
        %v7081 = vshll.u32 %v6972, 16
        %v7083 = vrot.slane %v7081, 4
        %v7084 = vor.u32 %v7080, %v7083
        %v7085 = vsel %vm2017, %v7075, %v7084
        %v7087 = vshrl.u32 %v6973, 16
        %v7089 = vrot.slane %v7087, 3
        %v7090 = vshll.u32 %v6973, 16
        %v7092 = vrot.slane %v7090, 4
        %v7093 = vor.u32 %v7089, %v7092
        %v7094 = vsel %vm2017, %v7084, %v7093
        %v7096 = vshrl.u32 %v6974, 16
        %v7098 = vrot.slane %v7096, 3
        %v7099 = vshll.u32 %v6974, 16
        %v7101 = vrot.slane %v7099, 4
        %v7102 = vor.u32 %v7098, %v7101
        %v7103 = vsel %vm2017, %v7093, %v7102
        %v7105 = vshrl.u32 %v6975, 16
        %v7107 = vrot.slane %v7105, 3
        %v7108 = vshll.u32 %v6975, 16
        %v7110 = vrot.slane %v7108, 4
        %v7111 = vor.u32 %v7107, %v7110
        %v7112 = vsel %vm2017, %v7102, %v7111
        %v7114 = vshrl.u32 %v6976, 16
        %v7116 = vrot.slane %v7114, 3
        %v7117 = vshll.u32 %v6976, 16
        %v7119 = vrot.slane %v7117, 4
        %v7120 = vor.u32 %v7116, %v7119
        %v7121 = vsel %vm2017, %v7111, %v7120
        %v7123 = vshrl.u32 %v6977, 16
        %v7125 = vrot.slane %v7123, 3
        %v7126 = vshll.u32 %v6977, 16
        %v7128 = vrot.slane %v7126, 4
        %v7129 = vor.u32 %v7125, %v7128
        %v7130 = vsel %vm2017, %v7120, %v7129
        %v7132 = vshrl.u32 %v6978, 16
        %v7134 = vrot.slane %v7132, 3
        %v7135 = vshll.u32 %v6978, 16
        %v7137 = vrot.slane %v7135, 4
        %v7138 = vor.u32 %v7134, %v7137
        %v7139 = vsel %vm2017, %v7129, %v7138
        %v7141 = vshrl.u32 %v6979, 16
        %v7143 = vrot.slane %v7141, 3
        %v7144 = vshll.u32 %v6979, 16
        %v7146 = vrot.slane %v7144, 4
        %v7147 = vor.u32 %v7143, %v7146
        %v7148 = vsel %vm2017, %v7138, %v7147
        %v7181 = vunpack.c.l.b16 %v6981
        %v7182 = vunpack.c.l.b16 %v6982
        %v7183 = vunpack.c.l.b16 %v6983
        %v7184 = vunpack.c.l.b16 %v6984
        %v7185 = vunpack.c.l.b16 %v6985
        %v7186 = vunpack.c.l.b16 %v6986
        %v7187 = vunpack.c.l.b16 %v6987
        %v7188 = vunpack.c.l.b16 %v6988
        %v7189 = vunpack.c.l.b16 %v6989
        %v7190 = vunpack.c.l.b16 %v6990
        %v7191 = vunpack.c.l.b16 %v6991
        %v7192 = vunpack.c.l.b16 %v6992
        %v7193 = vunpack.c.l.b16 %v6993
        %v7194 = vunpack.c.l.b16 %v6994
        %v7195 = vunpack.c.l.b16 %v6995
        %v7196 = vunpack.c.l.b16 %v6996
        %v7197 = vpack.c.b16 %v7182, %v7181
        %v7198 = vpack.c.b16 %v7184, %v7183
        %v7199 = vpack.c.b16 %v7186, %v7185
        %v7200 = vpack.c.b16 %v7188, %v7187
        %v7201 = vpack.c.b16 %v7190, %v7189
        %v7202 = vpack.c.b16 %v7192, %v7191
        %v7203 = vpack.c.b16 %v7194, %v7193
        %v7204 = vpack.c.b16 %v7196, %v7195
        %7213 = vmatpush.bf16.msra.mxu0 %v7204
        %7214 = vmatpush.bf16.msra.mxu0 %v7203
        %7215 = vmatpush.bf16.msra.mxu0 %v7202
        %7216 = vmatpush.bf16.msra.mxu0 %v7201
        %7217 = vmatpush.bf16.msra.mxu0 %v7200
        %7218 = vmatpush.bf16.msra.mxu0 %v7199
        %7219 = vmatpush.bf16.msra.mxu0 %v7198
        %7220 = vmatpush.bf16.msra.mxu0 %v7197
        %7221 = vmatmul.bf16.gmra.mxu0 %v7013
        %v7222 = vpop.f32.mrf.mxu0
        %v7223 = vadd.f32 0.0, %v7222
        %v7224 = vpop.f32.mrf.mxu0
        %v7225 = vadd.f32 0.0, %v7224
        %7226 = vmatmul.bf16.gmra.mxu0 %v7022
        %v7227 = vpop.f32.mrf.mxu0
        %v7228 = vadd.f32 0.0, %v7227
        %v7229 = vpop.f32.mrf.mxu0
        %v7230 = vadd.f32 0.0, %v7229
        %7231 = vmatmul.bf16.gmra.mxu0 %v7031
        %v7232 = vpop.f32.mrf.mxu0
        %v7233 = vadd.f32 0.0, %v7232
        %v7234 = vpop.f32.mrf.mxu0
        %v7235 = vadd.f32 0.0, %v7234
        %7236 = vmatmul.bf16.gmra.mxu0 %v7040
        %v7237 = vpop.f32.mrf.mxu0
        %v7238 = vadd.f32 0.0, %v7237
        %v7239 = vpop.f32.mrf.mxu0
        %v7240 = vadd.f32 0.0, %v7239
        %7241 = vmatmul.bf16.gmra.mxu0 %v7049
        %v7242 = vpop.f32.mrf.mxu0
        %v7243 = vadd.f32 0.0, %v7242
        %v7244 = vpop.f32.mrf.mxu0
        %v7245 = vadd.f32 0.0, %v7244
        %7246 = vmatmul.bf16.gmra.mxu0 %v7058
        %v7247 = vpop.f32.mrf.mxu0
        %v7248 = vadd.f32 0.0, %v7247
        %v7249 = vpop.f32.mrf.mxu0
        %v7250 = vadd.f32 0.0, %v7249
        %7251 = vmatmul.bf16.gmra.mxu0 %v7067
        %v7252 = vpop.f32.mrf.mxu0
        %v7253 = vadd.f32 0.0, %v7252
        %v7254 = vpop.f32.mrf.mxu0
        %v7255 = vadd.f32 0.0, %v7254
        %7256 = vmatmul.bf16.gmra.mxu0 %v7076
        %v7257 = vpop.f32.mrf.mxu0
        %v7258 = vadd.f32 0.0, %v7257
        %v7259 = vpop.f32.mrf.mxu0
        %v7260 = vadd.f32 0.0, %v7259
        %7261 = vmatmul.bf16.gmra.mxu0 %v7085
        %v7262 = vpop.f32.mrf.mxu0
        %v7263 = vadd.f32 0.0, %v7262
        %v7264 = vpop.f32.mrf.mxu0
        %v7265 = vadd.f32 0.0, %v7264
        %7266 = vmatmul.bf16.gmra.mxu0 %v7094
        %v7267 = vpop.f32.mrf.mxu0
        %v7268 = vadd.f32 0.0, %v7267
        %v7269 = vpop.f32.mrf.mxu0
        %v7270 = vadd.f32 0.0, %v7269
        %7271 = vmatmul.bf16.gmra.mxu0 %v7103
        %v7272 = vpop.f32.mrf.mxu0
        %v7273 = vadd.f32 0.0, %v7272
        %v7274 = vpop.f32.mrf.mxu0
        %v7275 = vadd.f32 0.0, %v7274
        %7276 = vmatmul.bf16.gmra.mxu0 %v7112
        %v7277 = vpop.f32.mrf.mxu0
        %v7278 = vadd.f32 0.0, %v7277
        %v7279 = vpop.f32.mrf.mxu0
        %v7280 = vadd.f32 0.0, %v7279
        %7281 = vmatmul.bf16.gmra.mxu0 %v7121
        %v7282 = vpop.f32.mrf.mxu0
        %v7283 = vadd.f32 0.0, %v7282
        %v7284 = vpop.f32.mrf.mxu0
        %v7285 = vadd.f32 0.0, %v7284
        %7286 = vmatmul.bf16.gmra.mxu0 %v7130
        %v7287 = vpop.f32.mrf.mxu0
        %v7288 = vadd.f32 0.0, %v7287
        %v7289 = vpop.f32.mrf.mxu0
        %v7290 = vadd.f32 0.0, %v7289
        %7291 = vmatmul.bf16.gmra.mxu0 %v7139
        %v7292 = vpop.f32.mrf.mxu0
        %v7293 = vadd.f32 0.0, %v7292
        %v7294 = vpop.f32.mrf.mxu0
        %v7295 = vadd.f32 0.0, %v7294
        %7296 = vmatmul.bf16.gmra.mxu0 %v7148
        %v7297 = vpop.f32.mrf.mxu0
        %v7298 = vadd.f32 0.0, %v7297
        %v7299 = vpop.f32.mrf.mxu0
        %v7300 = vadd.f32 0.0, %v7299
        %7301 = vdwg.mxu0
        %v7302 = vadd.f32 %v6832, %v7223
        %v7303 = vadd.f32 %v6833, %v7225
        %v7304 = vadd.f32 %v6834, %v7228
        %v7305 = vadd.f32 %v6835, %v7230
        %v7306 = vadd.f32 %v6836, %v7233
        %v7307 = vadd.f32 %v6837, %v7235
        %v7308 = vadd.f32 %v6838, %v7238
        %v7309 = vadd.f32 %v6839, %v7240
        %v7310 = vadd.f32 %v6840, %v7243
        %v7311 = vadd.f32 %v6841, %v7245
        %v7312 = vadd.f32 %v6842, %v7248
        %v7313 = vadd.f32 %v6843, %v7250
        %v7314 = vadd.f32 %v6844, %v7253
        %v7315 = vadd.f32 %v6845, %v7255
        %v7316 = vadd.f32 %v6846, %v7258
        %v7317 = vadd.f32 %v6847, %v7260
        %v7318 = vadd.f32 %v6848, %v7263
        %v7319 = vadd.f32 %v6849, %v7265
        %v7320 = vadd.f32 %v6850, %v7268
        %v7321 = vadd.f32 %v6851, %v7270
        %v7322 = vadd.f32 %v6852, %v7273
        %v7323 = vadd.f32 %v6853, %v7275
        %v7324 = vadd.f32 %v6854, %v7278
        %v7325 = vadd.f32 %v6855, %v7280
        %v7326 = vadd.f32 %v6856, %v7283
        %v7327 = vadd.f32 %v6857, %v7285
        %v7328 = vadd.f32 %v6858, %v7288
        %v7329 = vadd.f32 %v6859, %v7290
        %v7330 = vadd.f32 %v6860, %v7293
        %v7331 = vadd.f32 %v6861, %v7295
        %v7332 = vadd.f32 %v6862, %v7298
        %v7333 = vadd.f32 %v6863, %v7300
        %s7334 = scalar_lea.vmem [#allocation7], 256
        %v7335 = vld [vmem:[%s7334] sm:$0xf]
        %v7336 = vld [vmem:[%s7334 + $0x4] sm:$0xf]
        %v7337 = vld [vmem:[%s7334 + $0x8] sm:$0xf]
        %v7338 = vld [vmem:[%s7334 + $0xc] sm:$0xf]
        %v7339 = vld [vmem:[%s7334 + $0x10] sm:$0xf]
        %v7340 = vld [vmem:[%s7334 + $0x14] sm:$0xf]
        %v7341 = vld [vmem:[%s7334 + $0x18] sm:$0xf]
        %v7342 = vld [vmem:[%s7334 + $0x1c] sm:$0xf]
        %v7343 = vld [vmem:[%s7334 + $0x20] sm:$0xf]
        %v7344 = vld [vmem:[%s7334 + $0x24] sm:$0xf]
        %v7345 = vld [vmem:[%s7334 + $0x28] sm:$0xf]
        %v7346 = vld [vmem:[%s7334 + $0x2c] sm:$0xf]
        %v7347 = vld [vmem:[%s7334 + $0x30] sm:$0xf]
        %v7348 = vld [vmem:[%s7334 + $0x34] sm:$0xf]
        %v7349 = vld [vmem:[%s7334 + $0x38] sm:$0xf]
        %v7350 = vld [vmem:[%s7334 + $0x3c] sm:$0xf]
        %v7383 = vunpack.c.l.b16 %v6865
        %v7384 = vunpack.c.l.b16 %v6866
        %v7385 = vunpack.c.l.b16 %v6867
        %v7386 = vunpack.c.l.b16 %v6868
        %v7387 = vunpack.c.l.b16 %v6869
        %v7388 = vunpack.c.l.b16 %v6870
        %v7389 = vunpack.c.l.b16 %v6871
        %v7390 = vunpack.c.l.b16 %v6872
        %v7391 = vunpack.c.l.b16 %v6873
        %v7392 = vunpack.c.l.b16 %v6874
        %v7393 = vunpack.c.l.b16 %v6875
        %v7394 = vunpack.c.l.b16 %v6876
        %v7395 = vunpack.c.l.b16 %v6877
        %v7396 = vunpack.c.l.b16 %v6878
        %v7397 = vunpack.c.l.b16 %v6879
        %v7398 = vunpack.c.l.b16 %v6880
        %v7399 = vunpack.c.l.b16 %v6881
        %v7400 = vunpack.c.l.b16 %v6882
        %v7401 = vunpack.c.l.b16 %v6883
        %v7402 = vunpack.c.l.b16 %v6884
        %v7403 = vunpack.c.l.b16 %v6885
        %v7404 = vunpack.c.l.b16 %v6886
        %v7405 = vunpack.c.l.b16 %v6887
        %v7406 = vunpack.c.l.b16 %v6888
        %v7407 = vunpack.c.l.b16 %v6889
        %v7408 = vunpack.c.l.b16 %v6890
        %v7409 = vunpack.c.l.b16 %v6891
        %v7410 = vunpack.c.l.b16 %v6892
        %v7411 = vunpack.c.l.b16 %v6893
        %v7412 = vunpack.c.l.b16 %v6894
        %v7413 = vunpack.c.l.b16 %v6895
        %v7414 = vunpack.c.l.b16 %v6896
        %v7415 = vpack.c.b16 %v7384, %v7383
        %v7416 = vpack.c.b16 %v7386, %v7385
        %v7417 = vpack.c.b16 %v7388, %v7387
        %v7418 = vpack.c.b16 %v7390, %v7389
        %v7419 = vpack.c.b16 %v7392, %v7391
        %v7420 = vpack.c.b16 %v7394, %v7393
        %v7421 = vpack.c.b16 %v7396, %v7395
        %v7422 = vpack.c.b16 %v7398, %v7397
        %v7423 = vpack.c.b16 %v7400, %v7399
        %v7424 = vpack.c.b16 %v7402, %v7401
        %v7425 = vpack.c.b16 %v7404, %v7403
        %v7426 = vpack.c.b16 %v7406, %v7405
        %v7427 = vpack.c.b16 %v7408, %v7407
        %v7428 = vpack.c.b16 %v7410, %v7409
        %v7429 = vpack.c.b16 %v7412, %v7411
        %v7430 = vpack.c.b16 %v7414, %v7413
        %v7463 = vunpack.c.l.b16 %v7335
        %v7464 = vunpack.c.l.b16 %v7336
        %v7465 = vunpack.c.l.b16 %v7337
        %v7466 = vunpack.c.l.b16 %v7338
        %v7467 = vunpack.c.l.b16 %v7339
        %v7468 = vunpack.c.l.b16 %v7340
        %v7469 = vunpack.c.l.b16 %v7341
        %v7470 = vunpack.c.l.b16 %v7342
        %v7471 = vunpack.c.l.b16 %v7343
        %v7472 = vunpack.c.l.b16 %v7344
        %v7473 = vunpack.c.l.b16 %v7345
        %v7474 = vunpack.c.l.b16 %v7346
        %v7475 = vunpack.c.l.b16 %v7347
        %v7476 = vunpack.c.l.b16 %v7348
        %v7477 = vunpack.c.l.b16 %v7349
        %v7478 = vunpack.c.l.b16 %v7350
        %v7479 = vpack.c.b16 %v7464, %v7463
        %v7480 = vpack.c.b16 %v7466, %v7465
        %v7481 = vpack.c.b16 %v7468, %v7467
        %v7482 = vpack.c.b16 %v7470, %v7469
        %v7483 = vpack.c.b16 %v7472, %v7471
        %v7484 = vpack.c.b16 %v7474, %v7473
        %v7485 = vpack.c.b16 %v7476, %v7475
        %v7486 = vpack.c.b16 %v7478, %v7477
        %7495 = vmatpush.bf16.msra.mxu0 %v7486
        %7496 = vmatpush.bf16.msra.mxu0 %v7485
        %7497 = vmatpush.bf16.msra.mxu0 %v7484
        %7498 = vmatpush.bf16.msra.mxu0 %v7483
        %7499 = vmatpush.bf16.msra.mxu0 %v7482
        %7500 = vmatpush.bf16.msra.mxu0 %v7481
        %7501 = vmatpush.bf16.msra.mxu0 %v7480
        %7502 = vmatpush.bf16.msra.mxu0 %v7479
        %7503 = vmatmul.bf16.gmra.mxu0 %v7415
        %v7504 = vpop.f32.mrf.mxu0
        %v7505 = vadd.f32 0.0, %v7504
        %v7506 = vpop.f32.mrf.mxu0
        %v7507 = vadd.f32 0.0, %v7506
        %7508 = vmatmul.bf16.gmra.mxu0 %v7416
        %v7509 = vpop.f32.mrf.mxu0
        %v7510 = vadd.f32 0.0, %v7509
        %v7511 = vpop.f32.mrf.mxu0
        %v7512 = vadd.f32 0.0, %v7511
        %7513 = vmatmul.bf16.gmra.mxu0 %v7417
        %v7514 = vpop.f32.mrf.mxu0
        %v7515 = vadd.f32 0.0, %v7514
        %v7516 = vpop.f32.mrf.mxu0
        %v7517 = vadd.f32 0.0, %v7516
        %7518 = vmatmul.bf16.gmra.mxu0 %v7418
        %v7519 = vpop.f32.mrf.mxu0
        %v7520 = vadd.f32 0.0, %v7519
        %v7521 = vpop.f32.mrf.mxu0
        %v7522 = vadd.f32 0.0, %v7521
        %7523 = vmatmul.bf16.gmra.mxu0 %v7419
        %v7524 = vpop.f32.mrf.mxu0
        %v7525 = vadd.f32 0.0, %v7524
        %v7526 = vpop.f32.mrf.mxu0
        %v7527 = vadd.f32 0.0, %v7526
        %7528 = vmatmul.bf16.gmra.mxu0 %v7420
        %v7529 = vpop.f32.mrf.mxu0
        %v7530 = vadd.f32 0.0, %v7529
        %v7531 = vpop.f32.mrf.mxu0
        %v7532 = vadd.f32 0.0, %v7531
        %7533 = vmatmul.bf16.gmra.mxu0 %v7421
        %v7534 = vpop.f32.mrf.mxu0
        %v7535 = vadd.f32 0.0, %v7534
        %v7536 = vpop.f32.mrf.mxu0
        %v7537 = vadd.f32 0.0, %v7536
        %7538 = vmatmul.bf16.gmra.mxu0 %v7422
        %v7539 = vpop.f32.mrf.mxu0
        %v7540 = vadd.f32 0.0, %v7539
        %v7541 = vpop.f32.mrf.mxu0
        %v7542 = vadd.f32 0.0, %v7541
        %7543 = vmatmul.bf16.gmra.mxu0 %v7423
        %v7544 = vpop.f32.mrf.mxu0
        %v7545 = vadd.f32 0.0, %v7544
        %v7546 = vpop.f32.mrf.mxu0
        %v7547 = vadd.f32 0.0, %v7546
        %7548 = vmatmul.bf16.gmra.mxu0 %v7424
        %v7549 = vpop.f32.mrf.mxu0
        %v7550 = vadd.f32 0.0, %v7549
        %v7551 = vpop.f32.mrf.mxu0
        %v7552 = vadd.f32 0.0, %v7551
        %7553 = vmatmul.bf16.gmra.mxu0 %v7425
        %v7554 = vpop.f32.mrf.mxu0
        %v7555 = vadd.f32 0.0, %v7554
        %v7556 = vpop.f32.mrf.mxu0
        %v7557 = vadd.f32 0.0, %v7556
        %7558 = vmatmul.bf16.gmra.mxu0 %v7426
        %v7559 = vpop.f32.mrf.mxu0
        %v7560 = vadd.f32 0.0, %v7559
        %v7561 = vpop.f32.mrf.mxu0
        %v7562 = vadd.f32 0.0, %v7561
        %7563 = vmatmul.bf16.gmra.mxu0 %v7427
        %v7564 = vpop.f32.mrf.mxu0
        %v7565 = vadd.f32 0.0, %v7564
        %v7566 = vpop.f32.mrf.mxu0
        %v7567 = vadd.f32 0.0, %v7566
        %7568 = vmatmul.bf16.gmra.mxu0 %v7428
        %v7569 = vpop.f32.mrf.mxu0
        %v7570 = vadd.f32 0.0, %v7569
        %v7571 = vpop.f32.mrf.mxu0
        %v7572 = vadd.f32 0.0, %v7571
        %7573 = vmatmul.bf16.gmra.mxu0 %v7429
        %v7574 = vpop.f32.mrf.mxu0
        %v7575 = vadd.f32 0.0, %v7574
        %v7576 = vpop.f32.mrf.mxu0
        %v7577 = vadd.f32 0.0, %v7576
        %7578 = vmatmul.bf16.gmra.mxu0 %v7430
        %v7579 = vpop.f32.mrf.mxu0
        %v7580 = vadd.f32 0.0, %v7579
        %v7581 = vpop.f32.mrf.mxu0
        %v7582 = vadd.f32 0.0, %v7581
        %7583 = vdwg.mxu0
        %v7584 = vadd.f32 %v7302, %v7505
        %v7585 = vadd.f32 %v7303, %v7507
        %v7586 = vadd.f32 %v7304, %v7510
        %v7587 = vadd.f32 %v7305, %v7512
        %v7588 = vadd.f32 %v7306, %v7515
        %v7589 = vadd.f32 %v7307, %v7517
        %v7590 = vadd.f32 %v7308, %v7520
        %v7591 = vadd.f32 %v7309, %v7522
        %v7592 = vadd.f32 %v7310, %v7525
        %v7593 = vadd.f32 %v7311, %v7527
        %v7594 = vadd.f32 %v7312, %v7530
        %v7595 = vadd.f32 %v7313, %v7532
        %v7596 = vadd.f32 %v7314, %v7535
        %v7597 = vadd.f32 %v7315, %v7537
        %v7598 = vadd.f32 %v7316, %v7540
        %v7599 = vadd.f32 %v7317, %v7542
        %v7600 = vadd.f32 %v7318, %v7545
        %v7601 = vadd.f32 %v7319, %v7547
        %v7602 = vadd.f32 %v7320, %v7550
        %v7603 = vadd.f32 %v7321, %v7552
        %v7604 = vadd.f32 %v7322, %v7555
        %v7605 = vadd.f32 %v7323, %v7557
        %v7606 = vadd.f32 %v7324, %v7560
        %v7607 = vadd.f32 %v7325, %v7562
        %v7608 = vadd.f32 %v7326, %v7565
        %v7609 = vadd.f32 %v7327, %v7567
        %v7610 = vadd.f32 %v7328, %v7570
        %v7611 = vadd.f32 %v7329, %v7572
        %v7612 = vadd.f32 %v7330, %v7575
        %v7613 = vadd.f32 %v7331, %v7577
        %v7614 = vadd.f32 %v7332, %v7580
        %v7615 = vadd.f32 %v7333, %v7582
        %v7616 = vld [vmem:[#allocation4 + $0xc] sm:$0xf]
        %v7617 = vld [vmem:[#allocation4 + $0x10] sm:$0xf]
        %v7618 = vld [vmem:[#allocation4 + $0x14] sm:$0xf]
        %v7619 = vld [vmem:[#allocation4 + $0x18] sm:$0xf]
        %v7620 = vld [vmem:[#allocation4 + $0x1c] sm:$0xf]
        %v7621 = vld [vmem:[#allocation4 + $0x20] sm:$0xf]
        %v7622 = vld [vmem:[#allocation4 + $0x24] sm:$0xf]
        %v7623 = vld [vmem:[#allocation4 + $0x28] sm:$0xf]
        %v7624 = vld [vmem:[#allocation4 + $0x2c] sm:$0xf]
        %v7625 = vld [vmem:[#allocation4 + $0x30] sm:$0xf]
        %v7626 = vld [vmem:[#allocation4 + $0x34] sm:$0xf]
        %v7627 = vld [vmem:[#allocation4 + $0x38] sm:$0xf]
        %v7628 = vld [vmem:[#allocation4 + $0x3c] sm:$0xf]
        %v7629 = vld [vmem:[#allocation4 + $0x40] sm:$0xf]
        %v7630 = vld [vmem:[#allocation4 + $0x44] sm:$0xf]
        %v7631 = vld [vmem:[#allocation4 + $0x48] sm:$0xf]
        %v7632 = vld [vmem:[#allocation4 + $0x4c] sm:$0xf]
        %v7633 = vld [vmem:[#allocation4 + $0x50] sm:$0xf]
        %v7634 = vld [vmem:[#allocation4 + $0x54] sm:$0xf]
        %v7635 = vld [vmem:[#allocation4 + $0x58] sm:$0xf]
        %v7636 = vld [vmem:[#allocation4 + $0x5c] sm:$0xf]
        %v7637 = vld [vmem:[#allocation4 + $0x60] sm:$0xf]
        %v7638 = vld [vmem:[#allocation4 + $0x64] sm:$0xf]
        %v7639 = vld [vmem:[#allocation4 + $0x68] sm:$0xf]
        %v7640 = vld [vmem:[#allocation4 + $0x6c] sm:$0xf]
        %v7641 = vld [vmem:[#allocation4 + $0x70] sm:$0xf]
        %v7642 = vld [vmem:[#allocation4 + $0x74] sm:$0xf]
        %v7643 = vld [vmem:[#allocation4 + $0x78] sm:$0xf]
        %v7644 = vld [vmem:[#allocation4 + $0x7c] sm:$0xf]
        %v7645 = vld [vmem:[#allocation4 + $0x80] sm:$0xf]
        %v7646 = vld [vmem:[#allocation4 + $0x84] sm:$0xf]
        %v7647 = vld [vmem:[#allocation4 + $0x88] sm:$0xf]
        %v7648 = vld [vmem:[#allocation4 + $0x8c] sm:$0x1]
        %v7649 = vunpack.c.l.bf16 %v7616
        %v7650 = vunpack.c.l.bf16 %v7617
        %v7651 = vunpack.c.l.bf16 %v7618
        %v7652 = vunpack.c.l.bf16 %v7619
        %v7653 = vunpack.c.l.bf16 %v7620
        %v7654 = vunpack.c.l.bf16 %v7621
        %v7655 = vunpack.c.l.bf16 %v7622
        %v7656 = vunpack.c.l.bf16 %v7623
        %v7657 = vunpack.c.l.bf16 %v7624
        %v7658 = vunpack.c.l.bf16 %v7625
        %v7659 = vunpack.c.l.bf16 %v7626
        %v7660 = vunpack.c.l.bf16 %v7627
        %v7661 = vunpack.c.l.bf16 %v7628
        %v7662 = vunpack.c.l.bf16 %v7629
        %v7663 = vunpack.c.l.bf16 %v7630
        %v7664 = vunpack.c.l.bf16 %v7631
        %v7665 = vunpack.c.l.bf16 %v7632
        %v7666 = vunpack.c.l.bf16 %v7633
        %v7667 = vunpack.c.l.bf16 %v7634
        %v7668 = vunpack.c.l.bf16 %v7635
        %v7669 = vunpack.c.l.bf16 %v7636
        %v7670 = vunpack.c.l.bf16 %v7637
        %v7671 = vunpack.c.l.bf16 %v7638
        %v7672 = vunpack.c.l.bf16 %v7639
        %v7673 = vunpack.c.l.bf16 %v7640
        %v7674 = vunpack.c.l.bf16 %v7641
        %v7675 = vunpack.c.l.bf16 %v7642
        %v7676 = vunpack.c.l.bf16 %v7643
        %v7677 = vunpack.c.l.bf16 %v7644
        %v7678 = vunpack.c.l.bf16 %v7645
        %v7679 = vunpack.c.l.bf16 %v7646
        %v7680 = vunpack.c.l.bf16 %v7647
        %v7681 = vunpack.c.l.bf16 %v7648
        %v7682 = vmul.f32 %v7649, %v2710
        %v7683 = vmul.f32 %v7650, %v2712
        %v7684 = vmul.f32 %v7651, %v2714
        %v7685 = vmul.f32 %v7652, %v2716
        %v7686 = vmul.f32 %v7653, %v2718
        %v7687 = vmul.f32 %v7654, %v2720
        %v7688 = vmul.f32 %v7655, %v2722
        %v7689 = vmul.f32 %v7656, %v2724
        %v7690 = vmul.f32 %v7657, %v2726
        %v7691 = vmul.f32 %v7658, %v2728
        %v7692 = vmul.f32 %v7659, %v2730
        %v7693 = vmul.f32 %v7660, %v2732
        %v7694 = vmul.f32 %v7661, %v2734
        %v7695 = vmul.f32 %v7662, %v2736
        %v7696 = vmul.f32 %v7663, %v2738
        %v7697 = vmul.f32 %v7664, %v2740
        %v7698 = vmul.f32 %v7665, %v2742
        %v7699 = vmul.f32 %v7666, %v2744
        %v7700 = vmul.f32 %v7667, %v2746
        %v7701 = vmul.f32 %v7668, %v2748
        %v7702 = vmul.f32 %v7669, %v2750
        %v7703 = vmul.f32 %v7670, %v2752
        %v7704 = vmul.f32 %v7671, %v2754
        %v7705 = vmul.f32 %v7672, %v2756
        %v7706 = vmul.f32 %v7673, %v2758
        %v7707 = vmul.f32 %v7674, %v2760
        %v7708 = vmul.f32 %v7675, %v2762
        %v7709 = vmul.f32 %v7676, %v2764
        %v7710 = vmul.f32 %v7677, %v2766
        %v7711 = vmul.f32 %v7678, %v2768
        %v7712 = vmul.f32 %v7679, %v2770
        %v7713 = vmul.f32 %v7680, %v2772
        %v7714 = vmul.f32 %v7681, %v2771
        %v7715 = vpack.c.bf16 %v7683, %v7682
        %v7716 = vpack.c.bf16 %v7685, %v7684
        %v7717 = vpack.c.bf16 %v7687, %v7686
        %v7718 = vpack.c.bf16 %v7689, %v7688
        %v7719 = vpack.c.bf16 %v7691, %v7690
        %v7720 = vpack.c.bf16 %v7693, %v7692
        %v7721 = vpack.c.bf16 %v7695, %v7694
        %v7722 = vpack.c.bf16 %v7697, %v7696
        %v7723 = vpack.c.bf16 %v7699, %v7698
        %v7724 = vpack.c.bf16 %v7701, %v7700
        %v7725 = vpack.c.bf16 %v7703, %v7702
        %v7726 = vpack.c.bf16 %v7705, %v7704
        %v7727 = vpack.c.bf16 %v7707, %v7706
        %v7728 = vpack.c.bf16 %v7709, %v7708
        %v7729 = vpack.c.bf16 %v7711, %v7710
        %v7730 = vpack.c.bf16 %v7713, %v7712
        %v7731 = vpack.c.bf16 %v7714, %v7714
        %s7732 = scalar_lea.vmem [#allocation7], 320
        %v7733 = vld [vmem:[%s7732] sm:$0xf]
        %v7734 = vld [vmem:[%s7732 + $0x4] sm:$0xf]
        %v7735 = vld [vmem:[%s7732 + $0x8] sm:$0xf]
        %v7736 = vld [vmem:[%s7732 + $0xc] sm:$0xf]
        %v7737 = vld [vmem:[%s7732 + $0x10] sm:$0xf]
        %v7738 = vld [vmem:[%s7732 + $0x14] sm:$0xf]
        %v7739 = vld [vmem:[%s7732 + $0x18] sm:$0xf]
        %v7740 = vld [vmem:[%s7732 + $0x1c] sm:$0xf]
        %v7741 = vld [vmem:[%s7732 + $0x20] sm:$0xf]
        %v7742 = vld [vmem:[%s7732 + $0x24] sm:$0xf]
        %v7743 = vld [vmem:[%s7732 + $0x28] sm:$0xf]
        %v7744 = vld [vmem:[%s7732 + $0x2c] sm:$0xf]
        %v7745 = vld [vmem:[%s7732 + $0x30] sm:$0xf]
        %v7746 = vld [vmem:[%s7732 + $0x34] sm:$0xf]
        %v7747 = vld [vmem:[%s7732 + $0x38] sm:$0xf]
        %v7748 = vld [vmem:[%s7732 + $0x3c] sm:$0xf]
        %v7750 = vshrl.u32 %v7715, 16
        %v7752 = vshll.u32 %v7715, 16
        %v7754 = vrot.slane %v7752, 1
        %v7755 = vor.u32 %v7750, %v7754
        %v7757 = vshll.u32 %v7716, 16
        %v7759 = vrot.slane %v7757, 1
        %v7760 = vsel %vm2873, %v7755, %v7759
        %v7761 = vshrl.u32 %v7716, 16
        %v7763 = vor.u32 %v7761, %v7759
        %v7765 = vshll.u32 %v7717, 16
        %v7767 = vrot.slane %v7765, 1
        %v7768 = vsel %vm2873, %v7763, %v7767
        %v7769 = vshrl.u32 %v7717, 16
        %v7771 = vor.u32 %v7769, %v7767
        %v7773 = vshll.u32 %v7718, 16
        %v7775 = vrot.slane %v7773, 1
        %v7776 = vsel %vm2873, %v7771, %v7775
        %v7777 = vshrl.u32 %v7718, 16
        %v7779 = vor.u32 %v7777, %v7775
        %v7781 = vshll.u32 %v7719, 16
        %v7783 = vrot.slane %v7781, 1
        %v7784 = vsel %vm2873, %v7779, %v7783
        %v7785 = vshrl.u32 %v7719, 16
        %v7787 = vor.u32 %v7785, %v7783
        %v7789 = vshll.u32 %v7720, 16
        %v7791 = vrot.slane %v7789, 1
        %v7792 = vsel %vm2873, %v7787, %v7791
        %v7793 = vshrl.u32 %v7720, 16
        %v7795 = vor.u32 %v7793, %v7791
        %v7797 = vshll.u32 %v7721, 16
        %v7799 = vrot.slane %v7797, 1
        %v7800 = vsel %vm2873, %v7795, %v7799
        %v7801 = vshrl.u32 %v7721, 16
        %v7803 = vor.u32 %v7801, %v7799
        %v7805 = vshll.u32 %v7722, 16
        %v7807 = vrot.slane %v7805, 1
        %v7808 = vsel %vm2873, %v7803, %v7807
        %v7809 = vshrl.u32 %v7722, 16
        %v7811 = vor.u32 %v7809, %v7807
        %v7813 = vshll.u32 %v7723, 16
        %v7815 = vrot.slane %v7813, 1
        %v7816 = vsel %vm2873, %v7811, %v7815
        %v7817 = vshrl.u32 %v7723, 16
        %v7819 = vor.u32 %v7817, %v7815
        %v7821 = vshll.u32 %v7724, 16
        %v7823 = vrot.slane %v7821, 1
        %v7824 = vsel %vm2873, %v7819, %v7823
        %v7825 = vshrl.u32 %v7724, 16
        %v7827 = vor.u32 %v7825, %v7823
        %v7829 = vshll.u32 %v7725, 16
        %v7831 = vrot.slane %v7829, 1
        %v7832 = vsel %vm2873, %v7827, %v7831
        %v7833 = vshrl.u32 %v7725, 16
        %v7835 = vor.u32 %v7833, %v7831
        %v7837 = vshll.u32 %v7726, 16
        %v7839 = vrot.slane %v7837, 1
        %v7840 = vsel %vm2873, %v7835, %v7839
        %v7841 = vshrl.u32 %v7726, 16
        %v7843 = vor.u32 %v7841, %v7839
        %v7845 = vshll.u32 %v7727, 16
        %v7847 = vrot.slane %v7845, 1
        %v7848 = vsel %vm2873, %v7843, %v7847
        %v7849 = vshrl.u32 %v7727, 16
        %v7851 = vor.u32 %v7849, %v7847
        %v7853 = vshll.u32 %v7728, 16
        %v7855 = vrot.slane %v7853, 1
        %v7856 = vsel %vm2873, %v7851, %v7855
        %v7857 = vshrl.u32 %v7728, 16
        %v7859 = vor.u32 %v7857, %v7855
        %v7861 = vshll.u32 %v7729, 16
        %v7863 = vrot.slane %v7861, 1
        %v7864 = vsel %vm2873, %v7859, %v7863
        %v7865 = vshrl.u32 %v7729, 16
        %v7867 = vor.u32 %v7865, %v7863
        %v7869 = vshll.u32 %v7730, 16
        %v7871 = vrot.slane %v7869, 1
        %v7872 = vsel %vm2873, %v7867, %v7871
        %v7873 = vshrl.u32 %v7730, 16
        %v7875 = vor.u32 %v7873, %v7871
        %v7877 = vshll.u32 %v7731, 16
        %v7879 = vrot.slane %v7877, 1
        %v7880 = vsel %vm2873, %v7875, %v7879
        %v7913 = vunpack.c.l.b16 %v7733
        %v7914 = vunpack.c.l.b16 %v7734
        %v7915 = vunpack.c.l.b16 %v7735
        %v7916 = vunpack.c.l.b16 %v7736
        %v7917 = vunpack.c.l.b16 %v7737
        %v7918 = vunpack.c.l.b16 %v7738
        %v7919 = vunpack.c.l.b16 %v7739
        %v7920 = vunpack.c.l.b16 %v7740
        %v7921 = vunpack.c.l.b16 %v7741
        %v7922 = vunpack.c.l.b16 %v7742
        %v7923 = vunpack.c.l.b16 %v7743
        %v7924 = vunpack.c.l.b16 %v7744
        %v7925 = vunpack.c.l.b16 %v7745
        %v7926 = vunpack.c.l.b16 %v7746
        %v7927 = vunpack.c.l.b16 %v7747
        %v7928 = vunpack.c.l.b16 %v7748
        %v7929 = vpack.c.b16 %v7914, %v7913
        %v7930 = vpack.c.b16 %v7916, %v7915
        %v7931 = vpack.c.b16 %v7918, %v7917
        %v7932 = vpack.c.b16 %v7920, %v7919
        %v7933 = vpack.c.b16 %v7922, %v7921
        %v7934 = vpack.c.b16 %v7924, %v7923
        %v7935 = vpack.c.b16 %v7926, %v7925
        %v7936 = vpack.c.b16 %v7928, %v7927
        %7945 = vmatpush.bf16.msra.mxu0 %v7936
        %7946 = vmatpush.bf16.msra.mxu0 %v7935
        %7947 = vmatpush.bf16.msra.mxu0 %v7934
        %7948 = vmatpush.bf16.msra.mxu0 %v7933
        %7949 = vmatpush.bf16.msra.mxu0 %v7932
        %7950 = vmatpush.bf16.msra.mxu0 %v7931
        %7951 = vmatpush.bf16.msra.mxu0 %v7930
        %7952 = vmatpush.bf16.msra.mxu0 %v7929
        %7953 = vmatmul.bf16.gmra.mxu0 %v7760
        %v7954 = vpop.f32.mrf.mxu0
        %v7955 = vadd.f32 0.0, %v7954
        %v7956 = vpop.f32.mrf.mxu0
        %v7957 = vadd.f32 0.0, %v7956
        %7958 = vmatmul.bf16.gmra.mxu0 %v7768
        %v7959 = vpop.f32.mrf.mxu0
        %v7960 = vadd.f32 0.0, %v7959
        %v7961 = vpop.f32.mrf.mxu0
        %v7962 = vadd.f32 0.0, %v7961
        %7963 = vmatmul.bf16.gmra.mxu0 %v7776
        %v7964 = vpop.f32.mrf.mxu0
        %v7965 = vadd.f32 0.0, %v7964
        %v7966 = vpop.f32.mrf.mxu0
        %v7967 = vadd.f32 0.0, %v7966
        %7968 = vmatmul.bf16.gmra.mxu0 %v7784
        %v7969 = vpop.f32.mrf.mxu0
        %v7970 = vadd.f32 0.0, %v7969
        %v7971 = vpop.f32.mrf.mxu0
        %v7972 = vadd.f32 0.0, %v7971
        %7973 = vmatmul.bf16.gmra.mxu0 %v7792
        %v7974 = vpop.f32.mrf.mxu0
        %v7975 = vadd.f32 0.0, %v7974
        %v7976 = vpop.f32.mrf.mxu0
        %v7977 = vadd.f32 0.0, %v7976
        %7978 = vmatmul.bf16.gmra.mxu0 %v7800
        %v7979 = vpop.f32.mrf.mxu0
        %v7980 = vadd.f32 0.0, %v7979
        %v7981 = vpop.f32.mrf.mxu0
        %v7982 = vadd.f32 0.0, %v7981
        %7983 = vmatmul.bf16.gmra.mxu0 %v7808
        %v7984 = vpop.f32.mrf.mxu0
        %v7985 = vadd.f32 0.0, %v7984
        %v7986 = vpop.f32.mrf.mxu0
        %v7987 = vadd.f32 0.0, %v7986
        %7988 = vmatmul.bf16.gmra.mxu0 %v7816
        %v7989 = vpop.f32.mrf.mxu0
        %v7990 = vadd.f32 0.0, %v7989
        %v7991 = vpop.f32.mrf.mxu0
        %v7992 = vadd.f32 0.0, %v7991
        %7993 = vmatmul.bf16.gmra.mxu0 %v7824
        %v7994 = vpop.f32.mrf.mxu0
        %v7995 = vadd.f32 0.0, %v7994
        %v7996 = vpop.f32.mrf.mxu0
        %v7997 = vadd.f32 0.0, %v7996
        %7998 = vmatmul.bf16.gmra.mxu0 %v7832
        %v7999 = vpop.f32.mrf.mxu0
        %v8000 = vadd.f32 0.0, %v7999
        %v8001 = vpop.f32.mrf.mxu0
        %v8002 = vadd.f32 0.0, %v8001
        %8003 = vmatmul.bf16.gmra.mxu0 %v7840
        %v8004 = vpop.f32.mrf.mxu0
        %v8005 = vadd.f32 0.0, %v8004
        %v8006 = vpop.f32.mrf.mxu0
        %v8007 = vadd.f32 0.0, %v8006
        %8008 = vmatmul.bf16.gmra.mxu0 %v7848
        %v8009 = vpop.f32.mrf.mxu0
        %v8010 = vadd.f32 0.0, %v8009
        %v8011 = vpop.f32.mrf.mxu0
        %v8012 = vadd.f32 0.0, %v8011
        %8013 = vmatmul.bf16.gmra.mxu0 %v7856
        %v8014 = vpop.f32.mrf.mxu0
        %v8015 = vadd.f32 0.0, %v8014
        %v8016 = vpop.f32.mrf.mxu0
        %v8017 = vadd.f32 0.0, %v8016
        %8018 = vmatmul.bf16.gmra.mxu0 %v7864
        %v8019 = vpop.f32.mrf.mxu0
        %v8020 = vadd.f32 0.0, %v8019
        %v8021 = vpop.f32.mrf.mxu0
        %v8022 = vadd.f32 0.0, %v8021
        %8023 = vmatmul.bf16.gmra.mxu0 %v7872
        %v8024 = vpop.f32.mrf.mxu0
        %v8025 = vadd.f32 0.0, %v8024
        %v8026 = vpop.f32.mrf.mxu0
        %v8027 = vadd.f32 0.0, %v8026
        %8028 = vmatmul.bf16.gmra.mxu0 %v7880
        %v8029 = vpop.f32.mrf.mxu0
        %v8030 = vadd.f32 0.0, %v8029
        %v8031 = vpop.f32.mrf.mxu0
        %v8032 = vadd.f32 0.0, %v8031
        %8033 = vdwg.mxu0
        %v8034 = vadd.f32 %v7584, %v7955
        %v8035 = vadd.f32 %v7585, %v7957
        %v8036 = vadd.f32 %v7586, %v7960
        %v8037 = vadd.f32 %v7587, %v7962
        %v8038 = vadd.f32 %v7588, %v7965
        %v8039 = vadd.f32 %v7589, %v7967
        %v8040 = vadd.f32 %v7590, %v7970
        %v8041 = vadd.f32 %v7591, %v7972
        %v8042 = vadd.f32 %v7592, %v7975
        %v8043 = vadd.f32 %v7593, %v7977
        %v8044 = vadd.f32 %v7594, %v7980
        %v8045 = vadd.f32 %v7595, %v7982
        %v8046 = vadd.f32 %v7596, %v7985
        %v8047 = vadd.f32 %v7597, %v7987
        %v8048 = vadd.f32 %v7598, %v7990
        %v8049 = vadd.f32 %v7599, %v7992
        %v8050 = vadd.f32 %v7600, %v7995
        %v8051 = vadd.f32 %v7601, %v7997
        %v8052 = vadd.f32 %v7602, %v8000
        %v8053 = vadd.f32 %v7603, %v8002
        %v8054 = vadd.f32 %v7604, %v8005
        %v8055 = vadd.f32 %v7605, %v8007
        %v8056 = vadd.f32 %v7606, %v8010
        %v8057 = vadd.f32 %v7607, %v8012
        %v8058 = vadd.f32 %v7608, %v8015
        %v8059 = vadd.f32 %v7609, %v8017
        %v8060 = vadd.f32 %v7610, %v8020
        %v8061 = vadd.f32 %v7611, %v8022
        %v8062 = vadd.f32 %v7612, %v8025
        %v8063 = vadd.f32 %v7613, %v8027
        %v8064 = vadd.f32 %v7614, %v8030
        %v8065 = vadd.f32 %v7615, %v8032
        %v8066 = vld [vmem:[#allocation4 + $0x10] sm:$0x8]
        %v8067 = vld [vmem:[#allocation4 + $0x14] sm:$0xf]
        %v8068 = vld [vmem:[#allocation4 + $0x18] sm:$0xf]
        %v8069 = vld [vmem:[#allocation4 + $0x1c] sm:$0xf]
        %v8070 = vld [vmem:[#allocation4 + $0x20] sm:$0xf]
        %v8071 = vld [vmem:[#allocation4 + $0x24] sm:$0xf]
        %v8072 = vld [vmem:[#allocation4 + $0x28] sm:$0xf]
        %v8073 = vld [vmem:[#allocation4 + $0x2c] sm:$0xf]
        %v8074 = vld [vmem:[#allocation4 + $0x30] sm:$0xf]
        %v8075 = vld [vmem:[#allocation4 + $0x34] sm:$0xf]
        %v8076 = vld [vmem:[#allocation4 + $0x38] sm:$0xf]
        %v8077 = vld [vmem:[#allocation4 + $0x3c] sm:$0xf]
        %v8078 = vld [vmem:[#allocation4 + $0x40] sm:$0xf]
        %v8079 = vld [vmem:[#allocation4 + $0x44] sm:$0xf]
        %v8080 = vld [vmem:[#allocation4 + $0x48] sm:$0xf]
        %v8081 = vld [vmem:[#allocation4 + $0x4c] sm:$0xf]
        %v8082 = vld [vmem:[#allocation4 + $0x50] sm:$0xf]
        %v8083 = vld [vmem:[#allocation4 + $0x54] sm:$0xf]
        %v8084 = vld [vmem:[#allocation4 + $0x58] sm:$0xf]
        %v8085 = vld [vmem:[#allocation4 + $0x5c] sm:$0xf]
        %v8086 = vld [vmem:[#allocation4 + $0x60] sm:$0xf]
        %v8087 = vld [vmem:[#allocation4 + $0x64] sm:$0xf]
        %v8088 = vld [vmem:[#allocation4 + $0x68] sm:$0xf]
        %v8089 = vld [vmem:[#allocation4 + $0x6c] sm:$0xf]
        %v8090 = vld [vmem:[#allocation4 + $0x70] sm:$0xf]
        %v8091 = vld [vmem:[#allocation4 + $0x74] sm:$0xf]
        %v8092 = vld [vmem:[#allocation4 + $0x78] sm:$0xf]
        %v8093 = vld [vmem:[#allocation4 + $0x7c] sm:$0xf]
        %v8094 = vld [vmem:[#allocation4 + $0x80] sm:$0xf]
        %v8095 = vld [vmem:[#allocation4 + $0x84] sm:$0xf]
        %v8096 = vld [vmem:[#allocation4 + $0x88] sm:$0xf]
        %v8097 = vld [vmem:[#allocation4 + $0x8c] sm:$0xf]
        %v8098 = vld [vmem:[#allocation4 + $0x90] sm:$0xf]
        %v8099 = vunpack.c.l.bf16 %v8066
        %v8100 = vunpack.c.l.bf16 %v8067
        %v8101 = vunpack.c.l.bf16 %v8068
        %v8102 = vunpack.c.l.bf16 %v8069
        %v8103 = vunpack.c.l.bf16 %v8070
        %v8104 = vunpack.c.l.bf16 %v8071
        %v8105 = vunpack.c.l.bf16 %v8072
        %v8106 = vunpack.c.l.bf16 %v8073
        %v8107 = vunpack.c.l.bf16 %v8074
        %v8108 = vunpack.c.l.bf16 %v8075
        %v8109 = vunpack.c.l.bf16 %v8076
        %v8110 = vunpack.c.l.bf16 %v8077
        %v8111 = vunpack.c.l.bf16 %v8078
        %v8112 = vunpack.c.l.bf16 %v8079
        %v8113 = vunpack.c.l.bf16 %v8080
        %v8114 = vunpack.c.l.bf16 %v8081
        %v8115 = vunpack.c.l.bf16 %v8082
        %v8116 = vunpack.c.l.bf16 %v8083
        %v8117 = vunpack.c.l.bf16 %v8084
        %v8118 = vunpack.c.l.bf16 %v8085
        %v8119 = vunpack.c.l.bf16 %v8086
        %v8120 = vunpack.c.l.bf16 %v8087
        %v8121 = vunpack.c.l.bf16 %v8088
        %v8122 = vunpack.c.l.bf16 %v8089
        %v8123 = vunpack.c.l.bf16 %v8090
        %v8124 = vunpack.c.l.bf16 %v8091
        %v8125 = vunpack.c.l.bf16 %v8092
        %v8126 = vunpack.c.l.bf16 %v8093
        %v8127 = vunpack.c.l.bf16 %v8094
        %v8128 = vunpack.c.l.bf16 %v8095
        %v8129 = vunpack.c.l.bf16 %v8096
        %v8130 = vunpack.c.l.bf16 %v8097
        %v8131 = vunpack.c.l.bf16 %v8098
        %v8132 = vmul.f32 %v8099, %v1605
        %v8133 = vmul.f32 %v8100, %v1607
        %v8134 = vmul.f32 %v8101, %v1609
        %v8135 = vmul.f32 %v8102, %v1611
        %v8136 = vmul.f32 %v8103, %v1613
        %v8137 = vmul.f32 %v8104, %v1615
        %v8138 = vmul.f32 %v8105, %v1617
        %v8139 = vmul.f32 %v8106, %v1619
        %v8140 = vmul.f32 %v8107, %v1621
        %v8141 = vmul.f32 %v8108, %v1623
        %v8142 = vmul.f32 %v8109, %v1625
        %v8143 = vmul.f32 %v8110, %v1627
        %v8144 = vmul.f32 %v8111, %v1629
        %v8145 = vmul.f32 %v8112, %v1631
        %v8146 = vmul.f32 %v8113, %v1633
        %v8147 = vmul.f32 %v8114, %v1635
        %v8148 = vmul.f32 %v8115, %v1637
        %v8149 = vmul.f32 %v8116, %v1639
        %v8150 = vmul.f32 %v8117, %v1641
        %v8151 = vmul.f32 %v8118, %v1643
        %v8152 = vmul.f32 %v8119, %v1645
        %v8153 = vmul.f32 %v8120, %v1647
        %v8154 = vmul.f32 %v8121, %v1649
        %v8155 = vmul.f32 %v8122, %v1651
        %v8156 = vmul.f32 %v8123, %v1653
        %v8157 = vmul.f32 %v8124, %v1655
        %v8158 = vmul.f32 %v8125, %v1657
        %v8159 = vmul.f32 %v8126, %v1659
        %v8160 = vmul.f32 %v8127, %v1661
        %v8161 = vmul.f32 %v8128, %v1663
        %v8162 = vmul.f32 %v8129, %v1665
        %v8163 = vmul.f32 %v8130, %v1667
        %v8164 = vmul.f32 %v8131, %v1666
        %v8165 = vpack.c.bf16 %v8133, %v8132
        %v8166 = vpack.c.bf16 %v8135, %v8134
        %v8167 = vpack.c.bf16 %v8137, %v8136
        %v8168 = vpack.c.bf16 %v8139, %v8138
        %v8169 = vpack.c.bf16 %v8141, %v8140
        %v8170 = vpack.c.bf16 %v8143, %v8142
        %v8171 = vpack.c.bf16 %v8145, %v8144
        %v8172 = vpack.c.bf16 %v8147, %v8146
        %v8173 = vpack.c.bf16 %v8149, %v8148
        %v8174 = vpack.c.bf16 %v8151, %v8150
        %v8175 = vpack.c.bf16 %v8153, %v8152
        %v8176 = vpack.c.bf16 %v8155, %v8154
        %v8177 = vpack.c.bf16 %v8157, %v8156
        %v8178 = vpack.c.bf16 %v8159, %v8158
        %v8179 = vpack.c.bf16 %v8161, %v8160
        %v8180 = vpack.c.bf16 %v8163, %v8162
        %v8181 = vpack.c.bf16 %v8164, %v8164
        %s8182 = scalar_lea.vmem [#allocation7], 384
        %v8183 = vld [vmem:[%s8182] sm:$0xf]
        %v8184 = vld [vmem:[%s8182 + $0x4] sm:$0xf]
        %v8185 = vld [vmem:[%s8182 + $0x8] sm:$0xf]
        %v8186 = vld [vmem:[%s8182 + $0xc] sm:$0xf]
        %v8187 = vld [vmem:[%s8182 + $0x10] sm:$0xf]
        %v8188 = vld [vmem:[%s8182 + $0x14] sm:$0xf]
        %v8189 = vld [vmem:[%s8182 + $0x18] sm:$0xf]
        %v8190 = vld [vmem:[%s8182 + $0x1c] sm:$0xf]
        %v8191 = vld [vmem:[%s8182 + $0x20] sm:$0xf]
        %v8192 = vld [vmem:[%s8182 + $0x24] sm:$0xf]
        %v8193 = vld [vmem:[%s8182 + $0x28] sm:$0xf]
        %v8194 = vld [vmem:[%s8182 + $0x2c] sm:$0xf]
        %v8195 = vld [vmem:[%s8182 + $0x30] sm:$0xf]
        %v8196 = vld [vmem:[%s8182 + $0x34] sm:$0xf]
        %v8197 = vld [vmem:[%s8182 + $0x38] sm:$0xf]
        %v8198 = vld [vmem:[%s8182 + $0x3c] sm:$0xf]
        %v8200 = vshrl.u32 %v8165, 16
        %v8202 = vrot.slane %v8200, 3
        %v8203 = vshll.u32 %v8165, 16
        %v8205 = vrot.slane %v8203, 4
        %v8206 = vor.u32 %v8202, %v8205
        %v8208 = vshrl.u32 %v8166, 16
        %v8210 = vrot.slane %v8208, 3
        %v8211 = vshll.u32 %v8166, 16
        %v8213 = vrot.slane %v8211, 4
        %v8214 = vor.u32 %v8210, %v8213
        %v8215 = vsel %vm2017, %v8206, %v8214
        %v8217 = vshrl.u32 %v8167, 16
        %v8219 = vrot.slane %v8217, 3
        %v8220 = vshll.u32 %v8167, 16
        %v8222 = vrot.slane %v8220, 4
        %v8223 = vor.u32 %v8219, %v8222
        %v8224 = vsel %vm2017, %v8214, %v8223
        %v8226 = vshrl.u32 %v8168, 16
        %v8228 = vrot.slane %v8226, 3
        %v8229 = vshll.u32 %v8168, 16
        %v8231 = vrot.slane %v8229, 4
        %v8232 = vor.u32 %v8228, %v8231
        %v8233 = vsel %vm2017, %v8223, %v8232
        %v8235 = vshrl.u32 %v8169, 16
        %v8237 = vrot.slane %v8235, 3
        %v8238 = vshll.u32 %v8169, 16
        %v8240 = vrot.slane %v8238, 4
        %v8241 = vor.u32 %v8237, %v8240
        %v8242 = vsel %vm2017, %v8232, %v8241
        %v8244 = vshrl.u32 %v8170, 16
        %v8246 = vrot.slane %v8244, 3
        %v8247 = vshll.u32 %v8170, 16
        %v8249 = vrot.slane %v8247, 4
        %v8250 = vor.u32 %v8246, %v8249
        %v8251 = vsel %vm2017, %v8241, %v8250
        %v8253 = vshrl.u32 %v8171, 16
        %v8255 = vrot.slane %v8253, 3
        %v8256 = vshll.u32 %v8171, 16
        %v8258 = vrot.slane %v8256, 4
        %v8259 = vor.u32 %v8255, %v8258
        %v8260 = vsel %vm2017, %v8250, %v8259
        %v8262 = vshrl.u32 %v8172, 16
        %v8264 = vrot.slane %v8262, 3
        %v8265 = vshll.u32 %v8172, 16
        %v8267 = vrot.slane %v8265, 4
        %v8268 = vor.u32 %v8264, %v8267
        %v8269 = vsel %vm2017, %v8259, %v8268
        %v8271 = vshrl.u32 %v8173, 16
        %v8273 = vrot.slane %v8271, 3
        %v8274 = vshll.u32 %v8173, 16
        %v8276 = vrot.slane %v8274, 4
        %v8277 = vor.u32 %v8273, %v8276
        %v8278 = vsel %vm2017, %v8268, %v8277
        %v8280 = vshrl.u32 %v8174, 16
        %v8282 = vrot.slane %v8280, 3
        %v8283 = vshll.u32 %v8174, 16
        %v8285 = vrot.slane %v8283, 4
        %v8286 = vor.u32 %v8282, %v8285
        %v8287 = vsel %vm2017, %v8277, %v8286
        %v8289 = vshrl.u32 %v8175, 16
        %v8291 = vrot.slane %v8289, 3
        %v8292 = vshll.u32 %v8175, 16
        %v8294 = vrot.slane %v8292, 4
        %v8295 = vor.u32 %v8291, %v8294
        %v8296 = vsel %vm2017, %v8286, %v8295
        %v8298 = vshrl.u32 %v8176, 16
        %v8300 = vrot.slane %v8298, 3
        %v8301 = vshll.u32 %v8176, 16
        %v8303 = vrot.slane %v8301, 4
        %v8304 = vor.u32 %v8300, %v8303
        %v8305 = vsel %vm2017, %v8295, %v8304
        %v8307 = vshrl.u32 %v8177, 16
        %v8309 = vrot.slane %v8307, 3
        %v8310 = vshll.u32 %v8177, 16
        %v8312 = vrot.slane %v8310, 4
        %v8313 = vor.u32 %v8309, %v8312
        %v8314 = vsel %vm2017, %v8304, %v8313
        %v8316 = vshrl.u32 %v8178, 16
        %v8318 = vrot.slane %v8316, 3
        %v8319 = vshll.u32 %v8178, 16
        %v8321 = vrot.slane %v8319, 4
        %v8322 = vor.u32 %v8318, %v8321
        %v8323 = vsel %vm2017, %v8313, %v8322
        %v8325 = vshrl.u32 %v8179, 16
        %v8327 = vrot.slane %v8325, 3
        %v8328 = vshll.u32 %v8179, 16
        %v8330 = vrot.slane %v8328, 4
        %v8331 = vor.u32 %v8327, %v8330
        %v8332 = vsel %vm2017, %v8322, %v8331
        %v8334 = vshrl.u32 %v8180, 16
        %v8336 = vrot.slane %v8334, 3
        %v8337 = vshll.u32 %v8180, 16
        %v8339 = vrot.slane %v8337, 4
        %v8340 = vor.u32 %v8336, %v8339
        %v8341 = vsel %vm2017, %v8331, %v8340
        %v8343 = vshrl.u32 %v8181, 16
        %v8345 = vrot.slane %v8343, 3
        %v8346 = vshll.u32 %v8181, 16
        %v8348 = vrot.slane %v8346, 4
        %v8349 = vor.u32 %v8345, %v8348
        %v8350 = vsel %vm2017, %v8340, %v8349
        %v8383 = vunpack.c.l.b16 %v8183
        %v8384 = vunpack.c.l.b16 %v8184
        %v8385 = vunpack.c.l.b16 %v8185
        %v8386 = vunpack.c.l.b16 %v8186
        %v8387 = vunpack.c.l.b16 %v8187
        %v8388 = vunpack.c.l.b16 %v8188
        %v8389 = vunpack.c.l.b16 %v8189
        %v8390 = vunpack.c.l.b16 %v8190
        %v8391 = vunpack.c.l.b16 %v8191
        %v8392 = vunpack.c.l.b16 %v8192
        %v8393 = vunpack.c.l.b16 %v8193
        %v8394 = vunpack.c.l.b16 %v8194
        %v8395 = vunpack.c.l.b16 %v8195
        %v8396 = vunpack.c.l.b16 %v8196
        %v8397 = vunpack.c.l.b16 %v8197
        %v8398 = vunpack.c.l.b16 %v8198
        %v8399 = vpack.c.b16 %v8384, %v8383
        %v8400 = vpack.c.b16 %v8386, %v8385
        %v8401 = vpack.c.b16 %v8388, %v8387
        %v8402 = vpack.c.b16 %v8390, %v8389
        %v8403 = vpack.c.b16 %v8392, %v8391
        %v8404 = vpack.c.b16 %v8394, %v8393
        %v8405 = vpack.c.b16 %v8396, %v8395
        %v8406 = vpack.c.b16 %v8398, %v8397
        %8415 = vmatpush.bf16.msra.mxu0 %v8406
        %8416 = vmatpush.bf16.msra.mxu0 %v8405
        %8417 = vmatpush.bf16.msra.mxu0 %v8404
        %8418 = vmatpush.bf16.msra.mxu0 %v8403
        %8419 = vmatpush.bf16.msra.mxu0 %v8402
        %8420 = vmatpush.bf16.msra.mxu0 %v8401
        %8421 = vmatpush.bf16.msra.mxu0 %v8400
        %8422 = vmatpush.bf16.msra.mxu0 %v8399
        %8423 = vmatmul.bf16.gmra.mxu0 %v8215
        %v8424 = vpop.f32.mrf.mxu0
        %v8425 = vadd.f32 0.0, %v8424
        %v8426 = vpop.f32.mrf.mxu0
        %v8427 = vadd.f32 0.0, %v8426
        %8428 = vmatmul.bf16.gmra.mxu0 %v8224
        %v8429 = vpop.f32.mrf.mxu0
        %v8430 = vadd.f32 0.0, %v8429
        %v8431 = vpop.f32.mrf.mxu0
        %v8432 = vadd.f32 0.0, %v8431
        %8433 = vmatmul.bf16.gmra.mxu0 %v8233
        %v8434 = vpop.f32.mrf.mxu0
        %v8435 = vadd.f32 0.0, %v8434
        %v8436 = vpop.f32.mrf.mxu0
        %v8437 = vadd.f32 0.0, %v8436
        %8438 = vmatmul.bf16.gmra.mxu0 %v8242
        %v8439 = vpop.f32.mrf.mxu0
        %v8440 = vadd.f32 0.0, %v8439
        %v8441 = vpop.f32.mrf.mxu0
        %v8442 = vadd.f32 0.0, %v8441
        %8443 = vmatmul.bf16.gmra.mxu0 %v8251
        %v8444 = vpop.f32.mrf.mxu0
        %v8445 = vadd.f32 0.0, %v8444
        %v8446 = vpop.f32.mrf.mxu0
        %v8447 = vadd.f32 0.0, %v8446
        %8448 = vmatmul.bf16.gmra.mxu0 %v8260
        %v8449 = vpop.f32.mrf.mxu0
        %v8450 = vadd.f32 0.0, %v8449
        %v8451 = vpop.f32.mrf.mxu0
        %v8452 = vadd.f32 0.0, %v8451
        %8453 = vmatmul.bf16.gmra.mxu0 %v8269
        %v8454 = vpop.f32.mrf.mxu0
        %v8455 = vadd.f32 0.0, %v8454
        %v8456 = vpop.f32.mrf.mxu0
        %v8457 = vadd.f32 0.0, %v8456
        %8458 = vmatmul.bf16.gmra.mxu0 %v8278
        %v8459 = vpop.f32.mrf.mxu0
        %v8460 = vadd.f32 0.0, %v8459
        %v8461 = vpop.f32.mrf.mxu0
        %v8462 = vadd.f32 0.0, %v8461
        %8463 = vmatmul.bf16.gmra.mxu0 %v8287
        %v8464 = vpop.f32.mrf.mxu0
        %v8465 = vadd.f32 0.0, %v8464
        %v8466 = vpop.f32.mrf.mxu0
        %v8467 = vadd.f32 0.0, %v8466
        %8468 = vmatmul.bf16.gmra.mxu0 %v8296
        %v8469 = vpop.f32.mrf.mxu0
        %v8470 = vadd.f32 0.0, %v8469
        %v8471 = vpop.f32.mrf.mxu0
        %v8472 = vadd.f32 0.0, %v8471
        %8473 = vmatmul.bf16.gmra.mxu0 %v8305
        %v8474 = vpop.f32.mrf.mxu0
        %v8475 = vadd.f32 0.0, %v8474
        %v8476 = vpop.f32.mrf.mxu0
        %v8477 = vadd.f32 0.0, %v8476
        %8478 = vmatmul.bf16.gmra.mxu0 %v8314
        %v8479 = vpop.f32.mrf.mxu0
        %v8480 = vadd.f32 0.0, %v8479
        %v8481 = vpop.f32.mrf.mxu0
        %v8482 = vadd.f32 0.0, %v8481
        %8483 = vmatmul.bf16.gmra.mxu0 %v8323
        %v8484 = vpop.f32.mrf.mxu0
        %v8485 = vadd.f32 0.0, %v8484
        %v8486 = vpop.f32.mrf.mxu0
        %v8487 = vadd.f32 0.0, %v8486
        %8488 = vmatmul.bf16.gmra.mxu0 %v8332
        %v8489 = vpop.f32.mrf.mxu0
        %v8490 = vadd.f32 0.0, %v8489
        %v8491 = vpop.f32.mrf.mxu0
        %v8492 = vadd.f32 0.0, %v8491
        %8493 = vmatmul.bf16.gmra.mxu0 %v8341
        %v8494 = vpop.f32.mrf.mxu0
        %v8495 = vadd.f32 0.0, %v8494
        %v8496 = vpop.f32.mrf.mxu0
        %v8497 = vadd.f32 0.0, %v8496
        %8498 = vmatmul.bf16.gmra.mxu0 %v8350
        %v8499 = vpop.f32.mrf.mxu0
        %v8500 = vadd.f32 0.0, %v8499
        %v8501 = vpop.f32.mrf.mxu0
        %v8502 = vadd.f32 0.0, %v8501
        %8503 = vdwg.mxu0
        %v8504 = vadd.f32 %v8034, %v8425
        %v8505 = vadd.f32 %v8035, %v8427
        %v8506 = vadd.f32 %v8036, %v8430
        %v8507 = vadd.f32 %v8037, %v8432
        %v8508 = vadd.f32 %v8038, %v8435
        %v8509 = vadd.f32 %v8039, %v8437
        %v8510 = vadd.f32 %v8040, %v8440
        %v8511 = vadd.f32 %v8041, %v8442
        %v8512 = vadd.f32 %v8042, %v8445
        %v8513 = vadd.f32 %v8043, %v8447
        %v8514 = vadd.f32 %v8044, %v8450
        %v8515 = vadd.f32 %v8045, %v8452
        %v8516 = vadd.f32 %v8046, %v8455
        %v8517 = vadd.f32 %v8047, %v8457
        %v8518 = vadd.f32 %v8048, %v8460
        %v8519 = vadd.f32 %v8049, %v8462
        %v8520 = vadd.f32 %v8050, %v8465
        %v8521 = vadd.f32 %v8051, %v8467
        %v8522 = vadd.f32 %v8052, %v8470
        %v8523 = vadd.f32 %v8053, %v8472
        %v8524 = vadd.f32 %v8054, %v8475
        %v8525 = vadd.f32 %v8055, %v8477
        %v8526 = vadd.f32 %v8056, %v8480
        %v8527 = vadd.f32 %v8057, %v8482
        %v8528 = vadd.f32 %v8058, %v8485
        %v8529 = vadd.f32 %v8059, %v8487
        %v8530 = vadd.f32 %v8060, %v8490
        %v8531 = vadd.f32 %v8061, %v8492
        %v8532 = vadd.f32 %v8062, %v8495
        %v8533 = vadd.f32 %v8063, %v8497
        %v8534 = vadd.f32 %v8064, %v8500
        %v8535 = vadd.f32 %v8065, %v8502
        %s8536 = scalar_lea.vmem [#allocation7], 448
        %v8537 = vld [vmem:[%s8536] sm:$0xf]
        %v8538 = vld [vmem:[%s8536 + $0x4] sm:$0xf]
        %v8539 = vld [vmem:[%s8536 + $0x8] sm:$0xf]
        %v8540 = vld [vmem:[%s8536 + $0xc] sm:$0xf]
        %v8541 = vld [vmem:[%s8536 + $0x10] sm:$0xf]
        %v8542 = vld [vmem:[%s8536 + $0x14] sm:$0xf]
        %v8543 = vld [vmem:[%s8536 + $0x18] sm:$0xf]
        %v8544 = vld [vmem:[%s8536 + $0x1c] sm:$0xf]
        %v8545 = vld [vmem:[%s8536 + $0x20] sm:$0xf]
        %v8546 = vld [vmem:[%s8536 + $0x24] sm:$0xf]
        %v8547 = vld [vmem:[%s8536 + $0x28] sm:$0xf]
        %v8548 = vld [vmem:[%s8536 + $0x2c] sm:$0xf]
        %v8549 = vld [vmem:[%s8536 + $0x30] sm:$0xf]
        %v8550 = vld [vmem:[%s8536 + $0x34] sm:$0xf]
        %v8551 = vld [vmem:[%s8536 + $0x38] sm:$0xf]
        %v8552 = vld [vmem:[%s8536 + $0x3c] sm:$0xf]
        %v8585 = vunpack.c.l.b16 %v8067
        %v8586 = vunpack.c.l.b16 %v8068
        %v8587 = vunpack.c.l.b16 %v8069
        %v8588 = vunpack.c.l.b16 %v8070
        %v8589 = vunpack.c.l.b16 %v8071
        %v8590 = vunpack.c.l.b16 %v8072
        %v8591 = vunpack.c.l.b16 %v8073
        %v8592 = vunpack.c.l.b16 %v8074
        %v8593 = vunpack.c.l.b16 %v8075
        %v8594 = vunpack.c.l.b16 %v8076
        %v8595 = vunpack.c.l.b16 %v8077
        %v8596 = vunpack.c.l.b16 %v8078
        %v8597 = vunpack.c.l.b16 %v8079
        %v8598 = vunpack.c.l.b16 %v8080
        %v8599 = vunpack.c.l.b16 %v8081
        %v8600 = vunpack.c.l.b16 %v8082
        %v8601 = vunpack.c.l.b16 %v8083
        %v8602 = vunpack.c.l.b16 %v8084
        %v8603 = vunpack.c.l.b16 %v8085
        %v8604 = vunpack.c.l.b16 %v8086
        %v8605 = vunpack.c.l.b16 %v8087
        %v8606 = vunpack.c.l.b16 %v8088
        %v8607 = vunpack.c.l.b16 %v8089
        %v8608 = vunpack.c.l.b16 %v8090
        %v8609 = vunpack.c.l.b16 %v8091
        %v8610 = vunpack.c.l.b16 %v8092
        %v8611 = vunpack.c.l.b16 %v8093
        %v8612 = vunpack.c.l.b16 %v8094
        %v8613 = vunpack.c.l.b16 %v8095
        %v8614 = vunpack.c.l.b16 %v8096
        %v8615 = vunpack.c.l.b16 %v8097
        %v8616 = vunpack.c.l.b16 %v8098
        %v8617 = vpack.c.b16 %v8586, %v8585
        %v8618 = vpack.c.b16 %v8588, %v8587
        %v8619 = vpack.c.b16 %v8590, %v8589
        %v8620 = vpack.c.b16 %v8592, %v8591
        %v8621 = vpack.c.b16 %v8594, %v8593
        %v8622 = vpack.c.b16 %v8596, %v8595
        %v8623 = vpack.c.b16 %v8598, %v8597
        %v8624 = vpack.c.b16 %v8600, %v8599
        %v8625 = vpack.c.b16 %v8602, %v8601
        %v8626 = vpack.c.b16 %v8604, %v8603
        %v8627 = vpack.c.b16 %v8606, %v8605
        %v8628 = vpack.c.b16 %v8608, %v8607
        %v8629 = vpack.c.b16 %v8610, %v8609
        %v8630 = vpack.c.b16 %v8612, %v8611
        %v8631 = vpack.c.b16 %v8614, %v8613
        %v8632 = vpack.c.b16 %v8616, %v8615
        %v8665 = vunpack.c.l.b16 %v8537
        %v8666 = vunpack.c.l.b16 %v8538
        %v8667 = vunpack.c.l.b16 %v8539
        %v8668 = vunpack.c.l.b16 %v8540
        %v8669 = vunpack.c.l.b16 %v8541
        %v8670 = vunpack.c.l.b16 %v8542
        %v8671 = vunpack.c.l.b16 %v8543
        %v8672 = vunpack.c.l.b16 %v8544
        %v8673 = vunpack.c.l.b16 %v8545
        %v8674 = vunpack.c.l.b16 %v8546
        %v8675 = vunpack.c.l.b16 %v8547
        %v8676 = vunpack.c.l.b16 %v8548
        %v8677 = vunpack.c.l.b16 %v8549
        %v8678 = vunpack.c.l.b16 %v8550
        %v8679 = vunpack.c.l.b16 %v8551
        %v8680 = vunpack.c.l.b16 %v8552
        %v8681 = vpack.c.b16 %v8666, %v8665
        %v8682 = vpack.c.b16 %v8668, %v8667
        %v8683 = vpack.c.b16 %v8670, %v8669
        %v8684 = vpack.c.b16 %v8672, %v8671
        %v8685 = vpack.c.b16 %v8674, %v8673
        %v8686 = vpack.c.b16 %v8676, %v8675
        %v8687 = vpack.c.b16 %v8678, %v8677
        %v8688 = vpack.c.b16 %v8680, %v8679
        %8697 = vmatpush.bf16.msra.mxu0 %v8688
        %8698 = vmatpush.bf16.msra.mxu0 %v8687
        %8699 = vmatpush.bf16.msra.mxu0 %v8686
        %8700 = vmatpush.bf16.msra.mxu0 %v8685
        %8701 = vmatpush.bf16.msra.mxu0 %v8684
        %8702 = vmatpush.bf16.msra.mxu0 %v8683
        %8703 = vmatpush.bf16.msra.mxu0 %v8682
        %8704 = vmatpush.bf16.msra.mxu0 %v8681
        %8705 = vmatmul.bf16.gmra.mxu0 %v8617
        %v8706 = vpop.f32.mrf.mxu0
        %v8707 = vadd.f32 0.0, %v8706
        %v8708 = vpop.f32.mrf.mxu0
        %v8709 = vadd.f32 0.0, %v8708
        %8710 = vmatmul.bf16.gmra.mxu0 %v8618
        %v8711 = vpop.f32.mrf.mxu0
        %v8712 = vadd.f32 0.0, %v8711
        %v8713 = vpop.f32.mrf.mxu0
        %v8714 = vadd.f32 0.0, %v8713
        %8715 = vmatmul.bf16.gmra.mxu0 %v8619
        %v8716 = vpop.f32.mrf.mxu0
        %v8717 = vadd.f32 0.0, %v8716
        %v8718 = vpop.f32.mrf.mxu0
        %v8719 = vadd.f32 0.0, %v8718
        %8720 = vmatmul.bf16.gmra.mxu0 %v8620
        %v8721 = vpop.f32.mrf.mxu0
        %v8722 = vadd.f32 0.0, %v8721
        %v8723 = vpop.f32.mrf.mxu0
        %v8724 = vadd.f32 0.0, %v8723
        %8725 = vmatmul.bf16.gmra.mxu0 %v8621
        %v8726 = vpop.f32.mrf.mxu0
        %v8727 = vadd.f32 0.0, %v8726
        %v8728 = vpop.f32.mrf.mxu0
        %v8729 = vadd.f32 0.0, %v8728
        %8730 = vmatmul.bf16.gmra.mxu0 %v8622
        %v8731 = vpop.f32.mrf.mxu0
        %v8732 = vadd.f32 0.0, %v8731
        %v8733 = vpop.f32.mrf.mxu0
        %v8734 = vadd.f32 0.0, %v8733
        %8735 = vmatmul.bf16.gmra.mxu0 %v8623
        %v8736 = vpop.f32.mrf.mxu0
        %v8737 = vadd.f32 0.0, %v8736
        %v8738 = vpop.f32.mrf.mxu0
        %v8739 = vadd.f32 0.0, %v8738
        %8740 = vmatmul.bf16.gmra.mxu0 %v8624
        %v8741 = vpop.f32.mrf.mxu0
        %v8742 = vadd.f32 0.0, %v8741
        %v8743 = vpop.f32.mrf.mxu0
        %v8744 = vadd.f32 0.0, %v8743
        %8745 = vmatmul.bf16.gmra.mxu0 %v8625
        %v8746 = vpop.f32.mrf.mxu0
        %v8747 = vadd.f32 0.0, %v8746
        %v8748 = vpop.f32.mrf.mxu0
        %v8749 = vadd.f32 0.0, %v8748
        %8750 = vmatmul.bf16.gmra.mxu0 %v8626
        %v8751 = vpop.f32.mrf.mxu0
        %v8752 = vadd.f32 0.0, %v8751
        %v8753 = vpop.f32.mrf.mxu0
        %v8754 = vadd.f32 0.0, %v8753
        %8755 = vmatmul.bf16.gmra.mxu0 %v8627
        %v8756 = vpop.f32.mrf.mxu0
        %v8757 = vadd.f32 0.0, %v8756
        %v8758 = vpop.f32.mrf.mxu0
        %v8759 = vadd.f32 0.0, %v8758
        %8760 = vmatmul.bf16.gmra.mxu0 %v8628
        %v8761 = vpop.f32.mrf.mxu0
        %v8762 = vadd.f32 0.0, %v8761
        %v8763 = vpop.f32.mrf.mxu0
        %v8764 = vadd.f32 0.0, %v8763
        %8765 = vmatmul.bf16.gmra.mxu0 %v8629
        %v8766 = vpop.f32.mrf.mxu0
        %v8767 = vadd.f32 0.0, %v8766
        %v8768 = vpop.f32.mrf.mxu0
        %v8769 = vadd.f32 0.0, %v8768
        %8770 = vmatmul.bf16.gmra.mxu0 %v8630
        %v8771 = vpop.f32.mrf.mxu0
        %v8772 = vadd.f32 0.0, %v8771
        %v8773 = vpop.f32.mrf.mxu0
        %v8774 = vadd.f32 0.0, %v8773
        %8775 = vmatmul.bf16.gmra.mxu0 %v8631
        %v8776 = vpop.f32.mrf.mxu0
        %v8777 = vadd.f32 0.0, %v8776
        %v8778 = vpop.f32.mrf.mxu0
        %v8779 = vadd.f32 0.0, %v8778
        %8780 = vmatmul.bf16.gmra.mxu0 %v8632
        %v8781 = vpop.f32.mrf.mxu0
        %v8782 = vadd.f32 0.0, %v8781
        %v8783 = vpop.f32.mrf.mxu0
        %v8784 = vadd.f32 0.0, %v8783
        %8785 = vdwg.mxu0
        %v8786 = vadd.f32 %v8504, %v8707
        %v8787 = vadd.f32 %v8505, %v8709
        %v8788 = vadd.f32 %v8506, %v8712
        %v8789 = vadd.f32 %v8507, %v8714
        %v8790 = vadd.f32 %v8508, %v8717
        %v8791 = vadd.f32 %v8509, %v8719
        %v8792 = vadd.f32 %v8510, %v8722
        %v8793 = vadd.f32 %v8511, %v8724
        %v8794 = vadd.f32 %v8512, %v8727
        %v8795 = vadd.f32 %v8513, %v8729
        %v8796 = vadd.f32 %v8514, %v8732
        %v8797 = vadd.f32 %v8515, %v8734
        %v8798 = vadd.f32 %v8516, %v8737
        %v8799 = vadd.f32 %v8517, %v8739
        %v8800 = vadd.f32 %v8518, %v8742
        %v8801 = vadd.f32 %v8519, %v8744
        %v8802 = vadd.f32 %v8520, %v8747
        %v8803 = vadd.f32 %v8521, %v8749
        %v8804 = vadd.f32 %v8522, %v8752
        %v8805 = vadd.f32 %v8523, %v8754
        %v8806 = vadd.f32 %v8524, %v8757
        %v8807 = vadd.f32 %v8525, %v8759
        %v8808 = vadd.f32 %v8526, %v8762
        %v8809 = vadd.f32 %v8527, %v8764
        %v8810 = vadd.f32 %v8528, %v8767
        %v8811 = vadd.f32 %v8529, %v8769
        %v8812 = vadd.f32 %v8530, %v8772
        %v8813 = vadd.f32 %v8531, %v8774
        %v8814 = vadd.f32 %v8532, %v8777
        %v8815 = vadd.f32 %v8533, %v8779
        %v8816 = vadd.f32 %v8534, %v8782
        %v8817 = vadd.f32 %v8535, %v8784
        %v8818 = vld [vmem:[#allocation4 + $0x14] sm:$0xf]
        %v8819 = vld [vmem:[#allocation4 + $0x18] sm:$0xf]
        %v8820 = vld [vmem:[#allocation4 + $0x1c] sm:$0xf]
        %v8821 = vld [vmem:[#allocation4 + $0x20] sm:$0xf]
        %v8822 = vld [vmem:[#allocation4 + $0x24] sm:$0xf]
        %v8823 = vld [vmem:[#allocation4 + $0x28] sm:$0xf]
        %v8824 = vld [vmem:[#allocation4 + $0x2c] sm:$0xf]
        %v8825 = vld [vmem:[#allocation4 + $0x30] sm:$0xf]
        %v8826 = vld [vmem:[#allocation4 + $0x34] sm:$0xf]
        %v8827 = vld [vmem:[#allocation4 + $0x38] sm:$0xf]
        %v8828 = vld [vmem:[#allocation4 + $0x3c] sm:$0xf]
        %v8829 = vld [vmem:[#allocation4 + $0x40] sm:$0xf]
        %v8830 = vld [vmem:[#allocation4 + $0x44] sm:$0xf]
        %v8831 = vld [vmem:[#allocation4 + $0x48] sm:$0xf]
        %v8832 = vld [vmem:[#allocation4 + $0x4c] sm:$0xf]
        %v8833 = vld [vmem:[#allocation4 + $0x50] sm:$0xf]
        %v8834 = vld [vmem:[#allocation4 + $0x54] sm:$0xf]
        %v8835 = vld [vmem:[#allocation4 + $0x58] sm:$0xf]
        %v8836 = vld [vmem:[#allocation4 + $0x5c] sm:$0xf]
        %v8837 = vld [vmem:[#allocation4 + $0x60] sm:$0xf]
        %v8838 = vld [vmem:[#allocation4 + $0x64] sm:$0xf]
        %v8839 = vld [vmem:[#allocation4 + $0x68] sm:$0xf]
        %v8840 = vld [vmem:[#allocation4 + $0x6c] sm:$0xf]
        %v8841 = vld [vmem:[#allocation4 + $0x70] sm:$0xf]
        %v8842 = vld [vmem:[#allocation4 + $0x74] sm:$0xf]
        %v8843 = vld [vmem:[#allocation4 + $0x78] sm:$0xf]
        %v8844 = vld [vmem:[#allocation4 + $0x7c] sm:$0xf]
        %v8845 = vld [vmem:[#allocation4 + $0x80] sm:$0xf]
        %v8846 = vld [vmem:[#allocation4 + $0x84] sm:$0xf]
        %v8847 = vld [vmem:[#allocation4 + $0x88] sm:$0xf]
        %v8848 = vld [vmem:[#allocation4 + $0x8c] sm:$0xf]
        %v8849 = vld [vmem:[#allocation4 + $0x90] sm:$0xf]
        %v8850 = vld [vmem:[#allocation4 + $0x94] sm:$0x1]
        %v8851 = vunpack.c.l.bf16 %v8818
        %v8852 = vunpack.c.l.bf16 %v8819
        %v8853 = vunpack.c.l.bf16 %v8820
        %v8854 = vunpack.c.l.bf16 %v8821
        %v8855 = vunpack.c.l.bf16 %v8822
        %v8856 = vunpack.c.l.bf16 %v8823
        %v8857 = vunpack.c.l.bf16 %v8824
        %v8858 = vunpack.c.l.bf16 %v8825
        %v8859 = vunpack.c.l.bf16 %v8826
        %v8860 = vunpack.c.l.bf16 %v8827
        %v8861 = vunpack.c.l.bf16 %v8828
        %v8862 = vunpack.c.l.bf16 %v8829
        %v8863 = vunpack.c.l.bf16 %v8830
        %v8864 = vunpack.c.l.bf16 %v8831
        %v8865 = vunpack.c.l.bf16 %v8832
        %v8866 = vunpack.c.l.bf16 %v8833
        %v8867 = vunpack.c.l.bf16 %v8834
        %v8868 = vunpack.c.l.bf16 %v8835
        %v8869 = vunpack.c.l.bf16 %v8836
        %v8870 = vunpack.c.l.bf16 %v8837
        %v8871 = vunpack.c.l.bf16 %v8838
        %v8872 = vunpack.c.l.bf16 %v8839
        %v8873 = vunpack.c.l.bf16 %v8840
        %v8874 = vunpack.c.l.bf16 %v8841
        %v8875 = vunpack.c.l.bf16 %v8842
        %v8876 = vunpack.c.l.bf16 %v8843
        %v8877 = vunpack.c.l.bf16 %v8844
        %v8878 = vunpack.c.l.bf16 %v8845
        %v8879 = vunpack.c.l.bf16 %v8846
        %v8880 = vunpack.c.l.bf16 %v8847
        %v8881 = vunpack.c.l.bf16 %v8848
        %v8882 = vunpack.c.l.bf16 %v8849
        %v8883 = vunpack.c.l.bf16 %v8850
        %v8884 = vmul.f32 %v8851, %v2710
        %v8885 = vmul.f32 %v8852, %v2712
        %v8886 = vmul.f32 %v8853, %v2714
        %v8887 = vmul.f32 %v8854, %v2716
        %v8888 = vmul.f32 %v8855, %v2718
        %v8889 = vmul.f32 %v8856, %v2720
        %v8890 = vmul.f32 %v8857, %v2722
        %v8891 = vmul.f32 %v8858, %v2724
        %v8892 = vmul.f32 %v8859, %v2726
        %v8893 = vmul.f32 %v8860, %v2728
        %v8894 = vmul.f32 %v8861, %v2730
        %v8895 = vmul.f32 %v8862, %v2732
        %v8896 = vmul.f32 %v8863, %v2734
        %v8897 = vmul.f32 %v8864, %v2736
        %v8898 = vmul.f32 %v8865, %v2738
        %v8899 = vmul.f32 %v8866, %v2740
        %v8900 = vmul.f32 %v8867, %v2742
        %v8901 = vmul.f32 %v8868, %v2744
        %v8902 = vmul.f32 %v8869, %v2746
        %v8903 = vmul.f32 %v8870, %v2748
        %v8904 = vmul.f32 %v8871, %v2750
        %v8905 = vmul.f32 %v8872, %v2752
        %v8906 = vmul.f32 %v8873, %v2754
        %v8907 = vmul.f32 %v8874, %v2756
        %v8908 = vmul.f32 %v8875, %v2758
        %v8909 = vmul.f32 %v8876, %v2760
        %v8910 = vmul.f32 %v8877, %v2762
        %v8911 = vmul.f32 %v8878, %v2764
        %v8912 = vmul.f32 %v8879, %v2766
        %v8913 = vmul.f32 %v8880, %v2768
        %v8914 = vmul.f32 %v8881, %v2770
        %v8915 = vmul.f32 %v8882, %v2772
        %v8916 = vmul.f32 %v8883, %v2771
        %v8917 = vpack.c.bf16 %v8885, %v8884
        %v8918 = vpack.c.bf16 %v8887, %v8886
        %v8919 = vpack.c.bf16 %v8889, %v8888
        %v8920 = vpack.c.bf16 %v8891, %v8890
        %v8921 = vpack.c.bf16 %v8893, %v8892
        %v8922 = vpack.c.bf16 %v8895, %v8894
        %v8923 = vpack.c.bf16 %v8897, %v8896
        %v8924 = vpack.c.bf16 %v8899, %v8898
        %v8925 = vpack.c.bf16 %v8901, %v8900
        %v8926 = vpack.c.bf16 %v8903, %v8902
        %v8927 = vpack.c.bf16 %v8905, %v8904
        %v8928 = vpack.c.bf16 %v8907, %v8906
        %v8929 = vpack.c.bf16 %v8909, %v8908
        %v8930 = vpack.c.bf16 %v8911, %v8910
        %v8931 = vpack.c.bf16 %v8913, %v8912
        %v8932 = vpack.c.bf16 %v8915, %v8914
        %v8933 = vpack.c.bf16 %v8916, %v8916
        %s8934 = scalar_lea.vmem [#allocation7], 512
        %v8935 = vld [vmem:[%s8934] sm:$0xf]
        %v8936 = vld [vmem:[%s8934 + $0x4] sm:$0xf]
        %v8937 = vld [vmem:[%s8934 + $0x8] sm:$0xf]
        %v8938 = vld [vmem:[%s8934 + $0xc] sm:$0xf]
        %v8939 = vld [vmem:[%s8934 + $0x10] sm:$0xf]
        %v8940 = vld [vmem:[%s8934 + $0x14] sm:$0xf]
        %v8941 = vld [vmem:[%s8934 + $0x18] sm:$0xf]
        %v8942 = vld [vmem:[%s8934 + $0x1c] sm:$0xf]
        %v8943 = vld [vmem:[%s8934 + $0x20] sm:$0xf]
        %v8944 = vld [vmem:[%s8934 + $0x24] sm:$0xf]
        %v8945 = vld [vmem:[%s8934 + $0x28] sm:$0xf]
        %v8946 = vld [vmem:[%s8934 + $0x2c] sm:$0xf]
        %v8947 = vld [vmem:[%s8934 + $0x30] sm:$0xf]
        %v8948 = vld [vmem:[%s8934 + $0x34] sm:$0xf]
        %v8949 = vld [vmem:[%s8934 + $0x38] sm:$0xf]
        %v8950 = vld [vmem:[%s8934 + $0x3c] sm:$0xf]
        %v8952 = vshrl.u32 %v8917, 16
        %v8954 = vshll.u32 %v8917, 16
        %v8956 = vrot.slane %v8954, 1
        %v8957 = vor.u32 %v8952, %v8956
        %v8959 = vshll.u32 %v8918, 16
        %v8961 = vrot.slane %v8959, 1
        %v8962 = vsel %vm2873, %v8957, %v8961
        %v8963 = vshrl.u32 %v8918, 16
        %v8965 = vor.u32 %v8963, %v8961
        %v8967 = vshll.u32 %v8919, 16
        %v8969 = vrot.slane %v8967, 1
        %v8970 = vsel %vm2873, %v8965, %v8969
        %v8971 = vshrl.u32 %v8919, 16
        %v8973 = vor.u32 %v8971, %v8969
        %v8975 = vshll.u32 %v8920, 16
        %v8977 = vrot.slane %v8975, 1
        %v8978 = vsel %vm2873, %v8973, %v8977
        %v8979 = vshrl.u32 %v8920, 16
        %v8981 = vor.u32 %v8979, %v8977
        %v8983 = vshll.u32 %v8921, 16
        %v8985 = vrot.slane %v8983, 1
        %v8986 = vsel %vm2873, %v8981, %v8985
        %v8987 = vshrl.u32 %v8921, 16
        %v8989 = vor.u32 %v8987, %v8985
        %v8991 = vshll.u32 %v8922, 16
        %v8993 = vrot.slane %v8991, 1
        %v8994 = vsel %vm2873, %v8989, %v8993
        %v8995 = vshrl.u32 %v8922, 16
        %v8997 = vor.u32 %v8995, %v8993
        %v8999 = vshll.u32 %v8923, 16
        %v9001 = vrot.slane %v8999, 1
        %v9002 = vsel %vm2873, %v8997, %v9001
        %v9003 = vshrl.u32 %v8923, 16
        %v9005 = vor.u32 %v9003, %v9001
        %v9007 = vshll.u32 %v8924, 16
        %v9009 = vrot.slane %v9007, 1
        %v9010 = vsel %vm2873, %v9005, %v9009
        %v9011 = vshrl.u32 %v8924, 16
        %v9013 = vor.u32 %v9011, %v9009
        %v9015 = vshll.u32 %v8925, 16
        %v9017 = vrot.slane %v9015, 1
        %v9018 = vsel %vm2873, %v9013, %v9017
        %v9019 = vshrl.u32 %v8925, 16
        %v9021 = vor.u32 %v9019, %v9017
        %v9023 = vshll.u32 %v8926, 16
        %v9025 = vrot.slane %v9023, 1
        %v9026 = vsel %vm2873, %v9021, %v9025
        %v9027 = vshrl.u32 %v8926, 16
        %v9029 = vor.u32 %v9027, %v9025
        %v9031 = vshll.u32 %v8927, 16
        %v9033 = vrot.slane %v9031, 1
        %v9034 = vsel %vm2873, %v9029, %v9033
        %v9035 = vshrl.u32 %v8927, 16
        %v9037 = vor.u32 %v9035, %v9033
        %v9039 = vshll.u32 %v8928, 16
        %v9041 = vrot.slane %v9039, 1
        %v9042 = vsel %vm2873, %v9037, %v9041
        %v9043 = vshrl.u32 %v8928, 16
        %v9045 = vor.u32 %v9043, %v9041
        %v9047 = vshll.u32 %v8929, 16
        %v9049 = vrot.slane %v9047, 1
        %v9050 = vsel %vm2873, %v9045, %v9049
        %v9051 = vshrl.u32 %v8929, 16
        %v9053 = vor.u32 %v9051, %v9049
        %v9055 = vshll.u32 %v8930, 16
        %v9057 = vrot.slane %v9055, 1
        %v9058 = vsel %vm2873, %v9053, %v9057
        %v9059 = vshrl.u32 %v8930, 16
        %v9061 = vor.u32 %v9059, %v9057
        %v9063 = vshll.u32 %v8931, 16
        %v9065 = vrot.slane %v9063, 1
        %v9066 = vsel %vm2873, %v9061, %v9065
        %v9067 = vshrl.u32 %v8931, 16
        %v9069 = vor.u32 %v9067, %v9065
        %v9071 = vshll.u32 %v8932, 16
        %v9073 = vrot.slane %v9071, 1
        %v9074 = vsel %vm2873, %v9069, %v9073
        %v9075 = vshrl.u32 %v8932, 16
        %v9077 = vor.u32 %v9075, %v9073
        %v9079 = vshll.u32 %v8933, 16
        %v9081 = vrot.slane %v9079, 1
        %v9082 = vsel %vm2873, %v9077, %v9081
        %v9115 = vunpack.c.l.b16 %v8935
        %v9116 = vunpack.c.l.b16 %v8936
        %v9117 = vunpack.c.l.b16 %v8937
        %v9118 = vunpack.c.l.b16 %v8938
        %v9119 = vunpack.c.l.b16 %v8939
        %v9120 = vunpack.c.l.b16 %v8940
        %v9121 = vunpack.c.l.b16 %v8941
        %v9122 = vunpack.c.l.b16 %v8942
        %v9123 = vunpack.c.l.b16 %v8943
        %v9124 = vunpack.c.l.b16 %v8944
        %v9125 = vunpack.c.l.b16 %v8945
        %v9126 = vunpack.c.l.b16 %v8946
        %v9127 = vunpack.c.l.b16 %v8947
        %v9128 = vunpack.c.l.b16 %v8948
        %v9129 = vunpack.c.l.b16 %v8949
        %v9130 = vunpack.c.l.b16 %v8950
        %v9131 = vpack.c.b16 %v9116, %v9115
        %v9132 = vpack.c.b16 %v9118, %v9117
        %v9133 = vpack.c.b16 %v9120, %v9119
        %v9134 = vpack.c.b16 %v9122, %v9121
        %v9135 = vpack.c.b16 %v9124, %v9123
        %v9136 = vpack.c.b16 %v9126, %v9125
        %v9137 = vpack.c.b16 %v9128, %v9127
        %v9138 = vpack.c.b16 %v9130, %v9129
        %9147 = vmatpush.bf16.msra.mxu0 %v9138
        %9148 = vmatpush.bf16.msra.mxu0 %v9137
        %9149 = vmatpush.bf16.msra.mxu0 %v9136
        %9150 = vmatpush.bf16.msra.mxu0 %v9135
        %9151 = vmatpush.bf16.msra.mxu0 %v9134
        %9152 = vmatpush.bf16.msra.mxu0 %v9133
        %9153 = vmatpush.bf16.msra.mxu0 %v9132
        %9154 = vmatpush.bf16.msra.mxu0 %v9131
        %9155 = vmatmul.bf16.gmra.mxu0 %v8962
        %v9156 = vpop.f32.mrf.mxu0
        %v9157 = vadd.f32 0.0, %v9156
        %v9158 = vpop.f32.mrf.mxu0
        %v9159 = vadd.f32 0.0, %v9158
        %9160 = vmatmul.bf16.gmra.mxu0 %v8970
        %v9161 = vpop.f32.mrf.mxu0
        %v9162 = vadd.f32 0.0, %v9161
        %v9163 = vpop.f32.mrf.mxu0
        %v9164 = vadd.f32 0.0, %v9163
        %9165 = vmatmul.bf16.gmra.mxu0 %v8978
        %v9166 = vpop.f32.mrf.mxu0
        %v9167 = vadd.f32 0.0, %v9166
        %v9168 = vpop.f32.mrf.mxu0
        %v9169 = vadd.f32 0.0, %v9168
        %9170 = vmatmul.bf16.gmra.mxu0 %v8986
        %v9171 = vpop.f32.mrf.mxu0
        %v9172 = vadd.f32 0.0, %v9171
        %v9173 = vpop.f32.mrf.mxu0
        %v9174 = vadd.f32 0.0, %v9173
        %9175 = vmatmul.bf16.gmra.mxu0 %v8994
        %v9176 = vpop.f32.mrf.mxu0
        %v9177 = vadd.f32 0.0, %v9176
        %v9178 = vpop.f32.mrf.mxu0
        %v9179 = vadd.f32 0.0, %v9178
        %9180 = vmatmul.bf16.gmra.mxu0 %v9002
        %v9181 = vpop.f32.mrf.mxu0
        %v9182 = vadd.f32 0.0, %v9181
        %v9183 = vpop.f32.mrf.mxu0
        %v9184 = vadd.f32 0.0, %v9183
        %9185 = vmatmul.bf16.gmra.mxu0 %v9010
        %v9186 = vpop.f32.mrf.mxu0
        %v9187 = vadd.f32 0.0, %v9186
        %v9188 = vpop.f32.mrf.mxu0
        %v9189 = vadd.f32 0.0, %v9188
        %9190 = vmatmul.bf16.gmra.mxu0 %v9018
        %v9191 = vpop.f32.mrf.mxu0
        %v9192 = vadd.f32 0.0, %v9191
        %v9193 = vpop.f32.mrf.mxu0
        %v9194 = vadd.f32 0.0, %v9193
        %9195 = vmatmul.bf16.gmra.mxu0 %v9026
        %v9196 = vpop.f32.mrf.mxu0
        %v9197 = vadd.f32 0.0, %v9196
        %v9198 = vpop.f32.mrf.mxu0
        %v9199 = vadd.f32 0.0, %v9198
        %9200 = vmatmul.bf16.gmra.mxu0 %v9034
        %v9201 = vpop.f32.mrf.mxu0
        %v9202 = vadd.f32 0.0, %v9201
        %v9203 = vpop.f32.mrf.mxu0
        %v9204 = vadd.f32 0.0, %v9203
        %9205 = vmatmul.bf16.gmra.mxu0 %v9042
        %v9206 = vpop.f32.mrf.mxu0
        %v9207 = vadd.f32 0.0, %v9206
        %v9208 = vpop.f32.mrf.mxu0
        %v9209 = vadd.f32 0.0, %v9208
        %9210 = vmatmul.bf16.gmra.mxu0 %v9050
        %v9211 = vpop.f32.mrf.mxu0
        %v9212 = vadd.f32 0.0, %v9211
        %v9213 = vpop.f32.mrf.mxu0
        %v9214 = vadd.f32 0.0, %v9213
        %9215 = vmatmul.bf16.gmra.mxu0 %v9058
        %v9216 = vpop.f32.mrf.mxu0
        %v9217 = vadd.f32 0.0, %v9216
        %v9218 = vpop.f32.mrf.mxu0
        %v9219 = vadd.f32 0.0, %v9218
        %9220 = vmatmul.bf16.gmra.mxu0 %v9066
        %v9221 = vpop.f32.mrf.mxu0
        %v9222 = vadd.f32 0.0, %v9221
        %v9223 = vpop.f32.mrf.mxu0
        %v9224 = vadd.f32 0.0, %v9223
        %9225 = vmatmul.bf16.gmra.mxu0 %v9074
        %v9226 = vpop.f32.mrf.mxu0
        %v9227 = vadd.f32 0.0, %v9226
        %v9228 = vpop.f32.mrf.mxu0
        %v9229 = vadd.f32 0.0, %v9228
        %9230 = vmatmul.bf16.gmra.mxu0 %v9082
        %v9231 = vpop.f32.mrf.mxu0
        %v9232 = vadd.f32 0.0, %v9231
        %v9233 = vpop.f32.mrf.mxu0
        %v9234 = vadd.f32 0.0, %v9233
        %9235 = vdwg.mxu0
        %v9236 = vadd.f32 %v8786, %v9157
        %v9237 = vadd.f32 %v8787, %v9159
        %v9238 = vadd.f32 %v8788, %v9162
        %v9239 = vadd.f32 %v8789, %v9164
        %v9240 = vadd.f32 %v8790, %v9167
        %v9241 = vadd.f32 %v8791, %v9169
        %v9242 = vadd.f32 %v8792, %v9172
        %v9243 = vadd.f32 %v8793, %v9174
        %v9244 = vadd.f32 %v8794, %v9177
        %v9245 = vadd.f32 %v8795, %v9179
        %v9246 = vadd.f32 %v8796, %v9182
        %v9247 = vadd.f32 %v8797, %v9184
        %v9248 = vadd.f32 %v8798, %v9187
        %v9249 = vadd.f32 %v8799, %v9189
        %v9250 = vadd.f32 %v8800, %v9192
        %v9251 = vadd.f32 %v8801, %v9194
        %v9252 = vadd.f32 %v8802, %v9197
        %v9253 = vadd.f32 %v8803, %v9199
        %v9254 = vadd.f32 %v8804, %v9202
        %v9255 = vadd.f32 %v8805, %v9204
        %v9256 = vadd.f32 %v8806, %v9207
        %v9257 = vadd.f32 %v8807, %v9209
        %v9258 = vadd.f32 %v8808, %v9212
        %v9259 = vadd.f32 %v8809, %v9214
        %v9260 = vadd.f32 %v8810, %v9217
        %v9261 = vadd.f32 %v8811, %v9219
        %v9262 = vadd.f32 %v8812, %v9222
        %v9263 = vadd.f32 %v8813, %v9224
        %v9264 = vadd.f32 %v8814, %v9227
        %v9265 = vadd.f32 %v8815, %v9229
        %v9266 = vadd.f32 %v8816, %v9232
        %v9267 = vadd.f32 %v8817, %v9234
        %v9268 = vld [vmem:[%s7] sm:$0x1]
        %v9270 = vperm.slane %v9268, 0
        %v9272 = vadd.f32 %v9236, %v9270
        %v9273 = vadd.f32 %v9237, %v9270
        %v9274 = vadd.f32 %v9238, %v9270
        %v9275 = vadd.f32 %v9239, %v9270
        %v9276 = vadd.f32 %v9240, %v9270
        %v9277 = vadd.f32 %v9241, %v9270
        %v9278 = vadd.f32 %v9242, %v9270
        %v9279 = vadd.f32 %v9243, %v9270
        %v9280 = vadd.f32 %v9244, %v9270
        %v9281 = vadd.f32 %v9245, %v9270
        %v9282 = vadd.f32 %v9246, %v9270
        %v9283 = vadd.f32 %v9247, %v9270
        %v9284 = vadd.f32 %v9248, %v9270
        %v9285 = vadd.f32 %v9249, %v9270
        %v9286 = vadd.f32 %v9250, %v9270
        %v9287 = vadd.f32 %v9251, %v9270
        %v9288 = vadd.f32 %v9252, %v9270
        %v9289 = vadd.f32 %v9253, %v9270
        %v9290 = vadd.f32 %v9254, %v9270
        %v9291 = vadd.f32 %v9255, %v9270
        %v9292 = vadd.f32 %v9256, %v9270
        %v9293 = vadd.f32 %v9257, %v9270
        %v9294 = vadd.f32 %v9258, %v9270
        %v9295 = vadd.f32 %v9259, %v9270
        %v9296 = vadd.f32 %v9260, %v9270
        %v9297 = vadd.f32 %v9261, %v9270
        %v9298 = vadd.f32 %v9262, %v9270
        %v9299 = vadd.f32 %v9263, %v9270
        %v9300 = vadd.f32 %v9264, %v9270
        %v9301 = vadd.f32 %v9265, %v9270
        %v9302 = vadd.f32 %v9266, %v9270
        %v9303 = vadd.f32 %v9267, %v9270
        %v9304 = vmax.f32 %v9272, 0.0
        %v9305 = vmax.f32 %v9273, 0.0
        %v9306 = vmax.f32 %v9274, 0.0
        %v9307 = vmax.f32 %v9275, 0.0
        %v9308 = vmax.f32 %v9276, 0.0
        %v9309 = vmax.f32 %v9277, 0.0
        %v9310 = vmax.f32 %v9278, 0.0
        %v9311 = vmax.f32 %v9279, 0.0
        %v9312 = vmax.f32 %v9280, 0.0
        %v9313 = vmax.f32 %v9281, 0.0
        %v9314 = vmax.f32 %v9282, 0.0
        %v9315 = vmax.f32 %v9283, 0.0
        %v9316 = vmax.f32 %v9284, 0.0
        %v9317 = vmax.f32 %v9285, 0.0
        %v9318 = vmax.f32 %v9286, 0.0
        %v9319 = vmax.f32 %v9287, 0.0
        %v9320 = vmax.f32 %v9288, 0.0
        %v9321 = vmax.f32 %v9289, 0.0
        %v9322 = vmax.f32 %v9290, 0.0
        %v9323 = vmax.f32 %v9291, 0.0
        %v9324 = vmax.f32 %v9292, 0.0
        %v9325 = vmax.f32 %v9293, 0.0
        %v9326 = vmax.f32 %v9294, 0.0
        %v9327 = vmax.f32 %v9295, 0.0
        %v9328 = vmax.f32 %v9296, 0.0
        %v9329 = vmax.f32 %v9297, 0.0
        %v9330 = vmax.f32 %v9298, 0.0
        %v9331 = vmax.f32 %v9299, 0.0
        %v9332 = vmax.f32 %v9300, 0.0
        %v9333 = vmax.f32 %v9301, 0.0
        %v9334 = vmax.f32 %v9302, 0.0
        %v9335 = vmax.f32 %v9303, 0.0
        %9336 = vst [vmem:[%s393 + $0x10] sm:$0xff] %v9304
        %9337 = vst [vmem:[%s393 + $0x30] sm:$0xff] %v9305
        %9338 = vst [vmem:[%s393 + $0x50] sm:$0xff] %v9306
        %9339 = vst [vmem:[%s393 + $0x70] sm:$0xff] %v9307
        %9340 = vst [vmem:[%s393 + $0x90] sm:$0xff] %v9308
        %9341 = vst [vmem:[%s393 + $0xb0] sm:$0xff] %v9309
        %9342 = vst [vmem:[%s393 + $0xd0] sm:$0xff] %v9310
        %9343 = vst [vmem:[%s393 + $0xf0] sm:$0xff] %v9311
        %9344 = vst [vmem:[%s393 + $0x110] sm:$0xff] %v9312
        %9345 = vst [vmem:[%s393 + $0x130] sm:$0xff] %v9313
        %9346 = vst [vmem:[%s393 + $0x150] sm:$0xff] %v9314
        %9347 = vst [vmem:[%s393 + $0x170] sm:$0xff] %v9315
        %9348 = vst [vmem:[%s393 + $0x190] sm:$0xff] %v9316
        %9349 = vst [vmem:[%s393 + $0x1b0] sm:$0xff] %v9317
        %9350 = vst [vmem:[%s393 + $0x1d0] sm:$0xff] %v9318
        %9351 = vst [vmem:[%s393 + $0x1f0] sm:$0xff] %v9319
        %9352 = vst [vmem:[%s393 + $0x210] sm:$0xff] %v9320
        %9353 = vst [vmem:[%s393 + $0x230] sm:$0xff] %v9321
        %9354 = vst [vmem:[%s393 + $0x250] sm:$0xff] %v9322
        %9355 = vst [vmem:[%s393 + $0x270] sm:$0xff] %v9323
        %9356 = vst [vmem:[%s393 + $0x290] sm:$0xff] %v9324
        %9357 = vst [vmem:[%s393 + $0x2b0] sm:$0xff] %v9325
        %9358 = vst [vmem:[%s393 + $0x2d0] sm:$0xff] %v9326
        %9359 = vst [vmem:[%s393 + $0x2f0] sm:$0xff] %v9327
        %9360 = vst [vmem:[%s393 + $0x310] sm:$0xff] %v9328
        %9361 = vst [vmem:[%s393 + $0x330] sm:$0xff] %v9329
        %9362 = vst [vmem:[%s393 + $0x350] sm:$0xff] %v9330
        %9363 = vst [vmem:[%s393 + $0x370] sm:$0xff] %v9331
        %9364 = vst [vmem:[%s393 + $0x390] sm:$0xff] %v9332
        %9365 = vst [vmem:[%s393 + $0x3b0] sm:$0xff] %v9333
        %9366 = vst [vmem:[%s393 + $0x3d0] sm:$0xff] %v9334
        %9367 = vst [vmem:[%s393 + $0x3f0] sm:$0xff] %v9335
        %9368 = vst.msk [vmem:[#allocation2 + $0xc] sm:$0xf] %vm398, %v417
        %9369 = vst.msk [vmem:[#allocation2 + $0x10] sm:$0xf] %vm398, %v418
        %9370 = vst.msk [vmem:[#allocation2 + $0x14] sm:$0xf] %vm398, %v419
        %9371 = vst.msk [vmem:[#allocation2 + $0x18] sm:$0xf] %vm398, %v420
        %9372 = vst.msk [vmem:[#allocation2 + $0x1c] sm:$0xf] %vm398, %v421
        %9373 = vst.msk [vmem:[#allocation2 + $0x20] sm:$0xf] %vm398, %v422
        %9374 = vst.msk [vmem:[#allocation2 + $0x24] sm:$0xf] %vm398, %v423
        %9375 = vst.msk [vmem:[#allocation2 + $0x28] sm:$0xf] %vm398, %v424
        %9376 = vst.msk [vmem:[#allocation2 + $0x2c] sm:$0xf] %vm398, %v425
        %9377 = vst.msk [vmem:[#allocation2 + $0x30] sm:$0xf] %vm398, %v426
        %9378 = vst.msk [vmem:[#allocation2 + $0x34] sm:$0xf] %vm398, %v427
        %9379 = vst.msk [vmem:[#allocation2 + $0x38] sm:$0xf] %vm398, %v428
        %9380 = vst.msk [vmem:[#allocation2 + $0x3c] sm:$0xf] %vm398, %v429
        %9381 = vst.msk [vmem:[#allocation2 + $0x40] sm:$0xf] %vm398, %v430
        %9382 = vst.msk [vmem:[#allocation2 + $0x44] sm:$0xf] %vm398, %v431
        %9383 = vst.msk [vmem:[#allocation2 + $0x48] sm:$0xf] %vm398, %v432
        %9384 = vst.msk [vmem:[#allocation2 + $0x4c] sm:$0xf] %vm398, %v433
        %9385 = vst.msk [vmem:[#allocation2 + $0x50] sm:$0xf] %vm398, %v434
        %9386 = vst.msk [vmem:[#allocation2 + $0x54] sm:$0xf] %vm398, %v435
        %9387 = vst.msk [vmem:[#allocation2 + $0x58] sm:$0xf] %vm398, %v436
        %9388 = vst.msk [vmem:[#allocation2 + $0x5c] sm:$0xf] %vm398, %v437
        %9389 = vst.msk [vmem:[#allocation2 + $0x60] sm:$0xf] %vm398, %v438
        %9390 = vst.msk [vmem:[#allocation2 + $0x64] sm:$0xf] %vm398, %v439
        %9391 = vst.msk [vmem:[#allocation2 + $0x68] sm:$0xf] %vm398, %v440
        %9392 = vst.msk [vmem:[#allocation2 + $0x6c] sm:$0xf] %vm398, %v441
        %9393 = vst.msk [vmem:[#allocation2 + $0x70] sm:$0xf] %vm398, %v442
        %9394 = vst.msk [vmem:[#allocation2 + $0x74] sm:$0xf] %vm398, %v443
        %9395 = vst.msk [vmem:[#allocation2 + $0x78] sm:$0xf] %vm398, %v444
        %9396 = vst.msk [vmem:[#allocation2 + $0x7c] sm:$0xf] %vm398, %v445
        %9397 = vst.msk [vmem:[#allocation2 + $0x80] sm:$0xf] %vm398, %v446
        %9398 = vst.msk [vmem:[#allocation2 + $0x84] sm:$0xf] %vm398, %v447
        %9399 = vst.msk [vmem:[#allocation2 + $0x88] sm:$0xf] %vm398, %v448
        %v9400 = vld [vmem:[#allocation2 + $0x4] sm:$0xf]
        %v9401 = vld [vmem:[#allocation2 + $0x8] sm:$0xf]
        %v9402 = vld [vmem:[#allocation2 + $0xc] sm:$0xf]
        %v9403 = vld [vmem:[#allocation2 + $0x10] sm:$0xf]
        %v9404 = vld [vmem:[#allocation2 + $0x14] sm:$0xf]
        %v9405 = vld [vmem:[#allocation2 + $0x18] sm:$0xf]
        %v9406 = vld [vmem:[#allocation2 + $0x1c] sm:$0xf]
        %v9407 = vld [vmem:[#allocation2 + $0x20] sm:$0xf]
        %v9408 = vld [vmem:[#allocation2 + $0x24] sm:$0xf]
        %v9409 = vld [vmem:[#allocation2 + $0x28] sm:$0xf]
        %v9410 = vld [vmem:[#allocation2 + $0x2c] sm:$0xf]
        %v9411 = vld [vmem:[#allocation2 + $0x30] sm:$0xf]
        %v9412 = vld [vmem:[#allocation2 + $0x34] sm:$0xf]
        %v9413 = vld [vmem:[#allocation2 + $0x38] sm:$0xf]
        %v9414 = vld [vmem:[#allocation2 + $0x3c] sm:$0xf]
        %v9415 = vld [vmem:[#allocation2 + $0x40] sm:$0xf]
        %v9416 = vld [vmem:[#allocation2 + $0x44] sm:$0xf]
        %v9417 = vld [vmem:[#allocation2 + $0x48] sm:$0xf]
        %v9418 = vld [vmem:[#allocation2 + $0x4c] sm:$0xf]
        %v9419 = vld [vmem:[#allocation2 + $0x50] sm:$0xf]
        %v9420 = vld [vmem:[#allocation2 + $0x54] sm:$0xf]
        %v9421 = vld [vmem:[#allocation2 + $0x58] sm:$0xf]
        %v9422 = vld [vmem:[#allocation2 + $0x5c] sm:$0xf]
        %v9423 = vld [vmem:[#allocation2 + $0x60] sm:$0xf]
        %v9424 = vld [vmem:[#allocation2 + $0x64] sm:$0xf]
        %v9425 = vld [vmem:[#allocation2 + $0x68] sm:$0xf]
        %v9426 = vld [vmem:[#allocation2 + $0x6c] sm:$0xf]
        %v9427 = vld [vmem:[#allocation2 + $0x70] sm:$0xf]
        %v9428 = vld [vmem:[#allocation2 + $0x74] sm:$0xf]
        %v9429 = vld [vmem:[#allocation2 + $0x78] sm:$0xf]
        %v9430 = vld [vmem:[#allocation2 + $0x7c] sm:$0xf]
        %v9431 = vld [vmem:[#allocation2 + $0x80] sm:$0xf]
        %v9432 = vld [vmem:[#allocation2 + $0x84] sm:$0xf]
        %v9433 = vld [vmem:[#allocation2 + $0x88] sm:$0xf]
        %v9434 = vunpack.c.l.bf16 %v9400
        %v9435 = vunpack.c.l.bf16 %v9401
        %v9436 = vunpack.c.l.bf16 %v9402
        %v9437 = vunpack.c.l.bf16 %v9403
        %v9438 = vunpack.c.l.bf16 %v9404
        %v9439 = vunpack.c.l.bf16 %v9405
        %v9440 = vunpack.c.l.bf16 %v9406
        %v9441 = vunpack.c.l.bf16 %v9407
        %v9442 = vunpack.c.l.bf16 %v9408
        %v9443 = vunpack.c.l.bf16 %v9409
        %v9444 = vunpack.c.l.bf16 %v9410
        %v9445 = vunpack.c.l.bf16 %v9411
        %v9446 = vunpack.c.l.bf16 %v9412
        %v9447 = vunpack.c.l.bf16 %v9413
        %v9448 = vunpack.c.l.bf16 %v9414
        %v9449 = vunpack.c.l.bf16 %v9415
        %v9450 = vunpack.c.l.bf16 %v9416
        %v9451 = vunpack.c.l.bf16 %v9417
        %v9452 = vunpack.c.l.bf16 %v9418
        %v9453 = vunpack.c.l.bf16 %v9419
        %v9454 = vunpack.c.l.bf16 %v9420
        %v9455 = vunpack.c.l.bf16 %v9421
        %v9456 = vunpack.c.l.bf16 %v9422
        %v9457 = vunpack.c.l.bf16 %v9423
        %v9458 = vunpack.c.l.bf16 %v9424
        %v9459 = vunpack.c.l.bf16 %v9425
        %v9460 = vunpack.c.l.bf16 %v9426
        %v9461 = vunpack.c.l.bf16 %v9427
        %v9462 = vunpack.c.l.bf16 %v9428
        %v9463 = vunpack.c.l.bf16 %v9429
        %v9464 = vunpack.c.l.bf16 %v9430
        %v9465 = vunpack.c.l.bf16 %v9431
        %v9466 = vunpack.c.l.bf16 %v9432
        %v9467 = vunpack.c.l.bf16 %v9433
        %v9468 = vmax.f32 %v9434, %v9436
        %v9469 = vmax.f32 %v9435, %v9437
        %v9470 = vmax.f32 %v9436, %v9438
        %v9471 = vmax.f32 %v9437, %v9439
        %v9472 = vmax.f32 %v9438, %v9440
        %v9473 = vmax.f32 %v9439, %v9441
        %v9474 = vmax.f32 %v9440, %v9442
        %v9475 = vmax.f32 %v9441, %v9443
        %v9476 = vmax.f32 %v9442, %v9444
        %v9477 = vmax.f32 %v9443, %v9445
        %v9478 = vmax.f32 %v9444, %v9446
        %v9479 = vmax.f32 %v9445, %v9447
        %v9480 = vmax.f32 %v9446, %v9448
        %v9481 = vmax.f32 %v9447, %v9449
        %v9482 = vmax.f32 %v9448, %v9450
        %v9483 = vmax.f32 %v9449, %v9451
        %v9484 = vmax.f32 %v9450, %v9452
        %v9485 = vmax.f32 %v9451, %v9453
        %v9486 = vmax.f32 %v9452, %v9454
        %v9487 = vmax.f32 %v9453, %v9455
        %v9488 = vmax.f32 %v9454, %v9456
        %v9489 = vmax.f32 %v9455, %v9457
        %v9490 = vmax.f32 %v9456, %v9458
        %v9491 = vmax.f32 %v9457, %v9459
        %v9492 = vmax.f32 %v9458, %v9460
        %v9493 = vmax.f32 %v9459, %v9461
        %v9494 = vmax.f32 %v9460, %v9462
        %v9495 = vmax.f32 %v9461, %v9463
        %v9496 = vmax.f32 %v9462, %v9464
        %v9497 = vmax.f32 %v9463, %v9465
        %v9498 = vmax.f32 %v9464, %v9466
        %v9499 = vmax.f32 %v9465, %v9467
        %v9500 = vpack.c.bf16 %v9468, %v9468
        %v9501 = vpack.c.bf16 %v9469, %v9469
        %v9502 = vpack.c.bf16 %v9470, %v9470
        %v9503 = vpack.c.bf16 %v9471, %v9471
        %v9504 = vpack.c.bf16 %v9472, %v9472
        %v9505 = vpack.c.bf16 %v9473, %v9473
        %v9506 = vpack.c.bf16 %v9474, %v9474
        %v9507 = vpack.c.bf16 %v9475, %v9475
        %v9508 = vpack.c.bf16 %v9476, %v9476
        %v9509 = vpack.c.bf16 %v9477, %v9477
        %v9510 = vpack.c.bf16 %v9478, %v9478
        %v9511 = vpack.c.bf16 %v9479, %v9479
        %v9512 = vpack.c.bf16 %v9480, %v9480
        %v9513 = vpack.c.bf16 %v9481, %v9481
        %v9514 = vpack.c.bf16 %v9482, %v9482
        %v9515 = vpack.c.bf16 %v9483, %v9483
        %v9516 = vpack.c.bf16 %v9484, %v9484
        %v9517 = vpack.c.bf16 %v9485, %v9485
        %v9518 = vpack.c.bf16 %v9486, %v9486
        %v9519 = vpack.c.bf16 %v9487, %v9487
        %v9520 = vpack.c.bf16 %v9488, %v9488
        %v9521 = vpack.c.bf16 %v9489, %v9489
        %v9522 = vpack.c.bf16 %v9490, %v9490
        %v9523 = vpack.c.bf16 %v9491, %v9491
        %v9524 = vpack.c.bf16 %v9492, %v9492
        %v9525 = vpack.c.bf16 %v9493, %v9493
        %v9526 = vpack.c.bf16 %v9494, %v9494
        %v9527 = vpack.c.bf16 %v9495, %v9495
        %v9528 = vpack.c.bf16 %v9496, %v9496
        %v9529 = vpack.c.bf16 %v9497, %v9497
        %v9530 = vpack.c.bf16 %v9498, %v9498
        %v9531 = vpack.c.bf16 %v9499, %v9499
        %v9532 = vld [vmem:[#allocation2 + $0x8c] sm:$0xf]
        %v9533 = vld [vmem:[#allocation2 + $0x90] sm:$0xf]
        %v9534 = vunpack.c.l.bf16 %v9500
        %v9535 = vunpack.c.l.bf16 %v9501
        %v9536 = vunpack.c.l.bf16 %v9502
        %v9537 = vunpack.c.l.bf16 %v9503
        %v9538 = vunpack.c.l.bf16 %v9504
        %v9539 = vunpack.c.l.bf16 %v9505
        %v9540 = vunpack.c.l.bf16 %v9506
        %v9541 = vunpack.c.l.bf16 %v9507
        %v9542 = vunpack.c.l.bf16 %v9508
        %v9543 = vunpack.c.l.bf16 %v9509
        %v9544 = vunpack.c.l.bf16 %v9510
        %v9545 = vunpack.c.l.bf16 %v9511
        %v9546 = vunpack.c.l.bf16 %v9512
        %v9547 = vunpack.c.l.bf16 %v9513
        %v9548 = vunpack.c.l.bf16 %v9514
        %v9549 = vunpack.c.l.bf16 %v9515
        %v9550 = vunpack.c.l.bf16 %v9516
        %v9551 = vunpack.c.l.bf16 %v9517
        %v9552 = vunpack.c.l.bf16 %v9518
        %v9553 = vunpack.c.l.bf16 %v9519
        %v9554 = vunpack.c.l.bf16 %v9520
        %v9555 = vunpack.c.l.bf16 %v9521
        %v9556 = vunpack.c.l.bf16 %v9522
        %v9557 = vunpack.c.l.bf16 %v9523
        %v9558 = vunpack.c.l.bf16 %v9524
        %v9559 = vunpack.c.l.bf16 %v9525
        %v9560 = vunpack.c.l.bf16 %v9526
        %v9561 = vunpack.c.l.bf16 %v9527
        %v9562 = vunpack.c.l.bf16 %v9528
        %v9563 = vunpack.c.l.bf16 %v9529
        %v9564 = vunpack.c.l.bf16 %v9530
        %v9565 = vunpack.c.l.bf16 %v9531
        %v9566 = vunpack.c.l.bf16 %v9532
        %v9567 = vunpack.c.l.bf16 %v9533
        %v9568 = vmax.f32 %v9534, %v9438
        %v9569 = vmax.f32 %v9535, %v9439
        %v9570 = vmax.f32 %v9536, %v9440
        %v9571 = vmax.f32 %v9537, %v9441
        %v9572 = vmax.f32 %v9538, %v9442
        %v9573 = vmax.f32 %v9539, %v9443
        %v9574 = vmax.f32 %v9540, %v9444
        %v9575 = vmax.f32 %v9541, %v9445
        %v9576 = vmax.f32 %v9542, %v9446
        %v9577 = vmax.f32 %v9543, %v9447
        %v9578 = vmax.f32 %v9544, %v9448
        %v9579 = vmax.f32 %v9545, %v9449
        %v9580 = vmax.f32 %v9546, %v9450
        %v9581 = vmax.f32 %v9547, %v9451
        %v9582 = vmax.f32 %v9548, %v9452
        %v9583 = vmax.f32 %v9549, %v9453
        %v9584 = vmax.f32 %v9550, %v9454
        %v9585 = vmax.f32 %v9551, %v9455
        %v9586 = vmax.f32 %v9552, %v9456
        %v9587 = vmax.f32 %v9553, %v9457
        %v9588 = vmax.f32 %v9554, %v9458
        %v9589 = vmax.f32 %v9555, %v9459
        %v9590 = vmax.f32 %v9556, %v9460
        %v9591 = vmax.f32 %v9557, %v9461
        %v9592 = vmax.f32 %v9558, %v9462
        %v9593 = vmax.f32 %v9559, %v9463
        %v9594 = vmax.f32 %v9560, %v9464
        %v9595 = vmax.f32 %v9561, %v9465
        %v9596 = vmax.f32 %v9562, %v9466
        %v9597 = vmax.f32 %v9563, %v9467
        %v9598 = vmax.f32 %v9564, %v9566
        %v9599 = vmax.f32 %v9565, %v9567
        %v9600 = vpack.c.bf16 %v9568, %v9568
        %v9601 = vpack.c.bf16 %v9569, %v9569
        %v9602 = vpack.c.bf16 %v9570, %v9570
        %v9603 = vpack.c.bf16 %v9571, %v9571
        %v9604 = vpack.c.bf16 %v9572, %v9572
        %v9605 = vpack.c.bf16 %v9573, %v9573
        %v9606 = vpack.c.bf16 %v9574, %v9574
        %v9607 = vpack.c.bf16 %v9575, %v9575
        %v9608 = vpack.c.bf16 %v9576, %v9576
        %v9609 = vpack.c.bf16 %v9577, %v9577
        %v9610 = vpack.c.bf16 %v9578, %v9578
        %v9611 = vpack.c.bf16 %v9579, %v9579
        %v9612 = vpack.c.bf16 %v9580, %v9580
        %v9613 = vpack.c.bf16 %v9581, %v9581
        %v9614 = vpack.c.bf16 %v9582, %v9582
        %v9615 = vpack.c.bf16 %v9583, %v9583
        %v9616 = vpack.c.bf16 %v9584, %v9584
        %v9617 = vpack.c.bf16 %v9585, %v9585
        %v9618 = vpack.c.bf16 %v9586, %v9586
        %v9619 = vpack.c.bf16 %v9587, %v9587
        %v9620 = vpack.c.bf16 %v9588, %v9588
        %v9621 = vpack.c.bf16 %v9589, %v9589
        %v9622 = vpack.c.bf16 %v9590, %v9590
        %v9623 = vpack.c.bf16 %v9591, %v9591
        %v9624 = vpack.c.bf16 %v9592, %v9592
        %v9625 = vpack.c.bf16 %v9593, %v9593
        %v9626 = vpack.c.bf16 %v9594, %v9594
        %v9627 = vpack.c.bf16 %v9595, %v9595
        %v9628 = vpack.c.bf16 %v9596, %v9596
        %v9629 = vpack.c.bf16 %v9597, %v9597
        %v9630 = vpack.c.bf16 %v9598, %v9598
        %v9631 = vpack.c.bf16 %v9599, %v9599
        %v9632 = vld [vmem:[#allocation2] sm:$0x8]
        %v9633 = vld [vmem:[#allocation2 + $0x8] sm:$0x8]
        %v9634 = vunpack.c.l.bf16 %v9632
        %v9635 = vunpack.c.l.bf16 %v9633
        %v9636 = vmax.f32 %v9634, %v9635
        %v9637 = vpack.c.bf16 %v9636, %v9636
        %v9638 = vld [vmem:[#allocation2 + $0x10] sm:$0x8]
        %v9639 = vunpack.c.l.bf16 %v9637
        %v9640 = vunpack.c.l.bf16 %v9638
        %v9641 = vmax.f32 %v9639, %v9640
        %v9642 = vpack.c.bf16 %v9641, %v9641
        %v9643 = vld [vmem:[#allocation2 + $0x84] sm:$0x1]
        %v9644 = vld [vmem:[#allocation2 + $0x8c] sm:$0x1]
        %v9645 = vunpack.c.l.bf16 %v9643
        %v9646 = vunpack.c.l.bf16 %v9644
        %v9647 = vmax.f32 %v9645, %v9646
        %v9648 = vpack.c.bf16 %v9647, %v9647
        %v9649 = vld [vmem:[#allocation2 + $0x94] sm:$0x1]
        %v9650 = vunpack.c.l.bf16 %v9648
        %v9651 = vunpack.c.l.bf16 %v9649
        %v9652 = vmax.f32 %v9650, %v9651
        %v9653 = vpack.c.bf16 %v9652, %v9652
        %v9654 = vsel %vm513, 1, 0
        %v9655 = vsel %vm514, 1, 0
        %v9656 = vsel %vm515, 1, 0
        %v9657 = vsel %vm516, 1, 0
        %v9658 = vsel %vm517, 1, 0
        %v9659 = vsel %vm518, 1, 0
        %v9660 = vsel %vm519, 1, 0
        %v9661 = vsel %vm520, 1, 0
        %v9662 = vsel %vm521, 1, 0
        %v9663 = vsel %vm522, 1, 0
        %v9664 = vsel %vm523, 1, 0
        %v9665 = vsel %vm524, 1, 0
        %v9666 = vsel %vm525, 1, 0
        %v9667 = vsel %vm526, 1, 0
        %v9668 = vsel %vm527, 1, 0
        %v9669 = vsel %vm528, 1, 0
        %v9670 = vsel %vm529, 1, 0
        %v9671 = vsel %vm530, 1, 0
        %v9672 = vsel %vm531, 1, 0
        %v9673 = vsel %vm532, 1, 0
        %v9674 = vsel %vm533, 1, 0
        %v9675 = vsel %vm534, 1, 0
        %v9676 = vsel %vm535, 1, 0
        %v9677 = vsel %vm536, 1, 0
        %v9678 = vsel %vm537, 1, 0
        %v9679 = vsel %vm538, 1, 0
        %v9680 = vsel %vm539, 1, 0
        %v9681 = vsel %vm540, 1, 0
        %v9682 = vsel %vm541, 1, 0
        %v9683 = vsel %vm542, 1, 0
        %v9684 = vsel %vm543, 1, 0
        %v9685 = vsel %vm544, 1, 0
        %9686 = vset.pattern.permute.xlu0 0
        %9687 = vperm.xlu0 %9686, %v9654
        %v9688 = vpop.permute.xlu0 %9687
        %9689 = vset.pattern.permute.xlu0 0
        %9690 = vperm.xlu0 %9689, %v9655
        %v9691 = vpop.permute.xlu0 %9690
        %9692 = vset.pattern.permute.xlu0 0
        %9693 = vperm.xlu0 %9692, %v9656
        %v9694 = vpop.permute.xlu0 %9693
        %9695 = vset.pattern.permute.xlu0 0
        %9696 = vperm.xlu0 %9695, %v9657
        %v9697 = vpop.permute.xlu0 %9696
        %9698 = vset.pattern.permute.xlu0 0
        %9699 = vperm.xlu0 %9698, %v9658
        %v9700 = vpop.permute.xlu0 %9699
        %9701 = vset.pattern.permute.xlu0 0
        %9702 = vperm.xlu0 %9701, %v9659
        %v9703 = vpop.permute.xlu0 %9702
        %9704 = vset.pattern.permute.xlu0 0
        %9705 = vperm.xlu0 %9704, %v9660
        %v9706 = vpop.permute.xlu0 %9705
        %9707 = vset.pattern.permute.xlu0 0
        %9708 = vperm.xlu0 %9707, %v9661
        %v9709 = vpop.permute.xlu0 %9708
        %9710 = vset.pattern.permute.xlu0 0
        %9711 = vperm.xlu0 %9710, %v9662
        %v9712 = vpop.permute.xlu0 %9711
        %9713 = vset.pattern.permute.xlu0 0
        %9714 = vperm.xlu0 %9713, %v9663
        %v9715 = vpop.permute.xlu0 %9714
        %9716 = vset.pattern.permute.xlu0 0
        %9717 = vperm.xlu0 %9716, %v9664
        %v9718 = vpop.permute.xlu0 %9717
        %9719 = vset.pattern.permute.xlu0 0
        %9720 = vperm.xlu0 %9719, %v9665
        %v9721 = vpop.permute.xlu0 %9720
        %9722 = vset.pattern.permute.xlu0 0
        %9723 = vperm.xlu0 %9722, %v9666
        %v9724 = vpop.permute.xlu0 %9723
        %9725 = vset.pattern.permute.xlu0 0
        %9726 = vperm.xlu0 %9725, %v9667
        %v9727 = vpop.permute.xlu0 %9726
        %9728 = vset.pattern.permute.xlu0 0
        %9729 = vperm.xlu0 %9728, %v9668
        %v9730 = vpop.permute.xlu0 %9729
        %9731 = vset.pattern.permute.xlu0 0
        %9732 = vperm.xlu0 %9731, %v9669
        %v9733 = vpop.permute.xlu0 %9732
        %9734 = vset.pattern.permute.xlu0 0
        %9735 = vperm.xlu0 %9734, %v9670
        %v9736 = vpop.permute.xlu0 %9735
        %9737 = vset.pattern.permute.xlu0 0
        %9738 = vperm.xlu0 %9737, %v9671
        %v9739 = vpop.permute.xlu0 %9738
        %9740 = vset.pattern.permute.xlu0 0
        %9741 = vperm.xlu0 %9740, %v9672
        %v9742 = vpop.permute.xlu0 %9741
        %9743 = vset.pattern.permute.xlu0 0
        %9744 = vperm.xlu0 %9743, %v9673
        %v9745 = vpop.permute.xlu0 %9744
        %9746 = vset.pattern.permute.xlu0 0
        %9747 = vperm.xlu0 %9746, %v9674
        %v9748 = vpop.permute.xlu0 %9747
        %9749 = vset.pattern.permute.xlu0 0
        %9750 = vperm.xlu0 %9749, %v9675
        %v9751 = vpop.permute.xlu0 %9750
        %9752 = vset.pattern.permute.xlu0 0
        %9753 = vperm.xlu0 %9752, %v9676
        %v9754 = vpop.permute.xlu0 %9753
        %9755 = vset.pattern.permute.xlu0 0
        %9756 = vperm.xlu0 %9755, %v9677
        %v9757 = vpop.permute.xlu0 %9756
        %9758 = vset.pattern.permute.xlu0 0
        %9759 = vperm.xlu0 %9758, %v9678
        %v9760 = vpop.permute.xlu0 %9759
        %9761 = vset.pattern.permute.xlu0 0
        %9762 = vperm.xlu0 %9761, %v9679
        %v9763 = vpop.permute.xlu0 %9762
        %9764 = vset.pattern.permute.xlu0 0
        %9765 = vperm.xlu0 %9764, %v9680
        %v9766 = vpop.permute.xlu0 %9765
        %9767 = vset.pattern.permute.xlu0 0
        %9768 = vperm.xlu0 %9767, %v9681
        %v9769 = vpop.permute.xlu0 %9768
        %9770 = vset.pattern.permute.xlu0 0
        %9771 = vperm.xlu0 %9770, %v9682
        %v9772 = vpop.permute.xlu0 %9771
        %9773 = vset.pattern.permute.xlu0 0
        %9774 = vperm.xlu0 %9773, %v9683
        %v9775 = vpop.permute.xlu0 %9774
        %9776 = vset.pattern.permute.xlu0 0
        %9777 = vperm.xlu0 %9776, %v9684
        %v9778 = vpop.permute.xlu0 %9777
        %9779 = vset.pattern.permute.xlu0 0
        %9780 = vperm.xlu0 %9779, %v9685
        %v9781 = vpop.permute.xlu0 %9780
        %vm9782 = vcmp.eq.s32.totalorder %v9688, 1
        %vm9783 = vcmp.eq.s32.totalorder %v9691, 1
        %vm9784 = vcmp.eq.s32.totalorder %v9694, 1
        %vm9785 = vcmp.eq.s32.totalorder %v9697, 1
        %vm9786 = vcmp.eq.s32.totalorder %v9700, 1
        %vm9787 = vcmp.eq.s32.totalorder %v9703, 1
        %vm9788 = vcmp.eq.s32.totalorder %v9706, 1
        %vm9789 = vcmp.eq.s32.totalorder %v9709, 1
        %vm9790 = vcmp.eq.s32.totalorder %v9712, 1
        %vm9791 = vcmp.eq.s32.totalorder %v9715, 1
        %vm9792 = vcmp.eq.s32.totalorder %v9718, 1
        %vm9793 = vcmp.eq.s32.totalorder %v9721, 1
        %vm9794 = vcmp.eq.s32.totalorder %v9724, 1
        %vm9795 = vcmp.eq.s32.totalorder %v9727, 1
        %vm9796 = vcmp.eq.s32.totalorder %v9730, 1
        %vm9797 = vcmp.eq.s32.totalorder %v9733, 1
        %vm9798 = vcmp.eq.s32.totalorder %v9736, 1
        %vm9799 = vcmp.eq.s32.totalorder %v9739, 1
        %vm9800 = vcmp.eq.s32.totalorder %v9742, 1
        %vm9801 = vcmp.eq.s32.totalorder %v9745, 1
        %vm9802 = vcmp.eq.s32.totalorder %v9748, 1
        %vm9803 = vcmp.eq.s32.totalorder %v9751, 1
        %vm9804 = vcmp.eq.s32.totalorder %v9754, 1
        %vm9805 = vcmp.eq.s32.totalorder %v9757, 1
        %vm9806 = vcmp.eq.s32.totalorder %v9760, 1
        %vm9807 = vcmp.eq.s32.totalorder %v9763, 1
        %vm9808 = vcmp.eq.s32.totalorder %v9766, 1
        %vm9809 = vcmp.eq.s32.totalorder %v9769, 1
        %vm9810 = vcmp.eq.s32.totalorder %v9772, 1
        %vm9811 = vcmp.eq.s32.totalorder %v9775, 1
        %vm9812 = vcmp.eq.s32.totalorder %v9778, 1
        %vm9813 = vcmp.eq.s32.totalorder %v9781, 1
        %vm9814 = vmpackc.low %vm9782, %vm9782
        %vm9815 = vmpackc.low %vm9783, %vm9783
        %vm9816 = vmpackc.low %vm9784, %vm9784
        %vm9817 = vmpackc.low %vm9785, %vm9785
        %vm9818 = vmpackc.low %vm9786, %vm9786
        %vm9819 = vmpackc.low %vm9787, %vm9787
        %vm9820 = vmpackc.low %vm9788, %vm9788
        %vm9821 = vmpackc.low %vm9789, %vm9789
        %vm9822 = vmpackc.low %vm9790, %vm9790
        %vm9823 = vmpackc.low %vm9791, %vm9791
        %vm9824 = vmpackc.low %vm9792, %vm9792
        %vm9825 = vmpackc.low %vm9793, %vm9793
        %vm9826 = vmpackc.low %vm9794, %vm9794
        %vm9827 = vmpackc.low %vm9795, %vm9795
        %vm9828 = vmpackc.low %vm9796, %vm9796
        %vm9829 = vmpackc.low %vm9797, %vm9797
        %vm9830 = vmpackc.low %vm9798, %vm9798
        %vm9831 = vmpackc.low %vm9799, %vm9799
        %vm9832 = vmpackc.low %vm9800, %vm9800
        %vm9833 = vmpackc.low %vm9801, %vm9801
        %vm9834 = vmpackc.low %vm9802, %vm9802
        %vm9835 = vmpackc.low %vm9803, %vm9803
        %vm9836 = vmpackc.low %vm9804, %vm9804
        %vm9837 = vmpackc.low %vm9805, %vm9805
        %vm9838 = vmpackc.low %vm9806, %vm9806
        %vm9839 = vmpackc.low %vm9807, %vm9807
        %vm9840 = vmpackc.low %vm9808, %vm9808
        %vm9841 = vmpackc.low %vm9809, %vm9809
        %vm9842 = vmpackc.low %vm9810, %vm9810
        %vm9843 = vmpackc.low %vm9811, %vm9811
        %vm9844 = vmpackc.low %vm9812, %vm9812
        %vm9845 = vmpackc.low %vm9813, %vm9813
        %v9846 = vsel %vm9814, 65537, 0
        %v9847 = vsel %vm9815, 65537, 0
        %v9848 = vsel %vm9816, 65537, 0
        %v9849 = vsel %vm9817, 65537, 0
        %v9850 = vsel %vm9818, 65537, 0
        %v9851 = vsel %vm9819, 65537, 0
        %v9852 = vsel %vm9820, 65537, 0
        %v9853 = vsel %vm9821, 65537, 0
        %v9854 = vsel %vm9822, 65537, 0
        %v9855 = vsel %vm9823, 65537, 0
        %v9856 = vsel %vm9824, 65537, 0
        %v9857 = vsel %vm9825, 65537, 0
        %v9858 = vsel %vm9826, 65537, 0
        %v9859 = vsel %vm9827, 65537, 0
        %v9860 = vsel %vm9828, 65537, 0
        %v9861 = vsel %vm9829, 65537, 0
        %v9862 = vsel %vm9830, 65537, 0
        %v9863 = vsel %vm9831, 65537, 0
        %v9864 = vsel %vm9832, 65537, 0
        %v9865 = vsel %vm9833, 65537, 0
        %v9866 = vsel %vm9834, 65537, 0
        %v9867 = vsel %vm9835, 65537, 0
        %v9868 = vsel %vm9836, 65537, 0
        %v9869 = vsel %vm9837, 65537, 0
        %v9870 = vsel %vm9838, 65537, 0
        %v9871 = vsel %vm9839, 65537, 0
        %v9872 = vsel %vm9840, 65537, 0
        %v9873 = vsel %vm9841, 65537, 0
        %v9874 = vsel %vm9842, 65537, 0
        %v9875 = vsel %vm9843, 65537, 0
        %v9876 = vsel %vm9844, 65537, 0
        %v9877 = vsel %vm9845, 65537, 0
        %vm9878 = vsmask.f32 3328
        %vm9879 = vsmask.f32 7440
        %vm9880 = vmor %vm9878, %vm9879
        %v9882 = vshll.u32 %v9846, 16
        %v9884 = vrot.slane %v9882, 5
        %v9885 = vshrl.u32 %v9846, 16
        %v9887 = vrot.slane %v9885, 4
        %v9888 = vor.u32 %v9887, %v9884
        %v9889 = vrot.slane %v9888, 4
        %v9891 = vshll.u32 %v9847, 16
        %v9893 = vrot.slane %v9891, 5
        %v9894 = vsel %vm9880, %v9889, %v9893
        %v9895 = vshrl.u32 %v9847, 16
        %v9897 = vrot.slane %v9895, 4
        %v9898 = vor.u32 %v9897, %v9893
        %v9899 = vrot.slane %v9898, 4
        %v9901 = vshll.u32 %v9848, 16
        %v9903 = vrot.slane %v9901, 5
        %v9904 = vsel %vm9880, %v9899, %v9903
        %v9905 = vshrl.u32 %v9848, 16
        %v9907 = vrot.slane %v9905, 4
        %v9908 = vor.u32 %v9907, %v9903
        %v9909 = vrot.slane %v9908, 4
        %v9911 = vshll.u32 %v9849, 16
        %v9913 = vrot.slane %v9911, 5
        %v9914 = vsel %vm9880, %v9909, %v9913
        %v9915 = vshrl.u32 %v9849, 16
        %v9917 = vrot.slane %v9915, 4
        %v9918 = vor.u32 %v9917, %v9913
        %v9919 = vrot.slane %v9918, 4
        %v9921 = vshll.u32 %v9850, 16
        %v9923 = vrot.slane %v9921, 5
        %v9924 = vsel %vm9880, %v9919, %v9923
        %v9925 = vshrl.u32 %v9850, 16
        %v9927 = vrot.slane %v9925, 4
        %v9928 = vor.u32 %v9927, %v9923
        %v9929 = vrot.slane %v9928, 4
        %v9931 = vshll.u32 %v9851, 16
        %v9933 = vrot.slane %v9931, 5
        %v9934 = vsel %vm9880, %v9929, %v9933
        %v9935 = vshrl.u32 %v9851, 16
        %v9937 = vrot.slane %v9935, 4
        %v9938 = vor.u32 %v9937, %v9933
        %v9939 = vrot.slane %v9938, 4
        %v9941 = vshll.u32 %v9852, 16
        %v9943 = vrot.slane %v9941, 5
        %v9944 = vsel %vm9880, %v9939, %v9943
        %v9945 = vshrl.u32 %v9852, 16
        %v9947 = vrot.slane %v9945, 4
        %v9948 = vor.u32 %v9947, %v9943
        %v9949 = vrot.slane %v9948, 4
        %v9951 = vshll.u32 %v9853, 16
        %v9953 = vrot.slane %v9951, 5
        %v9954 = vsel %vm9880, %v9949, %v9953
        %v9955 = vshrl.u32 %v9853, 16
        %v9957 = vrot.slane %v9955, 4
        %v9958 = vor.u32 %v9957, %v9953
        %v9959 = vrot.slane %v9958, 4
        %v9961 = vshll.u32 %v9854, 16
        %v9963 = vrot.slane %v9961, 5
        %v9964 = vsel %vm9880, %v9959, %v9963
        %v9965 = vshrl.u32 %v9854, 16
        %v9967 = vrot.slane %v9965, 4
        %v9968 = vor.u32 %v9967, %v9963
        %v9969 = vrot.slane %v9968, 4
        %v9971 = vshll.u32 %v9855, 16
        %v9973 = vrot.slane %v9971, 5
        %v9974 = vsel %vm9880, %v9969, %v9973
        %v9975 = vshrl.u32 %v9855, 16
        %v9977 = vrot.slane %v9975, 4
        %v9978 = vor.u32 %v9977, %v9973
        %v9979 = vrot.slane %v9978, 4
        %v9981 = vshll.u32 %v9856, 16
        %v9983 = vrot.slane %v9981, 5
        %v9984 = vsel %vm9880, %v9979, %v9983
        %v9985 = vshrl.u32 %v9856, 16
        %v9987 = vrot.slane %v9985, 4
        %v9988 = vor.u32 %v9987, %v9983
        %v9989 = vrot.slane %v9988, 4
        %v9991 = vshll.u32 %v9857, 16
        %v9993 = vrot.slane %v9991, 5
        %v9994 = vsel %vm9880, %v9989, %v9993
        %v9995 = vshrl.u32 %v9857, 16
        %v9997 = vrot.slane %v9995, 4
        %v9998 = vor.u32 %v9997, %v9993
        %v9999 = vrot.slane %v9998, 4
        %v10001 = vshll.u32 %v9858, 16
        %v10003 = vrot.slane %v10001, 5
        %v10004 = vsel %vm9880, %v9999, %v10003
        %v10005 = vshrl.u32 %v9858, 16
        %v10007 = vrot.slane %v10005, 4
        %v10008 = vor.u32 %v10007, %v10003
        %v10009 = vrot.slane %v10008, 4
        %v10011 = vshll.u32 %v9859, 16
        %v10013 = vrot.slane %v10011, 5
        %v10014 = vsel %vm9880, %v10009, %v10013
        %v10015 = vshrl.u32 %v9859, 16
        %v10017 = vrot.slane %v10015, 4
        %v10018 = vor.u32 %v10017, %v10013
        %v10019 = vrot.slane %v10018, 4
        %v10021 = vshll.u32 %v9860, 16
        %v10023 = vrot.slane %v10021, 5
        %v10024 = vsel %vm9880, %v10019, %v10023
        %v10025 = vshrl.u32 %v9860, 16
        %v10027 = vrot.slane %v10025, 4
        %v10028 = vor.u32 %v10027, %v10023
        %v10029 = vrot.slane %v10028, 4
        %v10031 = vshll.u32 %v9861, 16
        %v10033 = vrot.slane %v10031, 5
        %v10034 = vsel %vm9880, %v10029, %v10033
        %v10035 = vshrl.u32 %v9861, 16
        %v10037 = vrot.slane %v10035, 4
        %v10038 = vor.u32 %v10037, %v10033
        %v10039 = vrot.slane %v10038, 4
        %v10041 = vshll.u32 %v9862, 16
        %v10043 = vrot.slane %v10041, 5
        %v10044 = vsel %vm9880, %v10039, %v10043
        %v10045 = vshrl.u32 %v9862, 16
        %v10047 = vrot.slane %v10045, 4
        %v10048 = vor.u32 %v10047, %v10043
        %v10049 = vrot.slane %v10048, 4
        %v10051 = vshll.u32 %v9863, 16
        %v10053 = vrot.slane %v10051, 5
        %v10054 = vsel %vm9880, %v10049, %v10053
        %v10055 = vshrl.u32 %v9863, 16
        %v10057 = vrot.slane %v10055, 4
        %v10058 = vor.u32 %v10057, %v10053
        %v10059 = vrot.slane %v10058, 4
        %v10061 = vshll.u32 %v9864, 16
        %v10063 = vrot.slane %v10061, 5
        %v10064 = vsel %vm9880, %v10059, %v10063
        %v10065 = vshrl.u32 %v9864, 16
        %v10067 = vrot.slane %v10065, 4
        %v10068 = vor.u32 %v10067, %v10063
        %v10069 = vrot.slane %v10068, 4
        %v10071 = vshll.u32 %v9865, 16
        %v10073 = vrot.slane %v10071, 5
        %v10074 = vsel %vm9880, %v10069, %v10073
        %v10075 = vshrl.u32 %v9865, 16
        %v10077 = vrot.slane %v10075, 4
        %v10078 = vor.u32 %v10077, %v10073
        %v10079 = vrot.slane %v10078, 4
        %v10081 = vshll.u32 %v9866, 16
        %v10083 = vrot.slane %v10081, 5
        %v10084 = vsel %vm9880, %v10079, %v10083
        %v10085 = vshrl.u32 %v9866, 16
        %v10087 = vrot.slane %v10085, 4
        %v10088 = vor.u32 %v10087, %v10083
        %v10089 = vrot.slane %v10088, 4
        %v10091 = vshll.u32 %v9867, 16
        %v10093 = vrot.slane %v10091, 5
        %v10094 = vsel %vm9880, %v10089, %v10093
        %v10095 = vshrl.u32 %v9867, 16
        %v10097 = vrot.slane %v10095, 4
        %v10098 = vor.u32 %v10097, %v10093
        %v10099 = vrot.slane %v10098, 4
        %v10101 = vshll.u32 %v9868, 16
        %v10103 = vrot.slane %v10101, 5
        %v10104 = vsel %vm9880, %v10099, %v10103
        %v10105 = vshrl.u32 %v9868, 16
        %v10107 = vrot.slane %v10105, 4
        %v10108 = vor.u32 %v10107, %v10103
        %v10109 = vrot.slane %v10108, 4
        %v10111 = vshll.u32 %v9869, 16
        %v10113 = vrot.slane %v10111, 5
        %v10114 = vsel %vm9880, %v10109, %v10113
        %v10115 = vshrl.u32 %v9869, 16
        %v10117 = vrot.slane %v10115, 4
        %v10118 = vor.u32 %v10117, %v10113
        %v10119 = vrot.slane %v10118, 4
        %v10121 = vshll.u32 %v9870, 16
        %v10123 = vrot.slane %v10121, 5
        %v10124 = vsel %vm9880, %v10119, %v10123
        %v10125 = vshrl.u32 %v9870, 16
        %v10127 = vrot.slane %v10125, 4
        %v10128 = vor.u32 %v10127, %v10123
        %v10129 = vrot.slane %v10128, 4
        %v10131 = vshll.u32 %v9871, 16
        %v10133 = vrot.slane %v10131, 5
        %v10134 = vsel %vm9880, %v10129, %v10133
        %v10135 = vshrl.u32 %v9871, 16
        %v10137 = vrot.slane %v10135, 4
        %v10138 = vor.u32 %v10137, %v10133
        %v10139 = vrot.slane %v10138, 4
        %v10141 = vshll.u32 %v9872, 16
        %v10143 = vrot.slane %v10141, 5
        %v10144 = vsel %vm9880, %v10139, %v10143
        %v10145 = vshrl.u32 %v9872, 16
        %v10147 = vrot.slane %v10145, 4
        %v10148 = vor.u32 %v10147, %v10143
        %v10149 = vrot.slane %v10148, 4
        %v10151 = vshll.u32 %v9873, 16
        %v10153 = vrot.slane %v10151, 5
        %v10154 = vsel %vm9880, %v10149, %v10153
        %v10155 = vshrl.u32 %v9873, 16
        %v10157 = vrot.slane %v10155, 4
        %v10158 = vor.u32 %v10157, %v10153
        %v10159 = vrot.slane %v10158, 4
        %v10161 = vshll.u32 %v9874, 16
        %v10163 = vrot.slane %v10161, 5
        %v10164 = vsel %vm9880, %v10159, %v10163
        %v10165 = vshrl.u32 %v9874, 16
        %v10167 = vrot.slane %v10165, 4
        %v10168 = vor.u32 %v10167, %v10163
        %v10169 = vrot.slane %v10168, 4
        %v10171 = vshll.u32 %v9875, 16
        %v10173 = vrot.slane %v10171, 5
        %v10174 = vsel %vm9880, %v10169, %v10173
        %v10175 = vshrl.u32 %v9875, 16
        %v10177 = vrot.slane %v10175, 4
        %v10178 = vor.u32 %v10177, %v10173
        %v10179 = vrot.slane %v10178, 4
        %v10181 = vshll.u32 %v9876, 16
        %v10183 = vrot.slane %v10181, 5
        %v10184 = vsel %vm9880, %v10179, %v10183
        %v10185 = vshrl.u32 %v9876, 16
        %v10187 = vrot.slane %v10185, 4
        %v10188 = vor.u32 %v10187, %v10183
        %v10189 = vrot.slane %v10188, 4
        %v10191 = vshll.u32 %v9877, 16
        %v10193 = vrot.slane %v10191, 5
        %v10194 = vsel %vm9880, %v10189, %v10193
        %v10195 = vshrl.u32 %v9877, 16
        %v10197 = vrot.slane %v10195, 4
        %v10198 = vor.u32 %v10197, %v10193
        %v10199 = vrot.slane %v10198, 4
        %v10200 = vunpack.c.l.b16 %v9884
        %v10201 = vunpack.c.h.b16 %v9884
        %v10202 = vunpack.c.l.b16 0
        %v10203 = vunpack.c.h.b16 0
        %vm10204 = vcmp.ne.s32.totalorder %v10200, %v10202
        %vm10205 = vcmp.ne.s32.totalorder %v10201, %v10203
        %vm10206 = vmpackc.low %vm10205, %vm10204
        %v10207 = vunpack.c.l.b16 %v9894
        %v10208 = vunpack.c.h.b16 %v9894
        %v10209 = vunpack.c.l.b16 0
        %v10210 = vunpack.c.h.b16 0
        %vm10211 = vcmp.ne.s32.totalorder %v10207, %v10209
        %vm10212 = vcmp.ne.s32.totalorder %v10208, %v10210
        %vm10213 = vmpackc.low %vm10212, %vm10211
        %v10214 = vunpack.c.l.b16 %v9904
        %v10215 = vunpack.c.h.b16 %v9904
        %v10216 = vunpack.c.l.b16 0
        %v10217 = vunpack.c.h.b16 0
        %vm10218 = vcmp.ne.s32.totalorder %v10214, %v10216
        %vm10219 = vcmp.ne.s32.totalorder %v10215, %v10217
        %vm10220 = vmpackc.low %vm10219, %vm10218
        %v10221 = vunpack.c.l.b16 %v9914
        %v10222 = vunpack.c.h.b16 %v9914
        %v10223 = vunpack.c.l.b16 0
        %v10224 = vunpack.c.h.b16 0
        %vm10225 = vcmp.ne.s32.totalorder %v10221, %v10223
        %vm10226 = vcmp.ne.s32.totalorder %v10222, %v10224
        %vm10227 = vmpackc.low %vm10226, %vm10225
        %v10228 = vunpack.c.l.b16 %v9924
        %v10229 = vunpack.c.h.b16 %v9924
        %v10230 = vunpack.c.l.b16 0
        %v10231 = vunpack.c.h.b16 0
        %vm10232 = vcmp.ne.s32.totalorder %v10228, %v10230
        %vm10233 = vcmp.ne.s32.totalorder %v10229, %v10231
        %vm10234 = vmpackc.low %vm10233, %vm10232
        %v10235 = vunpack.c.l.b16 %v9934
        %v10236 = vunpack.c.h.b16 %v9934
        %v10237 = vunpack.c.l.b16 0
        %v10238 = vunpack.c.h.b16 0
        %vm10239 = vcmp.ne.s32.totalorder %v10235, %v10237
        %vm10240 = vcmp.ne.s32.totalorder %v10236, %v10238
        %vm10241 = vmpackc.low %vm10240, %vm10239
        %v10242 = vunpack.c.l.b16 %v9944
        %v10243 = vunpack.c.h.b16 %v9944
        %v10244 = vunpack.c.l.b16 0
        %v10245 = vunpack.c.h.b16 0
        %vm10246 = vcmp.ne.s32.totalorder %v10242, %v10244
        %vm10247 = vcmp.ne.s32.totalorder %v10243, %v10245
        %vm10248 = vmpackc.low %vm10247, %vm10246
        %v10249 = vunpack.c.l.b16 %v9954
        %v10250 = vunpack.c.h.b16 %v9954
        %v10251 = vunpack.c.l.b16 0
        %v10252 = vunpack.c.h.b16 0
        %vm10253 = vcmp.ne.s32.totalorder %v10249, %v10251
        %vm10254 = vcmp.ne.s32.totalorder %v10250, %v10252
        %vm10255 = vmpackc.low %vm10254, %vm10253
        %v10256 = vunpack.c.l.b16 %v9964
        %v10257 = vunpack.c.h.b16 %v9964
        %v10258 = vunpack.c.l.b16 0
        %v10259 = vunpack.c.h.b16 0
        %vm10260 = vcmp.ne.s32.totalorder %v10256, %v10258
        %vm10261 = vcmp.ne.s32.totalorder %v10257, %v10259
        %vm10262 = vmpackc.low %vm10261, %vm10260
        %v10263 = vunpack.c.l.b16 %v9974
        %v10264 = vunpack.c.h.b16 %v9974
        %v10265 = vunpack.c.l.b16 0
        %v10266 = vunpack.c.h.b16 0
        %vm10267 = vcmp.ne.s32.totalorder %v10263, %v10265
        %vm10268 = vcmp.ne.s32.totalorder %v10264, %v10266
        %vm10269 = vmpackc.low %vm10268, %vm10267
        %v10270 = vunpack.c.l.b16 %v9984
        %v10271 = vunpack.c.h.b16 %v9984
        %v10272 = vunpack.c.l.b16 0
        %v10273 = vunpack.c.h.b16 0
        %vm10274 = vcmp.ne.s32.totalorder %v10270, %v10272
        %vm10275 = vcmp.ne.s32.totalorder %v10271, %v10273
        %vm10276 = vmpackc.low %vm10275, %vm10274
        %v10277 = vunpack.c.l.b16 %v9994
        %v10278 = vunpack.c.h.b16 %v9994
        %v10279 = vunpack.c.l.b16 0
        %v10280 = vunpack.c.h.b16 0
        %vm10281 = vcmp.ne.s32.totalorder %v10277, %v10279
        %vm10282 = vcmp.ne.s32.totalorder %v10278, %v10280
        %vm10283 = vmpackc.low %vm10282, %vm10281
        %v10284 = vunpack.c.l.b16 %v10004
        %v10285 = vunpack.c.h.b16 %v10004
        %v10286 = vunpack.c.l.b16 0
        %v10287 = vunpack.c.h.b16 0
        %vm10288 = vcmp.ne.s32.totalorder %v10284, %v10286
        %vm10289 = vcmp.ne.s32.totalorder %v10285, %v10287
        %vm10290 = vmpackc.low %vm10289, %vm10288
        %v10291 = vunpack.c.l.b16 %v10014
        %v10292 = vunpack.c.h.b16 %v10014
        %v10293 = vunpack.c.l.b16 0
        %v10294 = vunpack.c.h.b16 0
        %vm10295 = vcmp.ne.s32.totalorder %v10291, %v10293
        %vm10296 = vcmp.ne.s32.totalorder %v10292, %v10294
        %vm10297 = vmpackc.low %vm10296, %vm10295
        %v10298 = vunpack.c.l.b16 %v10024
        %v10299 = vunpack.c.h.b16 %v10024
        %v10300 = vunpack.c.l.b16 0
        %v10301 = vunpack.c.h.b16 0
        %vm10302 = vcmp.ne.s32.totalorder %v10298, %v10300
        %vm10303 = vcmp.ne.s32.totalorder %v10299, %v10301
        %vm10304 = vmpackc.low %vm10303, %vm10302
        %v10305 = vunpack.c.l.b16 %v10034
        %v10306 = vunpack.c.h.b16 %v10034
        %v10307 = vunpack.c.l.b16 0
        %v10308 = vunpack.c.h.b16 0
        %vm10309 = vcmp.ne.s32.totalorder %v10305, %v10307
        %vm10310 = vcmp.ne.s32.totalorder %v10306, %v10308
        %vm10311 = vmpackc.low %vm10310, %vm10309
        %v10312 = vunpack.c.l.b16 %v10044
        %v10313 = vunpack.c.h.b16 %v10044
        %v10314 = vunpack.c.l.b16 0
        %v10315 = vunpack.c.h.b16 0
        %vm10316 = vcmp.ne.s32.totalorder %v10312, %v10314
        %vm10317 = vcmp.ne.s32.totalorder %v10313, %v10315
        %vm10318 = vmpackc.low %vm10317, %vm10316
        %v10319 = vunpack.c.l.b16 %v10054
        %v10320 = vunpack.c.h.b16 %v10054
        %v10321 = vunpack.c.l.b16 0
        %v10322 = vunpack.c.h.b16 0
        %vm10323 = vcmp.ne.s32.totalorder %v10319, %v10321
        %vm10324 = vcmp.ne.s32.totalorder %v10320, %v10322
        %vm10325 = vmpackc.low %vm10324, %vm10323
        %v10326 = vunpack.c.l.b16 %v10064
        %v10327 = vunpack.c.h.b16 %v10064
        %v10328 = vunpack.c.l.b16 0
        %v10329 = vunpack.c.h.b16 0
        %vm10330 = vcmp.ne.s32.totalorder %v10326, %v10328
        %vm10331 = vcmp.ne.s32.totalorder %v10327, %v10329
        %vm10332 = vmpackc.low %vm10331, %vm10330
        %v10333 = vunpack.c.l.b16 %v10074
        %v10334 = vunpack.c.h.b16 %v10074
        %v10335 = vunpack.c.l.b16 0
        %v10336 = vunpack.c.h.b16 0
        %vm10337 = vcmp.ne.s32.totalorder %v10333, %v10335
        %vm10338 = vcmp.ne.s32.totalorder %v10334, %v10336
        %vm10339 = vmpackc.low %vm10338, %vm10337
        %v10340 = vunpack.c.l.b16 %v10084
        %v10341 = vunpack.c.h.b16 %v10084
        %v10342 = vunpack.c.l.b16 0
        %v10343 = vunpack.c.h.b16 0
        %vm10344 = vcmp.ne.s32.totalorder %v10340, %v10342
        %vm10345 = vcmp.ne.s32.totalorder %v10341, %v10343
        %vm10346 = vmpackc.low %vm10345, %vm10344
        %v10347 = vunpack.c.l.b16 %v10094
        %v10348 = vunpack.c.h.b16 %v10094
        %v10349 = vunpack.c.l.b16 0
        %v10350 = vunpack.c.h.b16 0
        %vm10351 = vcmp.ne.s32.totalorder %v10347, %v10349
        %vm10352 = vcmp.ne.s32.totalorder %v10348, %v10350
        %vm10353 = vmpackc.low %vm10352, %vm10351
        %v10354 = vunpack.c.l.b16 %v10104
        %v10355 = vunpack.c.h.b16 %v10104
        %v10356 = vunpack.c.l.b16 0
        %v10357 = vunpack.c.h.b16 0
        %vm10358 = vcmp.ne.s32.totalorder %v10354, %v10356
        %vm10359 = vcmp.ne.s32.totalorder %v10355, %v10357
        %vm10360 = vmpackc.low %vm10359, %vm10358
        %v10361 = vunpack.c.l.b16 %v10114
        %v10362 = vunpack.c.h.b16 %v10114
        %v10363 = vunpack.c.l.b16 0
        %v10364 = vunpack.c.h.b16 0
        %vm10365 = vcmp.ne.s32.totalorder %v10361, %v10363
        %vm10366 = vcmp.ne.s32.totalorder %v10362, %v10364
        %vm10367 = vmpackc.low %vm10366, %vm10365
        %v10368 = vunpack.c.l.b16 %v10124
        %v10369 = vunpack.c.h.b16 %v10124
        %v10370 = vunpack.c.l.b16 0
        %v10371 = vunpack.c.h.b16 0
        %vm10372 = vcmp.ne.s32.totalorder %v10368, %v10370
        %vm10373 = vcmp.ne.s32.totalorder %v10369, %v10371
        %vm10374 = vmpackc.low %vm10373, %vm10372
        %v10375 = vunpack.c.l.b16 %v10134
        %v10376 = vunpack.c.h.b16 %v10134
        %v10377 = vunpack.c.l.b16 0
        %v10378 = vunpack.c.h.b16 0
        %vm10379 = vcmp.ne.s32.totalorder %v10375, %v10377
        %vm10380 = vcmp.ne.s32.totalorder %v10376, %v10378
        %vm10381 = vmpackc.low %vm10380, %vm10379
        %v10382 = vunpack.c.l.b16 %v10144
        %v10383 = vunpack.c.h.b16 %v10144
        %v10384 = vunpack.c.l.b16 0
        %v10385 = vunpack.c.h.b16 0
        %vm10386 = vcmp.ne.s32.totalorder %v10382, %v10384
        %vm10387 = vcmp.ne.s32.totalorder %v10383, %v10385
        %vm10388 = vmpackc.low %vm10387, %vm10386
        %v10389 = vunpack.c.l.b16 %v10154
        %v10390 = vunpack.c.h.b16 %v10154
        %v10391 = vunpack.c.l.b16 0
        %v10392 = vunpack.c.h.b16 0
        %vm10393 = vcmp.ne.s32.totalorder %v10389, %v10391
        %vm10394 = vcmp.ne.s32.totalorder %v10390, %v10392
        %vm10395 = vmpackc.low %vm10394, %vm10393
        %v10396 = vunpack.c.l.b16 %v10164
        %v10397 = vunpack.c.h.b16 %v10164
        %v10398 = vunpack.c.l.b16 0
        %v10399 = vunpack.c.h.b16 0
        %vm10400 = vcmp.ne.s32.totalorder %v10396, %v10398
        %vm10401 = vcmp.ne.s32.totalorder %v10397, %v10399
        %vm10402 = vmpackc.low %vm10401, %vm10400
        %v10403 = vunpack.c.l.b16 %v10174
        %v10404 = vunpack.c.h.b16 %v10174
        %v10405 = vunpack.c.l.b16 0
        %v10406 = vunpack.c.h.b16 0
        %vm10407 = vcmp.ne.s32.totalorder %v10403, %v10405
        %vm10408 = vcmp.ne.s32.totalorder %v10404, %v10406
        %vm10409 = vmpackc.low %vm10408, %vm10407
        %v10410 = vunpack.c.l.b16 %v10184
        %v10411 = vunpack.c.h.b16 %v10184
        %v10412 = vunpack.c.l.b16 0
        %v10413 = vunpack.c.h.b16 0
        %vm10414 = vcmp.ne.s32.totalorder %v10410, %v10412
        %vm10415 = vcmp.ne.s32.totalorder %v10411, %v10413
        %vm10416 = vmpackc.low %vm10415, %vm10414
        %v10417 = vunpack.c.l.b16 %v10194
        %v10418 = vunpack.c.h.b16 %v10194
        %v10419 = vunpack.c.l.b16 0
        %v10420 = vunpack.c.h.b16 0
        %vm10421 = vcmp.ne.s32.totalorder %v10417, %v10419
        %vm10422 = vcmp.ne.s32.totalorder %v10418, %v10420
        %vm10423 = vmpackc.low %vm10422, %vm10421
        %v10424 = vunpack.c.l.b16 %v10199
        %v10425 = vunpack.c.h.b16 %v10199
        %v10426 = vunpack.c.l.b16 0
        %v10427 = vunpack.c.h.b16 0
        %vm10428 = vcmp.ne.s32.totalorder %v10424, %v10426
        %vm10429 = vcmp.ne.s32.totalorder %v10425, %v10427
        %vm10430 = vmpackc.low %vm10429, %vm10428
        %v10431 = vsel %vm10206, %v9642, 4286644096
        %v10432 = vsel %vm10213, %v9600, 4286644096
        %v10433 = vsel %vm10220, %v9601, 4286644096
        %v10434 = vsel %vm10227, %v9602, 4286644096
        %v10435 = vsel %vm10234, %v9603, 4286644096
        %v10436 = vsel %vm10241, %v9604, 4286644096
        %v10437 = vsel %vm10248, %v9605, 4286644096
        %v10438 = vsel %vm10255, %v9606, 4286644096
        %v10439 = vsel %vm10262, %v9607, 4286644096
        %v10440 = vsel %vm10269, %v9608, 4286644096
        %v10441 = vsel %vm10276, %v9609, 4286644096
        %v10442 = vsel %vm10283, %v9610, 4286644096
        %v10443 = vsel %vm10290, %v9611, 4286644096
        %v10444 = vsel %vm10297, %v9612, 4286644096
        %v10445 = vsel %vm10304, %v9613, 4286644096
        %v10446 = vsel %vm10311, %v9614, 4286644096
        %v10447 = vsel %vm10318, %v9615, 4286644096
        %v10448 = vsel %vm10325, %v9616, 4286644096
        %v10449 = vsel %vm10332, %v9617, 4286644096
        %v10450 = vsel %vm10339, %v9618, 4286644096
        %v10451 = vsel %vm10346, %v9619, 4286644096
        %v10452 = vsel %vm10353, %v9620, 4286644096
        %v10453 = vsel %vm10360, %v9621, 4286644096
        %v10454 = vsel %vm10367, %v9622, 4286644096
        %v10455 = vsel %vm10374, %v9623, 4286644096
        %v10456 = vsel %vm10381, %v9624, 4286644096
        %v10457 = vsel %vm10388, %v9625, 4286644096
        %v10458 = vsel %vm10395, %v9626, 4286644096
        %v10459 = vsel %vm10402, %v9627, 4286644096
        %v10460 = vsel %vm10409, %v9628, 4286644096
        %v10461 = vsel %vm10416, %v9629, 4286644096
        %v10462 = vsel %vm10423, %v9630, 4286644096
        %v10463 = vsel %vm10430, %v9631, 4286644096
        %v10464 = vunpack.c.l.bf16 %v9600
        %v10465 = vunpack.c.l.bf16 %v9601
        %v10466 = vunpack.c.l.bf16 %v9602
        %v10467 = vunpack.c.l.bf16 %v9603
        %v10468 = vunpack.c.l.bf16 %v9604
        %v10469 = vunpack.c.l.bf16 %v9605
        %v10470 = vunpack.c.l.bf16 %v9606
        %v10471 = vunpack.c.l.bf16 %v9607
        %v10472 = vunpack.c.l.bf16 %v9608
        %v10473 = vunpack.c.l.bf16 %v9609
        %v10474 = vunpack.c.l.bf16 %v9610
        %v10475 = vunpack.c.l.bf16 %v9611
        %v10476 = vunpack.c.l.bf16 %v9612
        %v10477 = vunpack.c.l.bf16 %v9613
        %v10478 = vunpack.c.l.bf16 %v9614
        %v10479 = vunpack.c.l.bf16 %v9615
        %v10480 = vunpack.c.l.bf16 %v9616
        %v10481 = vunpack.c.l.bf16 %v9617
        %v10482 = vunpack.c.l.bf16 %v9618
        %v10483 = vunpack.c.l.bf16 %v9619
        %v10484 = vunpack.c.l.bf16 %v9620
        %v10485 = vunpack.c.l.bf16 %v9621
        %v10486 = vunpack.c.l.bf16 %v9622
        %v10487 = vunpack.c.l.bf16 %v9623
        %v10488 = vunpack.c.l.bf16 %v9624
        %v10489 = vunpack.c.l.bf16 %v9625
        %v10490 = vunpack.c.l.bf16 %v9626
        %v10491 = vunpack.c.l.bf16 %v9627
        %v10492 = vunpack.c.l.bf16 %v9628
        %v10493 = vunpack.c.l.bf16 %v9629
        %v10494 = vunpack.c.l.bf16 %v9630
        %v10495 = vunpack.c.l.bf16 %v9631
        %v10496 = vunpack.c.l.bf16 %v10431
        %v10497 = vunpack.c.l.bf16 %v10432
        %v10498 = vunpack.c.l.bf16 %v10433
        %v10499 = vunpack.c.l.bf16 %v10434
        %v10500 = vunpack.c.l.bf16 %v10435
        %v10501 = vunpack.c.l.bf16 %v10436
        %v10502 = vunpack.c.l.bf16 %v10437
        %v10503 = vunpack.c.l.bf16 %v10438
        %v10504 = vunpack.c.l.bf16 %v10439
        %v10505 = vunpack.c.l.bf16 %v10440
        %v10506 = vunpack.c.l.bf16 %v10441
        %v10507 = vunpack.c.l.bf16 %v10442
        %v10508 = vunpack.c.l.bf16 %v10443
        %v10509 = vunpack.c.l.bf16 %v10444
        %v10510 = vunpack.c.l.bf16 %v10445
        %v10511 = vunpack.c.l.bf16 %v10446
        %v10512 = vunpack.c.l.bf16 %v10447
        %v10513 = vunpack.c.l.bf16 %v10448
        %v10514 = vunpack.c.l.bf16 %v10449
        %v10515 = vunpack.c.l.bf16 %v10450
        %v10516 = vunpack.c.l.bf16 %v10451
        %v10517 = vunpack.c.l.bf16 %v10452
        %v10518 = vunpack.c.l.bf16 %v10453
        %v10519 = vunpack.c.l.bf16 %v10454
        %v10520 = vunpack.c.l.bf16 %v10455
        %v10521 = vunpack.c.l.bf16 %v10456
        %v10522 = vunpack.c.l.bf16 %v10457
        %v10523 = vunpack.c.l.bf16 %v10458
        %v10524 = vunpack.c.l.bf16 %v10459
        %v10525 = vunpack.c.l.bf16 %v10460
        %v10526 = vunpack.c.l.bf16 %v10461
        %v10527 = vunpack.c.l.bf16 %v10462
        %v10528 = vunpack.c.l.bf16 %v10463
        %v10562 = vrot.slane %v10496, 7
        %v10563 = vrot.slane %v10497, 7
        %v10564 = vsel %vm2709, %v10562, %v10563
        %v10565 = vrot.slane %v10498, 7
        %v10566 = vsel %vm2709, %v10563, %v10565
        %v10567 = vrot.slane %v10499, 7
        %v10568 = vsel %vm2709, %v10565, %v10567
        %v10569 = vrot.slane %v10500, 7
        %v10570 = vsel %vm2709, %v10567, %v10569
        %v10571 = vrot.slane %v10501, 7
        %v10572 = vsel %vm2709, %v10569, %v10571
        %v10573 = vrot.slane %v10502, 7
        %v10574 = vsel %vm2709, %v10571, %v10573
        %v10575 = vrot.slane %v10503, 7
        %v10576 = vsel %vm2709, %v10573, %v10575
        %v10577 = vrot.slane %v10504, 7
        %v10578 = vsel %vm2709, %v10575, %v10577
        %v10579 = vrot.slane %v10505, 7
        %v10580 = vsel %vm2709, %v10577, %v10579
        %v10581 = vrot.slane %v10506, 7
        %v10582 = vsel %vm2709, %v10579, %v10581
        %v10583 = vrot.slane %v10507, 7
        %v10584 = vsel %vm2709, %v10581, %v10583
        %v10585 = vrot.slane %v10508, 7
        %v10586 = vsel %vm2709, %v10583, %v10585
        %v10587 = vrot.slane %v10509, 7
        %v10588 = vsel %vm2709, %v10585, %v10587
        %v10589 = vrot.slane %v10510, 7
        %v10590 = vsel %vm2709, %v10587, %v10589
        %v10591 = vrot.slane %v10511, 7
        %v10592 = vsel %vm2709, %v10589, %v10591
        %v10593 = vrot.slane %v10512, 7
        %v10594 = vsel %vm2709, %v10591, %v10593
        %v10595 = vrot.slane %v10513, 7
        %v10596 = vsel %vm2709, %v10593, %v10595
        %v10597 = vrot.slane %v10514, 7
        %v10598 = vsel %vm2709, %v10595, %v10597
        %v10599 = vrot.slane %v10515, 7
        %v10600 = vsel %vm2709, %v10597, %v10599
        %v10601 = vrot.slane %v10516, 7
        %v10602 = vsel %vm2709, %v10599, %v10601
        %v10603 = vrot.slane %v10517, 7
        %v10604 = vsel %vm2709, %v10601, %v10603
        %v10605 = vrot.slane %v10518, 7
        %v10606 = vsel %vm2709, %v10603, %v10605
        %v10607 = vrot.slane %v10519, 7
        %v10608 = vsel %vm2709, %v10605, %v10607
        %v10609 = vrot.slane %v10520, 7
        %v10610 = vsel %vm2709, %v10607, %v10609
        %v10611 = vrot.slane %v10521, 7
        %v10612 = vsel %vm2709, %v10609, %v10611
        %v10613 = vrot.slane %v10522, 7
        %v10614 = vsel %vm2709, %v10611, %v10613
        %v10615 = vrot.slane %v10523, 7
        %v10616 = vsel %vm2709, %v10613, %v10615
        %v10617 = vrot.slane %v10524, 7
        %v10618 = vsel %vm2709, %v10615, %v10617
        %v10619 = vrot.slane %v10525, 7
        %v10620 = vsel %vm2709, %v10617, %v10619
        %v10621 = vrot.slane %v10526, 7
        %v10622 = vsel %vm2709, %v10619, %v10621
        %v10623 = vrot.slane %v10527, 7
        %v10624 = vsel %vm2709, %v10621, %v10623
        %v10625 = vrot.slane %v10528, 7
        %v10626 = vsel %vm2709, %v10623, %v10625
        %v10659 = vmax.f32 %v10464, %v10564
        %v10660 = vmax.f32 %v10465, %v10566
        %v10661 = vmax.f32 %v10466, %v10568
        %v10662 = vmax.f32 %v10467, %v10570
        %v10663 = vmax.f32 %v10468, %v10572
        %v10664 = vmax.f32 %v10469, %v10574
        %v10665 = vmax.f32 %v10470, %v10576
        %v10666 = vmax.f32 %v10471, %v10578
        %v10667 = vmax.f32 %v10472, %v10580
        %v10668 = vmax.f32 %v10473, %v10582
        %v10669 = vmax.f32 %v10474, %v10584
        %v10670 = vmax.f32 %v10475, %v10586
        %v10671 = vmax.f32 %v10476, %v10588
        %v10672 = vmax.f32 %v10477, %v10590
        %v10673 = vmax.f32 %v10478, %v10592
        %v10674 = vmax.f32 %v10479, %v10594
        %v10675 = vmax.f32 %v10480, %v10596
        %v10676 = vmax.f32 %v10481, %v10598
        %v10677 = vmax.f32 %v10482, %v10600
        %v10678 = vmax.f32 %v10483, %v10602
        %v10679 = vmax.f32 %v10484, %v10604
        %v10680 = vmax.f32 %v10485, %v10606
        %v10681 = vmax.f32 %v10486, %v10608
        %v10682 = vmax.f32 %v10487, %v10610
        %v10683 = vmax.f32 %v10488, %v10612
        %v10684 = vmax.f32 %v10489, %v10614
        %v10685 = vmax.f32 %v10490, %v10616
        %v10686 = vmax.f32 %v10491, %v10618
        %v10687 = vmax.f32 %v10492, %v10620
        %v10688 = vmax.f32 %v10493, %v10622
        %v10689 = vmax.f32 %v10494, %v10624
        %v10690 = vmax.f32 %v10495, %v10626
        %v10691 = vpack.c.bf16 %v10659, %v10659
        %v10692 = vpack.c.bf16 %v10660, %v10660
        %v10693 = vpack.c.bf16 %v10661, %v10661
        %v10694 = vpack.c.bf16 %v10662, %v10662
        %v10695 = vpack.c.bf16 %v10663, %v10663
        %v10696 = vpack.c.bf16 %v10664, %v10664
        %v10697 = vpack.c.bf16 %v10665, %v10665
        %v10698 = vpack.c.bf16 %v10666, %v10666
        %v10699 = vpack.c.bf16 %v10667, %v10667
        %v10700 = vpack.c.bf16 %v10668, %v10668
        %v10701 = vpack.c.bf16 %v10669, %v10669
        %v10702 = vpack.c.bf16 %v10670, %v10670
        %v10703 = vpack.c.bf16 %v10671, %v10671
        %v10704 = vpack.c.bf16 %v10672, %v10672
        %v10705 = vpack.c.bf16 %v10673, %v10673
        %v10706 = vpack.c.bf16 %v10674, %v10674
        %v10707 = vpack.c.bf16 %v10675, %v10675
        %v10708 = vpack.c.bf16 %v10676, %v10676
        %v10709 = vpack.c.bf16 %v10677, %v10677
        %v10710 = vpack.c.bf16 %v10678, %v10678
        %v10711 = vpack.c.bf16 %v10679, %v10679
        %v10712 = vpack.c.bf16 %v10680, %v10680
        %v10713 = vpack.c.bf16 %v10681, %v10681
        %v10714 = vpack.c.bf16 %v10682, %v10682
        %v10715 = vpack.c.bf16 %v10683, %v10683
        %v10716 = vpack.c.bf16 %v10684, %v10684
        %v10717 = vpack.c.bf16 %v10685, %v10685
        %v10718 = vpack.c.bf16 %v10686, %v10686
        %v10719 = vpack.c.bf16 %v10687, %v10687
        %v10720 = vpack.c.bf16 %v10688, %v10688
        %v10721 = vpack.c.bf16 %v10689, %v10689
        %v10722 = vpack.c.bf16 %v10690, %v10690
        %10723 = vset.pattern.permute.xlu0 1
        %10724 = vperm.xlu0 %10723, %v9654
        %v10725 = vpop.permute.xlu0 %10724
        %10726 = vset.pattern.permute.xlu0 1
        %10727 = vperm.xlu0 %10726, %v9655
        %v10728 = vpop.permute.xlu0 %10727
        %10729 = vset.pattern.permute.xlu0 1
        %10730 = vperm.xlu0 %10729, %v9656
        %v10731 = vpop.permute.xlu0 %10730
        %10732 = vset.pattern.permute.xlu0 1
        %10733 = vperm.xlu0 %10732, %v9657
        %v10734 = vpop.permute.xlu0 %10733
        %10735 = vset.pattern.permute.xlu0 1
        %10736 = vperm.xlu0 %10735, %v9658
        %v10737 = vpop.permute.xlu0 %10736
        %10738 = vset.pattern.permute.xlu0 1
        %10739 = vperm.xlu0 %10738, %v9659
        %v10740 = vpop.permute.xlu0 %10739
        %10741 = vset.pattern.permute.xlu0 1
        %10742 = vperm.xlu0 %10741, %v9660
        %v10743 = vpop.permute.xlu0 %10742
        %10744 = vset.pattern.permute.xlu0 1
        %10745 = vperm.xlu0 %10744, %v9661
        %v10746 = vpop.permute.xlu0 %10745
        %10747 = vset.pattern.permute.xlu0 1
        %10748 = vperm.xlu0 %10747, %v9662
        %v10749 = vpop.permute.xlu0 %10748
        %10750 = vset.pattern.permute.xlu0 1
        %10751 = vperm.xlu0 %10750, %v9663
        %v10752 = vpop.permute.xlu0 %10751
        %10753 = vset.pattern.permute.xlu0 1
        %10754 = vperm.xlu0 %10753, %v9664
        %v10755 = vpop.permute.xlu0 %10754
        %10756 = vset.pattern.permute.xlu0 1
        %10757 = vperm.xlu0 %10756, %v9665
        %v10758 = vpop.permute.xlu0 %10757
        %10759 = vset.pattern.permute.xlu0 1
        %10760 = vperm.xlu0 %10759, %v9666
        %v10761 = vpop.permute.xlu0 %10760
        %10762 = vset.pattern.permute.xlu0 1
        %10763 = vperm.xlu0 %10762, %v9667
        %v10764 = vpop.permute.xlu0 %10763
        %10765 = vset.pattern.permute.xlu0 1
        %10766 = vperm.xlu0 %10765, %v9668
        %v10767 = vpop.permute.xlu0 %10766
        %10768 = vset.pattern.permute.xlu0 1
        %10769 = vperm.xlu0 %10768, %v9669
        %v10770 = vpop.permute.xlu0 %10769
        %10771 = vset.pattern.permute.xlu0 1
        %10772 = vperm.xlu0 %10771, %v9670
        %v10773 = vpop.permute.xlu0 %10772
        %10774 = vset.pattern.permute.xlu0 1
        %10775 = vperm.xlu0 %10774, %v9671
        %v10776 = vpop.permute.xlu0 %10775
        %10777 = vset.pattern.permute.xlu0 1
        %10778 = vperm.xlu0 %10777, %v9672
        %v10779 = vpop.permute.xlu0 %10778
        %10780 = vset.pattern.permute.xlu0 1
        %10781 = vperm.xlu0 %10780, %v9673
        %v10782 = vpop.permute.xlu0 %10781
        %10783 = vset.pattern.permute.xlu0 1
        %10784 = vperm.xlu0 %10783, %v9674
        %v10785 = vpop.permute.xlu0 %10784
        %10786 = vset.pattern.permute.xlu0 1
        %10787 = vperm.xlu0 %10786, %v9675
        %v10788 = vpop.permute.xlu0 %10787
        %10789 = vset.pattern.permute.xlu0 1
        %10790 = vperm.xlu0 %10789, %v9676
        %v10791 = vpop.permute.xlu0 %10790
        %10792 = vset.pattern.permute.xlu0 1
        %10793 = vperm.xlu0 %10792, %v9677
        %v10794 = vpop.permute.xlu0 %10793
        %10795 = vset.pattern.permute.xlu0 1
        %10796 = vperm.xlu0 %10795, %v9678
        %v10797 = vpop.permute.xlu0 %10796
        %10798 = vset.pattern.permute.xlu0 1
        %10799 = vperm.xlu0 %10798, %v9679
        %v10800 = vpop.permute.xlu0 %10799
        %10801 = vset.pattern.permute.xlu0 1
        %10802 = vperm.xlu0 %10801, %v9680
        %v10803 = vpop.permute.xlu0 %10802
        %10804 = vset.pattern.permute.xlu0 1
        %10805 = vperm.xlu0 %10804, %v9681
        %v10806 = vpop.permute.xlu0 %10805
        %10807 = vset.pattern.permute.xlu0 1
        %10808 = vperm.xlu0 %10807, %v9682
        %v10809 = vpop.permute.xlu0 %10808
        %10810 = vset.pattern.permute.xlu0 1
        %10811 = vperm.xlu0 %10810, %v9683
        %v10812 = vpop.permute.xlu0 %10811
        %10813 = vset.pattern.permute.xlu0 1
        %10814 = vperm.xlu0 %10813, %v9684
        %v10815 = vpop.permute.xlu0 %10814
        %10816 = vset.pattern.permute.xlu0 1
        %10817 = vperm.xlu0 %10816, %v9685
        %v10818 = vpop.permute.xlu0 %10817
        %vm10819 = vcmp.eq.s32.totalorder %v10725, 1
        %vm10820 = vcmp.eq.s32.totalorder %v10728, 1
        %vm10821 = vcmp.eq.s32.totalorder %v10731, 1
        %vm10822 = vcmp.eq.s32.totalorder %v10734, 1
        %vm10823 = vcmp.eq.s32.totalorder %v10737, 1
        %vm10824 = vcmp.eq.s32.totalorder %v10740, 1
        %vm10825 = vcmp.eq.s32.totalorder %v10743, 1
        %vm10826 = vcmp.eq.s32.totalorder %v10746, 1
        %vm10827 = vcmp.eq.s32.totalorder %v10749, 1
        %vm10828 = vcmp.eq.s32.totalorder %v10752, 1
        %vm10829 = vcmp.eq.s32.totalorder %v10755, 1
        %vm10830 = vcmp.eq.s32.totalorder %v10758, 1
        %vm10831 = vcmp.eq.s32.totalorder %v10761, 1
        %vm10832 = vcmp.eq.s32.totalorder %v10764, 1
        %vm10833 = vcmp.eq.s32.totalorder %v10767, 1
        %vm10834 = vcmp.eq.s32.totalorder %v10770, 1
        %vm10835 = vcmp.eq.s32.totalorder %v10773, 1
        %vm10836 = vcmp.eq.s32.totalorder %v10776, 1
        %vm10837 = vcmp.eq.s32.totalorder %v10779, 1
        %vm10838 = vcmp.eq.s32.totalorder %v10782, 1
        %vm10839 = vcmp.eq.s32.totalorder %v10785, 1
        %vm10840 = vcmp.eq.s32.totalorder %v10788, 1
        %vm10841 = vcmp.eq.s32.totalorder %v10791, 1
        %vm10842 = vcmp.eq.s32.totalorder %v10794, 1
        %vm10843 = vcmp.eq.s32.totalorder %v10797, 1
        %vm10844 = vcmp.eq.s32.totalorder %v10800, 1
        %vm10845 = vcmp.eq.s32.totalorder %v10803, 1
        %vm10846 = vcmp.eq.s32.totalorder %v10806, 1
        %vm10847 = vcmp.eq.s32.totalorder %v10809, 1
        %vm10848 = vcmp.eq.s32.totalorder %v10812, 1
        %vm10849 = vcmp.eq.s32.totalorder %v10815, 1
        %vm10850 = vcmp.eq.s32.totalorder %v10818, 1
        %vm10851 = vmpackc.low %vm10819, %vm10819
        %vm10852 = vmpackc.low %vm10820, %vm10820
        %vm10853 = vmpackc.low %vm10821, %vm10821
        %vm10854 = vmpackc.low %vm10822, %vm10822
        %vm10855 = vmpackc.low %vm10823, %vm10823
        %vm10856 = vmpackc.low %vm10824, %vm10824
        %vm10857 = vmpackc.low %vm10825, %vm10825
        %vm10858 = vmpackc.low %vm10826, %vm10826
        %vm10859 = vmpackc.low %vm10827, %vm10827
        %vm10860 = vmpackc.low %vm10828, %vm10828
        %vm10861 = vmpackc.low %vm10829, %vm10829
        %vm10862 = vmpackc.low %vm10830, %vm10830
        %vm10863 = vmpackc.low %vm10831, %vm10831
        %vm10864 = vmpackc.low %vm10832, %vm10832
        %vm10865 = vmpackc.low %vm10833, %vm10833
        %vm10866 = vmpackc.low %vm10834, %vm10834
        %vm10867 = vmpackc.low %vm10835, %vm10835
        %vm10868 = vmpackc.low %vm10836, %vm10836
        %vm10869 = vmpackc.low %vm10837, %vm10837
        %vm10870 = vmpackc.low %vm10838, %vm10838
        %vm10871 = vmpackc.low %vm10839, %vm10839
        %vm10872 = vmpackc.low %vm10840, %vm10840
        %vm10873 = vmpackc.low %vm10841, %vm10841
        %vm10874 = vmpackc.low %vm10842, %vm10842
        %vm10875 = vmpackc.low %vm10843, %vm10843
        %vm10876 = vmpackc.low %vm10844, %vm10844
        %vm10877 = vmpackc.low %vm10845, %vm10845
        %vm10878 = vmpackc.low %vm10846, %vm10846
        %vm10879 = vmpackc.low %vm10847, %vm10847
        %vm10880 = vmpackc.low %vm10848, %vm10848
        %vm10881 = vmpackc.low %vm10849, %vm10849
        %vm10882 = vmpackc.low %vm10850, %vm10850
        %v10883 = vsel %vm10851, 65537, 0
        %v10884 = vsel %vm10852, 65537, 0
        %v10885 = vsel %vm10853, 65537, 0
        %v10886 = vsel %vm10854, 65537, 0
        %v10887 = vsel %vm10855, 65537, 0
        %v10888 = vsel %vm10856, 65537, 0
        %v10889 = vsel %vm10857, 65537, 0
        %v10890 = vsel %vm10858, 65537, 0
        %v10891 = vsel %vm10859, 65537, 0
        %v10892 = vsel %vm10860, 65537, 0
        %v10893 = vsel %vm10861, 65537, 0
        %v10894 = vsel %vm10862, 65537, 0
        %v10895 = vsel %vm10863, 65537, 0
        %v10896 = vsel %vm10864, 65537, 0
        %v10897 = vsel %vm10865, 65537, 0
        %v10898 = vsel %vm10866, 65537, 0
        %v10899 = vsel %vm10867, 65537, 0
        %v10900 = vsel %vm10868, 65537, 0
        %v10901 = vsel %vm10869, 65537, 0
        %v10902 = vsel %vm10870, 65537, 0
        %v10903 = vsel %vm10871, 65537, 0
        %v10904 = vsel %vm10872, 65537, 0
        %v10905 = vsel %vm10873, 65537, 0
        %v10906 = vsel %vm10874, 65537, 0
        %v10907 = vsel %vm10875, 65537, 0
        %v10908 = vsel %vm10876, 65537, 0
        %v10909 = vsel %vm10877, 65537, 0
        %v10910 = vsel %vm10878, 65537, 0
        %v10911 = vsel %vm10879, 65537, 0
        %v10912 = vsel %vm10880, 65537, 0
        %v10913 = vsel %vm10881, 65537, 0
        %v10914 = vsel %vm10882, 65537, 0
        %vm10915 = vsmask.f32 256
        %vm10916 = vsmask.f32 4368
        %vm10917 = vmor %vm10915, %vm10916
        %v10919 = vshrl.u32 %v10883, 16
        %v10921 = vrot.slane %v10919, 7
        %v10922 = vshll.u32 %v10883, 16
        %v10924 = vor.u32 %v10921, %v10922
        %v10925 = vrot.slane %v10921, 4
        %v10927 = vshrl.u32 %v10884, 16
        %v10929 = vrot.slane %v10927, 7
        %v10930 = vshll.u32 %v10884, 16
        %v10932 = vor.u32 %v10929, %v10930
        %v10933 = vsel %vm10917, %v10925, %v10932
        %v10934 = vrot.slane %v10929, 4
        %v10936 = vshrl.u32 %v10885, 16
        %v10938 = vrot.slane %v10936, 7
        %v10939 = vshll.u32 %v10885, 16
        %v10941 = vor.u32 %v10938, %v10939
        %v10942 = vsel %vm10917, %v10934, %v10941
        %v10943 = vrot.slane %v10938, 4
        %v10945 = vshrl.u32 %v10886, 16
        %v10947 = vrot.slane %v10945, 7
        %v10948 = vshll.u32 %v10886, 16
        %v10950 = vor.u32 %v10947, %v10948
        %v10951 = vsel %vm10917, %v10943, %v10950
        %v10952 = vrot.slane %v10947, 4
        %v10954 = vshrl.u32 %v10887, 16
        %v10956 = vrot.slane %v10954, 7
        %v10957 = vshll.u32 %v10887, 16
        %v10959 = vor.u32 %v10956, %v10957
        %v10960 = vsel %vm10917, %v10952, %v10959
        %v10961 = vrot.slane %v10956, 4
        %v10963 = vshrl.u32 %v10888, 16
        %v10965 = vrot.slane %v10963, 7
        %v10966 = vshll.u32 %v10888, 16
        %v10968 = vor.u32 %v10965, %v10966
        %v10969 = vsel %vm10917, %v10961, %v10968
        %v10970 = vrot.slane %v10965, 4
        %v10972 = vshrl.u32 %v10889, 16
        %v10974 = vrot.slane %v10972, 7
        %v10975 = vshll.u32 %v10889, 16
        %v10977 = vor.u32 %v10974, %v10975
        %v10978 = vsel %vm10917, %v10970, %v10977
        %v10979 = vrot.slane %v10974, 4
        %v10981 = vshrl.u32 %v10890, 16
        %v10983 = vrot.slane %v10981, 7
        %v10984 = vshll.u32 %v10890, 16
        %v10986 = vor.u32 %v10983, %v10984
        %v10987 = vsel %vm10917, %v10979, %v10986
        %v10988 = vrot.slane %v10983, 4
        %v10990 = vshrl.u32 %v10891, 16
        %v10992 = vrot.slane %v10990, 7
        %v10993 = vshll.u32 %v10891, 16
        %v10995 = vor.u32 %v10992, %v10993
        %v10996 = vsel %vm10917, %v10988, %v10995
        %v10997 = vrot.slane %v10992, 4
        %v10999 = vshrl.u32 %v10892, 16
        %v11001 = vrot.slane %v10999, 7
        %v11002 = vshll.u32 %v10892, 16
        %v11004 = vor.u32 %v11001, %v11002
        %v11005 = vsel %vm10917, %v10997, %v11004
        %v11006 = vrot.slane %v11001, 4
        %v11008 = vshrl.u32 %v10893, 16
        %v11010 = vrot.slane %v11008, 7
        %v11011 = vshll.u32 %v10893, 16
        %v11013 = vor.u32 %v11010, %v11011
        %v11014 = vsel %vm10917, %v11006, %v11013
        %v11015 = vrot.slane %v11010, 4
        %v11017 = vshrl.u32 %v10894, 16
        %v11019 = vrot.slane %v11017, 7
        %v11020 = vshll.u32 %v10894, 16
        %v11022 = vor.u32 %v11019, %v11020
        %v11023 = vsel %vm10917, %v11015, %v11022
        %v11024 = vrot.slane %v11019, 4
        %v11026 = vshrl.u32 %v10895, 16
        %v11028 = vrot.slane %v11026, 7
        %v11029 = vshll.u32 %v10895, 16
        %v11031 = vor.u32 %v11028, %v11029
        %v11032 = vsel %vm10917, %v11024, %v11031
        %v11033 = vrot.slane %v11028, 4
        %v11035 = vshrl.u32 %v10896, 16
        %v11037 = vrot.slane %v11035, 7
        %v11038 = vshll.u32 %v10896, 16
        %v11040 = vor.u32 %v11037, %v11038
        %v11041 = vsel %vm10917, %v11033, %v11040
        %v11042 = vrot.slane %v11037, 4
        %v11044 = vshrl.u32 %v10897, 16
        %v11046 = vrot.slane %v11044, 7
        %v11047 = vshll.u32 %v10897, 16
        %v11049 = vor.u32 %v11046, %v11047
        %v11050 = vsel %vm10917, %v11042, %v11049
        %v11051 = vrot.slane %v11046, 4
        %v11053 = vshrl.u32 %v10898, 16
        %v11055 = vrot.slane %v11053, 7
        %v11056 = vshll.u32 %v10898, 16
        %v11058 = vor.u32 %v11055, %v11056
        %v11059 = vsel %vm10917, %v11051, %v11058
        %v11060 = vrot.slane %v11055, 4
        %v11062 = vshrl.u32 %v10899, 16
        %v11064 = vrot.slane %v11062, 7
        %v11065 = vshll.u32 %v10899, 16
        %v11067 = vor.u32 %v11064, %v11065
        %v11068 = vsel %vm10917, %v11060, %v11067
        %v11069 = vrot.slane %v11064, 4
        %v11071 = vshrl.u32 %v10900, 16
        %v11073 = vrot.slane %v11071, 7
        %v11074 = vshll.u32 %v10900, 16
        %v11076 = vor.u32 %v11073, %v11074
        %v11077 = vsel %vm10917, %v11069, %v11076
        %v11078 = vrot.slane %v11073, 4
        %v11080 = vshrl.u32 %v10901, 16
        %v11082 = vrot.slane %v11080, 7
        %v11083 = vshll.u32 %v10901, 16
        %v11085 = vor.u32 %v11082, %v11083
        %v11086 = vsel %vm10917, %v11078, %v11085
        %v11087 = vrot.slane %v11082, 4
        %v11089 = vshrl.u32 %v10902, 16
        %v11091 = vrot.slane %v11089, 7
        %v11092 = vshll.u32 %v10902, 16
        %v11094 = vor.u32 %v11091, %v11092
        %v11095 = vsel %vm10917, %v11087, %v11094
        %v11096 = vrot.slane %v11091, 4
        %v11098 = vshrl.u32 %v10903, 16
        %v11100 = vrot.slane %v11098, 7
        %v11101 = vshll.u32 %v10903, 16
        %v11103 = vor.u32 %v11100, %v11101
        %v11104 = vsel %vm10917, %v11096, %v11103
        %v11105 = vrot.slane %v11100, 4
        %v11107 = vshrl.u32 %v10904, 16
        %v11109 = vrot.slane %v11107, 7
        %v11110 = vshll.u32 %v10904, 16
        %v11112 = vor.u32 %v11109, %v11110
        %v11113 = vsel %vm10917, %v11105, %v11112
        %v11114 = vrot.slane %v11109, 4
        %v11116 = vshrl.u32 %v10905, 16
        %v11118 = vrot.slane %v11116, 7
        %v11119 = vshll.u32 %v10905, 16
        %v11121 = vor.u32 %v11118, %v11119
        %v11122 = vsel %vm10917, %v11114, %v11121
        %v11123 = vrot.slane %v11118, 4
        %v11125 = vshrl.u32 %v10906, 16
        %v11127 = vrot.slane %v11125, 7
        %v11128 = vshll.u32 %v10906, 16
        %v11130 = vor.u32 %v11127, %v11128
        %v11131 = vsel %vm10917, %v11123, %v11130
        %v11132 = vrot.slane %v11127, 4
        %v11134 = vshrl.u32 %v10907, 16
        %v11136 = vrot.slane %v11134, 7
        %v11137 = vshll.u32 %v10907, 16
        %v11139 = vor.u32 %v11136, %v11137
        %v11140 = vsel %vm10917, %v11132, %v11139
        %v11141 = vrot.slane %v11136, 4
        %v11143 = vshrl.u32 %v10908, 16
        %v11145 = vrot.slane %v11143, 7
        %v11146 = vshll.u32 %v10908, 16
        %v11148 = vor.u32 %v11145, %v11146
        %v11149 = vsel %vm10917, %v11141, %v11148
        %v11150 = vrot.slane %v11145, 4
        %v11152 = vshrl.u32 %v10909, 16
        %v11154 = vrot.slane %v11152, 7
        %v11155 = vshll.u32 %v10909, 16
        %v11157 = vor.u32 %v11154, %v11155
        %v11158 = vsel %vm10917, %v11150, %v11157
        %v11159 = vrot.slane %v11154, 4
        %v11161 = vshrl.u32 %v10910, 16
        %v11163 = vrot.slane %v11161, 7
        %v11164 = vshll.u32 %v10910, 16
        %v11166 = vor.u32 %v11163, %v11164
        %v11167 = vsel %vm10917, %v11159, %v11166
        %v11168 = vrot.slane %v11163, 4
        %v11170 = vshrl.u32 %v10911, 16
        %v11172 = vrot.slane %v11170, 7
        %v11173 = vshll.u32 %v10911, 16
        %v11175 = vor.u32 %v11172, %v11173
        %v11176 = vsel %vm10917, %v11168, %v11175
        %v11177 = vrot.slane %v11172, 4
        %v11179 = vshrl.u32 %v10912, 16
        %v11181 = vrot.slane %v11179, 7
        %v11182 = vshll.u32 %v10912, 16
        %v11184 = vor.u32 %v11181, %v11182
        %v11185 = vsel %vm10917, %v11177, %v11184
        %v11186 = vrot.slane %v11181, 4
        %v11188 = vshrl.u32 %v10913, 16
        %v11190 = vrot.slane %v11188, 7
        %v11191 = vshll.u32 %v10913, 16
        %v11193 = vor.u32 %v11190, %v11191
        %v11194 = vsel %vm10917, %v11186, %v11193
        %v11195 = vrot.slane %v11190, 4
        %v11197 = vshrl.u32 %v10914, 16
        %v11199 = vrot.slane %v11197, 7
        %v11200 = vshll.u32 %v10914, 16
        %v11202 = vor.u32 %v11199, %v11200
        %v11203 = vsel %vm10917, %v11195, %v11202
        %v11204 = vrot.slane %v11199, 4
        %v11205 = vunpack.c.l.b16 %v10924
        %v11206 = vunpack.c.h.b16 %v10924
        %v11207 = vunpack.c.l.b16 0
        %v11208 = vunpack.c.h.b16 0
        %vm11209 = vcmp.ne.s32.totalorder %v11205, %v11207
        %vm11210 = vcmp.ne.s32.totalorder %v11206, %v11208
        %vm11211 = vmpackc.low %vm11210, %vm11209
        %v11212 = vunpack.c.l.b16 %v10933
        %v11213 = vunpack.c.h.b16 %v10933
        %v11214 = vunpack.c.l.b16 0
        %v11215 = vunpack.c.h.b16 0
        %vm11216 = vcmp.ne.s32.totalorder %v11212, %v11214
        %vm11217 = vcmp.ne.s32.totalorder %v11213, %v11215
        %vm11218 = vmpackc.low %vm11217, %vm11216
        %v11219 = vunpack.c.l.b16 %v10942
        %v11220 = vunpack.c.h.b16 %v10942
        %v11221 = vunpack.c.l.b16 0
        %v11222 = vunpack.c.h.b16 0
        %vm11223 = vcmp.ne.s32.totalorder %v11219, %v11221
        %vm11224 = vcmp.ne.s32.totalorder %v11220, %v11222
        %vm11225 = vmpackc.low %vm11224, %vm11223
        %v11226 = vunpack.c.l.b16 %v10951
        %v11227 = vunpack.c.h.b16 %v10951
        %v11228 = vunpack.c.l.b16 0
        %v11229 = vunpack.c.h.b16 0
        %vm11230 = vcmp.ne.s32.totalorder %v11226, %v11228
        %vm11231 = vcmp.ne.s32.totalorder %v11227, %v11229
        %vm11232 = vmpackc.low %vm11231, %vm11230
        %v11233 = vunpack.c.l.b16 %v10960
        %v11234 = vunpack.c.h.b16 %v10960
        %v11235 = vunpack.c.l.b16 0
        %v11236 = vunpack.c.h.b16 0
        %vm11237 = vcmp.ne.s32.totalorder %v11233, %v11235
        %vm11238 = vcmp.ne.s32.totalorder %v11234, %v11236
        %vm11239 = vmpackc.low %vm11238, %vm11237
        %v11240 = vunpack.c.l.b16 %v10969
        %v11241 = vunpack.c.h.b16 %v10969
        %v11242 = vunpack.c.l.b16 0
        %v11243 = vunpack.c.h.b16 0
        %vm11244 = vcmp.ne.s32.totalorder %v11240, %v11242
        %vm11245 = vcmp.ne.s32.totalorder %v11241, %v11243
        %vm11246 = vmpackc.low %vm11245, %vm11244
        %v11247 = vunpack.c.l.b16 %v10978
        %v11248 = vunpack.c.h.b16 %v10978
        %v11249 = vunpack.c.l.b16 0
        %v11250 = vunpack.c.h.b16 0
        %vm11251 = vcmp.ne.s32.totalorder %v11247, %v11249
        %vm11252 = vcmp.ne.s32.totalorder %v11248, %v11250
        %vm11253 = vmpackc.low %vm11252, %vm11251
        %v11254 = vunpack.c.l.b16 %v10987
        %v11255 = vunpack.c.h.b16 %v10987
        %v11256 = vunpack.c.l.b16 0
        %v11257 = vunpack.c.h.b16 0
        %vm11258 = vcmp.ne.s32.totalorder %v11254, %v11256
        %vm11259 = vcmp.ne.s32.totalorder %v11255, %v11257
        %vm11260 = vmpackc.low %vm11259, %vm11258
        %v11261 = vunpack.c.l.b16 %v10996
        %v11262 = vunpack.c.h.b16 %v10996
        %v11263 = vunpack.c.l.b16 0
        %v11264 = vunpack.c.h.b16 0
        %vm11265 = vcmp.ne.s32.totalorder %v11261, %v11263
        %vm11266 = vcmp.ne.s32.totalorder %v11262, %v11264
        %vm11267 = vmpackc.low %vm11266, %vm11265
        %v11268 = vunpack.c.l.b16 %v11005
        %v11269 = vunpack.c.h.b16 %v11005
        %v11270 = vunpack.c.l.b16 0
        %v11271 = vunpack.c.h.b16 0
        %vm11272 = vcmp.ne.s32.totalorder %v11268, %v11270
        %vm11273 = vcmp.ne.s32.totalorder %v11269, %v11271
        %vm11274 = vmpackc.low %vm11273, %vm11272
        %v11275 = vunpack.c.l.b16 %v11014
        %v11276 = vunpack.c.h.b16 %v11014
        %v11277 = vunpack.c.l.b16 0
        %v11278 = vunpack.c.h.b16 0
        %vm11279 = vcmp.ne.s32.totalorder %v11275, %v11277
        %vm11280 = vcmp.ne.s32.totalorder %v11276, %v11278
        %vm11281 = vmpackc.low %vm11280, %vm11279
        %v11282 = vunpack.c.l.b16 %v11023
        %v11283 = vunpack.c.h.b16 %v11023
        %v11284 = vunpack.c.l.b16 0
        %v11285 = vunpack.c.h.b16 0
        %vm11286 = vcmp.ne.s32.totalorder %v11282, %v11284
        %vm11287 = vcmp.ne.s32.totalorder %v11283, %v11285
        %vm11288 = vmpackc.low %vm11287, %vm11286
        %v11289 = vunpack.c.l.b16 %v11032
        %v11290 = vunpack.c.h.b16 %v11032
        %v11291 = vunpack.c.l.b16 0
        %v11292 = vunpack.c.h.b16 0
        %vm11293 = vcmp.ne.s32.totalorder %v11289, %v11291
        %vm11294 = vcmp.ne.s32.totalorder %v11290, %v11292
        %vm11295 = vmpackc.low %vm11294, %vm11293
        %v11296 = vunpack.c.l.b16 %v11041
        %v11297 = vunpack.c.h.b16 %v11041
        %v11298 = vunpack.c.l.b16 0
        %v11299 = vunpack.c.h.b16 0
        %vm11300 = vcmp.ne.s32.totalorder %v11296, %v11298
        %vm11301 = vcmp.ne.s32.totalorder %v11297, %v11299
        %vm11302 = vmpackc.low %vm11301, %vm11300
        %v11303 = vunpack.c.l.b16 %v11050
        %v11304 = vunpack.c.h.b16 %v11050
        %v11305 = vunpack.c.l.b16 0
        %v11306 = vunpack.c.h.b16 0
        %vm11307 = vcmp.ne.s32.totalorder %v11303, %v11305
        %vm11308 = vcmp.ne.s32.totalorder %v11304, %v11306
        %vm11309 = vmpackc.low %vm11308, %vm11307
        %v11310 = vunpack.c.l.b16 %v11059
        %v11311 = vunpack.c.h.b16 %v11059
        %v11312 = vunpack.c.l.b16 0
        %v11313 = vunpack.c.h.b16 0
        %vm11314 = vcmp.ne.s32.totalorder %v11310, %v11312
        %vm11315 = vcmp.ne.s32.totalorder %v11311, %v11313
        %vm11316 = vmpackc.low %vm11315, %vm11314
        %v11317 = vunpack.c.l.b16 %v11068
        %v11318 = vunpack.c.h.b16 %v11068
        %v11319 = vunpack.c.l.b16 0
        %v11320 = vunpack.c.h.b16 0
        %vm11321 = vcmp.ne.s32.totalorder %v11317, %v11319
        %vm11322 = vcmp.ne.s32.totalorder %v11318, %v11320
        %vm11323 = vmpackc.low %vm11322, %vm11321
        %v11324 = vunpack.c.l.b16 %v11077
        %v11325 = vunpack.c.h.b16 %v11077
        %v11326 = vunpack.c.l.b16 0
        %v11327 = vunpack.c.h.b16 0
        %vm11328 = vcmp.ne.s32.totalorder %v11324, %v11326
        %vm11329 = vcmp.ne.s32.totalorder %v11325, %v11327
        %vm11330 = vmpackc.low %vm11329, %vm11328
        %v11331 = vunpack.c.l.b16 %v11086
        %v11332 = vunpack.c.h.b16 %v11086
        %v11333 = vunpack.c.l.b16 0
        %v11334 = vunpack.c.h.b16 0
        %vm11335 = vcmp.ne.s32.totalorder %v11331, %v11333
        %vm11336 = vcmp.ne.s32.totalorder %v11332, %v11334
        %vm11337 = vmpackc.low %vm11336, %vm11335
        %v11338 = vunpack.c.l.b16 %v11095
        %v11339 = vunpack.c.h.b16 %v11095
        %v11340 = vunpack.c.l.b16 0
        %v11341 = vunpack.c.h.b16 0
        %vm11342 = vcmp.ne.s32.totalorder %v11338, %v11340
        %vm11343 = vcmp.ne.s32.totalorder %v11339, %v11341
        %vm11344 = vmpackc.low %vm11343, %vm11342
        %v11345 = vunpack.c.l.b16 %v11104
        %v11346 = vunpack.c.h.b16 %v11104
        %v11347 = vunpack.c.l.b16 0
        %v11348 = vunpack.c.h.b16 0
        %vm11349 = vcmp.ne.s32.totalorder %v11345, %v11347
        %vm11350 = vcmp.ne.s32.totalorder %v11346, %v11348
        %vm11351 = vmpackc.low %vm11350, %vm11349
        %v11352 = vunpack.c.l.b16 %v11113
        %v11353 = vunpack.c.h.b16 %v11113
        %v11354 = vunpack.c.l.b16 0
        %v11355 = vunpack.c.h.b16 0
        %vm11356 = vcmp.ne.s32.totalorder %v11352, %v11354
        %vm11357 = vcmp.ne.s32.totalorder %v11353, %v11355
        %vm11358 = vmpackc.low %vm11357, %vm11356
        %v11359 = vunpack.c.l.b16 %v11122
        %v11360 = vunpack.c.h.b16 %v11122
        %v11361 = vunpack.c.l.b16 0
        %v11362 = vunpack.c.h.b16 0
        %vm11363 = vcmp.ne.s32.totalorder %v11359, %v11361
        %vm11364 = vcmp.ne.s32.totalorder %v11360, %v11362
        %vm11365 = vmpackc.low %vm11364, %vm11363
        %v11366 = vunpack.c.l.b16 %v11131
        %v11367 = vunpack.c.h.b16 %v11131
        %v11368 = vunpack.c.l.b16 0
        %v11369 = vunpack.c.h.b16 0
        %vm11370 = vcmp.ne.s32.totalorder %v11366, %v11368
        %vm11371 = vcmp.ne.s32.totalorder %v11367, %v11369
        %vm11372 = vmpackc.low %vm11371, %vm11370
        %v11373 = vunpack.c.l.b16 %v11140
        %v11374 = vunpack.c.h.b16 %v11140
        %v11375 = vunpack.c.l.b16 0
        %v11376 = vunpack.c.h.b16 0
        %vm11377 = vcmp.ne.s32.totalorder %v11373, %v11375
        %vm11378 = vcmp.ne.s32.totalorder %v11374, %v11376
        %vm11379 = vmpackc.low %vm11378, %vm11377
        %v11380 = vunpack.c.l.b16 %v11149
        %v11381 = vunpack.c.h.b16 %v11149
        %v11382 = vunpack.c.l.b16 0
        %v11383 = vunpack.c.h.b16 0
        %vm11384 = vcmp.ne.s32.totalorder %v11380, %v11382
        %vm11385 = vcmp.ne.s32.totalorder %v11381, %v11383
        %vm11386 = vmpackc.low %vm11385, %vm11384
        %v11387 = vunpack.c.l.b16 %v11158
        %v11388 = vunpack.c.h.b16 %v11158
        %v11389 = vunpack.c.l.b16 0
        %v11390 = vunpack.c.h.b16 0
        %vm11391 = vcmp.ne.s32.totalorder %v11387, %v11389
        %vm11392 = vcmp.ne.s32.totalorder %v11388, %v11390
        %vm11393 = vmpackc.low %vm11392, %vm11391
        %v11394 = vunpack.c.l.b16 %v11167
        %v11395 = vunpack.c.h.b16 %v11167
        %v11396 = vunpack.c.l.b16 0
        %v11397 = vunpack.c.h.b16 0
        %vm11398 = vcmp.ne.s32.totalorder %v11394, %v11396
        %vm11399 = vcmp.ne.s32.totalorder %v11395, %v11397
        %vm11400 = vmpackc.low %vm11399, %vm11398
        %v11401 = vunpack.c.l.b16 %v11176
        %v11402 = vunpack.c.h.b16 %v11176
        %v11403 = vunpack.c.l.b16 0
        %v11404 = vunpack.c.h.b16 0
        %vm11405 = vcmp.ne.s32.totalorder %v11401, %v11403
        %vm11406 = vcmp.ne.s32.totalorder %v11402, %v11404
        %vm11407 = vmpackc.low %vm11406, %vm11405
        %v11408 = vunpack.c.l.b16 %v11185
        %v11409 = vunpack.c.h.b16 %v11185
        %v11410 = vunpack.c.l.b16 0
        %v11411 = vunpack.c.h.b16 0
        %vm11412 = vcmp.ne.s32.totalorder %v11408, %v11410
        %vm11413 = vcmp.ne.s32.totalorder %v11409, %v11411
        %vm11414 = vmpackc.low %vm11413, %vm11412
        %v11415 = vunpack.c.l.b16 %v11194
        %v11416 = vunpack.c.h.b16 %v11194
        %v11417 = vunpack.c.l.b16 0
        %v11418 = vunpack.c.h.b16 0
        %vm11419 = vcmp.ne.s32.totalorder %v11415, %v11417
        %vm11420 = vcmp.ne.s32.totalorder %v11416, %v11418
        %vm11421 = vmpackc.low %vm11420, %vm11419
        %v11422 = vunpack.c.l.b16 %v11203
        %v11423 = vunpack.c.h.b16 %v11203
        %v11424 = vunpack.c.l.b16 0
        %v11425 = vunpack.c.h.b16 0
        %vm11426 = vcmp.ne.s32.totalorder %v11422, %v11424
        %vm11427 = vcmp.ne.s32.totalorder %v11423, %v11425
        %vm11428 = vmpackc.low %vm11427, %vm11426
        %v11429 = vunpack.c.l.b16 %v11204
        %v11430 = vunpack.c.h.b16 %v11204
        %v11431 = vunpack.c.l.b16 0
        %v11432 = vunpack.c.h.b16 0
        %vm11433 = vcmp.ne.s32.totalorder %v11429, %v11431
        %vm11434 = vcmp.ne.s32.totalorder %v11430, %v11432
        %vm11435 = vmpackc.low %vm11434, %vm11433
        %v11436 = vsel %vm11211, %v9600, 4286644096
        %v11437 = vsel %vm11218, %v9601, 4286644096
        %v11438 = vsel %vm11225, %v9602, 4286644096
        %v11439 = vsel %vm11232, %v9603, 4286644096
        %v11440 = vsel %vm11239, %v9604, 4286644096
        %v11441 = vsel %vm11246, %v9605, 4286644096
        %v11442 = vsel %vm11253, %v9606, 4286644096
        %v11443 = vsel %vm11260, %v9607, 4286644096
        %v11444 = vsel %vm11267, %v9608, 4286644096
        %v11445 = vsel %vm11274, %v9609, 4286644096
        %v11446 = vsel %vm11281, %v9610, 4286644096
        %v11447 = vsel %vm11288, %v9611, 4286644096
        %v11448 = vsel %vm11295, %v9612, 4286644096
        %v11449 = vsel %vm11302, %v9613, 4286644096
        %v11450 = vsel %vm11309, %v9614, 4286644096
        %v11451 = vsel %vm11316, %v9615, 4286644096
        %v11452 = vsel %vm11323, %v9616, 4286644096
        %v11453 = vsel %vm11330, %v9617, 4286644096
        %v11454 = vsel %vm11337, %v9618, 4286644096
        %v11455 = vsel %vm11344, %v9619, 4286644096
        %v11456 = vsel %vm11351, %v9620, 4286644096
        %v11457 = vsel %vm11358, %v9621, 4286644096
        %v11458 = vsel %vm11365, %v9622, 4286644096
        %v11459 = vsel %vm11372, %v9623, 4286644096
        %v11460 = vsel %vm11379, %v9624, 4286644096
        %v11461 = vsel %vm11386, %v9625, 4286644096
        %v11462 = vsel %vm11393, %v9626, 4286644096
        %v11463 = vsel %vm11400, %v9627, 4286644096
        %v11464 = vsel %vm11407, %v9628, 4286644096
        %v11465 = vsel %vm11414, %v9629, 4286644096
        %v11466 = vsel %vm11421, %v9630, 4286644096
        %v11467 = vsel %vm11428, %v9631, 4286644096
        %v11468 = vsel %vm11435, %v9653, 4286644096
        %v11469 = vunpack.c.l.bf16 %v10691
        %v11470 = vunpack.c.l.bf16 %v10692
        %v11471 = vunpack.c.l.bf16 %v10693
        %v11472 = vunpack.c.l.bf16 %v10694
        %v11473 = vunpack.c.l.bf16 %v10695
        %v11474 = vunpack.c.l.bf16 %v10696
        %v11475 = vunpack.c.l.bf16 %v10697
        %v11476 = vunpack.c.l.bf16 %v10698
        %v11477 = vunpack.c.l.bf16 %v10699
        %v11478 = vunpack.c.l.bf16 %v10700
        %v11479 = vunpack.c.l.bf16 %v10701
        %v11480 = vunpack.c.l.bf16 %v10702
        %v11481 = vunpack.c.l.bf16 %v10703
        %v11482 = vunpack.c.l.bf16 %v10704
        %v11483 = vunpack.c.l.bf16 %v10705
        %v11484 = vunpack.c.l.bf16 %v10706
        %v11485 = vunpack.c.l.bf16 %v10707
        %v11486 = vunpack.c.l.bf16 %v10708
        %v11487 = vunpack.c.l.bf16 %v10709
        %v11488 = vunpack.c.l.bf16 %v10710
        %v11489 = vunpack.c.l.bf16 %v10711
        %v11490 = vunpack.c.l.bf16 %v10712
        %v11491 = vunpack.c.l.bf16 %v10713
        %v11492 = vunpack.c.l.bf16 %v10714
        %v11493 = vunpack.c.l.bf16 %v10715
        %v11494 = vunpack.c.l.bf16 %v10716
        %v11495 = vunpack.c.l.bf16 %v10717
        %v11496 = vunpack.c.l.bf16 %v10718
        %v11497 = vunpack.c.l.bf16 %v10719
        %v11498 = vunpack.c.l.bf16 %v10720
        %v11499 = vunpack.c.l.bf16 %v10721
        %v11500 = vunpack.c.l.bf16 %v10722
        %v11501 = vunpack.c.l.bf16 %v11436
        %v11502 = vunpack.c.l.bf16 %v11437
        %v11503 = vunpack.c.l.bf16 %v11438
        %v11504 = vunpack.c.l.bf16 %v11439
        %v11505 = vunpack.c.l.bf16 %v11440
        %v11506 = vunpack.c.l.bf16 %v11441
        %v11507 = vunpack.c.l.bf16 %v11442
        %v11508 = vunpack.c.l.bf16 %v11443
        %v11509 = vunpack.c.l.bf16 %v11444
        %v11510 = vunpack.c.l.bf16 %v11445
        %v11511 = vunpack.c.l.bf16 %v11446
        %v11512 = vunpack.c.l.bf16 %v11447
        %v11513 = vunpack.c.l.bf16 %v11448
        %v11514 = vunpack.c.l.bf16 %v11449
        %v11515 = vunpack.c.l.bf16 %v11450
        %v11516 = vunpack.c.l.bf16 %v11451
        %v11517 = vunpack.c.l.bf16 %v11452
        %v11518 = vunpack.c.l.bf16 %v11453
        %v11519 = vunpack.c.l.bf16 %v11454
        %v11520 = vunpack.c.l.bf16 %v11455
        %v11521 = vunpack.c.l.bf16 %v11456
        %v11522 = vunpack.c.l.bf16 %v11457
        %v11523 = vunpack.c.l.bf16 %v11458
        %v11524 = vunpack.c.l.bf16 %v11459
        %v11525 = vunpack.c.l.bf16 %v11460
        %v11526 = vunpack.c.l.bf16 %v11461
        %v11527 = vunpack.c.l.bf16 %v11462
        %v11528 = vunpack.c.l.bf16 %v11463
        %v11529 = vunpack.c.l.bf16 %v11464
        %v11530 = vunpack.c.l.bf16 %v11465
        %v11531 = vunpack.c.l.bf16 %v11466
        %v11532 = vunpack.c.l.bf16 %v11467
        %v11533 = vunpack.c.l.bf16 %v11468
        %v11567 = vrot.slane %v11501, 1
        %v11568 = vrot.slane %v11502, 1
        %v11569 = vsel %vm1604, %v11567, %v11568
        %v11570 = vrot.slane %v11503, 1
        %v11571 = vsel %vm1604, %v11568, %v11570
        %v11572 = vrot.slane %v11504, 1
        %v11573 = vsel %vm1604, %v11570, %v11572
        %v11574 = vrot.slane %v11505, 1
        %v11575 = vsel %vm1604, %v11572, %v11574
        %v11576 = vrot.slane %v11506, 1
        %v11577 = vsel %vm1604, %v11574, %v11576
        %v11578 = vrot.slane %v11507, 1
        %v11579 = vsel %vm1604, %v11576, %v11578
        %v11580 = vrot.slane %v11508, 1
        %v11581 = vsel %vm1604, %v11578, %v11580
        %v11582 = vrot.slane %v11509, 1
        %v11583 = vsel %vm1604, %v11580, %v11582
        %v11584 = vrot.slane %v11510, 1
        %v11585 = vsel %vm1604, %v11582, %v11584
        %v11586 = vrot.slane %v11511, 1
        %v11587 = vsel %vm1604, %v11584, %v11586
        %v11588 = vrot.slane %v11512, 1
        %v11589 = vsel %vm1604, %v11586, %v11588
        %v11590 = vrot.slane %v11513, 1
        %v11591 = vsel %vm1604, %v11588, %v11590
        %v11592 = vrot.slane %v11514, 1
        %v11593 = vsel %vm1604, %v11590, %v11592
        %v11594 = vrot.slane %v11515, 1
        %v11595 = vsel %vm1604, %v11592, %v11594
        %v11596 = vrot.slane %v11516, 1
        %v11597 = vsel %vm1604, %v11594, %v11596
        %v11598 = vrot.slane %v11517, 1
        %v11599 = vsel %vm1604, %v11596, %v11598
        %v11600 = vrot.slane %v11518, 1
        %v11601 = vsel %vm1604, %v11598, %v11600
        %v11602 = vrot.slane %v11519, 1
        %v11603 = vsel %vm1604, %v11600, %v11602
        %v11604 = vrot.slane %v11520, 1
        %v11605 = vsel %vm1604, %v11602, %v11604
        %v11606 = vrot.slane %v11521, 1
        %v11607 = vsel %vm1604, %v11604, %v11606
        %v11608 = vrot.slane %v11522, 1
        %v11609 = vsel %vm1604, %v11606, %v11608
        %v11610 = vrot.slane %v11523, 1
        %v11611 = vsel %vm1604, %v11608, %v11610
        %v11612 = vrot.slane %v11524, 1
        %v11613 = vsel %vm1604, %v11610, %v11612
        %v11614 = vrot.slane %v11525, 1
        %v11615 = vsel %vm1604, %v11612, %v11614
        %v11616 = vrot.slane %v11526, 1
        %v11617 = vsel %vm1604, %v11614, %v11616
        %v11618 = vrot.slane %v11527, 1
        %v11619 = vsel %vm1604, %v11616, %v11618
        %v11620 = vrot.slane %v11528, 1
        %v11621 = vsel %vm1604, %v11618, %v11620
        %v11622 = vrot.slane %v11529, 1
        %v11623 = vsel %vm1604, %v11620, %v11622
        %v11624 = vrot.slane %v11530, 1
        %v11625 = vsel %vm1604, %v11622, %v11624
        %v11626 = vrot.slane %v11531, 1
        %v11627 = vsel %vm1604, %v11624, %v11626
        %v11628 = vrot.slane %v11532, 1
        %v11629 = vsel %vm1604, %v11626, %v11628
        %v11630 = vrot.slane %v11533, 1
        %v11631 = vsel %vm1604, %v11628, %v11630
        %v11664 = vmax.f32 %v11469, %v11569
        %v11665 = vmax.f32 %v11470, %v11571
        %v11666 = vmax.f32 %v11471, %v11573
        %v11667 = vmax.f32 %v11472, %v11575
        %v11668 = vmax.f32 %v11473, %v11577
        %v11669 = vmax.f32 %v11474, %v11579
        %v11670 = vmax.f32 %v11475, %v11581
        %v11671 = vmax.f32 %v11476, %v11583
        %v11672 = vmax.f32 %v11477, %v11585
        %v11673 = vmax.f32 %v11478, %v11587
        %v11674 = vmax.f32 %v11479, %v11589
        %v11675 = vmax.f32 %v11480, %v11591
        %v11676 = vmax.f32 %v11481, %v11593
        %v11677 = vmax.f32 %v11482, %v11595
        %v11678 = vmax.f32 %v11483, %v11597
        %v11679 = vmax.f32 %v11484, %v11599
        %v11680 = vmax.f32 %v11485, %v11601
        %v11681 = vmax.f32 %v11486, %v11603
        %v11682 = vmax.f32 %v11487, %v11605
        %v11683 = vmax.f32 %v11488, %v11607
        %v11684 = vmax.f32 %v11489, %v11609
        %v11685 = vmax.f32 %v11490, %v11611
        %v11686 = vmax.f32 %v11491, %v11613
        %v11687 = vmax.f32 %v11492, %v11615
        %v11688 = vmax.f32 %v11493, %v11617
        %v11689 = vmax.f32 %v11494, %v11619
        %v11690 = vmax.f32 %v11495, %v11621
        %v11691 = vmax.f32 %v11496, %v11623
        %v11692 = vmax.f32 %v11497, %v11625
        %v11693 = vmax.f32 %v11498, %v11627
        %v11694 = vmax.f32 %v11499, %v11629
        %v11695 = vmax.f32 %v11500, %v11631
        %v11696 = vpack.c.bf16 %v11665, %v11664
        %v11697 = vpack.c.bf16 %v11667, %v11666
        %v11698 = vpack.c.bf16 %v11669, %v11668
        %v11699 = vpack.c.bf16 %v11671, %v11670
        %v11700 = vpack.c.bf16 %v11673, %v11672
        %v11701 = vpack.c.bf16 %v11675, %v11674
        %v11702 = vpack.c.bf16 %v11677, %v11676
        %v11703 = vpack.c.bf16 %v11679, %v11678
        %v11704 = vpack.c.bf16 %v11681, %v11680
        %v11705 = vpack.c.bf16 %v11683, %v11682
        %v11706 = vpack.c.bf16 %v11685, %v11684
        %v11707 = vpack.c.bf16 %v11687, %v11686
        %v11708 = vpack.c.bf16 %v11689, %v11688
        %v11709 = vpack.c.bf16 %v11691, %v11690
        %v11710 = vpack.c.bf16 %v11693, %v11692
        %v11711 = vpack.c.bf16 %v11695, %v11694
        %v11712 = vld [vmem:[%s8] sm:$0x3]
        %v11713 = vld [vmem:[%s9] sm:$0x1]
        %v11715 = vperm.slane %v11713, 0
        %v11718 = vsel %vm639, %v11696, 0
        %v11721 = vsel %vm639, %v11697, 0
        %v11724 = vsel %vm639, %v11698, 0
        %v11727 = vsel %vm639, %v11699, 0
        %v11730 = vsel %vm639, %v11700, 0
        %v11733 = vsel %vm639, %v11701, 0
        %v11736 = vsel %vm639, %v11702, 0
        %v11739 = vsel %vm639, %v11703, 0
        %v11742 = vsel %vm639, %v11704, 0
        %v11745 = vsel %vm639, %v11705, 0
        %v11748 = vsel %vm639, %v11706, 0
        %v11751 = vsel %vm639, %v11707, 0
        %v11754 = vsel %vm639, %v11708, 0
        %v11757 = vsel %vm639, %v11709, 0
        %v11760 = vsel %vm639, %v11710, 0
        %v11763 = vsel %vm639, %v11711, 0
        %v11766 = vsel %vm688, %v11712, 0
        %11768 = vmatpush.bf16.msra.mxu0 0
        %11769 = vmatpush.bf16.msra.mxu0 0
        %11770 = vmatpush.bf16.msra.mxu0 0
        %11771 = vmatpush.bf16.msra.mxu0 0
        %11772 = vmatpush.bf16.msra.mxu0 0
        %11773 = vmatpush.bf16.msra.mxu0 0
        %11774 = vmatpush.bf16.msra.mxu0 0
        %11775 = vmatpush.bf16.msra.mxu0 %v11766
        %11776 = vmatmul.bf16.gmra.mxu0 %v11718
        %v11777 = vpop.f32.mrf.mxu0
        %v11778 = vadd.f32 %v11715, %v11777
        %v11779 = vpop.f32.mrf.mxu0
        %v11780 = vadd.f32 %v11715, %v11779
        %11781 = vmatmul.bf16.gmra.mxu0 %v11721
        %v11782 = vpop.f32.mrf.mxu0
        %v11783 = vadd.f32 %v11715, %v11782
        %v11784 = vpop.f32.mrf.mxu0
        %v11785 = vadd.f32 %v11715, %v11784
        %11786 = vmatmul.bf16.gmra.mxu0 %v11724
        %v11787 = vpop.f32.mrf.mxu0
        %v11788 = vadd.f32 %v11715, %v11787
        %v11789 = vpop.f32.mrf.mxu0
        %v11790 = vadd.f32 %v11715, %v11789
        %11791 = vmatmul.bf16.gmra.mxu0 %v11727
        %v11792 = vpop.f32.mrf.mxu0
        %v11793 = vadd.f32 %v11715, %v11792
        %v11794 = vpop.f32.mrf.mxu0
        %v11795 = vadd.f32 %v11715, %v11794
        %11796 = vmatmul.bf16.gmra.mxu0 %v11730
        %v11797 = vpop.f32.mrf.mxu0
        %v11798 = vadd.f32 %v11715, %v11797
        %v11799 = vpop.f32.mrf.mxu0
        %v11800 = vadd.f32 %v11715, %v11799
        %11801 = vmatmul.bf16.gmra.mxu0 %v11733
        %v11802 = vpop.f32.mrf.mxu0
        %v11803 = vadd.f32 %v11715, %v11802
        %v11804 = vpop.f32.mrf.mxu0
        %v11805 = vadd.f32 %v11715, %v11804
        %11806 = vmatmul.bf16.gmra.mxu0 %v11736
        %v11807 = vpop.f32.mrf.mxu0
        %v11808 = vadd.f32 %v11715, %v11807
        %v11809 = vpop.f32.mrf.mxu0
        %v11810 = vadd.f32 %v11715, %v11809
        %11811 = vmatmul.bf16.gmra.mxu0 %v11739
        %v11812 = vpop.f32.mrf.mxu0
        %v11813 = vadd.f32 %v11715, %v11812
        %v11814 = vpop.f32.mrf.mxu0
        %v11815 = vadd.f32 %v11715, %v11814
        %11816 = vmatmul.bf16.gmra.mxu0 %v11742
        %v11817 = vpop.f32.mrf.mxu0
        %v11818 = vadd.f32 %v11715, %v11817
        %v11819 = vpop.f32.mrf.mxu0
        %v11820 = vadd.f32 %v11715, %v11819
        %11821 = vmatmul.bf16.gmra.mxu0 %v11745
        %v11822 = vpop.f32.mrf.mxu0
        %v11823 = vadd.f32 %v11715, %v11822
        %v11824 = vpop.f32.mrf.mxu0
        %v11825 = vadd.f32 %v11715, %v11824
        %11826 = vmatmul.bf16.gmra.mxu0 %v11748
        %v11827 = vpop.f32.mrf.mxu0
        %v11828 = vadd.f32 %v11715, %v11827
        %v11829 = vpop.f32.mrf.mxu0
        %v11830 = vadd.f32 %v11715, %v11829
        %11831 = vmatmul.bf16.gmra.mxu0 %v11751
        %v11832 = vpop.f32.mrf.mxu0
        %v11833 = vadd.f32 %v11715, %v11832
        %v11834 = vpop.f32.mrf.mxu0
        %v11835 = vadd.f32 %v11715, %v11834
        %11836 = vmatmul.bf16.gmra.mxu0 %v11754
        %v11837 = vpop.f32.mrf.mxu0
        %v11838 = vadd.f32 %v11715, %v11837
        %v11839 = vpop.f32.mrf.mxu0
        %v11840 = vadd.f32 %v11715, %v11839
        %11841 = vmatmul.bf16.gmra.mxu0 %v11757
        %v11842 = vpop.f32.mrf.mxu0
        %v11843 = vadd.f32 %v11715, %v11842
        %v11844 = vpop.f32.mrf.mxu0
        %v11845 = vadd.f32 %v11715, %v11844
        %11846 = vmatmul.bf16.gmra.mxu0 %v11760
        %v11847 = vpop.f32.mrf.mxu0
        %v11848 = vadd.f32 %v11715, %v11847
        %v11849 = vpop.f32.mrf.mxu0
        %v11850 = vadd.f32 %v11715, %v11849
        %11851 = vmatmul.bf16.gmra.mxu0 %v11763
        %v11852 = vpop.f32.mrf.mxu0
        %v11853 = vadd.f32 %v11715, %v11852
        %v11854 = vpop.f32.mrf.mxu0
        %v11855 = vadd.f32 %v11715, %v11854
        %11856 = vdwg.mxu0
        %v11857 = vmax.f32 %v11778, 0.0
        %v11858 = vmax.f32 %v11780, 0.0
        %v11859 = vmax.f32 %v11783, 0.0
        %v11860 = vmax.f32 %v11785, 0.0
        %v11861 = vmax.f32 %v11788, 0.0
        %v11862 = vmax.f32 %v11790, 0.0
        %v11863 = vmax.f32 %v11793, 0.0
        %v11864 = vmax.f32 %v11795, 0.0
        %v11865 = vmax.f32 %v11798, 0.0
        %v11866 = vmax.f32 %v11800, 0.0
        %v11867 = vmax.f32 %v11803, 0.0
        %v11868 = vmax.f32 %v11805, 0.0
        %v11869 = vmax.f32 %v11808, 0.0
        %v11870 = vmax.f32 %v11810, 0.0
        %v11871 = vmax.f32 %v11813, 0.0
        %v11872 = vmax.f32 %v11815, 0.0
        %v11873 = vmax.f32 %v11818, 0.0
        %v11874 = vmax.f32 %v11820, 0.0
        %v11875 = vmax.f32 %v11823, 0.0
        %v11876 = vmax.f32 %v11825, 0.0
        %v11877 = vmax.f32 %v11828, 0.0
        %v11878 = vmax.f32 %v11830, 0.0
        %v11879 = vmax.f32 %v11833, 0.0
        %v11880 = vmax.f32 %v11835, 0.0
        %v11881 = vmax.f32 %v11838, 0.0
        %v11882 = vmax.f32 %v11840, 0.0
        %v11883 = vmax.f32 %v11843, 0.0
        %v11884 = vmax.f32 %v11845, 0.0
        %v11885 = vmax.f32 %v11848, 0.0
        %v11886 = vmax.f32 %v11850, 0.0
        %v11887 = vmax.f32 %v11853, 0.0
        %v11888 = vmax.f32 %v11855, 0.0
        %11889 = vst [vmem:[%s393 + $0x18] sm:$0xff] %v11857
        %11890 = vst [vmem:[%s393 + $0x38] sm:$0xff] %v11858
        %11891 = vst [vmem:[%s393 + $0x58] sm:$0xff] %v11859
        %11892 = vst [vmem:[%s393 + $0x78] sm:$0xff] %v11860
        %11893 = vst [vmem:[%s393 + $0x98] sm:$0xff] %v11861
        %11894 = vst [vmem:[%s393 + $0xb8] sm:$0xff] %v11862
        %11895 = vst [vmem:[%s393 + $0xd8] sm:$0xff] %v11863
        %11896 = vst [vmem:[%s393 + $0xf8] sm:$0xff] %v11864
        %11897 = vst [vmem:[%s393 + $0x118] sm:$0xff] %v11865
        %11898 = vst [vmem:[%s393 + $0x138] sm:$0xff] %v11866
        %11899 = vst [vmem:[%s393 + $0x158] sm:$0xff] %v11867
        %11900 = vst [vmem:[%s393 + $0x178] sm:$0xff] %v11868
        %11901 = vst [vmem:[%s393 + $0x198] sm:$0xff] %v11869
        %11902 = vst [vmem:[%s393 + $0x1b8] sm:$0xff] %v11870
        %11903 = vst [vmem:[%s393 + $0x1d8] sm:$0xff] %v11871
        %11904 = vst [vmem:[%s393 + $0x1f8] sm:$0xff] %v11872
        %11905 = vst [vmem:[%s393 + $0x218] sm:$0xff] %v11873
        %11906 = vst [vmem:[%s393 + $0x238] sm:$0xff] %v11874
        %11907 = vst [vmem:[%s393 + $0x258] sm:$0xff] %v11875
        %11908 = vst [vmem:[%s393 + $0x278] sm:$0xff] %v11876
        %11909 = vst [vmem:[%s393 + $0x298] sm:$0xff] %v11877
        %11910 = vst [vmem:[%s393 + $0x2b8] sm:$0xff] %v11878
        %11911 = vst [vmem:[%s393 + $0x2d8] sm:$0xff] %v11879
        %11912 = vst [vmem:[%s393 + $0x2f8] sm:$0xff] %v11880
        %11913 = vst [vmem:[%s393 + $0x318] sm:$0xff] %v11881
        %11914 = vst [vmem:[%s393 + $0x338] sm:$0xff] %v11882
        %11915 = vst [vmem:[%s393 + $0x358] sm:$0xff] %v11883
        %11916 = vst [vmem:[%s393 + $0x378] sm:$0xff] %v11884
        %11917 = vst [vmem:[%s393 + $0x398] sm:$0xff] %v11885
        %11918 = vst [vmem:[%s393 + $0x3b8] sm:$0xff] %v11886
        %11919 = vst [vmem:[%s393 + $0x3d8] sm:$0xff] %v11887
        %11920 = vst [vmem:[%s393 + $0x3f8] sm:$0xff] %v11888
        %p11921 = scmp.lt.s32.totalorder %s23, 1
        %s11922 = scalar_select %p11921, %s23, 1
        %s11923 = smul.addr %s11922, 128
        %s11924 = smul.addr %s11923, 8
        %s11925 = scalar_lea.vmem %s10, %s11924
        // Predicated region
        $region69: #{inception_forward.1} parent=59 // pred_check
          %p11926 = pneg %p256
        $region70: #{inception_forward.1} parent=59 // pred_check_branch
          %11928 = sbr.rel (%p11926) target = $region72
        $region71: #{inception_forward.1} parent=59 // pred_region
          _
        $region72: #{inception_forward.1} parent=59 // pred_fallthru
          _
      $region60: #{inception_forward.1} parent=5 // pred_fallthru
        _
      %p11929 = scmp.le.s32.totalorder 2, %s18
      // Predicated region
      $region73: #{inception_forward.1} parent=5 // pred_check
        %p11930 = pneg %p11929
      $region74: #{inception_forward.1} parent=5 // pred_check_branch
        %11932 = sbr.rel (%p11930) target = $region76
      $region75: #{inception_forward.1} parent=5 // pred_region
        %s11933 = ssub.s32 %s18, 2
        // Predicated region
        $region77: #{inception_forward.1} parent=75 // pred_check
          %p11934 = pneg %p262
        $region78: #{inception_forward.1} parent=75 // pred_check_branch
          %11936 = sbr.rel (%p11934) target = $region80
        $region79: #{inception_forward.1} parent=75 // pred_region
          %p11937 = scmp.lt.s32.totalorder %s24, 1
          %s11938 = scalar_select %p11937, %s24, 1
          %s11939 = smul.addr %s11938, 128
          %s11940 = smul.addr %s11939, 8
          %s11941 = scalar_lea.vmem %s10, %s11940
        $region80: #{inception_forward.1} parent=75 // pred_fallthru
          _
      $region76: #{inception_forward.1} parent=5 // pred_fallthru
        _
    $region6: #{inception_forward.1} parent=1 // loop_footer
      %s22 = sadd.s32 1, %s18
    $region7: #{inception_forward.1} parent=1 // loop_footer_branch
      %17 = sbr.rel target = $region3
    $region8: #{inception_forward.1} parent=1 // loop_exit
      _
    %11942 = vsyncpa [#allocation6], 1
    %s11943 = scalar_lea.sflag [#allocation6], 1
    %11944 = vsyncpa %s11943, 1
    %11945 = vsyncpa [#allocation8], 1

</llo_original>
